<compile_context>
chip_gen: v7x
topology: tpu7x:2x2x1
jax: 0.10.0
libtpu: 0.0.40
codegen_flags: <defaults>
</compile_context>

<pallas_src>
import functools

import jax
import jax.numpy as jnp
from jax.experimental import pallas as pl
from jax.experimental.pallas import tpu as pltpu

_VMEM_LIMIT = 32 * 1024 * 1024          # explicit scoped-VMEM limit (safe on all gens)
_CONV_TILE_BUDGET = 12 * 1024 * 1024    # per-step block budget for the conv kernel
_EW_TILE_BUDGET = 8 * 1024 * 1024       # per-step block budget for the CA-apply kernel


# ---------------------------------------------------------------------------
# Pallas kernels
# ---------------------------------------------------------------------------
def _conv3x3_kernel(*refs, relu, with_pool, with_res, tile_h, out_w):
    """Fused 3x3 conv (pad=1) + bias [+ ReLU] [+ residual add] [+ channel-sum pool].

    refs = (xa, xb, w, b, [res], out, [pool])
      xa:  (tile_h, W+2, Cin)  bf16   row band of the padded input
      xb:  (halo,   W+2, Cin)  bf16   halo band (only first 2 rows used)
      w:   (3, 3, Cin, Cout)   bf16   resident weights
      b:   (1, Cout)           f32
      res: (tile_h, W, Cout)   f32    optional residual to add
      out: (tile_h, W, Cout)   f32/bf16
      pool:(1, Cout)           f32    optional per-image channel sums
    """
    xa_ref, xb_ref, w_ref, b_ref = refs[:4]
    k = 4
    res_ref = None
    if with_res:
        res_ref = refs[k]
        k += 1
    o_ref = refs[k]
    k += 1
    pool_ref = refs[k] if with_pool else None

    xa = xa_ref[...]                                  # (tile_h, W+2, Cin) bf16
    xb = xb_ref[...]                                  # (halo,   W+2, Cin) bf16
    x = jnp.concatenate([xa, xb[:2]], axis=0)         # (tile_h+2, W+2, Cin)

    cin = x.shape[-1]
    cout = o_ref.shape[-1]
    rows = tile_h * out_w

    acc = jnp.zeros((rows, cout), jnp.float32)
    for ky in range(3):
        for kx in range(3):
            lhs = x[ky:ky + tile_h, kx:kx + out_w, :].reshape(rows, cin)
            acc = acc + jnp.dot(lhs, w_ref[ky, kx],
                                preferred_element_type=jnp.float32)

    y = acc + b_ref[...]                              # (rows, Cout) f32

    if with_pool:
        @pl.when(pl.program_id(1) == 0)
        def _init():
            pool_ref[...] = jnp.zeros_like(pool_ref)
        pool_ref[...] = pool_ref[...] + jnp.sum(y, axis=0, keepdims=True)

    if relu:
        y = jnp.maximum(y, 0.0)

    y = y.reshape(tile_h, out_w, cout)
    if with_res:
        y = y + res_ref[...]
    o_ref[...] = y.astype(o_ref.dtype)


def _ca_apply_kernel(x_ref, y_ref, pool_ref, wd_ref, bd_ref, wu_ref, bu_ref,
                     o_ref, *, inv_hw):
    """out = x + y * sigmoid(Wu.relu(Wd.(pool/HW) + bd) + bu)  (per-channel gate)."""
    s = pool_ref[...] * inv_hw                                        # (1, C)
    hid = jnp.maximum(
        jnp.dot(s, wd_ref[...], preferred_element_type=jnp.float32) + bd_ref[...],
        0.0)                                                          # (1, C/r)
    z = jnp.dot(hid, wu_ref[...], preferred_element_type=jnp.float32) + bu_ref[...]
    gate = 1.0 / (1.0 + jnp.exp(-z))                                  # sigmoid, (1, C)
    o_ref[...] = x_ref[...] + y_ref[...] * gate


# ---------------------------------------------------------------------------
# Tile-size selection (VMEM-budget driven; works for v5e/v6e/v7x)
# ---------------------------------------------------------------------------
def _pick_tile_h(h, w, cin, cout, with_res, out_bytes, budget=_CONV_TILE_BUDGET):
    divisors = sorted((d for d in range(2, h + 1) if h % d == 0), reverse=True)
    for t in divisors:
        halo = 2 if t % 2 == 0 else t
        need = (2 * t * (w + 2) * cin * 2          # xa, bf16, double-buffered
                + 2 * halo * (w + 2) * cin * 2     # xb halo block
                + 2 * t * w * cout * out_bytes     # output block
                + (2 * t * w * cout * 4 if with_res else 0)
                + 9 * cin * cout * 2 + cout * 4    # resident weights + bias
                + 3 * t * w * max(cin, cout) * 4)  # in-kernel temporaries
        if need <= budget:
            return t
    return divisors[-1] if divisors else h


def _pick_tile_m(rows, c, budget=_EW_TILE_BUDGET):
    for t in sorted([d for d in range(1, rows + 1) if rows % d == 0], reverse=True):
        if t != rows and t % 8 != 0:
            continue
        if 6 * t * c * 4 <= budget:                # x, y, out double-buffered
            return t
    return rows


# ---------------------------------------------------------------------------
# pallas_call wrappers
# ---------------------------------------------------------------------------
def _conv3x3(x, w, b, *, relu, with_pool=False, residual=None,
             out_dtype=jnp.float32):
    """x: (N, H, W, Cin) -> (N, H, W, Cout) [, (N, 1, Cout) channel sums]."""
    n, h, wdim, cin = x.shape
    cout = w.shape[-1]

    xpad = jnp.pad(x, ((0, 0), (1, 1), (1, 1), (0, 0))).astype(jnp.bfloat16)

    tile_h = _pick_tile_h(h, wdim, cin, cout, residual is not None,
                          jnp.dtype(out_dtype).itemsize)
    n_tiles = h // tile_h
    halo = 2 if tile_h % 2 == 0 else tile_h
    halo_mult = tile_h // halo

    xa_spec = pl.BlockSpec((None, tile_h, wdim + 2, cin),
                           lambda ni, ti: (ni, ti, 0, 0))
    xb_spec = pl.BlockSpec((None, halo, wdim + 2, cin),
                           lambda ni, ti: (ni, (ti + 1) * halo_mult, 0, 0))
    w_spec = pl.BlockSpec((3, 3, cin, cout), lambda ni, ti: (0, 0, 0, 0))
    b_spec = pl.BlockSpec((1, cout), lambda ni, ti: (0, 0))
    o_spec = pl.BlockSpec((None, tile_h, wdim, cout), lambda ni, ti: (ni, ti, 0, 0))

    in_specs = [xa_spec, xb_spec, w_spec, b_spec]
    inputs = [xpad, xpad, w, b]
    if residual is not None:
        in_specs.append(pl.BlockSpec((None, tile_h, wdim, cout),
                                     lambda ni, ti: (ni, ti, 0, 0)))
        inputs.append(residual)

    out_shape = jax.ShapeDtypeStruct((n, h, wdim, cout), out_dtype)
    out_specs = o_spec
    if with_pool:
        out_shape = (out_shape, jax.ShapeDtypeStruct((n, 1, cout), jnp.float32))
        out_specs = (o_spec,
                     pl.BlockSpec((None, 1, cout), lambda ni, ti: (ni, 0, 0)))

    kernel = functools.partial(_conv3x3_kernel, relu=relu, with_pool=with_pool,
                               with_res=residual is not None,
                               tile_h=tile_h, out_w=wdim)
    sem = ("parallel", "arbitrary") if with_pool else ("parallel", "parallel")

    return pl.pallas_call(
        kernel,
        grid=(n, n_tiles),
        in_specs=in_specs,
        out_specs=out_specs,
        out_shape=out_shape,
        compiler_params=pltpu.CompilerParams(
            dimension_semantics=sem, vmem_limit_bytes=_VMEM_LIMIT),
    )(*inputs)


def _ca_apply(x, y2, pool, wd, bd, wu, bu):
    """Channel attention gate + residual add: x + y2 * sigmoid(MLP(mean(y2)))."""
    n, h, w, c = x.shape
    rows = h * w
    tile_m = _pick_tile_m(rows, c)
    n_tiles = rows // tile_m

    xf = x.reshape(n, rows, c)
    yf = y2.reshape(n, rows, c)

    row_spec = pl.BlockSpec((None, tile_m, c), lambda ni, ti: (ni, ti, 0))
    pool_spec = pl.BlockSpec((None, 1, c), lambda ni, ti: (ni, 0, 0))

    def full_spec(shape):
        idx = (0,) * len(shape)
        return pl.BlockSpec(shape, lambda ni, ti: idx)

    out = pl.pallas_call(
        functools.partial(_ca_apply_kernel, inv_hw=1.0 / float(rows)),
        grid=(n, n_tiles),
        in_specs=[row_spec, row_spec, pool_spec,
                  full_spec(wd.shape), full_spec(bd.shape),
                  full_spec(wu.shape), full_spec(bu.shape)],
        out_specs=row_spec,
        out_shape=jax.ShapeDtypeStruct((n, rows, c), jnp.float32),
        compiler_params=pltpu.CompilerParams(
            dimension_semantics=("parallel", "parallel"),
            vmem_limit_bytes=_VMEM_LIMIT),
    )(xf, yf, pool, wd, bd, wu, bu)
    return out.reshape(n, h, w, c)


# ---------------------------------------------------------------------------
# ResidualGroup forward (matches the PyTorch module; kernel_size=3, bn=False,
# res_scale is stored but unused by the reference forward)
# ---------------------------------------------------------------------------
def residual_group_forward(params, x_nchw):
    x = jnp.transpose(x_nchw, (0, 2, 3, 1)).astype(jnp.float32)   # NCHW -> NHWC

    res = x
    for blk in params["rcabs"]:
        # RCAB: conv -> ReLU -> conv -> CALayer, then local residual add.
        # y1 is only ever consumed as a bf16 MXU operand -> store it in bf16.
        y1 = _conv3x3(res, blk["w1"], blk["b1"], relu=True,
                      out_dtype=jnp.bfloat16)
        y2, pool = _conv3x3(y1, blk["w2"], blk["b2"], relu=False, with_pool=True)
        res = _ca_apply(res, y2, pool, blk["wd"], blk["bd"], blk["wu"], blk["bu"])

    # Trailing conv of the group, with the group-level residual add fused in.
    out = _conv3x3(res, params["wf"], params["bf"], relu=False, residual=x)
    return jnp.transpose(out, (0, 3, 1, 2))                       # NHWC -> NCHW


# ---------------------------------------------------------------------------
# Deterministic synthetic parameters (HWIO conv weights, bf16 for the MXU)
# ---------------------------------------------------------------------------
def make_params(key, n_feat=128, reduction=16, n_rcablocks=2):
    cr = n_feat // reduction

    def conv_w(k, cin, cout):
        w = jax.random.normal(k, (3, 3, cin, cout), jnp.float32) / jnp.sqrt(9.0 * cin)
        return w.astype(jnp.bfloat16)

    rcabs = []
    for _ in range(n_rcablocks):
        key, k1, k2, k3, k4, k5, k6, k7, k8 = jax.random.split(key, 9)
        rcabs.append({
            "w1": conv_w(k1, n_feat, n_feat),
            "b1": 0.1 * jax.random.normal(k2, (1, n_feat), jnp.float32),
            "w2": conv_w(k3, n_feat, n_feat),
            "b2": 0.1 * jax.random.normal(k4, (1, n_feat), jnp.float32),
            "wd": jax.random.normal(k5, (n_feat, cr), jnp.float32) / jnp.sqrt(float(n_feat)),
            "bd": 0.1 * jax.random.normal(k6, (1, cr), jnp.float32),
            "wu": jax.random.normal(k7, (cr, n_feat), jnp.float32) / jnp.sqrt(float(cr)),
            "bu": 0.1 * jax.random.normal(k8, (1, n_feat), jnp.float32),
        })
    key, kf1, kf2 = jax.random.split(key, 3)
    return {"rcabs": rcabs,
            "wf": conv_w(kf1, n_feat, n_feat),
            "bf": 0.1 * jax.random.normal(kf2, (1, n_feat), jnp.float32)}


# ---------------------------------------------------------------------------
# Pure-JAX reference (same bf16-rounded weights, f32 math everywhere)
# ---------------------------------------------------------------------------
def _reference_forward(params, x_nchw):
    x = jnp.transpose(x_nchw, (0, 2, 3, 1)).astype(jnp.float32)

    def conv(v, w, b):
        y = jax.lax.conv_general_dilated(
            v, w.astype(jnp.float32), (1, 1), "SAME",
            dimension_numbers=("NHWC", "HWIO", "NHWC"))
        return y + b.reshape(1, 1, 1, -1)

    res = x
    for blk in params["rcabs"]:
        y1 = jnp.maximum(conv(res, blk["w1"], blk["b1"]), 0.0)
        y2 = conv(y1, blk["w2"], blk["b2"])
        s = jnp.mean(y2, axis=(1, 2))                                   # (N, C)
        hid = jnp.maximum(s @ blk["wd"] + blk["bd"], 0.0)
        gate = jax.nn.sigmoid(hid @ blk["wu"] + blk["bu"])              # (N, C)
        res = res + y2 * gate[:, None, None, :]
    out = x + conv(res, params["wf"], params["bf"])
    return jnp.transpose(out, (0, 3, 1, 2))


# ---------------------------------------------------------------------------
if __name__ == "__main__":
    key = jax.random.PRNGKey(0)
    k_params, k_x = jax.random.split(key)

    n_feat, reduction, n_rcablocks = 128, 16, 2     # lane-dense channels (128)
    batch, spatial = 2, 16

    params = make_params(k_params, n_feat=n_feat, reduction=reduction,
                         n_rcablocks=n_rcablocks)
    x = jax.random.normal(k_x, (batch, n_feat, spatial, spatial), jnp.float32)  # NCHW

    fwd = jax.jit(residual_group_forward)
    out = jax.block_until_ready(fwd(params, x))
    assert out.shape == x.shape, out.shape

    ref = jax.block_until_ready(_reference_forward(params, x))
    max_err = float(jnp.max(jnp.abs(out - ref)))
    assert max_err < 0.2, f"max abs err vs reference: {max_err}"

    print("KERNEL_OK")
</pallas_src>

<mosaic_0001>
module attributes {stable_mosaic.version = 11 : i64} {
  func.func @_conv3x3_kernel(%arg0: i32, %arg1: i32, %arg2: memref<1x16x18x128xbf16, #tpu.memory_space<vmem>>, %arg3: memref<1x2x18x128xbf16, #tpu.memory_space<vmem>>, %arg4: memref<3x3x128x128xbf16, #tpu.memory_space<vmem>>, %arg5: memref<1x128xf32, #tpu.memory_space<vmem>>, %arg6: memref<1x16x16x128xbf16, #tpu.memory_space<vmem>>) attributes {dimension_semantics = [#tpu.dimension_semantics<parallel>, #tpu.dimension_semantics<parallel>], iteration_bounds = array<i64: 2, 1>, scalar_prefetch = 0 : i64, scratch_operands = 0 : i64, tpu.core_type = #tpu.core_type<tc>, window_params = [{transform_indices = @transform_0, window_bounds = array<i64: 1, 16, 18, 128>}, {transform_indices = @transform_1, window_bounds = array<i64: 1, 2, 18, 128>}, {pipeline_mode = #tpu.pipeline_mode<synchronous>, transform_indices = @transform_2, window_bounds = array<i64: 3, 3, 128, 128>}, {pipeline_mode = #tpu.pipeline_mode<synchronous>, transform_indices = @transform_3, window_bounds = array<i64: 1, 128>}, {transform_indices = @transform_4, window_bounds = array<i64: 1, 16, 16, 128>}]} {
    %c0 = arith.constant 0 : index
    %c0_0 = arith.constant 0 : index
    %c0_1 = arith.constant 0 : index
    %c0_2 = arith.constant 0 : index
    %0 = vector.load %arg2[%c0, %c0_0, %c0_1, %c0_2] : memref<1x16x18x128xbf16, #tpu.memory_space<vmem>>, vector<1x16x18x128xbf16>
    %1 = vector.shape_cast %0 : vector<1x16x18x128xbf16> to vector<16x18x128xbf16>
    %c0_3 = arith.constant 0 : index
    %c0_4 = arith.constant 0 : index
    %c0_5 = arith.constant 0 : index
    %c0_6 = arith.constant 0 : index
    %2 = vector.load %arg3[%c0_3, %c0_4, %c0_5, %c0_6] : memref<1x2x18x128xbf16, #tpu.memory_space<vmem>>, vector<1x2x18x128xbf16>
    %3 = vector.shape_cast %2 : vector<1x2x18x128xbf16> to vector<2x18x128xbf16>
    %4 = tpu.concatenate %1, %3 in 0 : vector<16x18x128xbf16>, vector<2x18x128xbf16> -> vector<18x18x128xbf16>
    %cst = arith.constant 0.000000e+00 : f32
    %5 = vector.broadcast %cst : f32 to vector<256x128xf32>
    %6 = vector.extract_strided_slice %4 {offsets = [0, 0, 0], sizes = [16, 16, 128], strides = [1, 1, 1]} : vector<18x18x128xbf16> to vector<16x16x128xbf16>
    %7 = vector.shape_cast %6 : vector<16x16x128xbf16> to vector<256x128xbf16>
    %c0_7 = arith.constant 0 : index
    %c0_8 = arith.constant 0 : index
    %c0_9 = arith.constant 0 : index
    %c0_10 = arith.constant 0 : index
    %8 = vector.load %arg4[%c0_7, %c0_8, %c0_9, %c0_10] : memref<3x3x128x128xbf16, #tpu.memory_space<vmem>>, vector<1x1x128x128xbf16>
    %9 = vector.shape_cast %8 : vector<1x1x128x128xbf16> to vector<128x128xbf16>
    %cst_11 = arith.constant dense<0.000000e+00> : vector<256x128xf32>
    %10 = tpu.matmul %7, %9, %cst_11 {dimension_numbers = #tpu.dot_dimension_numbers<[1], [0], [0], [1], [0, 0, 1, 1], [], []>} : vector<256x128xbf16>, vector<128x128xbf16>, vector<256x128xf32> -> vector<256x128xf32>
    %11 = arith.addf %5, %10 : vector<256x128xf32>
    %12 = vector.extract_strided_slice %4 {offsets = [0, 1, 0], sizes = [16, 16, 128], strides = [1, 1, 1]} : vector<18x18x128xbf16> to vector<16x16x128xbf16>
    %13 = vector.shape_cast %12 : vector<16x16x128xbf16> to vector<256x128xbf16>
    %c0_12 = arith.constant 0 : index
    %c1 = arith.constant 1 : index
    %c0_13 = arith.constant 0 : index
    %c0_14 = arith.constant 0 : index
    %14 = vector.load %arg4[%c0_12, %c1, %c0_13, %c0_14] : memref<3x3x128x128xbf16, #tpu.memory_space<vmem>>, vector<1x1x128x128xbf16>
    %15 = vector.shape_cast %14 : vector<1x1x128x128xbf16> to vector<128x128xbf16>
    %cst_15 = arith.constant dense<0.000000e+00> : vector<256x128xf32>
    %16 = tpu.matmul %13, %15, %cst_15 {dimension_numbers = #tpu.dot_dimension_numbers<[1], [0], [0], [1], [0, 0, 1, 1], [], []>} : vector<256x128xbf16>, vector<128x128xbf16>, vector<256x128xf32> -> vector<256x128xf32>
    %17 = arith.addf %11, %16 : vector<256x128xf32>
    %18 = vector.extract_strided_slice %4 {offsets = [0, 2, 0], sizes = [16, 16, 128], strides = [1, 1, 1]} : vector<18x18x128xbf16> to vector<16x16x128xbf16>
    %19 = vector.shape_cast %18 : vector<16x16x128xbf16> to vector<256x128xbf16>
    %c0_16 = arith.constant 0 : index
    %c2 = arith.constant 2 : index
    %c0_17 = arith.constant 0 : index
    %c0_18 = arith.constant 0 : index
    %20 = vector.load %arg4[%c0_16, %c2, %c0_17, %c0_18] : memref<3x3x128x128xbf16, #tpu.memory_space<vmem>>, vector<1x1x128x128xbf16>
    %21 = vector.shape_cast %20 : vector<1x1x128x128xbf16> to vector<128x128xbf16>
    %cst_19 = arith.constant dense<0.000000e+00> : vector<256x128xf32>
    %22 = tpu.matmul %19, %21, %cst_19 {dimension_numbers = #tpu.dot_dimension_numbers<[1], [0], [0], [1], [0, 0, 1, 1], [], []>} : vector<256x128xbf16>, vector<128x128xbf16>, vector<256x128xf32> -> vector<256x128xf32>
    %23 = arith.addf %17, %22 : vector<256x128xf32>
    %24 = vector.extract_strided_slice %4 {offsets = [1, 0, 0], sizes = [16, 16, 128], strides = [1, 1, 1]} : vector<18x18x128xbf16> to vector<16x16x128xbf16>
    %25 = vector.shape_cast %24 : vector<16x16x128xbf16> to vector<256x128xbf16>
    %c1_20 = arith.constant 1 : index
    %c0_21 = arith.constant 0 : index
    %c0_22 = arith.constant 0 : index
    %c0_23 = arith.constant 0 : index
    %26 = vector.load %arg4[%c1_20, %c0_21, %c0_22, %c0_23] : memref<3x3x128x128xbf16, #tpu.memory_space<vmem>>, vector<1x1x128x128xbf16>
    %27 = vector.shape_cast %26 : vector<1x1x128x128xbf16> to vector<128x128xbf16>
    %cst_24 = arith.constant dense<0.000000e+00> : vector<256x128xf32>
    %28 = tpu.matmul %25, %27, %cst_24 {dimension_numbers = #tpu.dot_dimension_numbers<[1], [0], [0], [1], [0, 0, 1, 1], [], []>} : vector<256x128xbf16>, vector<128x128xbf16>, vector<256x128xf32> -> vector<256x128xf32>
    %29 = arith.addf %23, %28 : vector<256x128xf32>
    %30 = vector.extract_strided_slice %4 {offsets = [1, 1, 0], sizes = [16, 16, 128], strides = [1, 1, 1]} : vector<18x18x128xbf16> to vector<16x16x128xbf16>
    %31 = vector.shape_cast %30 : vector<16x16x128xbf16> to vector<256x128xbf16>
    %c1_25 = arith.constant 1 : index
    %c1_26 = arith.constant 1 : index
    %c0_27 = arith.constant 0 : index
    %c0_28 = arith.constant 0 : index
    %32 = vector.load %arg4[%c1_25, %c1_26, %c0_27, %c0_28] : memref<3x3x128x128xbf16, #tpu.memory_space<vmem>>, vector<1x1x128x128xbf16>
    %33 = vector.shape_cast %32 : vector<1x1x128x128xbf16> to vector<128x128xbf16>
    %cst_29 = arith.constant dense<0.000000e+00> : vector<256x128xf32>
    %34 = tpu.matmul %31, %33, %cst_29 {dimension_numbers = #tpu.dot_dimension_numbers<[1], [0], [0], [1], [0, 0, 1, 1], [], []>} : vector<256x128xbf16>, vector<128x128xbf16>, vector<256x128xf32> -> vector<256x128xf32>
    %35 = arith.addf %29, %34 : vector<256x128xf32>
    %36 = vector.extract_strided_slice %4 {offsets = [1, 2, 0], sizes = [16, 16, 128], strides = [1, 1, 1]} : vector<18x18x128xbf16> to vector<16x16x128xbf16>
    %37 = vector.shape_cast %36 : vector<16x16x128xbf16> to vector<256x128xbf16>
    %c1_30 = arith.constant 1 : index
    %c2_31 = arith.constant 2 : index
    %c0_32 = arith.constant 0 : index
    %c0_33 = arith.constant 0 : index
    %38 = vector.load %arg4[%c1_30, %c2_31, %c0_32, %c0_33] : memref<3x3x128x128xbf16, #tpu.memory_space<vmem>>, vector<1x1x128x128xbf16>
    %39 = vector.shape_cast %38 : vector<1x1x128x128xbf16> to vector<128x128xbf16>
    %cst_34 = arith.constant dense<0.000000e+00> : vector<256x128xf32>
    %40 = tpu.matmul %37, %39, %cst_34 {dimension_numbers = #tpu.dot_dimension_numbers<[1], [0], [0], [1], [0, 0, 1, 1], [], []>} : vector<256x128xbf16>, vector<128x128xbf16>, vector<256x128xf32> -> vector<256x128xf32>
    %41 = arith.addf %35, %40 : vector<256x128xf32>
    %42 = vector.extract_strided_slice %4 {offsets = [2, 0, 0], sizes = [16, 16, 128], strides = [1, 1, 1]} : vector<18x18x128xbf16> to vector<16x16x128xbf16>
    %43 = vector.shape_cast %42 : vector<16x16x128xbf16> to vector<256x128xbf16>
    %c2_35 = arith.constant 2 : index
    %c0_36 = arith.constant 0 : index
    %c0_37 = arith.constant 0 : index
    %c0_38 = arith.constant 0 : index
    %44 = vector.load %arg4[%c2_35, %c0_36, %c0_37, %c0_38] : memref<3x3x128x128xbf16, #tpu.memory_space<vmem>>, vector<1x1x128x128xbf16>
    %45 = vector.shape_cast %44 : vector<1x1x128x128xbf16> to vector<128x128xbf16>
    %cst_39 = arith.constant dense<0.000000e+00> : vector<256x128xf32>
    %46 = tpu.matmul %43, %45, %cst_39 {dimension_numbers = #tpu.dot_dimension_numbers<[1], [0], [0], [1], [0, 0, 1, 1], [], []>} : vector<256x128xbf16>, vector<128x128xbf16>, vector<256x128xf32> -> vector<256x128xf32>
    %47 = arith.addf %41, %46 : vector<256x128xf32>
    %48 = vector.extract_strided_slice %4 {offsets = [2, 1, 0], sizes = [16, 16, 128], strides = [1, 1, 1]} : vector<18x18x128xbf16> to vector<16x16x128xbf16>
    %49 = vector.shape_cast %48 : vector<16x16x128xbf16> to vector<256x128xbf16>
    %c2_40 = arith.constant 2 : index
    %c1_41 = arith.constant 1 : index
    %c0_42 = arith.constant 0 : index
    %c0_43 = arith.constant 0 : index
    %50 = vector.load %arg4[%c2_40, %c1_41, %c0_42, %c0_43] : memref<3x3x128x128xbf16, #tpu.memory_space<vmem>>, vector<1x1x128x128xbf16>
    %51 = vector.shape_cast %50 : vector<1x1x128x128xbf16> to vector<128x128xbf16>
    %cst_44 = arith.constant dense<0.000000e+00> : vector<256x128xf32>
    %52 = tpu.matmul %49, %51, %cst_44 {dimension_numbers = #tpu.dot_dimension_numbers<[1], [0], [0], [1], [0, 0, 1, 1], [], []>} : vector<256x128xbf16>, vector<128x128xbf16>, vector<256x128xf32> -> vector<256x128xf32>
    %53 = arith.addf %47, %52 : vector<256x128xf32>
    %54 = vector.extract_strided_slice %4 {offsets = [2, 2, 0], sizes = [16, 16, 128], strides = [1, 1, 1]} : vector<18x18x128xbf16> to vector<16x16x128xbf16>
    %55 = vector.shape_cast %54 : vector<16x16x128xbf16> to vector<256x128xbf16>
    %c2_45 = arith.constant 2 : index
    %c2_46 = arith.constant 2 : index
    %c0_47 = arith.constant 0 : index
    %c0_48 = arith.constant 0 : index
    %56 = vector.load %arg4[%c2_45, %c2_46, %c0_47, %c0_48] : memref<3x3x128x128xbf16, #tpu.memory_space<vmem>>, vector<1x1x128x128xbf16>
    %57 = vector.shape_cast %56 : vector<1x1x128x128xbf16> to vector<128x128xbf16>
    %cst_49 = arith.constant dense<0.000000e+00> : vector<256x128xf32>
    %58 = tpu.matmul %55, %57, %cst_49 {dimension_numbers = #tpu.dot_dimension_numbers<[1], [0], [0], [1], [0, 0, 1, 1], [], []>} : vector<256x128xbf16>, vector<128x128xbf16>, vector<256x128xf32> -> vector<256x128xf32>
    %59 = arith.addf %53, %58 : vector<256x128xf32>
    %c0_50 = arith.constant 0 : index
    %c0_51 = arith.constant 0 : index
    %60 = vector.load %arg5[%c0_50, %c0_51] : memref<1x128xf32, #tpu.memory_space<vmem>>, vector<1x128xf32>
    %61 = vector.broadcast %60 : vector<1x128xf32> to vector<256x128xf32>
    %62 = arith.addf %59, %61 : vector<256x128xf32>
    %cst_52 = arith.constant 0.000000e+00 : f32
    %63 = vector.broadcast %cst_52 : f32 to vector<256x128xf32>
    %64 = arith.maximumf %62, %63 : vector<256x128xf32>
    %65 = vector.shape_cast %64 : vector<256x128xf32> to vector<16x16x128xf32>
    %66 = arith.truncf %65 : vector<16x16x128xf32> to vector<16x16x128xbf16>
    %c0_53 = arith.constant 0 : index
    %c0_54 = arith.constant 0 : index
    %c0_55 = arith.constant 0 : index
    %c0_56 = arith.constant 0 : index
    %67 = vector.load %arg6[%c0_53, %c0_54, %c0_55, %c0_56] : memref<1x16x16x128xbf16, #tpu.memory_space<vmem>>, vector<1x16x16x128xbf16>
    %68 = vector.shape_cast %67 : vector<1x16x16x128xbf16> to vector<16x16x128xbf16>
    %69 = vector.shape_cast %66 : vector<16x16x128xbf16> to vector<1x16x16x128xbf16>
    tpu.vector_store %arg6[%c0_53, %c0_54, %c0_55, %c0_56], %69 {strides = array<i32>} : memref<1x16x16x128xbf16, #tpu.memory_space<vmem>>, vector<1x16x16x128xbf16>,
    return
  }
  func.func @transform_0(%arg0: i32, %arg1: i32) -> (i32, i32, i32, i32) {
    %c0_i32 = arith.constant 0 : i32
    %c0_i32_0 = arith.constant 0 : i32
    %c0_i32_1 = arith.constant 0 : i32
    return %arg0, %arg1, %c0_i32, %c0_i32_0 : i32, i32, i32, i32
  }
  func.func @transform_1(%arg0: i32, %arg1: i32) -> (i32, i32, i32, i32) {
    %c1_i32 = arith.constant 1 : i32
    %0 = arith.addi %arg1, %c1_i32 : i32
    %c8_i32 = arith.constant 8 : i32
    %1 = arith.muli %0, %c8_i32 : i32
    %c0_i32 = arith.constant 0 : i32
    %c0_i32_0 = arith.constant 0 : i32
    %c0_i32_1 = arith.constant 0 : i32
    return %arg0, %1, %c0_i32, %c0_i32_0 : i32, i32, i32, i32
  }
  func.func @transform_2(%arg0: i32, %arg1: i32) -> (i32, i32, i32, i32) {
    %c0_i32 = arith.constant 0 : i32
    %c0_i32_0 = arith.constant 0 : i32
    %c0_i32_1 = arith.constant 0 : i32
    %c0_i32_2 = arith.constant 0 : i32
    %c0_i32_3 = arith.constant 0 : i32
    return %c0_i32, %c0_i32_0, %c0_i32_1, %c0_i32_2 : i32, i32, i32, i32
  }
  func.func @transform_3(%arg0: i32, %arg1: i32) -> (i32, i32) {
    %c0_i32 = arith.constant 0 : i32
    %c0_i32_0 = arith.constant 0 : i32
    %c0_i32_1 = arith.constant 0 : i32
    return %c0_i32, %c0_i32_0 : i32, i32
  }
  func.func @transform_4(%arg0: i32, %arg1: i32) -> (i32, i32, i32, i32) {
    %c0_i32 = arith.constant 0 : i32
    %c0_i32_0 = arith.constant 0 : i32
    %c0_i32_1 = arith.constant 0 : i32
    return %arg0, %arg1, %c0_i32, %c0_i32_0 : i32, i32, i32, i32
  }
}

module attributes {stable_mosaic.version = 11 : i64} {
  func.func @_conv3x3_kernel(%arg0: i32, %arg1: i32, %arg2: memref<1x16x18x128xbf16, #tpu.memory_space<vmem>>, %arg3: memref<1x2x18x128xbf16, #tpu.memory_space<vmem>>, %arg4: memref<3x3x128x128xbf16, #tpu.memory_space<vmem>>, %arg5: memref<1x128xf32, #tpu.memory_space<vmem>>, %arg6: memref<1x16x16x128xf32, #tpu.memory_space<vmem>>, %arg7: memref<1x1x128xf32, #tpu.memory_space<vmem>>) attributes {dimension_semantics = [#tpu.dimension_semantics<parallel>, #tpu.dimension_semantics<arbitrary>], iteration_bounds = array<i64: 2, 1>, scalar_prefetch = 0 : i64, scratch_operands = 0 : i64, tpu.core_type = #tpu.core_type<tc>, window_params = [{transform_indices = @transform_0, window_bounds = array<i64: 1, 16, 18, 128>}, {transform_indices = @transform_1, window_bounds = array<i64: 1, 2, 18, 128>}, {pipeline_mode = #tpu.pipeline_mode<synchronous>, transform_indices = @transform_2, window_bounds = array<i64: 3, 3, 128, 128>}, {pipeline_mode = #tpu.pipeline_mode<synchronous>, transform_indices = @transform_3, window_bounds = array<i64: 1, 128>}, {transform_indices = @transform_4, window_bounds = array<i64: 1, 16, 16, 128>}, {transform_indices = @transform_5, window_bounds = array<i64: 1, 1, 128>}]} {
    %c0 = arith.constant 0 : index
    %c0_0 = arith.constant 0 : index
    %c0_1 = arith.constant 0 : index
    %c0_2 = arith.constant 0 : index
    %0 = vector.load %arg2[%c0, %c0_0, %c0_1, %c0_2] : memref<1x16x18x128xbf16, #tpu.memory_space<vmem>>, vector<1x16x18x128xbf16>
    %1 = vector.shape_cast %0 : vector<1x16x18x128xbf16> to vector<16x18x128xbf16>
    %c0_3 = arith.constant 0 : index
    %c0_4 = arith.constant 0 : index
    %c0_5 = arith.constant 0 : index
    %c0_6 = arith.constant 0 : index
    %2 = vector.load %arg3[%c0_3, %c0_4, %c0_5, %c0_6] : memref<1x2x18x128xbf16, #tpu.memory_space<vmem>>, vector<1x2x18x128xbf16>
    %3 = vector.shape_cast %2 : vector<1x2x18x128xbf16> to vector<2x18x128xbf16>
    %4 = tpu.concatenate %1, %3 in 0 : vector<16x18x128xbf16>, vector<2x18x128xbf16> -> vector<18x18x128xbf16>
    %cst = arith.constant 0.000000e+00 : f32
    %5 = vector.broadcast %cst : f32 to vector<256x128xf32>
    %6 = vector.extract_strided_slice %4 {offsets = [0, 0, 0], sizes = [16, 16, 128], strides = [1, 1, 1]} : vector<18x18x128xbf16> to vector<16x16x128xbf16>
    %7 = vector.shape_cast %6 : vector<16x16x128xbf16> to vector<256x128xbf16>
    %c0_7 = arith.constant 0 : index
    %c0_8 = arith.constant 0 : index
    %c0_9 = arith.constant 0 : index
    %c0_10 = arith.constant 0 : index
    %8 = vector.load %arg4[%c0_7, %c0_8, %c0_9, %c0_10] : memref<3x3x128x128xbf16, #tpu.memory_space<vmem>>, vector<1x1x128x128xbf16>
    %9 = vector.shape_cast %8 : vector<1x1x128x128xbf16> to vector<128x128xbf16>
    %cst_11 = arith.constant dense<0.000000e+00> : vector<256x128xf32>
    %10 = tpu.matmul %7, %9, %cst_11 {dimension_numbers = #tpu.dot_dimension_numbers<[1], [0], [0], [1], [0, 0, 1, 1], [], []>} : vector<256x128xbf16>, vector<128x128xbf16>, vector<256x128xf32> -> vector<256x128xf32>
    %11 = arith.addf %5, %10 : vector<256x128xf32>
    %12 = vector.extract_strided_slice %4 {offsets = [0, 1, 0], sizes = [16, 16, 128], strides = [1, 1, 1]} : vector<18x18x128xbf16> to vector<16x16x128xbf16>
    %13 = vector.shape_cast %12 : vector<16x16x128xbf16> to vector<256x128xbf16>
    %c0_12 = arith.constant 0 : index
    %c1 = arith.constant 1 : index
    %c0_13 = arith.constant 0 : index
    %c0_14 = arith.constant 0 : index
    %14 = vector.load %arg4[%c0_12, %c1, %c0_13, %c0_14] : memref<3x3x128x128xbf16, #tpu.memory_space<vmem>>, vector<1x1x128x128xbf16>
    %15 = vector.shape_cast %14 : vector<1x1x128x128xbf16> to vector<128x128xbf16>
    %cst_15 = arith.constant dense<0.000000e+00> : vector<256x128xf32>
    %16 = tpu.matmul %13, %15, %cst_15 {dimension_numbers = #tpu.dot_dimension_numbers<[1], [0], [0], [1], [0, 0, 1, 1], [], []>} : vector<256x128xbf16>, vector<128x128xbf16>, vector<256x128xf32> -> vector<256x128xf32>
    %17 = arith.addf %11, %16 : vector<256x128xf32>
    %18 = vector.extract_strided_slice %4 {offsets = [0, 2, 0], sizes = [16, 16, 128], strides = [1, 1, 1]} : vector<18x18x128xbf16> to vector<16x16x128xbf16>
    %19 = vector.shape_cast %18 : vector<16x16x128xbf16> to vector<256x128xbf16>
    %c0_16 = arith.constant 0 : index
    %c2 = arith.constant 2 : index
    %c0_17 = arith.constant 0 : index
    %c0_18 = arith.constant 0 : index
    %20 = vector.load %arg4[%c0_16, %c2, %c0_17, %c0_18] : memref<3x3x128x128xbf16, #tpu.memory_space<vmem>>, vector<1x1x128x128xbf16>
    %21 = vector.shape_cast %20 : vector<1x1x128x128xbf16> to vector<128x128xbf16>
    %cst_19 = arith.constant dense<0.000000e+00> : vector<256x128xf32>
    %22 = tpu.matmul %19, %21, %cst_19 {dimension_numbers = #tpu.dot_dimension_numbers<[1], [0], [0], [1], [0, 0, 1, 1], [], []>} : vector<256x128xbf16>, vector<128x128xbf16>, vector<256x128xf32> -> vector<256x128xf32>
    %23 = arith.addf %17, %22 : vector<256x128xf32>
    %24 = vector.extract_strided_slice %4 {offsets = [1, 0, 0], sizes = [16, 16, 128], strides = [1, 1, 1]} : vector<18x18x128xbf16> to vector<16x16x128xbf16>
    %25 = vector.shape_cast %24 : vector<16x16x128xbf16> to vector<256x128xbf16>
    %c1_20 = arith.constant 1 : index
    %c0_21 = arith.constant 0 : index
    %c0_22 = arith.constant 0 : index
    %c0_23 = arith.constant 0 : index
    %26 = vector.load %arg4[%c1_20, %c0_21, %c0_22, %c0_23] : memref<3x3x128x128xbf16, #tpu.memory_space<vmem>>, vector<1x1x128x128xbf16>
    %27 = vector.shape_cast %26 : vector<1x1x128x128xbf16> to vector<128x128xbf16>
    %cst_24 = arith.constant dense<0.000000e+00> : vector<256x128xf32>
    %28 = tpu.matmul %25, %27, %cst_24 {dimension_numbers = #tpu.dot_dimension_numbers<[1], [0], [0], [1], [0, 0, 1, 1], [], []>} : vector<256x128xbf16>, vector<128x128xbf16>, vector<256x128xf32> -> vector<256x128xf32>
    %29 = arith.addf %23, %28 : vector<256x128xf32>
    %30 = vector.extract_strided_slice %4 {offsets = [1, 1, 0], sizes = [16, 16, 128], strides = [1, 1, 1]} : vector<18x18x128xbf16> to vector<16x16x128xbf16>
    %31 = vector.shape_cast %30 : vector<16x16x128xbf16> to vector<256x128xbf16>
    %c1_25 = arith.constant 1 : index
    %c1_26 = arith.constant 1 : index
    %c0_27 = arith.constant 0 : index
    %c0_28 = arith.constant 0 : index
    %32 = vector.load %arg4[%c1_25, %c1_26, %c0_27, %c0_28] : memref<3x3x128x128xbf16, #tpu.memory_space<vmem>>, vector<1x1x128x128xbf16>
    %33 = vector.shape_cast %32 : vector<1x1x128x128xbf16> to vector<128x128xbf16>
    %cst_29 = arith.constant dense<0.000000e+00> : vector<256x128xf32>
    %34 = tpu.matmul %31, %33, %cst_29 {dimension_numbers = #tpu.dot_dimension_numbers<[1], [0], [0], [1], [0, 0, 1, 1], [], []>} : vector<256x128xbf16>, vector<128x128xbf16>, vector<256x128xf32> -> vector<256x128xf32>
    %35 = arith.addf %29, %34 : vector<256x128xf32>
    %36 = vector.extract_strided_slice %4 {offsets = [1, 2, 0], sizes = [16, 16, 128], strides = [1, 1, 1]} : vector<18x18x128xbf16> to vector<16x16x128xbf16>
    %37 = vector.shape_cast %36 : vector<16x16x128xbf16> to vector<256x128xbf16>
    %c1_30 = arith.constant 1 : index
    %c2_31 = arith.constant 2 : index
    %c0_32 = arith.constant 0 : index
    %c0_33 = arith.constant 0 : index
    %38 = vector.load %arg4[%c1_30, %c2_31, %c0_32, %c0_33] : memref<3x3x128x128xbf16, #tpu.memory_space<vmem>>, vector<1x1x128x128xbf16>
    %39 = vector.shape_cast %38 : vector<1x1x128x128xbf16> to vector<128x128xbf16>
    %cst_34 = arith.constant dense<0.000000e+00> : vector<256x128xf32>
    %40 = tpu.matmul %37, %39, %cst_34 {dimension_numbers = #tpu.dot_dimension_numbers<[1], [0], [0], [1], [0, 0, 1, 1], [], []>} : vector<256x128xbf16>, vector<128x128xbf16>, vector<256x128xf32> -> vector<256x128xf32>
    %41 = arith.addf %35, %40 : vector<256x128xf32>
    %42 = vector.extract_strided_slice %4 {offsets = [2, 0, 0], sizes = [16, 16, 128], strides = [1, 1, 1]} : vector<18x18x128xbf16> to vector<16x16x128xbf16>
    %43 = vector.shape_cast %42 : vector<16x16x128xbf16> to vector<256x128xbf16>
    %c2_35 = arith.constant 2 : index
    %c0_36 = arith.constant 0 : index
    %c0_37 = arith.constant 0 : index
    %c0_38 = arith.constant 0 : index
    %44 = vector.load %arg4[%c2_35, %c0_36, %c0_37, %c0_38] : memref<3x3x128x128xbf16, #tpu.memory_space<vmem>>, vector<1x1x128x128xbf16>
    %45 = vector.shape_cast %44 : vector<1x1x128x128xbf16> to vector<128x128xbf16>
    %cst_39 = arith.constant dense<0.000000e+00> : vector<256x128xf32>
    %46 = tpu.matmul %43, %45, %cst_39 {dimension_numbers = #tpu.dot_dimension_numbers<[1], [0], [0], [1], [0, 0, 1, 1], [], []>} : vector<256x128xbf16>, vector<128x128xbf16>, vector<256x128xf32> -> vector<256x128xf32>
    %47 = arith.addf %41, %46 : vector<256x128xf32>
    %48 = vector.extract_strided_slice %4 {offsets = [2, 1, 0], sizes = [16, 16, 128], strides = [1, 1, 1]} : vector<18x18x128xbf16> to vector<16x16x128xbf16>
    %49 = vector.shape_cast %48 : vector<16x16x128xbf16> to vector<256x128xbf16>
    %c2_40 = arith.constant 2 : index
    %c1_41 = arith.constant 1 : index
    %c0_42 = arith.constant 0 : index
    %c0_43 = arith.constant 0 : index
    %50 = vector.load %arg4[%c2_40, %c1_41, %c0_42, %c0_43] : memref<3x3x128x128xbf16, #tpu.memory_space<vmem>>, vector<1x1x128x128xbf16>
    %51 = vector.shape_cast %50 : vector<1x1x128x128xbf16> to vector<128x128xbf16>
    %cst_44 = arith.constant dense<0.000000e+00> : vector<256x128xf32>
    %52 = tpu.matmul %49, %51, %cst_44 {dimension_numbers = #tpu.dot_dimension_numbers<[1], [0], [0], [1], [0, 0, 1, 1], [], []>} : vector<256x128xbf16>, vector<128x128xbf16>, vector<256x128xf32> -> vector<256x128xf32>
    %53 = arith.addf %47, %52 : vector<256x128xf32>
    %54 = vector.extract_strided_slice %4 {offsets = [2, 2, 0], sizes = [16, 16, 128], strides = [1, 1, 1]} : vector<18x18x128xbf16> to vector<16x16x128xbf16>
    %55 = vector.shape_cast %54 : vector<16x16x128xbf16> to vector<256x128xbf16>
    %c2_45 = arith.constant 2 : index
    %c2_46 = arith.constant 2 : index
    %c0_47 = arith.constant 0 : index
    %c0_48 = arith.constant 0 : index
    %56 = vector.load %arg4[%c2_45, %c2_46, %c0_47, %c0_48] : memref<3x3x128x128xbf16, #tpu.memory_space<vmem>>, vector<1x1x128x128xbf16>
    %57 = vector.shape_cast %56 : vector<1x1x128x128xbf16> to vector<128x128xbf16>
    %cst_49 = arith.constant dense<0.000000e+00> : vector<256x128xf32>
    %58 = tpu.matmul %55, %57, %cst_49 {dimension_numbers = #tpu.dot_dimension_numbers<[1], [0], [0], [1], [0, 0, 1, 1], [], []>} : vector<256x128xbf16>, vector<128x128xbf16>, vector<256x128xf32> -> vector<256x128xf32>
    %59 = arith.addf %53, %58 : vector<256x128xf32>
    %c0_50 = arith.constant 0 : index
    %c0_51 = arith.constant 0 : index
    %60 = vector.load %arg5[%c0_50, %c0_51] : memref<1x128xf32, #tpu.memory_space<vmem>>, vector<1x128xf32>
    %61 = vector.broadcast %60 : vector<1x128xf32> to vector<256x128xf32>
    %62 = arith.addf %59, %61 : vector<256x128xf32>
    %c0_i32 = arith.constant 0 : i32
    %63 = arith.cmpi eq, %arg1, %c0_i32 : i32
    %64 = arith.extui %63 : i1 to i32
    %c0_i32_52 = arith.constant 0 : i32
    %65 = arith.cmpi ne, %64, %c0_i32_52 : i32
    scf.if %65 {
      %cst_64 = arith.constant 0.000000e+00 : f32
      %78 = vector.broadcast %cst_64 : f32 to vector<1x128xf32>
      %c0_65 = arith.constant 0 : index
      %c0_66 = arith.constant 0 : index
      %c0_67 = arith.constant 0 : index
      %79 = vector.load %arg7[%c0_65, %c0_66, %c0_67] : memref<1x1x128xf32, #tpu.memory_space<vmem>>, vector<1x1x128xf32>
      %80 = vector.shape_cast %79 : vector<1x1x128xf32> to vector<1x128xf32>
      %81 = vector.shape_cast %78 : vector<1x128xf32> to vector<1x1x128xf32>
      tpu.vector_store %arg7[%c0_65, %c0_66, %c0_67], %81 {strides = array<i32>} : memref<1x1x128xf32, #tpu.memory_space<vmem>>, vector<1x1x128xf32>,
    } else {
    }
    %c0_53 = arith.constant 0 : index
    %c0_54 = arith.constant 0 : index
    %c0_55 = arith.constant 0 : index
    %66 = vector.load %arg7[%c0_53, %c0_54, %c0_55] : memref<1x1x128xf32, #tpu.memory_space<vmem>>, vector<1x1x128xf32>
    %67 = vector.shape_cast %66 : vector<1x1x128xf32> to vector<1x128xf32>
    %cst_56 = arith.constant dense<0.000000e+00> : vector<128xf32>
    %68 = vector.multi_reduction <add>, %62, %cst_56 [0] : vector<256x128xf32> to vector<128xf32>
    %69 = vector.shape_cast %68 : vector<128xf32> to vector<1x128xf32>
    %70 = arith.addf %67, %69 : vector<1x128xf32>
    %c0_57 = arith.constant 0 : index
    %c0_58 = arith.constant 0 : index
    %c0_59 = arith.constant 0 : index
    %71 = vector.load %arg7[%c0_57, %c0_58, %c0_59] : memref<1x1x128xf32, #tpu.memory_space<vmem>>, vector<1x1x128xf32>
    %72 = vector.shape_cast %71 : vector<1x1x128xf32> to vector<1x128xf32>
    %73 = vector.shape_cast %70 : vector<1x128xf32> to vector<1x1x128xf32>
    tpu.vector_store %arg7[%c0_57, %c0_58, %c0_59], %73 {strides = array<i32>} : memref<1x1x128xf32, #tpu.memory_space<vmem>>, vector<1x1x128xf32>,
    %74 = vector.shape_cast %62 : vector<256x128xf32> to vector<16x16x128xf32>
    %c0_60 = arith.constant 0 : index
    %c0_61 = arith.constant 0 : index
    %c0_62 = arith.constant 0 : index
    %c0_63 = arith.constant 0 : index
    %75 = vector.load %arg6[%c0_60, %c0_61, %c0_62, %c0_63] : memref<1x16x16x128xf32, #tpu.memory_space<vmem>>, vector<1x16x16x128xf32>
    %76 = vector.shape_cast %75 : vector<1x16x16x128xf32> to vector<16x16x128xf32>
    %77 = vector.shape_cast %74 : vector<16x16x128xf32> to vector<1x16x16x128xf32>
    tpu.vector_store %arg6[%c0_60, %c0_61, %c0_62, %c0_63], %77 {strides = array<i32>} : memref<1x16x16x128xf32, #tpu.memory_space<vmem>>, vector<1x16x16x128xf32>,
    return
  }
  func.func @transform_0(%arg0: i32, %arg1: i32) -> (i32, i32, i32, i32) {
    %c0_i32 = arith.constant 0 : i32
    %c0_i32_0 = arith.constant 0 : i32
    %c0_i32_1 = arith.constant 0 : i32
    return %arg0, %arg1, %c0_i32, %c0_i32_0 : i32, i32, i32, i32
  }
  func.func @transform_1(%arg0: i32, %arg1: i32) -> (i32, i32, i32, i32) {
    %c1_i32 = arith.constant 1 : i32
    %0 = arith.addi %arg1, %c1_i32 : i32
    %c8_i32 = arith.constant 8 : i32
    %1 = arith.muli %0, %c8_i32 : i32
    %c0_i32 = arith.constant 0 : i32
    %c0_i32_0 = arith.constant 0 : i32
    %c0_i32_1 = arith.constant 0 : i32
    return %arg0, %1, %c0_i32, %c0_i32_0 : i32, i32, i32, i32
  }
  func.func @transform_2(%arg0: i32, %arg1: i32) -> (i32, i32, i32, i32) {
    %c0_i32 = arith.constant 0 : i32
    %c0_i32_0 = arith.constant 0 : i32
    %c0_i32_1 = arith.constant 0 : i32
    %c0_i32_2 = arith.constant 0 : i32
    %c0_i32_3 = arith.constant 0 : i32
    return %c0_i32, %c0_i32_0, %c0_i32_1, %c0_i32_2 : i32, i32, i32, i32
  }
  func.func @transform_3(%arg0: i32, %arg1: i32) -> (i32, i32) {
    %c0_i32 = arith.constant 0 : i32
    %c0_i32_0 = arith.constant 0 : i32
    %c0_i32_1 = arith.constant 0 : i32
    return %c0_i32, %c0_i32_0 : i32, i32
  }
  func.func @transform_4(%arg0: i32, %arg1: i32) -> (i32, i32, i32, i32) {
    %c0_i32 = arith.constant 0 : i32
    %c0_i32_0 = arith.constant 0 : i32
    %c0_i32_1 = arith.constant 0 : i32
    return %arg0, %arg1, %c0_i32, %c0_i32_0 : i32, i32, i32, i32
  }
  func.func @transform_5(%arg0: i32, %arg1: i32) -> (i32, i32, i32) {
    %c0_i32 = arith.constant 0 : i32
    %c0_i32_0 = arith.constant 0 : i32
    %c0_i32_1 = arith.constant 0 : i32
    return %arg0, %c0_i32, %c0_i32_0 : i32, i32, i32
  }
}

module attributes {stable_mosaic.version = 11 : i64} {
  func.func @_ca_apply_kernel(%arg0: i32, %arg1: i32, %arg2: memref<1x256x128xf32, #tpu.memory_space<vmem>>, %arg3: memref<1x256x128xf32, #tpu.memory_space<vmem>>, %arg4: memref<1x1x128xf32, #tpu.memory_space<vmem>>, %arg5: memref<128x8xf32, #tpu.memory_space<vmem>>, %arg6: memref<1x8xf32, #tpu.memory_space<vmem>>, %arg7: memref<8x128xf32, #tpu.memory_space<vmem>>, %arg8: memref<1x128xf32, #tpu.memory_space<vmem>>, %arg9: memref<1x256x128xf32, #tpu.memory_space<vmem>>) attributes {dimension_semantics = [#tpu.dimension_semantics<parallel>, #tpu.dimension_semantics<parallel>], iteration_bounds = array<i64: 2, 1>, scalar_prefetch = 0 : i64, scratch_operands = 0 : i64, tpu.core_type = #tpu.core_type<tc>, window_params = [{transform_indices = @transform_0, window_bounds = array<i64: 1, 256, 128>}, {transform_indices = @transform_1, window_bounds = array<i64: 1, 256, 128>}, {transform_indices = @transform_2, window_bounds = array<i64: 1, 1, 128>}, {pipeline_mode = #tpu.pipeline_mode<synchronous>, transform_indices = @transform_3, window_bounds = array<i64: 128, 8>}, {pipeline_mode = #tpu.pipeline_mode<synchronous>, transform_indices = @transform_4, window_bounds = array<i64: 1, 8>}, {pipeline_mode = #tpu.pipeline_mode<synchronous>, transform_indices = @transform_5, window_bounds = array<i64: 8, 128>}, {pipeline_mode = #tpu.pipeline_mode<synchronous>, transform_indices = @transform_6, window_bounds = array<i64: 1, 128>}, {transform_indices = @transform_7, window_bounds = array<i64: 1, 256, 128>}]} {
    %c0 = arith.constant 0 : index
    %c0_0 = arith.constant 0 : index
    %c0_1 = arith.constant 0 : index
    %0 = vector.load %arg4[%c0, %c0_0, %c0_1] : memref<1x1x128xf32, #tpu.memory_space<vmem>>, vector<1x1x128xf32>
    %1 = vector.shape_cast %0 : vector<1x1x128xf32> to vector<1x128xf32>
    %cst = arith.constant 3.906250e-03 : f32
    %2 = vector.broadcast %cst : f32 to vector<1x128xf32>
    %3 = arith.mulf %1, %2 : vector<1x128xf32>
    %c0_2 = arith.constant 0 : index
    %c0_3 = arith.constant 0 : index
    %4 = vector.load %arg5[%c0_2, %c0_3] : memref<128x8xf32, #tpu.memory_space<vmem>>, vector<128x8xf32>
    %cst_4 = arith.constant dense<0.000000e+00> : vector<1x8xf32>
    %5 = tpu.matmul %3, %4, %cst_4 {dimension_numbers = #tpu.dot_dimension_numbers<[1], [0], [0], [1], [0, 0, 1, 1], [], []>} : vector<1x128xf32>, vector<128x8xf32>, vector<1x8xf32> -> vector<1x8xf32>
    %c0_5 = arith.constant 0 : index
    %c0_6 = arith.constant 0 : index
    %6 = vector.load %arg6[%c0_5, %c0_6] : memref<1x8xf32, #tpu.memory_space<vmem>>, vector<1x8xf32>
    %7 = arith.addf %5, %6 : vector<1x8xf32>
    %cst_7 = arith.constant 0.000000e+00 : f32
    %8 = vector.broadcast %cst_7 : f32 to vector<1x8xf32>
    %9 = arith.maximumf %7, %8 : vector<1x8xf32>
    %c0_8 = arith.constant 0 : index
    %c0_9 = arith.constant 0 : index
    %10 = vector.load %arg7[%c0_8, %c0_9] : memref<8x128xf32, #tpu.memory_space<vmem>>, vector<8x128xf32>
    %cst_10 = arith.constant dense<0.000000e+00> : vector<1x128xf32>
    %11 = tpu.matmul %9, %10, %cst_10 {dimension_numbers = #tpu.dot_dimension_numbers<[1], [0], [0], [1], [0, 0, 1, 1], [], []>} : vector<1x8xf32>, vector<8x128xf32>, vector<1x128xf32> -> vector<1x128xf32>
    %c0_11 = arith.constant 0 : index
    %c0_12 = arith.constant 0 : index
    %12 = vector.load %arg8[%c0_11, %c0_12] : memref<1x128xf32, #tpu.memory_space<vmem>>, vector<1x128xf32>
    %13 = arith.addf %11, %12 : vector<1x128xf32>
    %cst_13 = arith.constant 0.000000e+00 : f32
    %14 = vector.broadcast %cst_13 : f32 to vector<1x128xf32>
    %15 = arith.subf %14, %13 : vector<1x128xf32>
    %16 = math.exp %15 : vector<1x128xf32>
    %cst_14 = arith.constant 1.000000e+00 : f32
    %17 = vector.broadcast %cst_14 : f32 to vector<1x128xf32>
    %18 = arith.addf %17, %16 : vector<1x128xf32>
    %cst_15 = arith.constant 1.000000e+00 : f32
    %19 = vector.broadcast %cst_15 : f32 to vector<1x128xf32>
    %20 = arith.divf %19, %18 : vector<1x128xf32>
    %c0_16 = arith.constant 0 : index
    %c0_17 = arith.constant 0 : index
    %c0_18 = arith.constant 0 : index
    %21 = vector.load %arg2[%c0_16, %c0_17, %c0_18] : memref<1x256x128xf32, #tpu.memory_space<vmem>>, vector<1x256x128xf32>
    %22 = vector.shape_cast %21 : vector<1x256x128xf32> to vector<256x128xf32>
    %c0_19 = arith.constant 0 : index
    %c0_20 = arith.constant 0 : index
    %c0_21 = arith.constant 0 : index
    %23 = vector.load %arg3[%c0_19, %c0_20, %c0_21] : memref<1x256x128xf32, #tpu.memory_space<vmem>>, vector<1x256x128xf32>
    %24 = vector.shape_cast %23 : vector<1x256x128xf32> to vector<256x128xf32>
    %25 = vector.broadcast %20 : vector<1x128xf32> to vector<256x128xf32>
    %26 = arith.mulf %24, %25 : vector<256x128xf32>
    %27 = arith.addf %22, %26 : vector<256x128xf32>
    %c0_22 = arith.constant 0 : index
    %c0_23 = arith.constant 0 : index
    %c0_24 = arith.constant 0 : index
    %28 = vector.load %arg9[%c0_22, %c0_23, %c0_24] : memref<1x256x128xf32, #tpu.memory_space<vmem>>, vector<1x256x128xf32>
    %29 = vector.shape_cast %28 : vector<1x256x128xf32> to vector<256x128xf32>
    %30 = vector.shape_cast %27 : vector<256x128xf32> to vector<1x256x128xf32>
    tpu.vector_store %arg9[%c0_22, %c0_23, %c0_24], %30 {strides = array<i32>} : memref<1x256x128xf32, #tpu.memory_space<vmem>>, vector<1x256x128xf32>,
    return
  }
  func.func @transform_0(%arg0: i32, %arg1: i32) -> (i32, i32, i32) {
    %c0_i32 = arith.constant 0 : i32
    %c0_i32_0 = arith.constant 0 : i32
    return %arg0, %arg1, %c0_i32 : i32, i32, i32
  }
  func.func @transform_1(%arg0: i32, %arg1: i32) -> (i32, i32, i32) {
    %c0_i32 = arith.constant 0 : i32
    %c0_i32_0 = arith.constant 0 : i32
    return %arg0, %arg1, %c0_i32 : i32, i32, i32
  }
  func.func @transform_2(%arg0: i32, %arg1: i32) -> (i32, i32, i32) {
    %c0_i32 = arith.constant 0 : i32
    %c0_i32_0 = arith.constant 0 : i32
    %c0_i32_1 = arith.constant 0 : i32
    return %arg0, %c0_i32, %c0_i32_0 : i32, i32, i32
  }
  func.func @transform_3(%arg0: i32, %arg1: i32) -> (i32, i32) {
    %c0_i32 = arith.constant 0 : i32
    %c0_i32_0 = arith.constant 0 : i32
    %c0_i32_1 = arith.constant 0 : i32
    return %c0_i32, %c0_i32_0 : i32, i32
  }
  func.func @transform_4(%arg0: i32, %arg1: i32) -> (i32, i32) {
    %c0_i32 = arith.constant 0 : i32
    %c0_i32_0 = arith.constant 0 : i32
    %c0_i32_1 = arith.constant 0 : i32
    return %c0_i32, %c0_i32_0 : i32, i32
  }
  func.func @transform_5(%arg0: i32, %arg1: i32) -> (i32, i32) {
    %c0_i32 = arith.constant 0 : i32
    %c0_i32_0 = arith.constant 0 : i32
    %c0_i32_1 = arith.constant 0 : i32
    return %c0_i32, %c0_i32_0 : i32, i32
  }
  func.func @transform_6(%arg0: i32, %arg1: i32) -> (i32, i32) {
    %c0_i32 = arith.constant 0 : i32
    %c0_i32_0 = arith.constant 0 : i32
    %c0_i32_1 = arith.constant 0 : i32
    return %c0_i32, %c0_i32_0 : i32, i32
  }
  func.func @transform_7(%arg0: i32, %arg1: i32) -> (i32, i32, i32) {
    %c0_i32 = arith.constant 0 : i32
    %c0_i32_0 = arith.constant 0 : i32
    return %arg0, %arg1, %c0_i32 : i32, i32, i32
  }
}

module attributes {stable_mosaic.version = 11 : i64} {
  func.func @_conv3x3_kernel(%arg0: i32, %arg1: i32, %arg2: memref<1x16x18x128xbf16, #tpu.memory_space<vmem>>, %arg3: memref<1x2x18x128xbf16, #tpu.memory_space<vmem>>, %arg4: memref<3x3x128x128xbf16, #tpu.memory_space<vmem>>, %arg5: memref<1x128xf32, #tpu.memory_space<vmem>>, %arg6: memref<1x16x16x128xf32, #tpu.memory_space<vmem>>, %arg7: memref<1x16x16x128xf32, #tpu.memory_space<vmem>>) attributes {dimension_semantics = [#tpu.dimension_semantics<parallel>, #tpu.dimension_semantics<parallel>], iteration_bounds = array<i64: 2, 1>, scalar_prefetch = 0 : i64, scratch_operands = 0 : i64, tpu.core_type = #tpu.core_type<tc>, window_params = [{transform_indices = @transform_0, window_bounds = array<i64: 1, 16, 18, 128>}, {transform_indices = @transform_1, window_bounds = array<i64: 1, 2, 18, 128>}, {pipeline_mode = #tpu.pipeline_mode<synchronous>, transform_indices = @transform_2, window_bounds = array<i64: 3, 3, 128, 128>}, {pipeline_mode = #tpu.pipeline_mode<synchronous>, transform_indices = @transform_3, window_bounds = array<i64: 1, 128>}, {transform_indices = @transform_4, window_bounds = array<i64: 1, 16, 16, 128>}, {transform_indices = @transform_5, window_bounds = array<i64: 1, 16, 16, 128>}]} {
    %c0 = arith.constant 0 : index
    %c0_0 = arith.constant 0 : index
    %c0_1 = arith.constant 0 : index
    %c0_2 = arith.constant 0 : index
    %0 = vector.load %arg2[%c0, %c0_0, %c0_1, %c0_2] : memref<1x16x18x128xbf16, #tpu.memory_space<vmem>>, vector<1x16x18x128xbf16>
    %1 = vector.shape_cast %0 : vector<1x16x18x128xbf16> to vector<16x18x128xbf16>
    %c0_3 = arith.constant 0 : index
    %c0_4 = arith.constant 0 : index
    %c0_5 = arith.constant 0 : index
    %c0_6 = arith.constant 0 : index
    %2 = vector.load %arg3[%c0_3, %c0_4, %c0_5, %c0_6] : memref<1x2x18x128xbf16, #tpu.memory_space<vmem>>, vector<1x2x18x128xbf16>
    %3 = vector.shape_cast %2 : vector<1x2x18x128xbf16> to vector<2x18x128xbf16>
    %4 = tpu.concatenate %1, %3 in 0 : vector<16x18x128xbf16>, vector<2x18x128xbf16> -> vector<18x18x128xbf16>
    %cst = arith.constant 0.000000e+00 : f32
    %5 = vector.broadcast %cst : f32 to vector<256x128xf32>
    %6 = vector.extract_strided_slice %4 {offsets = [0, 0, 0], sizes = [16, 16, 128], strides = [1, 1, 1]} : vector<18x18x128xbf16> to vector<16x16x128xbf16>
    %7 = vector.shape_cast %6 : vector<16x16x128xbf16> to vector<256x128xbf16>
    %c0_7 = arith.constant 0 : index
    %c0_8 = arith.constant 0 : index
    %c0_9 = arith.constant 0 : index
    %c0_10 = arith.constant 0 : index
    %8 = vector.load %arg4[%c0_7, %c0_8, %c0_9, %c0_10] : memref<3x3x128x128xbf16, #tpu.memory_space<vmem>>, vector<1x1x128x128xbf16>
    %9 = vector.shape_cast %8 : vector<1x1x128x128xbf16> to vector<128x128xbf16>
    %cst_11 = arith.constant dense<0.000000e+00> : vector<256x128xf32>
    %10 = tpu.matmul %7, %9, %cst_11 {dimension_numbers = #tpu.dot_dimension_numbers<[1], [0], [0], [1], [0, 0, 1, 1], [], []>} : vector<256x128xbf16>, vector<128x128xbf16>, vector<256x128xf32> -> vector<256x128xf32>
    %11 = arith.addf %5, %10 : vector<256x128xf32>
    %12 = vector.extract_strided_slice %4 {offsets = [0, 1, 0], sizes = [16, 16, 128], strides = [1, 1, 1]} : vector<18x18x128xbf16> to vector<16x16x128xbf16>
    %13 = vector.shape_cast %12 : vector<16x16x128xbf16> to vector<256x128xbf16>
    %c0_12 = arith.constant 0 : index
    %c1 = arith.constant 1 : index
    %c0_13 = arith.constant 0 : index
    %c0_14 = arith.constant 0 : index
    %14 = vector.load %arg4[%c0_12, %c1, %c0_13, %c0_14] : memref<3x3x128x128xbf16, #tpu.memory_space<vmem>>, vector<1x1x128x128xbf16>
    %15 = vector.shape_cast %14 : vector<1x1x128x128xbf16> to vector<128x128xbf16>
    %cst_15 = arith.constant dense<0.000000e+00> : vector<256x128xf32>
    %16 = tpu.matmul %13, %15, %cst_15 {dimension_numbers = #tpu.dot_dimension_numbers<[1], [0], [0], [1], [0, 0, 1, 1], [], []>} : vector<256x128xbf16>, vector<128x128xbf16>, vector<256x128xf32> -> vector<256x128xf32>
    %17 = arith.addf %11, %16 : vector<256x128xf32>
    %18 = vector.extract_strided_slice %4 {offsets = [0, 2, 0], sizes = [16, 16, 128], strides = [1, 1, 1]} : vector<18x18x128xbf16> to vector<16x16x128xbf16>
    %19 = vector.shape_cast %18 : vector<16x16x128xbf16> to vector<256x128xbf16>
    %c0_16 = arith.constant 0 : index
    %c2 = arith.constant 2 : index
    %c0_17 = arith.constant 0 : index
    %c0_18 = arith.constant 0 : index
    %20 = vector.load %arg4[%c0_16, %c2, %c0_17, %c0_18] : memref<3x3x128x128xbf16, #tpu.memory_space<vmem>>, vector<1x1x128x128xbf16>
    %21 = vector.shape_cast %20 : vector<1x1x128x128xbf16> to vector<128x128xbf16>
    %cst_19 = arith.constant dense<0.000000e+00> : vector<256x128xf32>
    %22 = tpu.matmul %19, %21, %cst_19 {dimension_numbers = #tpu.dot_dimension_numbers<[1], [0], [0], [1], [0, 0, 1, 1], [], []>} : vector<256x128xbf16>, vector<128x128xbf16>, vector<256x128xf32> -> vector<256x128xf32>
    %23 = arith.addf %17, %22 : vector<256x128xf32>
    %24 = vector.extract_strided_slice %4 {offsets = [1, 0, 0], sizes = [16, 16, 128], strides = [1, 1, 1]} : vector<18x18x128xbf16> to vector<16x16x128xbf16>
    %25 = vector.shape_cast %24 : vector<16x16x128xbf16> to vector<256x128xbf16>
    %c1_20 = arith.constant 1 : index
    %c0_21 = arith.constant 0 : index
    %c0_22 = arith.constant 0 : index
    %c0_23 = arith.constant 0 : index
    %26 = vector.load %arg4[%c1_20, %c0_21, %c0_22, %c0_23] : memref<3x3x128x128xbf16, #tpu.memory_space<vmem>>, vector<1x1x128x128xbf16>
    %27 = vector.shape_cast %26 : vector<1x1x128x128xbf16> to vector<128x128xbf16>
    %cst_24 = arith.constant dense<0.000000e+00> : vector<256x128xf32>
    %28 = tpu.matmul %25, %27, %cst_24 {dimension_numbers = #tpu.dot_dimension_numbers<[1], [0], [0], [1], [0, 0, 1, 1], [], []>} : vector<256x128xbf16>, vector<128x128xbf16>, vector<256x128xf32> -> vector<256x128xf32>
    %29 = arith.addf %23, %28 : vector<256x128xf32>
    %30 = vector.extract_strided_slice %4 {offsets = [1, 1, 0], sizes = [16, 16, 128], strides = [1, 1, 1]} : vector<18x18x128xbf16> to vector<16x16x128xbf16>
    %31 = vector.shape_cast %30 : vector<16x16x128xbf16> to vector<256x128xbf16>
    %c1_25 = arith.constant 1 : index
    %c1_26 = arith.constant 1 : index
    %c0_27 = arith.constant 0 : index
    %c0_28 = arith.constant 0 : index
    %32 = vector.load %arg4[%c1_25, %c1_26, %c0_27, %c0_28] : memref<3x3x128x128xbf16, #tpu.memory_space<vmem>>, vector<1x1x128x128xbf16>
    %33 = vector.shape_cast %32 : vector<1x1x128x128xbf16> to vector<128x128xbf16>
    %cst_29 = arith.constant dense<0.000000e+00> : vector<256x128xf32>
    %34 = tpu.matmul %31, %33, %cst_29 {dimension_numbers = #tpu.dot_dimension_numbers<[1], [0], [0], [1], [0, 0, 1, 1], [], []>} : vector<256x128xbf16>, vector<128x128xbf16>, vector<256x128xf32> -> vector<256x128xf32>
    %35 = arith.addf %29, %34 : vector<256x128xf32>
    %36 = vector.extract_strided_slice %4 {offsets = [1, 2, 0], sizes = [16, 16, 128], strides = [1, 1, 1]} : vector<18x18x128xbf16> to vector<16x16x128xbf16>
    %37 = vector.shape_cast %36 : vector<16x16x128xbf16> to vector<256x128xbf16>
    %c1_30 = arith.constant 1 : index
    %c2_31 = arith.constant 2 : index
    %c0_32 = arith.constant 0 : index
    %c0_33 = arith.constant 0 : index
    %38 = vector.load %arg4[%c1_30, %c2_31, %c0_32, %c0_33] : memref<3x3x128x128xbf16, #tpu.memory_space<vmem>>, vector<1x1x128x128xbf16>
    %39 = vector.shape_cast %38 : vector<1x1x128x128xbf16> to vector<128x128xbf16>
    %cst_34 = arith.constant dense<0.000000e+00> : vector<256x128xf32>
    %40 = tpu.matmul %37, %39, %cst_34 {dimension_numbers = #tpu.dot_dimension_numbers<[1], [0], [0], [1], [0, 0, 1, 1], [], []>} : vector<256x128xbf16>, vector<128x128xbf16>, vector<256x128xf32> -> vector<256x128xf32>
    %41 = arith.addf %35, %40 : vector<256x128xf32>
    %42 = vector.extract_strided_slice %4 {offsets = [2, 0, 0], sizes = [16, 16, 128], strides = [1, 1, 1]} : vector<18x18x128xbf16> to vector<16x16x128xbf16>
    %43 = vector.shape_cast %42 : vector<16x16x128xbf16> to vector<256x128xbf16>
    %c2_35 = arith.constant 2 : index
    %c0_36 = arith.constant 0 : index
    %c0_37 = arith.constant 0 : index
    %c0_38 = arith.constant 0 : index
    %44 = vector.load %arg4[%c2_35, %c0_36, %c0_37, %c0_38] : memref<3x3x128x128xbf16, #tpu.memory_space<vmem>>, vector<1x1x128x128xbf16>
    %45 = vector.shape_cast %44 : vector<1x1x128x128xbf16> to vector<128x128xbf16>
    %cst_39 = arith.constant dense<0.000000e+00> : vector<256x128xf32>
    %46 = tpu.matmul %43, %45, %cst_39 {dimension_numbers = #tpu.dot_dimension_numbers<[1], [0], [0], [1], [0, 0, 1, 1], [], []>} : vector<256x128xbf16>, vector<128x128xbf16>, vector<256x128xf32> -> vector<256x128xf32>
    %47 = arith.addf %41, %46 : vector<256x128xf32>
    %48 = vector.extract_strided_slice %4 {offsets = [2, 1, 0], sizes = [16, 16, 128], strides = [1, 1, 1]} : vector<18x18x128xbf16> to vector<16x16x128xbf16>
    %49 = vector.shape_cast %48 : vector<16x16x128xbf16> to vector<256x128xbf16>
    %c2_40 = arith.constant 2 : index
    %c1_41 = arith.constant 1 : index
    %c0_42 = arith.constant 0 : index
    %c0_43 = arith.constant 0 : index
    %50 = vector.load %arg4[%c2_40, %c1_41, %c0_42, %c0_43] : memref<3x3x128x128xbf16, #tpu.memory_space<vmem>>, vector<1x1x128x128xbf16>
    %51 = vector.shape_cast %50 : vector<1x1x128x128xbf16> to vector<128x128xbf16>
    %cst_44 = arith.constant dense<0.000000e+00> : vector<256x128xf32>
    %52 = tpu.matmul %49, %51, %cst_44 {dimension_numbers = #tpu.dot_dimension_numbers<[1], [0], [0], [1], [0, 0, 1, 1], [], []>} : vector<256x128xbf16>, vector<128x128xbf16>, vector<256x128xf32> -> vector<256x128xf32>
    %53 = arith.addf %47, %52 : vector<256x128xf32>
    %54 = vector.extract_strided_slice %4 {offsets = [2, 2, 0], sizes = [16, 16, 128], strides = [1, 1, 1]} : vector<18x18x128xbf16> to vector<16x16x128xbf16>
    %55 = vector.shape_cast %54 : vector<16x16x128xbf16> to vector<256x128xbf16>
    %c2_45 = arith.constant 2 : index
    %c2_46 = arith.constant 2 : index
    %c0_47 = arith.constant 0 : index
    %c0_48 = arith.constant 0 : index
    %56 = vector.load %arg4[%c2_45, %c2_46, %c0_47, %c0_48] : memref<3x3x128x128xbf16, #tpu.memory_space<vmem>>, vector<1x1x128x128xbf16>
    %57 = vector.shape_cast %56 : vector<1x1x128x128xbf16> to vector<128x128xbf16>
    %cst_49 = arith.constant dense<0.000000e+00> : vector<256x128xf32>
    %58 = tpu.matmul %55, %57, %cst_49 {dimension_numbers = #tpu.dot_dimension_numbers<[1], [0], [0], [1], [0, 0, 1, 1], [], []>} : vector<256x128xbf16>, vector<128x128xbf16>, vector<256x128xf32> -> vector<256x128xf32>
    %59 = arith.addf %53, %58 : vector<256x128xf32>
    %c0_50 = arith.constant 0 : index
    %c0_51 = arith.constant 0 : index
    %60 = vector.load %arg5[%c0_50, %c0_51] : memref<1x128xf32, #tpu.memory_space<vmem>>, vector<1x128xf32>
    %61 = vector.broadcast %60 : vector<1x128xf32> to vector<256x128xf32>
    %62 = arith.addf %59, %61 : vector<256x128xf32>
    %63 = vector.shape_cast %62 : vector<256x128xf32> to vector<16x16x128xf32>
    %c0_52 = arith.constant 0 : index
    %c0_53 = arith.constant 0 : index
    %c0_54 = arith.constant 0 : index
    %c0_55 = arith.constant 0 : index
    %64 = vector.load %arg6[%c0_52, %c0_53, %c0_54, %c0_55] : memref<1x16x16x128xf32, #tpu.memory_space<vmem>>, vector<1x16x16x128xf32>
    %65 = vector.shape_cast %64 : vector<1x16x16x128xf32> to vector<16x16x128xf32>
    %66 = arith.addf %63, %65 : vector<16x16x128xf32>
    %c0_56 = arith.constant 0 : index
    %c0_57 = arith.constant 0 : index
    %c0_58 = arith.constant 0 : index
    %c0_59 = arith.constant 0 : index
    %67 = vector.load %arg7[%c0_56, %c0_57, %c0_58, %c0_59] : memref<1x16x16x128xf32, #tpu.memory_space<vmem>>, vector<1x16x16x128xf32>
    %68 = vector.shape_cast %67 : vector<1x16x16x128xf32> to vector<16x16x128xf32>
    %69 = vector.shape_cast %66 : vector<16x16x128xf32> to vector<1x16x16x128xf32>
    tpu.vector_store %arg7[%c0_56, %c0_57, %c0_58, %c0_59], %69 {strides = array<i32>} : memref<1x16x16x128xf32, #tpu.memory_space<vmem>>, vector<1x16x16x128xf32>,
    return
  }
  func.func @transform_0(%arg0: i32, %arg1: i32) -> (i32, i32, i32, i32) {
    %c0_i32 = arith.constant 0 : i32
    %c0_i32_0 = arith.constant 0 : i32
    %c0_i32_1 = arith.constant 0 : i32
    return %arg0, %arg1, %c0_i32, %c0_i32_0 : i32, i32, i32, i32
  }
  func.func @transform_1(%arg0: i32, %arg1: i32) -> (i32, i32, i32, i32) {
    %c1_i32 = arith.constant 1 : i32
    %0 = arith.addi %arg1, %c1_i32 : i32
    %c8_i32 = arith.constant 8 : i32
    %1 = arith.muli %0, %c8_i32 : i32
    %c0_i32 = arith.constant 0 : i32
    %c0_i32_0 = arith.constant 0 : i32
    %c0_i32_1 = arith.constant 0 : i32
    return %arg0, %1, %c0_i32, %c0_i32_0 : i32, i32, i32, i32
  }
  func.func @transform_2(%arg0: i32, %arg1: i32) -> (i32, i32, i32, i32) {
    %c0_i32 = arith.constant 0 : i32
    %c0_i32_0 = arith.constant 0 : i32
    %c0_i32_1 = arith.constant 0 : i32
    %c0_i32_2 = arith.constant 0 : i32
    %c0_i32_3 = arith.constant 0 : i32
    return %c0_i32, %c0_i32_0, %c0_i32_1, %c0_i32_2 : i32, i32, i32, i32
  }
  func.func @transform_3(%arg0: i32, %arg1: i32) -> (i32, i32) {
    %c0_i32 = arith.constant 0 : i32
    %c0_i32_0 = arith.constant 0 : i32
    %c0_i32_1 = arith.constant 0 : i32
    return %c0_i32, %c0_i32_0 : i32, i32
  }
  func.func @transform_4(%arg0: i32, %arg1: i32) -> (i32, i32, i32, i32) {
    %c0_i32 = arith.constant 0 : i32
    %c0_i32_0 = arith.constant 0 : i32
    %c0_i32_1 = arith.constant 0 : i32
    return %arg0, %arg1, %c0_i32, %c0_i32_0 : i32, i32, i32, i32
  }
  func.func @transform_5(%arg0: i32, %arg1: i32) -> (i32, i32, i32, i32) {
    %c0_i32 = arith.constant 0 : i32
    %c0_i32_0 = arith.constant 0 : i32
    %c0_i32_1 = arith.constant 0 : i32
    return %arg0, %arg1, %c0_i32, %c0_i32_0 : i32, i32, i32, i32
  }
}

</mosaic_0001>

<llo_original>
// kernel: residual_group_forward.9
$region0: #{residual_group_forward.9}
  #allocation0 [shape = 'u32[]', space=smem, size = 0x4, offset = 0x4, fixed_abs, tag = 'smem constant byte address 0x4 - core index']
  #allocation1 [shape = 'u32[144,128]{1,0:T(1,128)}', space=vmem, size = 0x12000, scoped, tag = 'internal scratch']
  %s0 = inlined_call_operand.vmem [shape: f32[2,256,128], index: 0, kind: input, shape index: {}]
  %s1 = inlined_call_operand.vmem [shape: f32[2,256,128], index: 1, kind: input, shape index: {}]
  %s2 = inlined_call_operand.vmem [shape: f32[2,1,128], index: 2, kind: input, shape index: {}]
  %s3 = inlined_call_operand.vmem [shape: f32[128,8], index: 3, kind: input, shape index: {}]
  %s4 = inlined_call_operand.vmem [shape: f32[1,8], index: 4, kind: input, shape index: {}]
  %s5 = inlined_call_operand.vmem [shape: f32[8,128], index: 5, kind: input, shape index: {}]
  %s6 = inlined_call_operand.vmem [shape: f32[1,128], index: 6, kind: input, shape index: {}]
  %s7 = inlined_call_operand.vmem [shape: f32[2,256,128], index: 7, kind: output, shape index: {}]
  %s8 = sld [smem:[#allocation0]]
  $region61: #{residual_group_forward.9} parent=0
    _
  %s10 = ssub.s32 1, %s8
  %s11 = scalar_select 0, %s10, %s8
  loop: start=0, step=1, limit=4
  $region2: #{residual_group_forward.9} parent=0 // loop_pre_header
    _
  $region3: #{residual_group_forward.9} parent=0 // loop_header
    %s13 = sphi 0, %s17
    %p14 = scmp.ge.s32.totalorder %s13, 4
    %s20 = sphi 0, %s32
    %s21 = sphi 0, %s28
    %s22 = sphi 0, %s20
    %s23 = sphi 0, %s21
    %s24 = sphi 0, %s22
    %s25 = sphi 0, %s23
    %s37 = sphi 0, %s39
    %s40 = sphi 0, %s37
    %s41 = sphi 0, %s40
    %s57 = sphi 0, %s41
    %s65 = sphi 0, %s67
    %s68 = sphi 0, %s65
    %s69 = sphi 0, %s68
    %s85 = sphi 0, %s69
    %s91 = sphi 0, %s93
    %s94 = sphi 0, %s91
    %s95 = sphi 0, %s94
    %s111 = sphi 0, %s95
    %s115 = sphi 0, %s115
    %s117 = sphi 0, %s115
    %s118 = sphi 0, %s117
    %s132 = sphi 0, %s118
    %s136 = sphi 0, %s136
    %s138 = sphi 0, %s136
    %s139 = sphi 0, %s138
    %s153 = sphi 0, %s139
    %s157 = sphi 0, %s157
    %s159 = sphi 0, %s157
    %s160 = sphi 0, %s159
    %s174 = sphi 0, %s160
    %s178 = sphi 0, %s178
    %s180 = sphi 0, %s178
    %s181 = sphi 0, %s180
    %s195 = sphi 0, %s181
    %s203 = sphi 0, %s205
    %s206 = sphi 0, %s203
    %s207 = sphi 0, %s206
    %s223 = sphi 0, %s207
  $region4: #{residual_group_forward.9} parent=0 // loop_header_branch
    %16 = sbr.rel (%p14) target = $region8
  $region5: #{residual_group_forward.9} parent=0 // loop_body
    %s18 = ssub.s32 %s13, 1
    %s19 = ssub.s32 %s13, 2
    %s26 = sadd.s32 1, %s21
    %p27 = scmp.ge.s32.totalorder %s26, 1
    %s28 = scalar_select %p27, 0, %s26
    %s29 = sadd.s32 1, %s20
    %s30 = scalar_select %p27, %s29, %s20
    %p31 = scmp.ge.s32.totalorder %s30, 2
    %s32 = scalar_select %p31, 0, %s30
    %s33 = ssub.s32 %s20, %s32
    %s34 = ssub.s32 %s21, %s28
    %s35 = sor.u32 %s33, %s34
    %p36 = scmp.eq.s32.totalorder %s35, 0
    %s38 = sadd.s32 %s37, 1
    %s39 = scalar_select %p36, %s37, %s38
    %p42 = pneg %p36
    %p43 = scmp.eq.s32.totalorder %s13, 1
    %p44 = por %p42, %p43
    %p45 = scmp.ne.s32.totalorder %s37, %s40
    %p46 = scmp.eq.s32.totalorder %s13, 0
    %p47 = por %p45, %p46
    %p48 = scmp.ne.s32.totalorder %s37, %s40
    %p49 = scmp.eq.s32.totalorder %s18, 1
    %p50 = por %p48, %p49
    %p51 = scmp.ne.s32.totalorder %s40, %s41
    %p52 = scmp.eq.s32.totalorder %s18, 0
    %p53 = por %p51, %p52
    %p54 = scmp.ne.s32.totalorder %s40, %s41
    %p55 = scmp.eq.s32.totalorder %s19, 1
    %p56 = por %p54, %p55
    %p58 = scmp.ne.s32.totalorder %s41, %s57
    %p59 = scmp.eq.s32.totalorder %s19, 0
    %p60 = por %p58, %p59
    %s61 = ssub.s32 %s20, %s32
    %s62 = ssub.s32 %s21, %s28
    %s63 = sor.u32 %s61, %s62
    %p64 = scmp.eq.s32.totalorder %s63, 0
    %s66 = sadd.s32 %s65, 1
    %s67 = scalar_select %p64, %s65, %s66
    %p70 = pneg %p64
    %p71 = scmp.eq.s32.totalorder %s13, 1
    %p72 = por %p70, %p71
    %p73 = scmp.ne.s32.totalorder %s65, %s68
    %p74 = scmp.eq.s32.totalorder %s13, 0
    %p75 = por %p73, %p74
    %p76 = scmp.ne.s32.totalorder %s65, %s68
    %p77 = scmp.eq.s32.totalorder %s18, 1
    %p78 = por %p76, %p77
    %p79 = scmp.ne.s32.totalorder %s68, %s69
    %p80 = scmp.eq.s32.totalorder %s18, 0
    %p81 = por %p79, %p80
    %p82 = scmp.ne.s32.totalorder %s68, %s69
    %p83 = scmp.eq.s32.totalorder %s19, 1
    %p84 = por %p82, %p83
    %p86 = scmp.ne.s32.totalorder %s69, %s85
    %p87 = scmp.eq.s32.totalorder %s19, 0
    %p88 = por %p86, %p87
    %s89 = ssub.s32 %s20, %s32
    %p90 = scmp.eq.s32.totalorder %s89, 0
    %s92 = sadd.s32 %s91, 1
    %s93 = scalar_select %p90, %s91, %s92
    %p96 = pneg %p90
    %p97 = scmp.eq.s32.totalorder %s13, 1
    %p98 = por %p96, %p97
    %p99 = scmp.ne.s32.totalorder %s91, %s94
    %p100 = scmp.eq.s32.totalorder %s13, 0
    %p101 = por %p99, %p100
    %p102 = scmp.ne.s32.totalorder %s91, %s94
    %p103 = scmp.eq.s32.totalorder %s18, 1
    %p104 = por %p102, %p103
    %p105 = scmp.ne.s32.totalorder %s94, %s95
    %p106 = scmp.eq.s32.totalorder %s18, 0
    %p107 = por %p105, %p106
    %p108 = scmp.ne.s32.totalorder %s94, %s95
    %p109 = scmp.eq.s32.totalorder %s19, 1
    %p110 = por %p108, %p109
    %p112 = scmp.ne.s32.totalorder %s95, %s111
    %p113 = scmp.eq.s32.totalorder %s19, 0
    %p114 = por %p112, %p113
    %s116 = sadd.s32 %s115, 1
    %p119 = scmp.eq.s32.totalorder %s13, 1
    %p120 = scmp.ne.s32.totalorder %s115, %s117
    %p121 = scmp.eq.s32.totalorder %s13, 0
    %p122 = por %p120, %p121
    %p123 = scmp.ne.s32.totalorder %s115, %s117
    %p124 = scmp.eq.s32.totalorder %s18, 1
    %p125 = por %p123, %p124
    %p126 = scmp.ne.s32.totalorder %s117, %s118
    %p127 = scmp.eq.s32.totalorder %s18, 0
    %p128 = por %p126, %p127
    %p129 = scmp.ne.s32.totalorder %s117, %s118
    %p130 = scmp.eq.s32.totalorder %s19, 1
    %p131 = por %p129, %p130
    %p133 = scmp.ne.s32.totalorder %s118, %s132
    %p134 = scmp.eq.s32.totalorder %s19, 0
    %p135 = por %p133, %p134
    %s137 = sadd.s32 %s136, 1
    %p140 = scmp.eq.s32.totalorder %s13, 1
    %p141 = scmp.ne.s32.totalorder %s136, %s138
    %p142 = scmp.eq.s32.totalorder %s13, 0
    %p143 = por %p141, %p142
    %p144 = scmp.ne.s32.totalorder %s136, %s138
    %p145 = scmp.eq.s32.totalorder %s18, 1
    %p146 = por %p144, %p145
    %p147 = scmp.ne.s32.totalorder %s138, %s139
    %p148 = scmp.eq.s32.totalorder %s18, 0
    %p149 = por %p147, %p148
    %p150 = scmp.ne.s32.totalorder %s138, %s139
    %p151 = scmp.eq.s32.totalorder %s19, 1
    %p152 = por %p150, %p151
    %p154 = scmp.ne.s32.totalorder %s139, %s153
    %p155 = scmp.eq.s32.totalorder %s19, 0
    %p156 = por %p154, %p155
    %s158 = sadd.s32 %s157, 1
    %p161 = scmp.eq.s32.totalorder %s13, 1
    %p162 = scmp.ne.s32.totalorder %s157, %s159
    %p163 = scmp.eq.s32.totalorder %s13, 0
    %p164 = por %p162, %p163
    %p165 = scmp.ne.s32.totalorder %s157, %s159
    %p166 = scmp.eq.s32.totalorder %s18, 1
    %p167 = por %p165, %p166
    %p168 = scmp.ne.s32.totalorder %s159, %s160
    %p169 = scmp.eq.s32.totalorder %s18, 0
    %p170 = por %p168, %p169
    %p171 = scmp.ne.s32.totalorder %s159, %s160
    %p172 = scmp.eq.s32.totalorder %s19, 1
    %p173 = por %p171, %p172
    %p175 = scmp.ne.s32.totalorder %s160, %s174
    %p176 = scmp.eq.s32.totalorder %s19, 0
    %p177 = por %p175, %p176
    %s179 = sadd.s32 %s178, 1
    %p182 = scmp.eq.s32.totalorder %s13, 1
    %p183 = scmp.ne.s32.totalorder %s178, %s180
    %p184 = scmp.eq.s32.totalorder %s13, 0
    %p185 = por %p183, %p184
    %p186 = scmp.ne.s32.totalorder %s178, %s180
    %p187 = scmp.eq.s32.totalorder %s18, 1
    %p188 = por %p186, %p187
    %p189 = scmp.ne.s32.totalorder %s180, %s181
    %p190 = scmp.eq.s32.totalorder %s18, 0
    %p191 = por %p189, %p190
    %p192 = scmp.ne.s32.totalorder %s180, %s181
    %p193 = scmp.eq.s32.totalorder %s19, 1
    %p194 = por %p192, %p193
    %p196 = scmp.ne.s32.totalorder %s181, %s195
    %p197 = scmp.eq.s32.totalorder %s19, 0
    %p198 = por %p196, %p197
    %s199 = ssub.s32 %s20, %s32
    %s200 = ssub.s32 %s21, %s28
    %s201 = sor.u32 %s199, %s200
    %p202 = scmp.eq.s32.totalorder %s201, 0
    %s204 = sadd.s32 %s203, 1
    %s205 = scalar_select %p202, %s203, %s204
    %p208 = pneg %p202
    %p209 = scmp.eq.s32.totalorder %s13, 1
    %p210 = por %p208, %p209
    %p211 = scmp.ne.s32.totalorder %s203, %s206
    %p212 = scmp.eq.s32.totalorder %s13, 0
    %p213 = por %p211, %p212
    %p214 = scmp.ne.s32.totalorder %s203, %s206
    %p215 = scmp.eq.s32.totalorder %s18, 1
    %p216 = por %p214, %p215
    %p217 = scmp.ne.s32.totalorder %s206, %s207
    %p218 = scmp.eq.s32.totalorder %s18, 0
    %p219 = por %p217, %p218
    %p220 = scmp.ne.s32.totalorder %s206, %s207
    %p221 = scmp.eq.s32.totalorder %s19, 1
    %p222 = por %p220, %p221
    %p224 = scmp.ne.s32.totalorder %s207, %s223
    %p225 = scmp.eq.s32.totalorder %s19, 0
    %p226 = por %p224, %p225
    %p227 = scmp.le.s32.totalorder 1, %s13
    %p228 = scmp.lt.s32.totalorder %s13, 3
    %p229 = pnand %p227, %p228
    %p230 = pneg %p229
    // Predicated region
    $region9: #{residual_group_forward.9} parent=5 // pred_check
      _
    $region10: #{residual_group_forward.9} parent=5 // pred_check_branch
      %232 = sbr.rel (%p229) target = $region12
    $region11: #{residual_group_forward.9} parent=5 // pred_region
      %s233 = ssub.s32 %s13, 1
      // Predicated region
      $region13: #{residual_group_forward.9} parent=11 // pred_check
        %p234 = pneg %p128
      $region14: #{residual_group_forward.9} parent=11 // pred_check_branch
        %236 = sbr.rel (%p234) target = $region16
      $region15: #{residual_group_forward.9} parent=11 // pred_region
        _
      $region16: #{residual_group_forward.9} parent=11 // pred_fallthru
        _
      // Predicated region
      $region17: #{residual_group_forward.9} parent=11 // pred_check
        %p237 = pneg %p149
      $region18: #{residual_group_forward.9} parent=11 // pred_check_branch
        %239 = sbr.rel (%p237) target = $region20
      $region19: #{residual_group_forward.9} parent=11 // pred_region
        _
      $region20: #{residual_group_forward.9} parent=11 // pred_fallthru
        _
      // Predicated region
      $region21: #{residual_group_forward.9} parent=11 // pred_check
        %p240 = pneg %p170
      $region22: #{residual_group_forward.9} parent=11 // pred_check_branch
        %242 = sbr.rel (%p240) target = $region24
      $region23: #{residual_group_forward.9} parent=11 // pred_region
        _
      $region24: #{residual_group_forward.9} parent=11 // pred_fallthru
        _
      // Predicated region
      $region25: #{residual_group_forward.9} parent=11 // pred_check
        %p243 = pneg %p191
      $region26: #{residual_group_forward.9} parent=11 // pred_check_branch
        %245 = sbr.rel (%p243) target = $region28
      $region27: #{residual_group_forward.9} parent=11 // pred_region
        _
      $region28: #{residual_group_forward.9} parent=11 // pred_fallthru
        _
    $region12: #{residual_group_forward.9} parent=5 // pred_fallthru
      _
    %p246 = scmp.lt.s32.totalorder %s13, 2
    // Predicated region
    $region29: #{residual_group_forward.9} parent=5 // pred_check
      %p247 = pneg %p246
    $region30: #{residual_group_forward.9} parent=5 // pred_check_branch
      %249 = sbr.rel (%p247) target = $region32
    $region31: #{residual_group_forward.9} parent=5 // pred_region
      // Predicated region
      $region33: #{residual_group_forward.9} parent=31 // pred_check
        %p250 = pneg %p47
      $region34: #{residual_group_forward.9} parent=31 // pred_check_branch
        %252 = sbr.rel (%p250) target = $region36
      $region35: #{residual_group_forward.9} parent=31 // pred_region
        %s253 = smul.u32 32, %s21
        %p254 = scmp.lt.s32.totalorder %s20, 1
        %s255 = scalar_select %p254, %s20, 1
        %p256 = scmp.lt.s32.totalorder %s253, 31
        %s257 = scalar_select %p256, %s253, 31
        %s258 = smul.addr %s255, 32
        %s259 = sadd.s32 %s257, %s258
        %s260 = smul.addr %s259, 8
        %s261 = scalar_lea.vmem %s0, %s260
        %s262 = smul.u32 32, %s21
      $region36: #{residual_group_forward.9} parent=31 // pred_fallthru
        _
      // Predicated region
      $region37: #{residual_group_forward.9} parent=31 // pred_check
        %p263 = pneg %p75
      $region38: #{residual_group_forward.9} parent=31 // pred_check_branch
        %265 = sbr.rel (%p263) target = $region40
      $region39: #{residual_group_forward.9} parent=31 // pred_region
        %s266 = smul.u32 32, %s21
        %p267 = scmp.lt.s32.totalorder %s20, 1
        %s268 = scalar_select %p267, %s20, 1
        %p269 = scmp.lt.s32.totalorder %s266, 31
        %s270 = scalar_select %p269, %s266, 31
        %s271 = smul.addr %s268, 32
        %s272 = sadd.s32 %s270, %s271
        %s273 = smul.addr %s272, 8
        %s274 = scalar_lea.vmem %s1, %s273
        %s275 = smul.u32 32, %s21
      $region40: #{residual_group_forward.9} parent=31 // pred_fallthru
        _
      // Predicated region
      $region41: #{residual_group_forward.9} parent=31 // pred_check
        %p276 = pneg %p101
      $region42: #{residual_group_forward.9} parent=31 // pred_check_branch
        %278 = sbr.rel (%p276) target = $region44
      $region43: #{residual_group_forward.9} parent=31 // pred_region
        %p279 = scmp.lt.s32.totalorder %s20, 1
        %s280 = scalar_select %p279, %s20, 1
        %s281 = scalar_lea.vmem %s2, %s280
      $region44: #{residual_group_forward.9} parent=31 // pred_fallthru
        _
    $region32: #{residual_group_forward.9} parent=5 // pred_fallthru
      _
    %p282 = scmp.le.s32.totalorder 1, %s13
    %p283 = scmp.lt.s32.totalorder %s13, 3
    %p284 = pnand %p282, %p283
    %p285 = pneg %p284
    // Predicated region
    $region45: #{residual_group_forward.9} parent=5 // pred_check
      _
    $region46: #{residual_group_forward.9} parent=5 // pred_check_branch
      %287 = sbr.rel (%p284) target = $region48
    $region47: #{residual_group_forward.9} parent=5 // pred_region
      %s288 = ssub.s32 %s13, 1
      %s289 = smul.u32 32, %s23
      %p290 = scmp.lt.s32.totalorder %s22, 1
      %s291 = scalar_select %p290, %s22, 1
      %p292 = scmp.lt.s32.totalorder %s289, 31
      %s293 = scalar_select %p292, %s289, 31
      %s294 = smul.addr %s291, 32
      %s295 = sadd.s32 %s293, %s294
      %s296 = smul.addr %s295, 8
      %s297 = scalar_lea.vmem %s0, %s296
      %p298 = pneg %p53
      %p299 = pneg %p50
      %s300 = smul.u32 32, %s23
      %p301 = scmp.lt.s32.totalorder %s22, 1
      %s302 = scalar_select %p301, %s22, 1
      %p303 = scmp.lt.s32.totalorder %s300, 31
      %s304 = scalar_select %p303, %s300, 31
      %s305 = smul.addr %s302, 32
      %s306 = sadd.s32 %s304, %s305
      %s307 = smul.addr %s306, 8
      %s308 = scalar_lea.vmem %s1, %s307
      %p309 = pneg %p81
      %p310 = pneg %p78
      %p311 = scmp.lt.s32.totalorder %s22, 1
      %s312 = scalar_select %p311, %s22, 1
      %s313 = scalar_lea.vmem %s2, %s312
      %p314 = pneg %p107
      %p315 = pneg %p104
      %p316 = pneg %p128
      %p317 = pneg %p125
      %p318 = pneg %p149
      %p319 = pneg %p146
      %p320 = pneg %p170
      %p321 = pneg %p167
      %p322 = pneg %p191
      %p323 = pneg %p188
      %p324 = pneg %p219
      %p325 = pneg %p216
      %s326 = smul.u32 32, %s23
      %p327 = scmp.lt.s32.totalorder %s22, 1
      %s328 = scalar_select %p327, %s22, 1
      %p329 = scmp.lt.s32.totalorder %s326, 31
      %s330 = scalar_select %p329, %s326, 31
      %s331 = smul.addr %s328, 32
      %s332 = sadd.s32 %s330, %s331
      %s333 = smul.addr %s332, 8
      %s334 = scalar_lea.vmem %s7, %s333
      %s335 = smul.u32 32, %s23
      %p336 = scmp.lt.s32.totalorder %s22, 1
      %s337 = scalar_select %p336, %s22, 1
      %p338 = scmp.lt.s32.totalorder %s335, 31
      %s339 = scalar_select %p338, %s335, 31
      %s340 = smul.addr %s337, 32
      %s341 = sadd.s32 %s339, %s340
      %s342 = smul.addr %s341, 8
      %s343 = scalar_lea.vmem %s0, %s342
      %s344 = smul.u32 32, %s23
      %s345 = smul.u32 32, %s23
      %p346 = scmp.lt.s32.totalorder %s22, 1
      %s347 = scalar_select %p346, %s22, 1
      %p348 = scmp.lt.s32.totalorder %s345, 31
      %s349 = scalar_select %p348, %s345, 31
      %s350 = smul.addr %s347, 32
      %s351 = sadd.s32 %s349, %s350
      %s352 = smul.addr %s351, 8
      %s353 = scalar_lea.vmem %s1, %s352
      %s354 = smul.u32 32, %s23
      %p355 = scmp.lt.s32.totalorder %s22, 1
      %s356 = scalar_select %p355, %s22, 1
      %s357 = scalar_lea.vmem %s2, %s356
      %s358 = smul.u32 32, %s23
      %p359 = scmp.lt.s32.totalorder %s22, 1
      %s360 = scalar_select %p359, %s22, 1
      %p361 = scmp.lt.s32.totalorder %s358, 31
      %s362 = scalar_select %p361, %s358, 31
      %s363 = smul.addr %s360, 32
      %s364 = sadd.s32 %s362, %s363
      %s365 = smul.addr %s364, 8
      %s366 = scalar_lea.vmem %s7, %s365
      %s367 = smul.u32 32, %s23
      %v368 = vld [vmem:[%s357] sm:$0x1]
      %v369 = vmul.f32 %v368, 0.00390625
      %v370 = vld [vmem:[%s3] sm:$0xff]
      %v371 = vld [vmem:[%s3 + $0x8] sm:$0xff]
      %v372 = vld [vmem:[%s3 + $0x10] sm:$0xff]
      %v373 = vld [vmem:[%s3 + $0x18] sm:$0xff]
      %v374 = vld [vmem:[%s3 + $0x20] sm:$0xff]
      %v375 = vld [vmem:[%s3 + $0x28] sm:$0xff]
      %v376 = vld [vmem:[%s3 + $0x30] sm:$0xff]
      %v377 = vld [vmem:[%s3 + $0x38] sm:$0xff]
      %v378 = vld [vmem:[%s3 + $0x40] sm:$0xff]
      %v379 = vld [vmem:[%s3 + $0x48] sm:$0xff]
      %v380 = vld [vmem:[%s3 + $0x50] sm:$0xff]
      %v381 = vld [vmem:[%s3 + $0x58] sm:$0xff]
      %v382 = vld [vmem:[%s3 + $0x60] sm:$0xff]
      %v383 = vld [vmem:[%s3 + $0x68] sm:$0xff]
      %v384 = vld [vmem:[%s3 + $0x70] sm:$0xff]
      %v385 = vld [vmem:[%s3 + $0x78] sm:$0xff]
      %v386 = vld [vmem:[%s4] sm:$0x1]
      %387 = vmatprep.subr.mxu0 0.0
      %388 = vmatpush1.msra.mxu0 %v370
      %389 = vmatprep.subr.mxu0 0.0
      %390 = vmatpush1.msra.mxu0 %v371
      %391 = vmatprep.subr.mxu0 0.0
      %392 = vmatpush1.msra.mxu0 %v372
      %393 = vmatprep.subr.mxu0 0.0
      %394 = vmatpush1.msra.mxu0 %v373
      %395 = vmatprep.subr.mxu0 0.0
      %396 = vmatpush1.msra.mxu0 %v374
      %397 = vmatprep.subr.mxu0 0.0
      %398 = vmatpush1.msra.mxu0 %v375
      %399 = vmatprep.subr.mxu0 0.0
      %400 = vmatpush1.msra.mxu0 %v376
      %401 = vmatprep.subr.mxu0 0.0
      %402 = vmatpush1.msra.mxu0 %v377
      %403 = vmatprep.subr.mxu0 0.0
      %404 = vmatpush1.msra.mxu0 %v378
      %405 = vmatprep.subr.mxu0 0.0
      %406 = vmatpush1.msra.mxu0 %v379
      %407 = vmatprep.subr.mxu0 0.0
      %408 = vmatpush1.msra.mxu0 %v380
      %409 = vmatprep.subr.mxu0 0.0
      %410 = vmatpush1.msra.mxu0 %v381
      %411 = vmatprep.subr.mxu0 0.0
      %412 = vmatpush1.msra.mxu0 %v382
      %413 = vmatprep.subr.mxu0 0.0
      %414 = vmatpush1.msra.mxu0 %v383
      %415 = vmatprep.subr.mxu0 0.0
      %416 = vmatpush1.msra.mxu0 %v384
      %417 = vmatprep.subr.mxu0 0.0
      %418 = vmatpush1.msra.mxu0 %v385
      %419 = vmatprep.subr.mxu0 0.0
      %420 = vmatpush1.msra.mxu0 0.0
      %421 = vmatprep.subr.mxu0 0.0
      %422 = vmatpush1.msra.mxu0 0.0
      %423 = vmatprep.subr.mxu0 0.0
      %424 = vmatpush1.msra.mxu0 0.0
      %425 = vmatprep.subr.mxu0 0.0
      %426 = vmatpush1.msra.mxu0 0.0
      %427 = vmatprep.subr.mxu0 0.0
      %428 = vmatpush1.msra.mxu0 0.0
      %429 = vmatprep.subr.mxu0 0.0
      %430 = vmatpush1.msra.mxu0 0.0
      %431 = vmatprep.subr.mxu0 0.0
      %432 = vmatpush1.msra.mxu0 0.0
      %433 = vmatprep.subr.mxu0 0.0
      %434 = vmatpush1.msra.mxu0 0.0
      %435 = vmatprep.subr.mxu0 0.0
      %436 = vmatpush1.msra.mxu0 0.0
      %437 = vmatprep.subr.mxu0 0.0
      %438 = vmatpush1.msra.mxu0 0.0
      %439 = vmatprep.subr.mxu0 0.0
      %440 = vmatpush1.msra.mxu0 0.0
      %441 = vmatprep.subr.mxu0 0.0
      %442 = vmatpush1.msra.mxu0 0.0
      %443 = vmatprep.subr.mxu0 0.0
      %444 = vmatpush1.msra.mxu0 0.0
      %445 = vmatprep.subr.mxu0 0.0
      %446 = vmatpush1.msra.mxu0 0.0
      %447 = vmatprep.subr.mxu0 0.0
      %448 = vmatpush1.msra.mxu0 0.0
      %449 = vmatprep.subr.mxu0 0.0
      %450 = vmatpush1.msra.mxu0 0.0
      %451 = vmatprep.mubr.f32.mxu0 0.0
      %452 = vmatmul.mubr.f32.gmra.mrb[0].mxu0 %v369
      %v453 = vpop.f32.mrb[0].mxu0
      %v454 = vadd.f32 %v386, %v453
      %v455 = vpop.f32.mrb[0].mxu0
      %456 = vdwg.mxu0
      %v457 = vmax.f32 %v454, 0.0
      %v458 = vld [vmem:[%s5] sm:$0xff]
      %v459 = vld [vmem:[%s6] sm:$0x1]
      %vm460 = vcmask 64512
      %v462 = vsel %vm460, %v457, 0
      %464 = vmatprep.subr.mxu0 0.0
      %465 = vmatpush1.msra.mxu0 %v458
      %466 = vmatprep.subr.mxu0 0.0
      %467 = vmatpush1.msra.mxu0 0.0
      %468 = vmatprep.subr.mxu0 0.0
      %469 = vmatpush1.msra.mxu0 0.0
      %470 = vmatprep.subr.mxu0 0.0
      %471 = vmatpush1.msra.mxu0 0.0
      %472 = vmatprep.subr.mxu0 0.0
      %473 = vmatpush1.msra.mxu0 0.0
      %474 = vmatprep.subr.mxu0 0.0
      %475 = vmatpush1.msra.mxu0 0.0
      %476 = vmatprep.subr.mxu0 0.0
      %477 = vmatpush1.msra.mxu0 0.0
      %478 = vmatprep.subr.mxu0 0.0
      %479 = vmatpush1.msra.mxu0 0.0
      %480 = vmatprep.subr.mxu0 0.0
      %481 = vmatpush1.msra.mxu0 0.0
      %482 = vmatprep.subr.mxu0 0.0
      %483 = vmatpush1.msra.mxu0 0.0
      %484 = vmatprep.subr.mxu0 0.0
      %485 = vmatpush1.msra.mxu0 0.0
      %486 = vmatprep.subr.mxu0 0.0
      %487 = vmatpush1.msra.mxu0 0.0
      %488 = vmatprep.subr.mxu0 0.0
      %489 = vmatpush1.msra.mxu0 0.0
      %490 = vmatprep.subr.mxu0 0.0
      %491 = vmatpush1.msra.mxu0 0.0
      %492 = vmatprep.subr.mxu0 0.0
      %493 = vmatpush1.msra.mxu0 0.0
      %494 = vmatprep.subr.mxu0 0.0
      %495 = vmatpush1.msra.mxu0 0.0
      %496 = vmatprep.subr.mxu0 0.0
      %497 = vmatpush1.msra.mxu0 0.0
      %498 = vmatprep.subr.mxu0 0.0
      %499 = vmatpush1.msra.mxu0 0.0
      %500 = vmatprep.subr.mxu0 0.0
      %501 = vmatpush1.msra.mxu0 0.0
      %502 = vmatprep.subr.mxu0 0.0
      %503 = vmatpush1.msra.mxu0 0.0
      %504 = vmatprep.subr.mxu0 0.0
      %505 = vmatpush1.msra.mxu0 0.0
      %506 = vmatprep.subr.mxu0 0.0
      %507 = vmatpush1.msra.mxu0 0.0
      %508 = vmatprep.subr.mxu0 0.0
      %509 = vmatpush1.msra.mxu0 0.0
      %510 = vmatprep.subr.mxu0 0.0
      %511 = vmatpush1.msra.mxu0 0.0
      %512 = vmatprep.subr.mxu0 0.0
      %513 = vmatpush1.msra.mxu0 0.0
      %514 = vmatprep.subr.mxu0 0.0
      %515 = vmatpush1.msra.mxu0 0.0
      %516 = vmatprep.subr.mxu0 0.0
      %517 = vmatpush1.msra.mxu0 0.0
      %518 = vmatprep.subr.mxu0 0.0
      %519 = vmatpush1.msra.mxu0 0.0
      %520 = vmatprep.subr.mxu0 0.0
      %521 = vmatpush1.msra.mxu0 0.0
      %522 = vmatprep.subr.mxu0 0.0
      %523 = vmatpush1.msra.mxu0 0.0
      %524 = vmatprep.subr.mxu0 0.0
      %525 = vmatpush1.msra.mxu0 0.0
      %526 = vmatprep.subr.mxu0 0.0
      %527 = vmatpush1.msra.mxu0 0.0
      %528 = vmatprep.mubr.f32.mxu0 0.0
      %529 = vmatmul.mubr.f32.gmra.mrb[0].mxu0 %v462
      %v530 = vpop.f32.mrb[0].mxu0
      %v531 = vadd.f32 %v459, %v530
      %v532 = vpop.f32.mrb[0].mxu0
      %533 = vdwg.mxu0
      %v534 = vsub.f32 0.0, %v531
      %v535 = vmul.f32 %v534, 1.442695
      %v536 = vpow.pop %v535
      %v537 = vadd.f32 %v536, 1.0
      %v538 = vrcp.pop %v537
      %v539 = vmul.f32 1.0, %v538
      %v540 = vld [vmem:[%s343] sm:$0xff]
      %v541 = vld [vmem:[%s343 + $0x8] sm:$0xff]
      %v542 = vld [vmem:[%s343 + $0x10] sm:$0xff]
      %v543 = vld [vmem:[%s343 + $0x18] sm:$0xff]
      %v544 = vld [vmem:[%s343 + $0x20] sm:$0xff]
      %v545 = vld [vmem:[%s343 + $0x28] sm:$0xff]
      %v546 = vld [vmem:[%s343 + $0x30] sm:$0xff]
      %v547 = vld [vmem:[%s343 + $0x38] sm:$0xff]
      %v548 = vld [vmem:[%s343 + $0x40] sm:$0xff]
      %v549 = vld [vmem:[%s343 + $0x48] sm:$0xff]
      %v550 = vld [vmem:[%s343 + $0x50] sm:$0xff]
      %v551 = vld [vmem:[%s343 + $0x58] sm:$0xff]
      %v552 = vld [vmem:[%s343 + $0x60] sm:$0xff]
      %v553 = vld [vmem:[%s343 + $0x68] sm:$0xff]
      %v554 = vld [vmem:[%s343 + $0x70] sm:$0xff]
      %v555 = vld [vmem:[%s343 + $0x78] sm:$0xff]
      %v556 = vld [vmem:[%s343 + $0x80] sm:$0xff]
      %v557 = vld [vmem:[%s343 + $0x88] sm:$0xff]
      %v558 = vld [vmem:[%s343 + $0x90] sm:$0xff]
      %v559 = vld [vmem:[%s343 + $0x98] sm:$0xff]
      %v560 = vld [vmem:[%s343 + $0xa0] sm:$0xff]
      %v561 = vld [vmem:[%s343 + $0xa8] sm:$0xff]
      %v562 = vld [vmem:[%s343 + $0xb0] sm:$0xff]
      %v563 = vld [vmem:[%s343 + $0xb8] sm:$0xff]
      %v564 = vld [vmem:[%s343 + $0xc0] sm:$0xff]
      %v565 = vld [vmem:[%s343 + $0xc8] sm:$0xff]
      %v566 = vld [vmem:[%s343 + $0xd0] sm:$0xff]
      %v567 = vld [vmem:[%s343 + $0xd8] sm:$0xff]
      %v568 = vld [vmem:[%s343 + $0xe0] sm:$0xff]
      %v569 = vld [vmem:[%s343 + $0xe8] sm:$0xff]
      %v570 = vld [vmem:[%s343 + $0xf0] sm:$0xff]
      %v571 = vld [vmem:[%s343 + $0xf8] sm:$0xff]
      %v572 = vld [vmem:[%s353] sm:$0xff]
      %v573 = vld [vmem:[%s353 + $0x8] sm:$0xff]
      %v574 = vld [vmem:[%s353 + $0x10] sm:$0xff]
      %v575 = vld [vmem:[%s353 + $0x18] sm:$0xff]
      %v576 = vld [vmem:[%s353 + $0x20] sm:$0xff]
      %v577 = vld [vmem:[%s353 + $0x28] sm:$0xff]
      %v578 = vld [vmem:[%s353 + $0x30] sm:$0xff]
      %v579 = vld [vmem:[%s353 + $0x38] sm:$0xff]
      %v580 = vld [vmem:[%s353 + $0x40] sm:$0xff]
      %v581 = vld [vmem:[%s353 + $0x48] sm:$0xff]
      %v582 = vld [vmem:[%s353 + $0x50] sm:$0xff]
      %v583 = vld [vmem:[%s353 + $0x58] sm:$0xff]
      %v584 = vld [vmem:[%s353 + $0x60] sm:$0xff]
      %v585 = vld [vmem:[%s353 + $0x68] sm:$0xff]
      %v586 = vld [vmem:[%s353 + $0x70] sm:$0xff]
      %v587 = vld [vmem:[%s353 + $0x78] sm:$0xff]
      %v588 = vld [vmem:[%s353 + $0x80] sm:$0xff]
      %v589 = vld [vmem:[%s353 + $0x88] sm:$0xff]
      %v590 = vld [vmem:[%s353 + $0x90] sm:$0xff]
      %v591 = vld [vmem:[%s353 + $0x98] sm:$0xff]
      %v592 = vld [vmem:[%s353 + $0xa0] sm:$0xff]
      %v593 = vld [vmem:[%s353 + $0xa8] sm:$0xff]
      %v594 = vld [vmem:[%s353 + $0xb0] sm:$0xff]
      %v595 = vld [vmem:[%s353 + $0xb8] sm:$0xff]
      %v596 = vld [vmem:[%s353 + $0xc0] sm:$0xff]
      %v597 = vld [vmem:[%s353 + $0xc8] sm:$0xff]
      %v598 = vld [vmem:[%s353 + $0xd0] sm:$0xff]
      %v599 = vld [vmem:[%s353 + $0xd8] sm:$0xff]
      %v600 = vld [vmem:[%s353 + $0xe0] sm:$0xff]
      %v601 = vld [vmem:[%s353 + $0xe8] sm:$0xff]
      %v602 = vld [vmem:[%s353 + $0xf0] sm:$0xff]
      %v603 = vld [vmem:[%s353 + $0xf8] sm:$0xff]
      %v604 = vlaneseq
      %v605 = vshrl.u32 %v604, 7
      %v606 = vsub.s32 0, %v605
      %v607 = vrot.slane %v539, %v606
      %v608 = vmul.f32 %v572, %v607
      %v609 = vmul.f32 %v573, %v607
      %v610 = vmul.f32 %v574, %v607
      %v611 = vmul.f32 %v575, %v607
      %v612 = vmul.f32 %v576, %v607
      %v613 = vmul.f32 %v577, %v607
      %v614 = vmul.f32 %v578, %v607
      %v615 = vmul.f32 %v579, %v607
      %v616 = vmul.f32 %v580, %v607
      %v617 = vmul.f32 %v581, %v607
      %v618 = vmul.f32 %v582, %v607
      %v619 = vmul.f32 %v583, %v607
      %v620 = vmul.f32 %v584, %v607
      %v621 = vmul.f32 %v585, %v607
      %v622 = vmul.f32 %v586, %v607
      %v623 = vmul.f32 %v587, %v607
      %v624 = vmul.f32 %v588, %v607
      %v625 = vmul.f32 %v589, %v607
      %v626 = vmul.f32 %v590, %v607
      %v627 = vmul.f32 %v591, %v607
      %v628 = vmul.f32 %v592, %v607
      %v629 = vmul.f32 %v593, %v607
      %v630 = vmul.f32 %v594, %v607
      %v631 = vmul.f32 %v595, %v607
      %v632 = vmul.f32 %v596, %v607
      %v633 = vmul.f32 %v597, %v607
      %v634 = vmul.f32 %v598, %v607
      %v635 = vmul.f32 %v599, %v607
      %v636 = vmul.f32 %v600, %v607
      %v637 = vmul.f32 %v601, %v607
      %v638 = vmul.f32 %v602, %v607
      %v639 = vmul.f32 %v603, %v607
      %v640 = vadd.f32 %v540, %v608
      %v641 = vadd.f32 %v541, %v609
      %v642 = vadd.f32 %v542, %v610
      %v643 = vadd.f32 %v543, %v611
      %v644 = vadd.f32 %v544, %v612
      %v645 = vadd.f32 %v545, %v613
      %v646 = vadd.f32 %v546, %v614
      %v647 = vadd.f32 %v547, %v615
      %v648 = vadd.f32 %v548, %v616
      %v649 = vadd.f32 %v549, %v617
      %v650 = vadd.f32 %v550, %v618
      %v651 = vadd.f32 %v551, %v619
      %v652 = vadd.f32 %v552, %v620
      %v653 = vadd.f32 %v553, %v621
      %v654 = vadd.f32 %v554, %v622
      %v655 = vadd.f32 %v555, %v623
      %v656 = vadd.f32 %v556, %v624
      %v657 = vadd.f32 %v557, %v625
      %v658 = vadd.f32 %v558, %v626
      %v659 = vadd.f32 %v559, %v627
      %v660 = vadd.f32 %v560, %v628
      %v661 = vadd.f32 %v561, %v629
      %v662 = vadd.f32 %v562, %v630
      %v663 = vadd.f32 %v563, %v631
      %v664 = vadd.f32 %v564, %v632
      %v665 = vadd.f32 %v565, %v633
      %v666 = vadd.f32 %v566, %v634
      %v667 = vadd.f32 %v567, %v635
      %v668 = vadd.f32 %v568, %v636
      %v669 = vadd.f32 %v569, %v637
      %v670 = vadd.f32 %v570, %v638
      %v671 = vadd.f32 %v571, %v639
      %672 = vst [vmem:[%s366] sm:$0xff] %v640
      %673 = vst [vmem:[%s366 + $0x8] sm:$0xff] %v641
      %674 = vst [vmem:[%s366 + $0x10] sm:$0xff] %v642
      %675 = vst [vmem:[%s366 + $0x18] sm:$0xff] %v643
      %676 = vst [vmem:[%s366 + $0x20] sm:$0xff] %v644
      %677 = vst [vmem:[%s366 + $0x28] sm:$0xff] %v645
      %678 = vst [vmem:[%s366 + $0x30] sm:$0xff] %v646
      %679 = vst [vmem:[%s366 + $0x38] sm:$0xff] %v647
      %680 = vst [vmem:[%s366 + $0x40] sm:$0xff] %v648
      %681 = vst [vmem:[%s366 + $0x48] sm:$0xff] %v649
      %682 = vst [vmem:[%s366 + $0x50] sm:$0xff] %v650
      %683 = vst [vmem:[%s366 + $0x58] sm:$0xff] %v651
      %684 = vst [vmem:[%s366 + $0x60] sm:$0xff] %v652
      %685 = vst [vmem:[%s366 + $0x68] sm:$0xff] %v653
      %686 = vst [vmem:[%s366 + $0x70] sm:$0xff] %v654
      %687 = vst [vmem:[%s366 + $0x78] sm:$0xff] %v655
      %688 = vst [vmem:[%s366 + $0x80] sm:$0xff] %v656
      %689 = vst [vmem:[%s366 + $0x88] sm:$0xff] %v657
      %690 = vst [vmem:[%s366 + $0x90] sm:$0xff] %v658
      %691 = vst [vmem:[%s366 + $0x98] sm:$0xff] %v659
      %692 = vst [vmem:[%s366 + $0xa0] sm:$0xff] %v660
      %693 = vst [vmem:[%s366 + $0xa8] sm:$0xff] %v661
      %694 = vst [vmem:[%s366 + $0xb0] sm:$0xff] %v662
      %695 = vst [vmem:[%s366 + $0xb8] sm:$0xff] %v663
      %696 = vst [vmem:[%s366 + $0xc0] sm:$0xff] %v664
      %697 = vst [vmem:[%s366 + $0xc8] sm:$0xff] %v665
      %698 = vst [vmem:[%s366 + $0xd0] sm:$0xff] %v666
      %699 = vst [vmem:[%s366 + $0xd8] sm:$0xff] %v667
      %700 = vst [vmem:[%s366 + $0xe0] sm:$0xff] %v668
      %701 = vst [vmem:[%s366 + $0xe8] sm:$0xff] %v669
      %702 = vst [vmem:[%s366 + $0xf0] sm:$0xff] %v670
      %703 = vst [vmem:[%s366 + $0xf8] sm:$0xff] %v671
      %s704 = smul.u32 32, %s23
      %p705 = scmp.lt.s32.totalorder %s22, 1
      %s706 = scalar_select %p705, %s22, 1
      %p707 = scmp.lt.s32.totalorder %s704, 31
      %s708 = scalar_select %p707, %s704, 31
      %s709 = smul.addr %s706, 32
      %s710 = sadd.s32 %s708, %s709
      %s711 = smul.addr %s710, 8
      %s712 = scalar_lea.vmem %s7, %s711
      // Predicated region
      $region49: #{residual_group_forward.9} parent=47 // pred_check
        %p713 = pneg %p216
      $region50: #{residual_group_forward.9} parent=47 // pred_check_branch
        %715 = sbr.rel (%p713) target = $region52
      $region51: #{residual_group_forward.9} parent=47 // pred_region
        %s716 = smul.u32 32, %s23
      $region52: #{residual_group_forward.9} parent=47 // pred_fallthru
        _
    $region48: #{residual_group_forward.9} parent=5 // pred_fallthru
      _
    %p717 = scmp.le.s32.totalorder 2, %s13
    // Predicated region
    $region53: #{residual_group_forward.9} parent=5 // pred_check
      %p718 = pneg %p717
    $region54: #{residual_group_forward.9} parent=5 // pred_check_branch
      %720 = sbr.rel (%p718) target = $region56
    $region55: #{residual_group_forward.9} parent=5 // pred_region
      %s721 = ssub.s32 %s13, 2
      // Predicated region
      $region57: #{residual_group_forward.9} parent=55 // pred_check
        %p722 = pneg %p222
      $region58: #{residual_group_forward.9} parent=55 // pred_check_branch
        %724 = sbr.rel (%p722) target = $region60
      $region59: #{residual_group_forward.9} parent=55 // pred_region
        %s725 = smul.u32 32, %s25
        %p726 = scmp.lt.s32.totalorder %s24, 1
        %s727 = scalar_select %p726, %s24, 1
        %p728 = scmp.lt.s32.totalorder %s725, 31
        %s729 = scalar_select %p728, %s725, 31
        %s730 = smul.addr %s727, 32
        %s731 = sadd.s32 %s729, %s730
        %s732 = smul.addr %s731, 8
        %s733 = scalar_lea.vmem %s7, %s732
      $region60: #{residual_group_forward.9} parent=55 // pred_fallthru
        _
    $region56: #{residual_group_forward.9} parent=5 // pred_fallthru
      _
  $region6: #{residual_group_forward.9} parent=0 // loop_footer
    %s17 = sadd.s32 1, %s13
  $region7: #{residual_group_forward.9} parent=0 // loop_footer_branch
    %12 = sbr.rel target = $region3
  $region8: #{residual_group_forward.9} parent=0 // loop_exit
    _

// kernel: residual_group_forward.13
$region0: #{residual_group_forward.13}
  #allocation0 [shape = 'u32[]', space=smem, size = 0x4, offset = 0x4, fixed_abs, tag = 'smem constant byte address 0x4 - core index']
  #allocation1 [shape = 'u32[144,128]{1,0:T(1,128)}', space=vmem, size = 0x12000, scoped, tag = 'internal scratch']
  %s0 = inlined_call_operand.vmem [shape: bf16[2,18,18,128], index: 0, kind: input, shape index: {}, may-alias: {0,1}]
  %s1 = inlined_call_operand.vmem [shape: bf16[2,18,18,128], index: 1, kind: input, shape index: {}, may-alias: {0,1}]
  %s2 = inlined_call_operand.vmem [shape: bf16[3,3,128,128], index: 2, kind: input, shape index: {}]
  %s3 = inlined_call_operand.vmem [shape: f32[1,128], index: 3, kind: input, shape index: {}]
  %s4 = inlined_call_operand.vmem [shape: f32[2,16,16,128], index: 4, kind: input, shape index: {}]
  %s5 = inlined_call_operand.hbm [shape: f32[2,16,16,128], index: 5, kind: output, shape index: {}]
  %s6 = sld [smem:[#allocation0]]
  $region53: #{residual_group_forward.13} parent=0
    _
  %s8 = ssub.s32 1, %s6
  %s9 = scalar_select 0, %s8, %s6
  $region1: #{residual_group_forward.13} parent=0
    #allocation2 [shape = 'u8[262144]{0}', space=vmem, size = 0x40000, scoped, tag = 'output window, operand 0']
    #allocation3 [shape = 's32[2]{0}', space=sflag, size = 0x8, scoped, tag = 'scoped memory for residual_group_forward.13']
    %10 = vsyncpa [#allocation3], 0
    %s11 = scalar_lea.sflag [#allocation3], 1
    %12 = vsyncpa %s11, 0
    loop: start=0, step=1, limit=4
    $region2: #{residual_group_forward.13} parent=1 // loop_pre_header
      _
    $region3: #{residual_group_forward.13} parent=1 // loop_header
      %s14 = sphi 0, %s18
      %p15 = scmp.ge.s32.totalorder %s14, 4
      %s21 = sphi 0, %s33
      %s22 = sphi 0, %s29
      %s23 = sphi 0, %s21
      %s24 = sphi 0, %s22
      %s25 = sphi 0, %s23
      %s26 = sphi 0, %s24
      %s38 = sphi 0, %s40
      %s41 = sphi 0, %s38
      %s42 = sphi 0, %s41
      %s58 = sphi 0, %s42
      %s70 = sphi 0, %s72
      %s73 = sphi 0, %s70
      %s74 = sphi 0, %s73
      %s90 = sphi 0, %s74
      %s94 = sphi 0, %s94
      %s96 = sphi 0, %s94
      %s97 = sphi 0, %s96
      %s111 = sphi 0, %s97
      %s115 = sphi 0, %s115
      %s117 = sphi 0, %s115
      %s118 = sphi 0, %s117
      %s132 = sphi 0, %s118
      %s140 = sphi 0, %s142
      %s143 = sphi 0, %s140
      %s144 = sphi 0, %s143
      %s160 = sphi 0, %s144
      %s168 = sphi 0, %s170
      %s171 = sphi 0, %s168
      %s172 = sphi 0, %s171
      %s188 = sphi 0, %s172
    $region4: #{residual_group_forward.13} parent=1 // loop_header_branch
      %17 = sbr.rel (%p15) target = $region8
    $region5: #{residual_group_forward.13} parent=1 // loop_body
      %s19 = ssub.s32 %s14, 1
      %s20 = ssub.s32 %s14, 2
      %s27 = sadd.s32 1, %s22
      %p28 = scmp.ge.s32.totalorder %s27, 1
      %s29 = scalar_select %p28, 0, %s27
      %s30 = sadd.s32 1, %s21
      %s31 = scalar_select %p28, %s30, %s21
      %p32 = scmp.ge.s32.totalorder %s31, 2
      %s33 = scalar_select %p32, 0, %s31
      %s34 = ssub.s32 %s21, %s33
      %s35 = ssub.s32 %s22, %s29
      %s36 = sor.u32 %s34, %s35
      %p37 = scmp.eq.s32.totalorder %s36, 0
      %s39 = sadd.s32 %s38, 1
      %s40 = scalar_select %p37, %s38, %s39
      %p43 = pneg %p37
      %p44 = scmp.eq.s32.totalorder %s14, 1
      %p45 = por %p43, %p44
      %p46 = scmp.ne.s32.totalorder %s38, %s41
      %p47 = scmp.eq.s32.totalorder %s14, 0
      %p48 = por %p46, %p47
      %p49 = scmp.ne.s32.totalorder %s38, %s41
      %p50 = scmp.eq.s32.totalorder %s19, 1
      %p51 = por %p49, %p50
      %p52 = scmp.ne.s32.totalorder %s41, %s42
      %p53 = scmp.eq.s32.totalorder %s19, 0
      %p54 = por %p52, %p53
      %p55 = scmp.ne.s32.totalorder %s41, %s42
      %p56 = scmp.eq.s32.totalorder %s20, 1
      %p57 = por %p55, %p56
      %p59 = scmp.ne.s32.totalorder %s42, %s58
      %p60 = scmp.eq.s32.totalorder %s20, 0
      %p61 = por %p59, %p60
      %s62 = sadd.s32 %s22, 1
      %s63 = smul.u32 %s62, 8
      %s64 = sadd.s32 %s29, 1
      %s65 = smul.u32 %s64, 8
      %s66 = ssub.s32 %s21, %s33
      %s67 = ssub.s32 %s63, %s65
      %s68 = sor.u32 %s66, %s67
      %p69 = scmp.eq.s32.totalorder %s68, 0
      %s71 = sadd.s32 %s70, 1
      %s72 = scalar_select %p69, %s70, %s71
      %p75 = pneg %p69
      %p76 = scmp.eq.s32.totalorder %s14, 1
      %p77 = por %p75, %p76
      %p78 = scmp.ne.s32.totalorder %s70, %s73
      %p79 = scmp.eq.s32.totalorder %s14, 0
      %p80 = por %p78, %p79
      %p81 = scmp.ne.s32.totalorder %s70, %s73
      %p82 = scmp.eq.s32.totalorder %s19, 1
      %p83 = por %p81, %p82
      %p84 = scmp.ne.s32.totalorder %s73, %s74
      %p85 = scmp.eq.s32.totalorder %s19, 0
      %p86 = por %p84, %p85
      %p87 = scmp.ne.s32.totalorder %s73, %s74
      %p88 = scmp.eq.s32.totalorder %s20, 1
      %p89 = por %p87, %p88
      %p91 = scmp.ne.s32.totalorder %s74, %s90
      %p92 = scmp.eq.s32.totalorder %s20, 0
      %p93 = por %p91, %p92
      %s95 = sadd.s32 %s94, 1
      %p98 = scmp.eq.s32.totalorder %s14, 1
      %p99 = scmp.ne.s32.totalorder %s94, %s96
      %p100 = scmp.eq.s32.totalorder %s14, 0
      %p101 = por %p99, %p100
      %p102 = scmp.ne.s32.totalorder %s94, %s96
      %p103 = scmp.eq.s32.totalorder %s19, 1
      %p104 = por %p102, %p103
      %p105 = scmp.ne.s32.totalorder %s96, %s97
      %p106 = scmp.eq.s32.totalorder %s19, 0
      %p107 = por %p105, %p106
      %p108 = scmp.ne.s32.totalorder %s96, %s97
      %p109 = scmp.eq.s32.totalorder %s20, 1
      %p110 = por %p108, %p109
      %p112 = scmp.ne.s32.totalorder %s97, %s111
      %p113 = scmp.eq.s32.totalorder %s20, 0
      %p114 = por %p112, %p113
      %s116 = sadd.s32 %s115, 1
      %p119 = scmp.eq.s32.totalorder %s14, 1
      %p120 = scmp.ne.s32.totalorder %s115, %s117
      %p121 = scmp.eq.s32.totalorder %s14, 0
      %p122 = por %p120, %p121
      %p123 = scmp.ne.s32.totalorder %s115, %s117
      %p124 = scmp.eq.s32.totalorder %s19, 1
      %p125 = por %p123, %p124
      %p126 = scmp.ne.s32.totalorder %s117, %s118
      %p127 = scmp.eq.s32.totalorder %s19, 0
      %p128 = por %p126, %p127
      %p129 = scmp.ne.s32.totalorder %s117, %s118
      %p130 = scmp.eq.s32.totalorder %s20, 1
      %p131 = por %p129, %p130
      %p133 = scmp.ne.s32.totalorder %s118, %s132
      %p134 = scmp.eq.s32.totalorder %s20, 0
      %p135 = por %p133, %p134
      %s136 = ssub.s32 %s21, %s33
      %s137 = ssub.s32 %s22, %s29
      %s138 = sor.u32 %s136, %s137
      %p139 = scmp.eq.s32.totalorder %s138, 0
      %s141 = sadd.s32 %s140, 1
      %s142 = scalar_select %p139, %s140, %s141
      %p145 = pneg %p139
      %p146 = scmp.eq.s32.totalorder %s14, 1
      %p147 = por %p145, %p146
      %p148 = scmp.ne.s32.totalorder %s140, %s143
      %p149 = scmp.eq.s32.totalorder %s14, 0
      %p150 = por %p148, %p149
      %p151 = scmp.ne.s32.totalorder %s140, %s143
      %p152 = scmp.eq.s32.totalorder %s19, 1
      %p153 = por %p151, %p152
      %p154 = scmp.ne.s32.totalorder %s143, %s144
      %p155 = scmp.eq.s32.totalorder %s19, 0
      %p156 = por %p154, %p155
      %p157 = scmp.ne.s32.totalorder %s143, %s144
      %p158 = scmp.eq.s32.totalorder %s20, 1
      %p159 = por %p157, %p158
      %p161 = scmp.ne.s32.totalorder %s144, %s160
      %p162 = scmp.eq.s32.totalorder %s20, 0
      %p163 = por %p161, %p162
      %s164 = ssub.s32 %s21, %s33
      %s165 = ssub.s32 %s22, %s29
      %s166 = sor.u32 %s164, %s165
      %p167 = scmp.eq.s32.totalorder %s166, 0
      %s169 = sadd.s32 %s168, 1
      %s170 = scalar_select %p167, %s168, %s169
      %p173 = pneg %p167
      %p174 = scmp.eq.s32.totalorder %s14, 1
      %p175 = por %p173, %p174
      %p176 = scmp.ne.s32.totalorder %s168, %s171
      %p177 = scmp.eq.s32.totalorder %s14, 0
      %p178 = por %p176, %p177
      %p179 = scmp.ne.s32.totalorder %s168, %s171
      %p180 = scmp.eq.s32.totalorder %s19, 1
      %p181 = por %p179, %p180
      %p182 = scmp.ne.s32.totalorder %s171, %s172
      %p183 = scmp.eq.s32.totalorder %s19, 0
      %p184 = por %p182, %p183
      %p185 = scmp.ne.s32.totalorder %s171, %s172
      %p186 = scmp.eq.s32.totalorder %s20, 1
      %p187 = por %p185, %p186
      %p189 = scmp.ne.s32.totalorder %s172, %s188
      %p190 = scmp.eq.s32.totalorder %s20, 0
      %p191 = por %p189, %p190
      %p192 = scmp.le.s32.totalorder 1, %s14
      %p193 = scmp.lt.s32.totalorder %s14, 3
      %p194 = pnand %p192, %p193
      %p195 = pneg %p194
      // Predicated region
      $region9: #{residual_group_forward.13} parent=5 // pred_check
        _
      $region10: #{residual_group_forward.13} parent=5 // pred_check_branch
        %197 = sbr.rel (%p194) target = $region12
      $region11: #{residual_group_forward.13} parent=5 // pred_region
        %s198 = ssub.s32 %s14, 1
        // Predicated region
        $region13: #{residual_group_forward.13} parent=11 // pred_check
          %p199 = pneg %p107
        $region14: #{residual_group_forward.13} parent=11 // pred_check_branch
          %201 = sbr.rel (%p199) target = $region16
        $region15: #{residual_group_forward.13} parent=11 // pred_region
          _
        $region16: #{residual_group_forward.13} parent=11 // pred_fallthru
          _
        // Predicated region
        $region17: #{residual_group_forward.13} parent=11 // pred_check
          %p202 = pneg %p128
        $region18: #{residual_group_forward.13} parent=11 // pred_check_branch
          %204 = sbr.rel (%p202) target = $region20
        $region19: #{residual_group_forward.13} parent=11 // pred_region
          _
        $region20: #{residual_group_forward.13} parent=11 // pred_fallthru
          _
      $region12: #{residual_group_forward.13} parent=5 // pred_fallthru
        _
      %p205 = scmp.lt.s32.totalorder %s14, 2
      // Predicated region
      $region21: #{residual_group_forward.13} parent=5 // pred_check
        %p206 = pneg %p205
      $region22: #{residual_group_forward.13} parent=5 // pred_check_branch
        %208 = sbr.rel (%p206) target = $region24
      $region23: #{residual_group_forward.13} parent=5 // pred_region
        // Predicated region
        $region25: #{residual_group_forward.13} parent=23 // pred_check
          %p209 = pneg %p48
        $region26: #{residual_group_forward.13} parent=23 // pred_check_branch
          %211 = sbr.rel (%p209) target = $region28
        $region27: #{residual_group_forward.13} parent=23 // pred_region
          %s212 = smul.u32 16, %s22
          %s213 = ssub.s32 18, %s212
          %p214 = scmp.lt.s32.totalorder %s213, 16
          %s215 = scalar_select %p214, %s213, 16
          %s216 = smul.u32 64, %s215
          %s217 = smul.u32 %s216, 3
          %p218 = scmp.lt.s32.totalorder %s21, 1
          %s219 = scalar_select %p218, %s21, 1
          %p220 = scmp.lt.s32.totalorder %s212, 17
          %s221 = scalar_select %p220, %s212, 17
          %s222 = smul.addr %s221, 3
          %s223 = smul.addr %s219, 54
          %s224 = sadd.s32 %s222, %s223
          %s225 = smul.addr %s224, 4
          %s226 = scalar_lea.vmem %s0, %s225
          %s227 = smul.u32 16, %s22
          %s228 = ssub.s32 18, %s227
          %p229 = scmp.lt.s32.totalorder %s228, 16
          %s230 = scalar_select %p229, %s228, 16
          %s231 = smul.u32 64, %s230
          %s232 = smul.u32 %s231, 3
        $region28: #{residual_group_forward.13} parent=23 // pred_fallthru
          _
        // Predicated region
        $region29: #{residual_group_forward.13} parent=23 // pred_check
          %p233 = pneg %p80
        $region30: #{residual_group_forward.13} parent=23 // pred_check_branch
          %235 = sbr.rel (%p233) target = $region32
        $region31: #{residual_group_forward.13} parent=23 // pred_region
          %s236 = sadd.s32 %s22, 1
          %s237 = smul.u32 %s236, 8
          %s238 = smul.u32 2, %s237
          %p239 = scmp.lt.s32.totalorder %s21, 1
          %s240 = scalar_select %p239, %s21, 1
          %p241 = scmp.lt.s32.totalorder %s238, 17
          %s242 = scalar_select %p241, %s238, 17
          %s243 = smul.addr %s242, 3
          %s244 = smul.addr %s240, 54
          %s245 = sadd.s32 %s243, %s244
          %s246 = smul.addr %s245, 4
          %s247 = scalar_lea.vmem %s1, %s246
          %s248 = sadd.s32 %s22, 1
          %s249 = smul.u32 %s248, 8
          %s250 = smul.u32 2, %s249
        $region32: #{residual_group_forward.13} parent=23 // pred_fallthru
          _
        // Predicated region
        $region33: #{residual_group_forward.13} parent=23 // pred_check
          %p251 = pneg %p150
        $region34: #{residual_group_forward.13} parent=23 // pred_check_branch
          %253 = sbr.rel (%p251) target = $region36
        $region35: #{residual_group_forward.13} parent=23 // pred_region
          %s254 = smul.u32 16, %s22
          %p255 = scmp.lt.s32.totalorder %s21, 1
          %s256 = scalar_select %p255, %s21, 1
          %p257 = scmp.lt.s32.totalorder %s254, 15
          %s258 = scalar_select %p257, %s254, 15
          %s259 = smul.addr %s258, 2
          %s260 = smul.addr %s256, 32
          %s261 = sadd.s32 %s259, %s260
          %s262 = smul.addr %s261, 8
          %s263 = scalar_lea.vmem %s4, %s262
          %s264 = smul.u32 16, %s22
        $region36: #{residual_group_forward.13} parent=23 // pred_fallthru
          _
      $region24: #{residual_group_forward.13} parent=5 // pred_fallthru
        _
      %p265 = scmp.le.s32.totalorder 1, %s14
      %p266 = scmp.lt.s32.totalorder %s14, 3
      %p267 = pnand %p265, %p266
      %p268 = pneg %p267
      // Predicated region
      $region37: #{residual_group_forward.13} parent=5 // pred_check
        _
      $region38: #{residual_group_forward.13} parent=5 // pred_check_branch
        %270 = sbr.rel (%p267) target = $region40
      $region39: #{residual_group_forward.13} parent=5 // pred_region
        %s271 = ssub.s32 %s14, 1
        %s272 = smul.u32 16, %s24
        %s273 = ssub.s32 18, %s272
        %p274 = scmp.lt.s32.totalorder %s273, 16
        %s275 = scalar_select %p274, %s273, 16
        %s276 = smul.u32 64, %s275
        %s277 = smul.u32 %s276, 3
        %p278 = scmp.lt.s32.totalorder %s23, 1
        %s279 = scalar_select %p278, %s23, 1
        %p280 = scmp.lt.s32.totalorder %s272, 17
        %s281 = scalar_select %p280, %s272, 17
        %s282 = smul.addr %s281, 3
        %s283 = smul.addr %s279, 54
        %s284 = sadd.s32 %s282, %s283
        %s285 = smul.addr %s284, 4
        %s286 = scalar_lea.vmem %s0, %s285
        %p287 = pneg %p54
        %p288 = pneg %p51
        %s289 = sadd.s32 %s24, 1
        %s290 = smul.u32 %s289, 8
        %s291 = smul.u32 2, %s290
        %p292 = scmp.lt.s32.totalorder %s23, 1
        %s293 = scalar_select %p292, %s23, 1
        %p294 = scmp.lt.s32.totalorder %s291, 17
        %s295 = scalar_select %p294, %s291, 17
        %s296 = smul.addr %s295, 3
        %s297 = smul.addr %s293, 54
        %s298 = sadd.s32 %s296, %s297
        %s299 = smul.addr %s298, 4
        %s300 = scalar_lea.vmem %s1, %s299
        %p301 = pneg %p86
        %p302 = pneg %p83
        %p303 = pneg %p107
        %p304 = pneg %p104
        %p305 = pneg %p128
        %p306 = pneg %p125
        %s307 = smul.u32 16, %s24
        %p308 = scmp.lt.s32.totalorder %s23, 1
        %s309 = scalar_select %p308, %s23, 1
        %p310 = scmp.lt.s32.totalorder %s307, 15
        %s311 = scalar_select %p310, %s307, 15
        %s312 = smul.addr %s311, 2
        %s313 = smul.addr %s309, 32
        %s314 = sadd.s32 %s312, %s313
        %s315 = smul.addr %s314, 8
        %s316 = scalar_lea.vmem %s4, %s315
        %p317 = pneg %p156
        %p318 = pneg %p153
        %p319 = pneg %p184
        %p320 = pneg %p181
        %s321 = sand.u32 %s171, 1
        %s322 = scalar_lea.sflag [#allocation3], %s321
        %s323 = sand.u32 %s171, 1
        %s324 = smul.addr %s323, 256
        %s325 = scalar_lea.vmem [#allocation2], %s324
        %s326 = smul.u32 16, %s24
        %s327 = ssub.s32 18, %s326
        %p328 = scmp.lt.s32.totalorder %s327, 16
        %s329 = scalar_select %p328, %s327, 16
        %s330 = smul.u32 64, %s329
        %s331 = smul.u32 %s330, 3
        %p332 = scmp.lt.s32.totalorder %s23, 1
        %s333 = scalar_select %p332, %s23, 1
        %p334 = scmp.lt.s32.totalorder %s326, 17
        %s335 = scalar_select %p334, %s326, 17
        %s336 = smul.addr %s335, 3
        %s337 = smul.addr %s333, 54
        %s338 = sadd.s32 %s336, %s337
        %s339 = smul.addr %s338, 4
        %s340 = scalar_lea.vmem %s0, %s339
        %s341 = smul.u32 16, %s24
        %s342 = ssub.s32 18, %s341
        %p343 = scmp.lt.s32.totalorder %s342, 16
        %s344 = scalar_select %p343, %s342, 16
        %s345 = smul.u32 64, %s344
        %s346 = smul.u32 %s345, 3
        %s347 = sadd.s32 %s24, 1
        %s348 = smul.u32 %s347, 8
        %s349 = smul.u32 2, %s348
        %p350 = scmp.lt.s32.totalorder %s23, 1
        %s351 = scalar_select %p350, %s23, 1
        %p352 = scmp.lt.s32.totalorder %s349, 17
        %s353 = scalar_select %p352, %s349, 17
        %s354 = smul.addr %s353, 3
        %s355 = smul.addr %s351, 54
        %s356 = sadd.s32 %s354, %s355
        %s357 = smul.addr %s356, 4
        %s358 = scalar_lea.vmem %s1, %s357
        %s359 = sadd.s32 %s24, 1
        %s360 = smul.u32 %s359, 8
        %s361 = smul.u32 2, %s360
        %s362 = smul.u32 16, %s24
        %p363 = scmp.lt.s32.totalorder %s23, 1
        %s364 = scalar_select %p363, %s23, 1
        %p365 = scmp.lt.s32.totalorder %s362, 15
        %s366 = scalar_select %p365, %s362, 15
        %s367 = smul.addr %s366, 2
        %s368 = smul.addr %s364, 32
        %s369 = sadd.s32 %s367, %s368
        %s370 = smul.addr %s369, 8
        %s371 = scalar_lea.vmem %s4, %s370
        %s372 = smul.u32 16, %s24
        %s373 = smul.u32 16, %s24
        %v375 = vld [vmem:[%s340] sm:$0xf]
        %v376 = vld [vmem:[%s340 + $0x4] sm:$0xf]
        %v377 = vld [vmem:[%s340 + $0x8] sm:$0x1]
        %v378 = vld [vmem:[%s340 + $0xc] sm:$0xf]
        %v379 = vld [vmem:[%s340 + $0x10] sm:$0xf]
        %v380 = vld [vmem:[%s340 + $0x14] sm:$0x1]
        %v381 = vld [vmem:[%s340 + $0x18] sm:$0xf]
        %v382 = vld [vmem:[%s340 + $0x1c] sm:$0xf]
        %v383 = vld [vmem:[%s340 + $0x20] sm:$0x1]
        %v384 = vld [vmem:[%s340 + $0x24] sm:$0xf]
        %v385 = vld [vmem:[%s340 + $0x28] sm:$0xf]
        %v386 = vld [vmem:[%s340 + $0x2c] sm:$0x1]
        %v387 = vld [vmem:[%s340 + $0x30] sm:$0xf]
        %v388 = vld [vmem:[%s340 + $0x34] sm:$0xf]
        %v389 = vld [vmem:[%s340 + $0x38] sm:$0x1]
        %v390 = vld [vmem:[%s340 + $0x3c] sm:$0xf]
        %v391 = vld [vmem:[%s340 + $0x40] sm:$0xf]
        %v392 = vld [vmem:[%s340 + $0x44] sm:$0x1]
        %v393 = vld [vmem:[%s340 + $0x48] sm:$0xf]
        %v394 = vld [vmem:[%s340 + $0x4c] sm:$0xf]
        %v395 = vld [vmem:[%s340 + $0x50] sm:$0x1]
        %v396 = vld [vmem:[%s340 + $0x54] sm:$0xf]
        %v397 = vld [vmem:[%s340 + $0x58] sm:$0xf]
        %v398 = vld [vmem:[%s340 + $0x5c] sm:$0x1]
        %v399 = vld [vmem:[%s340 + $0x60] sm:$0xf]
        %v400 = vld [vmem:[%s340 + $0x64] sm:$0xf]
        %v401 = vld [vmem:[%s340 + $0x68] sm:$0x1]
        %v402 = vld [vmem:[%s340 + $0x6c] sm:$0xf]
        %v403 = vld [vmem:[%s340 + $0x70] sm:$0xf]
        %v404 = vld [vmem:[%s340 + $0x74] sm:$0x1]
        %v405 = vld [vmem:[%s340 + $0x78] sm:$0xf]
        %v406 = vld [vmem:[%s340 + $0x7c] sm:$0xf]
        %v407 = vld [vmem:[%s340 + $0x80] sm:$0x1]
        %v408 = vld [vmem:[%s340 + $0x84] sm:$0xf]
        %v409 = vld [vmem:[%s340 + $0x88] sm:$0xf]
        %v410 = vld [vmem:[%s340 + $0x8c] sm:$0x1]
        %v411 = vld [vmem:[%s340 + $0x90] sm:$0xf]
        %v412 = vld [vmem:[%s340 + $0x94] sm:$0xf]
        %v413 = vld [vmem:[%s340 + $0x98] sm:$0x1]
        %v414 = vld [vmem:[%s340 + $0x9c] sm:$0xf]
        %v415 = vld [vmem:[%s340 + $0xa0] sm:$0xf]
        %v416 = vld [vmem:[%s340 + $0xa4] sm:$0x1]
        %v417 = vld [vmem:[%s340 + $0xa8] sm:$0xf]
        %v418 = vld [vmem:[%s340 + $0xac] sm:$0xf]
        %v419 = vld [vmem:[%s340 + $0xb0] sm:$0x1]
        %v420 = vld [vmem:[%s340 + $0xb4] sm:$0xf]
        %v421 = vld [vmem:[%s340 + $0xb8] sm:$0xf]
        %v422 = vld [vmem:[%s340 + $0xbc] sm:$0x1]
        %v423 = vld [vmem:[%s358] sm:$0xf]
        %v424 = vld [vmem:[%s358 + $0x4] sm:$0xf]
        %v425 = vld [vmem:[%s358 + $0x8] sm:$0x1]
        %v426 = vld [vmem:[%s358 + $0xc] sm:$0xf]
        %v427 = vld [vmem:[%s358 + $0x10] sm:$0xf]
        %v428 = vld [vmem:[%s358 + $0x14] sm:$0x1]
        %v429 = vld [vmem:[%s2] sm:$0xf]
        %v430 = vld [vmem:[%s2 + $0x4] sm:$0xf]
        %v431 = vld [vmem:[%s2 + $0x8] sm:$0xf]
        %v432 = vld [vmem:[%s2 + $0xc] sm:$0xf]
        %v433 = vld [vmem:[%s2 + $0x10] sm:$0xf]
        %v434 = vld [vmem:[%s2 + $0x14] sm:$0xf]
        %v435 = vld [vmem:[%s2 + $0x18] sm:$0xf]
        %v436 = vld [vmem:[%s2 + $0x1c] sm:$0xf]
        %v437 = vld [vmem:[%s2 + $0x20] sm:$0xf]
        %v438 = vld [vmem:[%s2 + $0x24] sm:$0xf]
        %v439 = vld [vmem:[%s2 + $0x28] sm:$0xf]
        %v440 = vld [vmem:[%s2 + $0x2c] sm:$0xf]
        %v441 = vld [vmem:[%s2 + $0x30] sm:$0xf]
        %v442 = vld [vmem:[%s2 + $0x34] sm:$0xf]
        %v443 = vld [vmem:[%s2 + $0x38] sm:$0xf]
        %v444 = vld [vmem:[%s2 + $0x3c] sm:$0xf]
        %vm445 = vsmask.f32 3328
        %vm446 = vsmask.f32 7440
        %vm447 = vmor %vm445, %vm446
        %v449 = vshrl.u32 %v375, 16
        %v451 = vrot.slane %v449, 4
        %v452 = vshll.u32 %v375, 16
        %v454 = vrot.slane %v452, 5
        %v455 = vor.u32 %v451, %v454
        %v456 = vrot.slane %v455, 4
        %v458 = vshll.u32 %v376, 16
        %v460 = vrot.slane %v458, 5
        %v461 = vsel %vm447, %v456, %v460
        %v462 = vshrl.u32 %v376, 16
        %v464 = vrot.slane %v462, 4
        %v465 = vor.u32 %v464, %v460
        %v466 = vrot.slane %v465, 4
        %v468 = vshll.u32 %v377, 16
        %v470 = vrot.slane %v468, 5
        %v471 = vsel %vm447, %v466, %v470
        %v473 = vshrl.u32 %v378, 16
        %v475 = vrot.slane %v473, 4
        %v476 = vshll.u32 %v378, 16
        %v478 = vrot.slane %v476, 5
        %v479 = vor.u32 %v475, %v478
        %v480 = vrot.slane %v479, 4
        %v482 = vshll.u32 %v379, 16
        %v484 = vrot.slane %v482, 5
        %v485 = vsel %vm447, %v480, %v484
        %v486 = vshrl.u32 %v379, 16
        %v488 = vrot.slane %v486, 4
        %v489 = vor.u32 %v488, %v484
        %v490 = vrot.slane %v489, 4
        %v492 = vshll.u32 %v380, 16
        %v494 = vrot.slane %v492, 5
        %v495 = vsel %vm447, %v490, %v494
        %v497 = vshrl.u32 %v381, 16
        %v499 = vrot.slane %v497, 4
        %v500 = vshll.u32 %v381, 16
        %v502 = vrot.slane %v500, 5
        %v503 = vor.u32 %v499, %v502
        %v504 = vrot.slane %v503, 4
        %v506 = vshll.u32 %v382, 16
        %v508 = vrot.slane %v506, 5
        %v509 = vsel %vm447, %v504, %v508
        %v510 = vshrl.u32 %v382, 16
        %v512 = vrot.slane %v510, 4
        %v513 = vor.u32 %v512, %v508
        %v514 = vrot.slane %v513, 4
        %v516 = vshll.u32 %v383, 16
        %v518 = vrot.slane %v516, 5
        %v519 = vsel %vm447, %v514, %v518
        %v521 = vshrl.u32 %v384, 16
        %v523 = vrot.slane %v521, 4
        %v524 = vshll.u32 %v384, 16
        %v526 = vrot.slane %v524, 5
        %v527 = vor.u32 %v523, %v526
        %v528 = vrot.slane %v527, 4
        %v530 = vshll.u32 %v385, 16
        %v532 = vrot.slane %v530, 5
        %v533 = vsel %vm447, %v528, %v532
        %v534 = vshrl.u32 %v385, 16
        %v536 = vrot.slane %v534, 4
        %v537 = vor.u32 %v536, %v532
        %v538 = vrot.slane %v537, 4
        %v540 = vshll.u32 %v386, 16
        %v542 = vrot.slane %v540, 5
        %v543 = vsel %vm447, %v538, %v542
        %v545 = vshrl.u32 %v387, 16
        %v547 = vrot.slane %v545, 4
        %v548 = vshll.u32 %v387, 16
        %v550 = vrot.slane %v548, 5
        %v551 = vor.u32 %v547, %v550
        %v552 = vrot.slane %v551, 4
        %v554 = vshll.u32 %v388, 16
        %v556 = vrot.slane %v554, 5
        %v557 = vsel %vm447, %v552, %v556
        %v558 = vshrl.u32 %v388, 16
        %v560 = vrot.slane %v558, 4
        %v561 = vor.u32 %v560, %v556
        %v562 = vrot.slane %v561, 4
        %v564 = vshll.u32 %v389, 16
        %v566 = vrot.slane %v564, 5
        %v567 = vsel %vm447, %v562, %v566
        %v569 = vshrl.u32 %v390, 16
        %v571 = vrot.slane %v569, 4
        %v572 = vshll.u32 %v390, 16
        %v574 = vrot.slane %v572, 5
        %v575 = vor.u32 %v571, %v574
        %v576 = vrot.slane %v575, 4
        %v578 = vshll.u32 %v391, 16
        %v580 = vrot.slane %v578, 5
        %v581 = vsel %vm447, %v576, %v580
        %v582 = vshrl.u32 %v391, 16
        %v584 = vrot.slane %v582, 4
        %v585 = vor.u32 %v584, %v580
        %v586 = vrot.slane %v585, 4
        %v588 = vshll.u32 %v392, 16
        %v590 = vrot.slane %v588, 5
        %v591 = vsel %vm447, %v586, %v590
        %v593 = vshrl.u32 %v393, 16
        %v595 = vrot.slane %v593, 4
        %v596 = vshll.u32 %v393, 16
        %v598 = vrot.slane %v596, 5
        %v599 = vor.u32 %v595, %v598
        %v600 = vrot.slane %v599, 4
        %v602 = vshll.u32 %v394, 16
        %v604 = vrot.slane %v602, 5
        %v605 = vsel %vm447, %v600, %v604
        %v606 = vshrl.u32 %v394, 16
        %v608 = vrot.slane %v606, 4
        %v609 = vor.u32 %v608, %v604
        %v610 = vrot.slane %v609, 4
        %v612 = vshll.u32 %v395, 16
        %v614 = vrot.slane %v612, 5
        %v615 = vsel %vm447, %v610, %v614
        %v617 = vshrl.u32 %v396, 16
        %v619 = vrot.slane %v617, 4
        %v620 = vshll.u32 %v396, 16
        %v622 = vrot.slane %v620, 5
        %v623 = vor.u32 %v619, %v622
        %v624 = vrot.slane %v623, 4
        %v626 = vshll.u32 %v397, 16
        %v628 = vrot.slane %v626, 5
        %v629 = vsel %vm447, %v624, %v628
        %v630 = vshrl.u32 %v397, 16
        %v632 = vrot.slane %v630, 4
        %v633 = vor.u32 %v632, %v628
        %v634 = vrot.slane %v633, 4
        %v636 = vshll.u32 %v398, 16
        %v638 = vrot.slane %v636, 5
        %v639 = vsel %vm447, %v634, %v638
        %v641 = vshrl.u32 %v399, 16
        %v643 = vrot.slane %v641, 4
        %v644 = vshll.u32 %v399, 16
        %v646 = vrot.slane %v644, 5
        %v647 = vor.u32 %v643, %v646
        %v648 = vrot.slane %v647, 4
        %v650 = vshll.u32 %v400, 16
        %v652 = vrot.slane %v650, 5
        %v653 = vsel %vm447, %v648, %v652
        %v654 = vshrl.u32 %v400, 16
        %v656 = vrot.slane %v654, 4
        %v657 = vor.u32 %v656, %v652
        %v658 = vrot.slane %v657, 4
        %v660 = vshll.u32 %v401, 16
        %v662 = vrot.slane %v660, 5
        %v663 = vsel %vm447, %v658, %v662
        %v665 = vshrl.u32 %v402, 16
        %v667 = vrot.slane %v665, 4
        %v668 = vshll.u32 %v402, 16
        %v670 = vrot.slane %v668, 5
        %v671 = vor.u32 %v667, %v670
        %v672 = vrot.slane %v671, 4
        %v674 = vshll.u32 %v403, 16
        %v676 = vrot.slane %v674, 5
        %v677 = vsel %vm447, %v672, %v676
        %v678 = vshrl.u32 %v403, 16
        %v680 = vrot.slane %v678, 4
        %v681 = vor.u32 %v680, %v676
        %v682 = vrot.slane %v681, 4
        %v684 = vshll.u32 %v404, 16
        %v686 = vrot.slane %v684, 5
        %v687 = vsel %vm447, %v682, %v686
        %v689 = vshrl.u32 %v405, 16
        %v691 = vrot.slane %v689, 4
        %v692 = vshll.u32 %v405, 16
        %v694 = vrot.slane %v692, 5
        %v695 = vor.u32 %v691, %v694
        %v696 = vrot.slane %v695, 4
        %v698 = vshll.u32 %v406, 16
        %v700 = vrot.slane %v698, 5
        %v701 = vsel %vm447, %v696, %v700
        %v702 = vshrl.u32 %v406, 16
        %v704 = vrot.slane %v702, 4
        %v705 = vor.u32 %v704, %v700
        %v706 = vrot.slane %v705, 4
        %v708 = vshll.u32 %v407, 16
        %v710 = vrot.slane %v708, 5
        %v711 = vsel %vm447, %v706, %v710
        %v713 = vshrl.u32 %v408, 16
        %v715 = vrot.slane %v713, 4
        %v716 = vshll.u32 %v408, 16
        %v718 = vrot.slane %v716, 5
        %v719 = vor.u32 %v715, %v718
        %v720 = vrot.slane %v719, 4
        %v722 = vshll.u32 %v409, 16
        %v724 = vrot.slane %v722, 5
        %v725 = vsel %vm447, %v720, %v724
        %v726 = vshrl.u32 %v409, 16
        %v728 = vrot.slane %v726, 4
        %v729 = vor.u32 %v728, %v724
        %v730 = vrot.slane %v729, 4
        %v732 = vshll.u32 %v410, 16
        %v734 = vrot.slane %v732, 5
        %v735 = vsel %vm447, %v730, %v734
        %v737 = vshrl.u32 %v411, 16
        %v739 = vrot.slane %v737, 4
        %v740 = vshll.u32 %v411, 16
        %v742 = vrot.slane %v740, 5
        %v743 = vor.u32 %v739, %v742
        %v744 = vrot.slane %v743, 4
        %v746 = vshll.u32 %v412, 16
        %v748 = vrot.slane %v746, 5
        %v749 = vsel %vm447, %v744, %v748
        %v750 = vshrl.u32 %v412, 16
        %v752 = vrot.slane %v750, 4
        %v753 = vor.u32 %v752, %v748
        %v754 = vrot.slane %v753, 4
        %v756 = vshll.u32 %v413, 16
        %v758 = vrot.slane %v756, 5
        %v759 = vsel %vm447, %v754, %v758
        %v761 = vshrl.u32 %v414, 16
        %v763 = vrot.slane %v761, 4
        %v764 = vshll.u32 %v414, 16
        %v766 = vrot.slane %v764, 5
        %v767 = vor.u32 %v763, %v766
        %v768 = vrot.slane %v767, 4
        %v770 = vshll.u32 %v415, 16
        %v772 = vrot.slane %v770, 5
        %v773 = vsel %vm447, %v768, %v772
        %v774 = vshrl.u32 %v415, 16
        %v776 = vrot.slane %v774, 4
        %v777 = vor.u32 %v776, %v772
        %v778 = vrot.slane %v777, 4
        %v780 = vshll.u32 %v416, 16
        %v782 = vrot.slane %v780, 5
        %v783 = vsel %vm447, %v778, %v782
        %v785 = vshrl.u32 %v417, 16
        %v787 = vrot.slane %v785, 4
        %v788 = vshll.u32 %v417, 16
        %v790 = vrot.slane %v788, 5
        %v791 = vor.u32 %v787, %v790
        %v792 = vrot.slane %v791, 4
        %v794 = vshll.u32 %v418, 16
        %v796 = vrot.slane %v794, 5
        %v797 = vsel %vm447, %v792, %v796
        %v798 = vshrl.u32 %v418, 16
        %v800 = vrot.slane %v798, 4
        %v801 = vor.u32 %v800, %v796
        %v802 = vrot.slane %v801, 4
        %v804 = vshll.u32 %v419, 16
        %v806 = vrot.slane %v804, 5
        %v807 = vsel %vm447, %v802, %v806
        %v809 = vshrl.u32 %v420, 16
        %v811 = vrot.slane %v809, 4
        %v812 = vshll.u32 %v420, 16
        %v814 = vrot.slane %v812, 5
        %v815 = vor.u32 %v811, %v814
        %v816 = vrot.slane %v815, 4
        %v818 = vshll.u32 %v421, 16
        %v820 = vrot.slane %v818, 5
        %v821 = vsel %vm447, %v816, %v820
        %v822 = vshrl.u32 %v421, 16
        %v824 = vrot.slane %v822, 4
        %v825 = vor.u32 %v824, %v820
        %v826 = vrot.slane %v825, 4
        %v828 = vshll.u32 %v422, 16
        %v830 = vrot.slane %v828, 5
        %v831 = vsel %vm447, %v826, %v830
        %s832 = scalar_lea.vmem %s2, 64
        %v833 = vld [vmem:[%s832] sm:$0xf]
        %v834 = vld [vmem:[%s832 + $0x4] sm:$0xf]
        %v835 = vld [vmem:[%s832 + $0x8] sm:$0xf]
        %v836 = vld [vmem:[%s832 + $0xc] sm:$0xf]
        %v837 = vld [vmem:[%s832 + $0x10] sm:$0xf]
        %v838 = vld [vmem:[%s832 + $0x14] sm:$0xf]
        %v839 = vld [vmem:[%s832 + $0x18] sm:$0xf]
        %v840 = vld [vmem:[%s832 + $0x1c] sm:$0xf]
        %v841 = vld [vmem:[%s832 + $0x20] sm:$0xf]
        %v842 = vld [vmem:[%s832 + $0x24] sm:$0xf]
        %v843 = vld [vmem:[%s832 + $0x28] sm:$0xf]
        %v844 = vld [vmem:[%s832 + $0x2c] sm:$0xf]
        %v845 = vld [vmem:[%s832 + $0x30] sm:$0xf]
        %v846 = vld [vmem:[%s832 + $0x34] sm:$0xf]
        %v847 = vld [vmem:[%s832 + $0x38] sm:$0xf]
        %v848 = vld [vmem:[%s832 + $0x3c] sm:$0xf]
        %v849 = vunpack.c.l.b16 %v461
        %v850 = vunpack.c.l.b16 %v471
        %v851 = vunpack.c.l.b16 %v485
        %v852 = vunpack.c.l.b16 %v495
        %v853 = vunpack.c.l.b16 %v509
        %v854 = vunpack.c.l.b16 %v519
        %v855 = vunpack.c.l.b16 %v533
        %v856 = vunpack.c.l.b16 %v543
        %v857 = vunpack.c.l.b16 %v557
        %v858 = vunpack.c.l.b16 %v567
        %v859 = vunpack.c.l.b16 %v581
        %v860 = vunpack.c.l.b16 %v591
        %v861 = vunpack.c.l.b16 %v605
        %v862 = vunpack.c.l.b16 %v615
        %v863 = vunpack.c.l.b16 %v629
        %v864 = vunpack.c.l.b16 %v639
        %v865 = vunpack.c.l.b16 %v653
        %v866 = vunpack.c.l.b16 %v663
        %v867 = vunpack.c.l.b16 %v677
        %v868 = vunpack.c.l.b16 %v687
        %v869 = vunpack.c.l.b16 %v701
        %v870 = vunpack.c.l.b16 %v711
        %v871 = vunpack.c.l.b16 %v725
        %v872 = vunpack.c.l.b16 %v735
        %v873 = vunpack.c.l.b16 %v749
        %v874 = vunpack.c.l.b16 %v759
        %v875 = vunpack.c.l.b16 %v773
        %v876 = vunpack.c.l.b16 %v783
        %v877 = vunpack.c.l.b16 %v797
        %v878 = vunpack.c.l.b16 %v807
        %v879 = vunpack.c.l.b16 %v821
        %v880 = vunpack.c.l.b16 %v831
        %v881 = vpack.c.b16 %v850, %v849
        %v882 = vpack.c.b16 %v852, %v851
        %v883 = vpack.c.b16 %v854, %v853
        %v884 = vpack.c.b16 %v856, %v855
        %v885 = vpack.c.b16 %v858, %v857
        %v886 = vpack.c.b16 %v860, %v859
        %v887 = vpack.c.b16 %v862, %v861
        %v888 = vpack.c.b16 %v864, %v863
        %v889 = vpack.c.b16 %v866, %v865
        %v890 = vpack.c.b16 %v868, %v867
        %v891 = vpack.c.b16 %v870, %v869
        %v892 = vpack.c.b16 %v872, %v871
        %v893 = vpack.c.b16 %v874, %v873
        %v894 = vpack.c.b16 %v876, %v875
        %v895 = vpack.c.b16 %v878, %v877
        %v896 = vpack.c.b16 %v880, %v879
        %v929 = vunpack.c.l.b16 %v833
        %v930 = vunpack.c.l.b16 %v834
        %v931 = vunpack.c.l.b16 %v835
        %v932 = vunpack.c.l.b16 %v836
        %v933 = vunpack.c.l.b16 %v837
        %v934 = vunpack.c.l.b16 %v838
        %v935 = vunpack.c.l.b16 %v839
        %v936 = vunpack.c.l.b16 %v840
        %v937 = vunpack.c.l.b16 %v841
        %v938 = vunpack.c.l.b16 %v842
        %v939 = vunpack.c.l.b16 %v843
        %v940 = vunpack.c.l.b16 %v844
        %v941 = vunpack.c.l.b16 %v845
        %v942 = vunpack.c.l.b16 %v846
        %v943 = vunpack.c.l.b16 %v847
        %v944 = vunpack.c.l.b16 %v848
        %v945 = vpack.c.b16 %v930, %v929
        %v946 = vpack.c.b16 %v932, %v931
        %v947 = vpack.c.b16 %v934, %v933
        %v948 = vpack.c.b16 %v936, %v935
        %v949 = vpack.c.b16 %v938, %v937
        %v950 = vpack.c.b16 %v940, %v939
        %v951 = vpack.c.b16 %v942, %v941
        %v952 = vpack.c.b16 %v944, %v943
        %961 = vmatprep.subr.bf16.mxu0 0
        %962 = vmatpush1.bf16.msra.mxu0 %v945
        %963 = vmatprep.subr.bf16.mxu0 0
        %964 = vmatpush1.bf16.msra.mxu0 %v946
        %965 = vmatprep.subr.bf16.mxu0 0
        %966 = vmatpush1.bf16.msra.mxu0 %v947
        %967 = vmatprep.subr.bf16.mxu0 0
        %968 = vmatpush1.bf16.msra.mxu0 %v948
        %969 = vmatprep.subr.bf16.mxu0 0
        %970 = vmatpush1.bf16.msra.mxu0 %v949
        %971 = vmatprep.subr.bf16.mxu0 0
        %972 = vmatpush1.bf16.msra.mxu0 %v950
        %973 = vmatprep.subr.bf16.mxu0 0
        %974 = vmatpush1.bf16.msra.mxu0 %v951
        %975 = vmatprep.subr.bf16.mxu0 0
        %976 = vmatpush1.bf16.msra.mxu0 %v952
        %977 = vmatprep.subr.bf16.mxu0 0
        %978 = vmatpush1.bf16.msra.mxu0 0
        %979 = vmatprep.subr.bf16.mxu0 0
        %980 = vmatpush1.bf16.msra.mxu0 0
        %981 = vmatprep.subr.bf16.mxu0 0
        %982 = vmatpush1.bf16.msra.mxu0 0
        %983 = vmatprep.subr.bf16.mxu0 0
        %984 = vmatpush1.bf16.msra.mxu0 0
        %985 = vmatprep.subr.bf16.mxu0 0
        %986 = vmatpush1.bf16.msra.mxu0 0
        %987 = vmatprep.subr.bf16.mxu0 0
        %988 = vmatpush1.bf16.msra.mxu0 0
        %989 = vmatprep.subr.bf16.mxu0 0
        %990 = vmatpush1.bf16.msra.mxu0 0
        %991 = vmatprep.subr.bf16.mxu0 0
        %992 = vmatpush1.bf16.msra.mxu0 0
        %993 = vmatprep.mubr.bf16.mxu0 0
        %994 = vmatmul.mubr.bf16.gmra.mrb[0].mxu0 %v881
        %v995 = vpop.f32.mrb[0].mxu0
        %v996 = vadd.f32 0.0, %v995
        %v997 = vpop.f32.mrb[0].mxu0
        %v998 = vpop.f32.mrb[0].mxu0
        %v999 = vadd.f32 0.0, %v998
        %v1000 = vpop.f32.mrb[0].mxu0
        %1001 = vmatprep.mubr.bf16.mxu0 0
        %1002 = vmatmul.mubr.bf16.gmra.mrb[0].mxu0 %v882
        %v1003 = vpop.f32.mrb[0].mxu0
        %v1004 = vadd.f32 0.0, %v1003
        %v1005 = vpop.f32.mrb[0].mxu0
        %v1006 = vpop.f32.mrb[0].mxu0
        %v1007 = vadd.f32 0.0, %v1006
        %v1008 = vpop.f32.mrb[0].mxu0
        %1009 = vmatprep.mubr.bf16.mxu0 0
        %1010 = vmatmul.mubr.bf16.gmra.mrb[0].mxu0 %v883
        %v1011 = vpop.f32.mrb[0].mxu0
        %v1012 = vadd.f32 0.0, %v1011
        %v1013 = vpop.f32.mrb[0].mxu0
        %v1014 = vpop.f32.mrb[0].mxu0
        %v1015 = vadd.f32 0.0, %v1014
        %v1016 = vpop.f32.mrb[0].mxu0
        %1017 = vmatprep.mubr.bf16.mxu0 0
        %1018 = vmatmul.mubr.bf16.gmra.mrb[0].mxu0 %v884
        %v1019 = vpop.f32.mrb[0].mxu0
        %v1020 = vadd.f32 0.0, %v1019
        %v1021 = vpop.f32.mrb[0].mxu0
        %v1022 = vpop.f32.mrb[0].mxu0
        %v1023 = vadd.f32 0.0, %v1022
        %v1024 = vpop.f32.mrb[0].mxu0
        %1025 = vmatprep.mubr.bf16.mxu0 0
        %1026 = vmatmul.mubr.bf16.gmra.mrb[0].mxu0 %v885
        %v1027 = vpop.f32.mrb[0].mxu0
        %v1028 = vadd.f32 0.0, %v1027
        %v1029 = vpop.f32.mrb[0].mxu0
        %v1030 = vpop.f32.mrb[0].mxu0
        %v1031 = vadd.f32 0.0, %v1030
        %v1032 = vpop.f32.mrb[0].mxu0
        %1033 = vmatprep.mubr.bf16.mxu0 0
        %1034 = vmatmul.mubr.bf16.gmra.mrb[0].mxu0 %v886
        %v1035 = vpop.f32.mrb[0].mxu0
        %v1036 = vadd.f32 0.0, %v1035
        %v1037 = vpop.f32.mrb[0].mxu0
        %v1038 = vpop.f32.mrb[0].mxu0
        %v1039 = vadd.f32 0.0, %v1038
        %v1040 = vpop.f32.mrb[0].mxu0
        %1041 = vmatprep.mubr.bf16.mxu0 0
        %1042 = vmatmul.mubr.bf16.gmra.mrb[0].mxu0 %v887
        %v1043 = vpop.f32.mrb[0].mxu0
        %v1044 = vadd.f32 0.0, %v1043
        %v1045 = vpop.f32.mrb[0].mxu0
        %v1046 = vpop.f32.mrb[0].mxu0
        %v1047 = vadd.f32 0.0, %v1046
        %v1048 = vpop.f32.mrb[0].mxu0
        %1049 = vmatprep.mubr.bf16.mxu0 0
        %1050 = vmatmul.mubr.bf16.gmra.mrb[0].mxu0 %v888
        %v1051 = vpop.f32.mrb[0].mxu0
        %v1052 = vadd.f32 0.0, %v1051
        %v1053 = vpop.f32.mrb[0].mxu0
        %v1054 = vpop.f32.mrb[0].mxu0
        %v1055 = vadd.f32 0.0, %v1054
        %v1056 = vpop.f32.mrb[0].mxu0
        %1057 = vmatprep.mubr.bf16.mxu0 0
        %1058 = vmatmul.mubr.bf16.gmra.mrb[0].mxu0 %v889
        %v1059 = vpop.f32.mrb[0].mxu0
        %v1060 = vadd.f32 0.0, %v1059
        %v1061 = vpop.f32.mrb[0].mxu0
        %v1062 = vpop.f32.mrb[0].mxu0
        %v1063 = vadd.f32 0.0, %v1062
        %v1064 = vpop.f32.mrb[0].mxu0
        %1065 = vmatprep.mubr.bf16.mxu0 0
        %1066 = vmatmul.mubr.bf16.gmra.mrb[0].mxu0 %v890
        %v1067 = vpop.f32.mrb[0].mxu0
        %v1068 = vadd.f32 0.0, %v1067
        %v1069 = vpop.f32.mrb[0].mxu0
        %v1070 = vpop.f32.mrb[0].mxu0
        %v1071 = vadd.f32 0.0, %v1070
        %v1072 = vpop.f32.mrb[0].mxu0
        %1073 = vmatprep.mubr.bf16.mxu0 0
        %1074 = vmatmul.mubr.bf16.gmra.mrb[0].mxu0 %v891
        %v1075 = vpop.f32.mrb[0].mxu0
        %v1076 = vadd.f32 0.0, %v1075
        %v1077 = vpop.f32.mrb[0].mxu0
        %v1078 = vpop.f32.mrb[0].mxu0
        %v1079 = vadd.f32 0.0, %v1078
        %v1080 = vpop.f32.mrb[0].mxu0
        %1081 = vmatprep.mubr.bf16.mxu0 0
        %1082 = vmatmul.mubr.bf16.gmra.mrb[0].mxu0 %v892
        %v1083 = vpop.f32.mrb[0].mxu0
        %v1084 = vadd.f32 0.0, %v1083
        %v1085 = vpop.f32.mrb[0].mxu0
        %v1086 = vpop.f32.mrb[0].mxu0
        %v1087 = vadd.f32 0.0, %v1086
        %v1088 = vpop.f32.mrb[0].mxu0
        %1089 = vmatprep.mubr.bf16.mxu0 0
        %1090 = vmatmul.mubr.bf16.gmra.mrb[0].mxu0 %v893
        %v1091 = vpop.f32.mrb[0].mxu0
        %v1092 = vadd.f32 0.0, %v1091
        %v1093 = vpop.f32.mrb[0].mxu0
        %v1094 = vpop.f32.mrb[0].mxu0
        %v1095 = vadd.f32 0.0, %v1094
        %v1096 = vpop.f32.mrb[0].mxu0
        %1097 = vmatprep.mubr.bf16.mxu0 0
        %1098 = vmatmul.mubr.bf16.gmra.mrb[0].mxu0 %v894
        %v1099 = vpop.f32.mrb[0].mxu0
        %v1100 = vadd.f32 0.0, %v1099
        %v1101 = vpop.f32.mrb[0].mxu0
        %v1102 = vpop.f32.mrb[0].mxu0
        %v1103 = vadd.f32 0.0, %v1102
        %v1104 = vpop.f32.mrb[0].mxu0
        %1105 = vmatprep.mubr.bf16.mxu0 0
        %1106 = vmatmul.mubr.bf16.gmra.mrb[0].mxu0 %v895
        %v1107 = vpop.f32.mrb[0].mxu0
        %v1108 = vadd.f32 0.0, %v1107
        %v1109 = vpop.f32.mrb[0].mxu0
        %v1110 = vpop.f32.mrb[0].mxu0
        %v1111 = vadd.f32 0.0, %v1110
        %v1112 = vpop.f32.mrb[0].mxu0
        %1113 = vmatprep.mubr.bf16.mxu0 0
        %1114 = vmatmul.mubr.bf16.gmra.mrb[0].mxu0 %v896
        %v1115 = vpop.f32.mrb[0].mxu0
        %v1116 = vadd.f32 0.0, %v1115
        %v1117 = vpop.f32.mrb[0].mxu0
        %v1118 = vpop.f32.mrb[0].mxu0
        %v1119 = vadd.f32 0.0, %v1118
        %v1120 = vpop.f32.mrb[0].mxu0
        %1121 = vdwg.mxu0
        %v1154 = vunpack.c.l.b16 %v375
        %v1155 = vunpack.c.l.b16 %v376
        %v1156 = vunpack.c.l.b16 %v378
        %v1157 = vunpack.c.l.b16 %v379
        %v1158 = vunpack.c.l.b16 %v381
        %v1159 = vunpack.c.l.b16 %v382
        %v1160 = vunpack.c.l.b16 %v384
        %v1161 = vunpack.c.l.b16 %v385
        %v1162 = vunpack.c.l.b16 %v387
        %v1163 = vunpack.c.l.b16 %v388
        %v1164 = vunpack.c.l.b16 %v390
        %v1165 = vunpack.c.l.b16 %v391
        %v1166 = vunpack.c.l.b16 %v393
        %v1167 = vunpack.c.l.b16 %v394
        %v1168 = vunpack.c.l.b16 %v396
        %v1169 = vunpack.c.l.b16 %v397
        %v1170 = vunpack.c.l.b16 %v399
        %v1171 = vunpack.c.l.b16 %v400
        %v1172 = vunpack.c.l.b16 %v402
        %v1173 = vunpack.c.l.b16 %v403
        %v1174 = vunpack.c.l.b16 %v405
        %v1175 = vunpack.c.l.b16 %v406
        %v1176 = vunpack.c.l.b16 %v408
        %v1177 = vunpack.c.l.b16 %v409
        %v1178 = vunpack.c.l.b16 %v411
        %v1179 = vunpack.c.l.b16 %v412
        %v1180 = vunpack.c.l.b16 %v414
        %v1181 = vunpack.c.l.b16 %v415
        %v1182 = vunpack.c.l.b16 %v417
        %v1183 = vunpack.c.l.b16 %v418
        %v1184 = vunpack.c.l.b16 %v420
        %v1185 = vunpack.c.l.b16 %v421
        %v1186 = vpack.c.b16 %v1155, %v1154
        %v1187 = vpack.c.b16 %v1157, %v1156
        %v1188 = vpack.c.b16 %v1159, %v1158
        %v1189 = vpack.c.b16 %v1161, %v1160
        %v1190 = vpack.c.b16 %v1163, %v1162
        %v1191 = vpack.c.b16 %v1165, %v1164
        %v1192 = vpack.c.b16 %v1167, %v1166
        %v1193 = vpack.c.b16 %v1169, %v1168
        %v1194 = vpack.c.b16 %v1171, %v1170
        %v1195 = vpack.c.b16 %v1173, %v1172
        %v1196 = vpack.c.b16 %v1175, %v1174
        %v1197 = vpack.c.b16 %v1177, %v1176
        %v1198 = vpack.c.b16 %v1179, %v1178
        %v1199 = vpack.c.b16 %v1181, %v1180
        %v1200 = vpack.c.b16 %v1183, %v1182
        %v1201 = vpack.c.b16 %v1185, %v1184
        %v1234 = vunpack.c.l.b16 %v429
        %v1235 = vunpack.c.l.b16 %v430
        %v1236 = vunpack.c.l.b16 %v431
        %v1237 = vunpack.c.l.b16 %v432
        %v1238 = vunpack.c.l.b16 %v433
        %v1239 = vunpack.c.l.b16 %v434
        %v1240 = vunpack.c.l.b16 %v435
        %v1241 = vunpack.c.l.b16 %v436
        %v1242 = vunpack.c.l.b16 %v437
        %v1243 = vunpack.c.l.b16 %v438
        %v1244 = vunpack.c.l.b16 %v439
        %v1245 = vunpack.c.l.b16 %v440
        %v1246 = vunpack.c.l.b16 %v441
        %v1247 = vunpack.c.l.b16 %v442
        %v1248 = vunpack.c.l.b16 %v443
        %v1249 = vunpack.c.l.b16 %v444
        %v1250 = vpack.c.b16 %v1235, %v1234
        %v1251 = vpack.c.b16 %v1237, %v1236
        %v1252 = vpack.c.b16 %v1239, %v1238
        %v1253 = vpack.c.b16 %v1241, %v1240
        %v1254 = vpack.c.b16 %v1243, %v1242
        %v1255 = vpack.c.b16 %v1245, %v1244
        %v1256 = vpack.c.b16 %v1247, %v1246
        %v1257 = vpack.c.b16 %v1249, %v1248
        %1266 = vmatprep.subr.bf16.mxu0 0
        %1267 = vmatpush1.bf16.msra.mxu0 %v1250
        %1268 = vmatprep.subr.bf16.mxu0 0
        %1269 = vmatpush1.bf16.msra.mxu0 %v1251
        %1270 = vmatprep.subr.bf16.mxu0 0
        %1271 = vmatpush1.bf16.msra.mxu0 %v1252
        %1272 = vmatprep.subr.bf16.mxu0 0
        %1273 = vmatpush1.bf16.msra.mxu0 %v1253
        %1274 = vmatprep.subr.bf16.mxu0 0
        %1275 = vmatpush1.bf16.msra.mxu0 %v1254
        %1276 = vmatprep.subr.bf16.mxu0 0
        %1277 = vmatpush1.bf16.msra.mxu0 %v1255
        %1278 = vmatprep.subr.bf16.mxu0 0
        %1279 = vmatpush1.bf16.msra.mxu0 %v1256
        %1280 = vmatprep.subr.bf16.mxu0 0
        %1281 = vmatpush1.bf16.msra.mxu0 %v1257
        %1282 = vmatprep.subr.bf16.mxu0 0
        %1283 = vmatpush1.bf16.msra.mxu0 0
        %1284 = vmatprep.subr.bf16.mxu0 0
        %1285 = vmatpush1.bf16.msra.mxu0 0
        %1286 = vmatprep.subr.bf16.mxu0 0
        %1287 = vmatpush1.bf16.msra.mxu0 0
        %1288 = vmatprep.subr.bf16.mxu0 0
        %1289 = vmatpush1.bf16.msra.mxu0 0
        %1290 = vmatprep.subr.bf16.mxu0 0
        %1291 = vmatpush1.bf16.msra.mxu0 0
        %1292 = vmatprep.subr.bf16.mxu0 0
        %1293 = vmatpush1.bf16.msra.mxu0 0
        %1294 = vmatprep.subr.bf16.mxu0 0
        %1295 = vmatpush1.bf16.msra.mxu0 0
        %1296 = vmatprep.subr.bf16.mxu0 0
        %1297 = vmatpush1.bf16.msra.mxu0 0
        %1298 = vmatprep.mubr.bf16.mxu0 0
        %1299 = vmatmul.mubr.bf16.gmra.mrb[0].mxu0 %v1186
        %v1300 = vpop.f32.mrb[0].mxu0
        %v1301 = vadd.f32 %v996, %v1300
        %v1302 = vpop.f32.mrb[0].mxu0
        %v1303 = vpop.f32.mrb[0].mxu0
        %v1304 = vadd.f32 %v999, %v1303
        %v1305 = vpop.f32.mrb[0].mxu0
        %1306 = vmatprep.mubr.bf16.mxu0 0
        %1307 = vmatmul.mubr.bf16.gmra.mrb[0].mxu0 %v1187
        %v1308 = vpop.f32.mrb[0].mxu0
        %v1309 = vadd.f32 %v1004, %v1308
        %v1310 = vpop.f32.mrb[0].mxu0
        %v1311 = vpop.f32.mrb[0].mxu0
        %v1312 = vadd.f32 %v1007, %v1311
        %v1313 = vpop.f32.mrb[0].mxu0
        %1314 = vmatprep.mubr.bf16.mxu0 0
        %1315 = vmatmul.mubr.bf16.gmra.mrb[0].mxu0 %v1188
        %v1316 = vpop.f32.mrb[0].mxu0
        %v1317 = vadd.f32 %v1012, %v1316
        %v1318 = vpop.f32.mrb[0].mxu0
        %v1319 = vpop.f32.mrb[0].mxu0
        %v1320 = vadd.f32 %v1015, %v1319
        %v1321 = vpop.f32.mrb[0].mxu0
        %1322 = vmatprep.mubr.bf16.mxu0 0
        %1323 = vmatmul.mubr.bf16.gmra.mrb[0].mxu0 %v1189
        %v1324 = vpop.f32.mrb[0].mxu0
        %v1325 = vadd.f32 %v1020, %v1324
        %v1326 = vpop.f32.mrb[0].mxu0
        %v1327 = vpop.f32.mrb[0].mxu0
        %v1328 = vadd.f32 %v1023, %v1327
        %v1329 = vpop.f32.mrb[0].mxu0
        %1330 = vmatprep.mubr.bf16.mxu0 0
        %1331 = vmatmul.mubr.bf16.gmra.mrb[0].mxu0 %v1190
        %v1332 = vpop.f32.mrb[0].mxu0
        %v1333 = vadd.f32 %v1028, %v1332
        %v1334 = vpop.f32.mrb[0].mxu0
        %v1335 = vpop.f32.mrb[0].mxu0
        %v1336 = vadd.f32 %v1031, %v1335
        %v1337 = vpop.f32.mrb[0].mxu0
        %1338 = vmatprep.mubr.bf16.mxu0 0
        %1339 = vmatmul.mubr.bf16.gmra.mrb[0].mxu0 %v1191
        %v1340 = vpop.f32.mrb[0].mxu0
        %v1341 = vadd.f32 %v1036, %v1340
        %v1342 = vpop.f32.mrb[0].mxu0
        %v1343 = vpop.f32.mrb[0].mxu0
        %v1344 = vadd.f32 %v1039, %v1343
        %v1345 = vpop.f32.mrb[0].mxu0
        %1346 = vmatprep.mubr.bf16.mxu0 0
        %1347 = vmatmul.mubr.bf16.gmra.mrb[0].mxu0 %v1192
        %v1348 = vpop.f32.mrb[0].mxu0
        %v1349 = vadd.f32 %v1044, %v1348
        %v1350 = vpop.f32.mrb[0].mxu0
        %v1351 = vpop.f32.mrb[0].mxu0
        %v1352 = vadd.f32 %v1047, %v1351
        %v1353 = vpop.f32.mrb[0].mxu0
        %1354 = vmatprep.mubr.bf16.mxu0 0
        %1355 = vmatmul.mubr.bf16.gmra.mrb[0].mxu0 %v1193
        %v1356 = vpop.f32.mrb[0].mxu0
        %v1357 = vadd.f32 %v1052, %v1356
        %v1358 = vpop.f32.mrb[0].mxu0
        %v1359 = vpop.f32.mrb[0].mxu0
        %v1360 = vadd.f32 %v1055, %v1359
        %v1361 = vpop.f32.mrb[0].mxu0
        %1362 = vmatprep.mubr.bf16.mxu0 0
        %1363 = vmatmul.mubr.bf16.gmra.mrb[0].mxu0 %v1194
        %v1364 = vpop.f32.mrb[0].mxu0
        %v1365 = vadd.f32 %v1060, %v1364
        %v1366 = vpop.f32.mrb[0].mxu0
        %v1367 = vpop.f32.mrb[0].mxu0
        %v1368 = vadd.f32 %v1063, %v1367
        %v1369 = vpop.f32.mrb[0].mxu0
        %1370 = vmatprep.mubr.bf16.mxu0 0
        %1371 = vmatmul.mubr.bf16.gmra.mrb[0].mxu0 %v1195
        %v1372 = vpop.f32.mrb[0].mxu0
        %v1373 = vadd.f32 %v1068, %v1372
        %v1374 = vpop.f32.mrb[0].mxu0
        %v1375 = vpop.f32.mrb[0].mxu0
        %v1376 = vadd.f32 %v1071, %v1375
        %v1377 = vpop.f32.mrb[0].mxu0
        %1378 = vmatprep.mubr.bf16.mxu0 0
        %1379 = vmatmul.mubr.bf16.gmra.mrb[0].mxu0 %v1196
        %v1380 = vpop.f32.mrb[0].mxu0
        %v1381 = vadd.f32 %v1076, %v1380
        %v1382 = vpop.f32.mrb[0].mxu0
        %v1383 = vpop.f32.mrb[0].mxu0
        %v1384 = vadd.f32 %v1079, %v1383
        %v1385 = vpop.f32.mrb[0].mxu0
        %1386 = vmatprep.mubr.bf16.mxu0 0
        %1387 = vmatmul.mubr.bf16.gmra.mrb[0].mxu0 %v1197
        %v1388 = vpop.f32.mrb[0].mxu0
        %v1389 = vadd.f32 %v1084, %v1388
        %v1390 = vpop.f32.mrb[0].mxu0
        %v1391 = vpop.f32.mrb[0].mxu0
        %v1392 = vadd.f32 %v1087, %v1391
        %v1393 = vpop.f32.mrb[0].mxu0
        %1394 = vmatprep.mubr.bf16.mxu0 0
        %1395 = vmatmul.mubr.bf16.gmra.mrb[0].mxu0 %v1198
        %v1396 = vpop.f32.mrb[0].mxu0
        %v1397 = vadd.f32 %v1092, %v1396
        %v1398 = vpop.f32.mrb[0].mxu0
        %v1399 = vpop.f32.mrb[0].mxu0
        %v1400 = vadd.f32 %v1095, %v1399
        %v1401 = vpop.f32.mrb[0].mxu0
        %1402 = vmatprep.mubr.bf16.mxu0 0
        %1403 = vmatmul.mubr.bf16.gmra.mrb[0].mxu0 %v1199
        %v1404 = vpop.f32.mrb[0].mxu0
        %v1405 = vadd.f32 %v1100, %v1404
        %v1406 = vpop.f32.mrb[0].mxu0
        %v1407 = vpop.f32.mrb[0].mxu0
        %v1408 = vadd.f32 %v1103, %v1407
        %v1409 = vpop.f32.mrb[0].mxu0
        %1410 = vmatprep.mubr.bf16.mxu0 0
        %1411 = vmatmul.mubr.bf16.gmra.mrb[0].mxu0 %v1200
        %v1412 = vpop.f32.mrb[0].mxu0
        %v1413 = vadd.f32 %v1108, %v1412
        %v1414 = vpop.f32.mrb[0].mxu0
        %v1415 = vpop.f32.mrb[0].mxu0
        %v1416 = vadd.f32 %v1111, %v1415
        %v1417 = vpop.f32.mrb[0].mxu0
        %1418 = vmatprep.mubr.bf16.mxu0 0
        %1419 = vmatmul.mubr.bf16.gmra.mrb[0].mxu0 %v1201
        %v1420 = vpop.f32.mrb[0].mxu0
        %v1421 = vadd.f32 %v1116, %v1420
        %v1422 = vpop.f32.mrb[0].mxu0
        %v1423 = vpop.f32.mrb[0].mxu0
        %v1424 = vadd.f32 %v1119, %v1423
        %v1425 = vpop.f32.mrb[0].mxu0
        %1426 = vdwg.mxu0
        %vm1443 = vcmask 1042432
        %vm1444 = vcmask 1046532
        %vm1445 = vmor %vm1443, %vm1444
        %v1446 = vrot.slane %v375, 5
        %v1447 = vrot.slane %v1446, 4
        %v1448 = vrot.slane %v376, 5
        %v1449 = vsel %vm1445, %v1447, %v1448
        %v1450 = vrot.slane %v1448, 4
        %v1451 = vrot.slane %v377, 5
        %v1452 = vsel %vm1445, %v1450, %v1451
        %v1453 = vrot.slane %v378, 5
        %v1454 = vrot.slane %v1453, 4
        %v1455 = vrot.slane %v379, 5
        %v1456 = vsel %vm1445, %v1454, %v1455
        %v1457 = vrot.slane %v1455, 4
        %v1458 = vrot.slane %v380, 5
        %v1459 = vsel %vm1445, %v1457, %v1458
        %v1460 = vrot.slane %v381, 5
        %v1461 = vrot.slane %v1460, 4
        %v1462 = vrot.slane %v382, 5
        %v1463 = vsel %vm1445, %v1461, %v1462
        %v1464 = vrot.slane %v1462, 4
        %v1465 = vrot.slane %v383, 5
        %v1466 = vsel %vm1445, %v1464, %v1465
        %v1467 = vrot.slane %v384, 5
        %v1468 = vrot.slane %v1467, 4
        %v1469 = vrot.slane %v385, 5
        %v1470 = vsel %vm1445, %v1468, %v1469
        %v1471 = vrot.slane %v1469, 4
        %v1472 = vrot.slane %v386, 5
        %v1473 = vsel %vm1445, %v1471, %v1472
        %v1474 = vrot.slane %v387, 5
        %v1475 = vrot.slane %v1474, 4
        %v1476 = vrot.slane %v388, 5
        %v1477 = vsel %vm1445, %v1475, %v1476
        %v1478 = vrot.slane %v1476, 4
        %v1479 = vrot.slane %v389, 5
        %v1480 = vsel %vm1445, %v1478, %v1479
        %v1481 = vrot.slane %v390, 5
        %v1482 = vrot.slane %v1481, 4
        %v1483 = vrot.slane %v391, 5
        %v1484 = vsel %vm1445, %v1482, %v1483
        %v1485 = vrot.slane %v1483, 4
        %v1486 = vrot.slane %v392, 5
        %v1487 = vsel %vm1445, %v1485, %v1486
        %v1488 = vrot.slane %v393, 5
        %v1489 = vrot.slane %v1488, 4
        %v1490 = vrot.slane %v394, 5
        %v1491 = vsel %vm1445, %v1489, %v1490
        %v1492 = vrot.slane %v1490, 4
        %v1493 = vrot.slane %v395, 5
        %v1494 = vsel %vm1445, %v1492, %v1493
        %v1495 = vrot.slane %v396, 5
        %v1496 = vrot.slane %v1495, 4
        %v1497 = vrot.slane %v397, 5
        %v1498 = vsel %vm1445, %v1496, %v1497
        %v1499 = vrot.slane %v1497, 4
        %v1500 = vrot.slane %v398, 5
        %v1501 = vsel %vm1445, %v1499, %v1500
        %v1502 = vrot.slane %v399, 5
        %v1503 = vrot.slane %v1502, 4
        %v1504 = vrot.slane %v400, 5
        %v1505 = vsel %vm1445, %v1503, %v1504
        %v1506 = vrot.slane %v1504, 4
        %v1507 = vrot.slane %v401, 5
        %v1508 = vsel %vm1445, %v1506, %v1507
        %v1509 = vrot.slane %v402, 5
        %v1510 = vrot.slane %v1509, 4
        %v1511 = vrot.slane %v403, 5
        %v1512 = vsel %vm1445, %v1510, %v1511
        %v1513 = vrot.slane %v1511, 4
        %v1514 = vrot.slane %v404, 5
        %v1515 = vsel %vm1445, %v1513, %v1514
        %v1516 = vrot.slane %v405, 5
        %v1517 = vrot.slane %v1516, 4
        %v1518 = vrot.slane %v406, 5
        %v1519 = vsel %vm1445, %v1517, %v1518
        %v1520 = vrot.slane %v1518, 4
        %v1521 = vrot.slane %v407, 5
        %v1522 = vsel %vm1445, %v1520, %v1521
        %v1523 = vrot.slane %v408, 5
        %v1524 = vrot.slane %v1523, 4
        %v1525 = vrot.slane %v409, 5
        %v1526 = vsel %vm1445, %v1524, %v1525
        %v1527 = vrot.slane %v1525, 4
        %v1528 = vrot.slane %v410, 5
        %v1529 = vsel %vm1445, %v1527, %v1528
        %v1530 = vrot.slane %v411, 5
        %v1531 = vrot.slane %v1530, 4
        %v1532 = vrot.slane %v412, 5
        %v1533 = vsel %vm1445, %v1531, %v1532
        %v1534 = vrot.slane %v1532, 4
        %v1535 = vrot.slane %v413, 5
        %v1536 = vsel %vm1445, %v1534, %v1535
        %v1537 = vrot.slane %v414, 5
        %v1538 = vrot.slane %v1537, 4
        %v1539 = vrot.slane %v415, 5
        %v1540 = vsel %vm1445, %v1538, %v1539
        %v1541 = vrot.slane %v1539, 4
        %v1542 = vrot.slane %v416, 5
        %v1543 = vsel %vm1445, %v1541, %v1542
        %v1544 = vrot.slane %v417, 5
        %v1545 = vrot.slane %v1544, 4
        %v1546 = vrot.slane %v418, 5
        %v1547 = vsel %vm1445, %v1545, %v1546
        %v1548 = vrot.slane %v1546, 4
        %v1549 = vrot.slane %v419, 5
        %v1550 = vsel %vm1445, %v1548, %v1549
        %v1551 = vrot.slane %v420, 5
        %v1552 = vrot.slane %v1551, 4
        %v1553 = vrot.slane %v421, 5
        %v1554 = vsel %vm1445, %v1552, %v1553
        %v1555 = vrot.slane %v1553, 4
        %v1556 = vrot.slane %v422, 5
        %v1557 = vsel %vm1445, %v1555, %v1556
        %s1558 = scalar_lea.vmem %s2, 128
        %v1559 = vld [vmem:[%s1558] sm:$0xf]
        %v1560 = vld [vmem:[%s1558 + $0x4] sm:$0xf]
        %v1561 = vld [vmem:[%s1558 + $0x8] sm:$0xf]
        %v1562 = vld [vmem:[%s1558 + $0xc] sm:$0xf]
        %v1563 = vld [vmem:[%s1558 + $0x10] sm:$0xf]
        %v1564 = vld [vmem:[%s1558 + $0x14] sm:$0xf]
        %v1565 = vld [vmem:[%s1558 + $0x18] sm:$0xf]
        %v1566 = vld [vmem:[%s1558 + $0x1c] sm:$0xf]
        %v1567 = vld [vmem:[%s1558 + $0x20] sm:$0xf]
        %v1568 = vld [vmem:[%s1558 + $0x24] sm:$0xf]
        %v1569 = vld [vmem:[%s1558 + $0x28] sm:$0xf]
        %v1570 = vld [vmem:[%s1558 + $0x2c] sm:$0xf]
        %v1571 = vld [vmem:[%s1558 + $0x30] sm:$0xf]
        %v1572 = vld [vmem:[%s1558 + $0x34] sm:$0xf]
        %v1573 = vld [vmem:[%s1558 + $0x38] sm:$0xf]
        %v1574 = vld [vmem:[%s1558 + $0x3c] sm:$0xf]
        %v1575 = vunpack.c.l.b16 %v1449
        %v1576 = vunpack.c.l.b16 %v1452
        %v1577 = vunpack.c.l.b16 %v1456
        %v1578 = vunpack.c.l.b16 %v1459
        %v1579 = vunpack.c.l.b16 %v1463
        %v1580 = vunpack.c.l.b16 %v1466
        %v1581 = vunpack.c.l.b16 %v1470
        %v1582 = vunpack.c.l.b16 %v1473
        %v1583 = vunpack.c.l.b16 %v1477
        %v1584 = vunpack.c.l.b16 %v1480
        %v1585 = vunpack.c.l.b16 %v1484
        %v1586 = vunpack.c.l.b16 %v1487
        %v1587 = vunpack.c.l.b16 %v1491
        %v1588 = vunpack.c.l.b16 %v1494
        %v1589 = vunpack.c.l.b16 %v1498
        %v1590 = vunpack.c.l.b16 %v1501
        %v1591 = vunpack.c.l.b16 %v1505
        %v1592 = vunpack.c.l.b16 %v1508
        %v1593 = vunpack.c.l.b16 %v1512
        %v1594 = vunpack.c.l.b16 %v1515
        %v1595 = vunpack.c.l.b16 %v1519
        %v1596 = vunpack.c.l.b16 %v1522
        %v1597 = vunpack.c.l.b16 %v1526
        %v1598 = vunpack.c.l.b16 %v1529
        %v1599 = vunpack.c.l.b16 %v1533
        %v1600 = vunpack.c.l.b16 %v1536
        %v1601 = vunpack.c.l.b16 %v1540
        %v1602 = vunpack.c.l.b16 %v1543
        %v1603 = vunpack.c.l.b16 %v1547
        %v1604 = vunpack.c.l.b16 %v1550
        %v1605 = vunpack.c.l.b16 %v1554
        %v1606 = vunpack.c.l.b16 %v1557
        %v1607 = vpack.c.b16 %v1576, %v1575
        %v1608 = vpack.c.b16 %v1578, %v1577
        %v1609 = vpack.c.b16 %v1580, %v1579
        %v1610 = vpack.c.b16 %v1582, %v1581
        %v1611 = vpack.c.b16 %v1584, %v1583
        %v1612 = vpack.c.b16 %v1586, %v1585
        %v1613 = vpack.c.b16 %v1588, %v1587
        %v1614 = vpack.c.b16 %v1590, %v1589
        %v1615 = vpack.c.b16 %v1592, %v1591
        %v1616 = vpack.c.b16 %v1594, %v1593
        %v1617 = vpack.c.b16 %v1596, %v1595
        %v1618 = vpack.c.b16 %v1598, %v1597
        %v1619 = vpack.c.b16 %v1600, %v1599
        %v1620 = vpack.c.b16 %v1602, %v1601
        %v1621 = vpack.c.b16 %v1604, %v1603
        %v1622 = vpack.c.b16 %v1606, %v1605
        %v1655 = vunpack.c.l.b16 %v1559
        %v1656 = vunpack.c.l.b16 %v1560
        %v1657 = vunpack.c.l.b16 %v1561
        %v1658 = vunpack.c.l.b16 %v1562
        %v1659 = vunpack.c.l.b16 %v1563
        %v1660 = vunpack.c.l.b16 %v1564
        %v1661 = vunpack.c.l.b16 %v1565
        %v1662 = vunpack.c.l.b16 %v1566
        %v1663 = vunpack.c.l.b16 %v1567
        %v1664 = vunpack.c.l.b16 %v1568
        %v1665 = vunpack.c.l.b16 %v1569
        %v1666 = vunpack.c.l.b16 %v1570
        %v1667 = vunpack.c.l.b16 %v1571
        %v1668 = vunpack.c.l.b16 %v1572
        %v1669 = vunpack.c.l.b16 %v1573
        %v1670 = vunpack.c.l.b16 %v1574
        %v1671 = vpack.c.b16 %v1656, %v1655
        %v1672 = vpack.c.b16 %v1658, %v1657
        %v1673 = vpack.c.b16 %v1660, %v1659
        %v1674 = vpack.c.b16 %v1662, %v1661
        %v1675 = vpack.c.b16 %v1664, %v1663
        %v1676 = vpack.c.b16 %v1666, %v1665
        %v1677 = vpack.c.b16 %v1668, %v1667
        %v1678 = vpack.c.b16 %v1670, %v1669
        %1687 = vmatprep.subr.bf16.mxu0 0
        %1688 = vmatpush1.bf16.msra.mxu0 %v1671
        %1689 = vmatprep.subr.bf16.mxu0 0
        %1690 = vmatpush1.bf16.msra.mxu0 %v1672
        %1691 = vmatprep.subr.bf16.mxu0 0
        %1692 = vmatpush1.bf16.msra.mxu0 %v1673
        %1693 = vmatprep.subr.bf16.mxu0 0
        %1694 = vmatpush1.bf16.msra.mxu0 %v1674
        %1695 = vmatprep.subr.bf16.mxu0 0
        %1696 = vmatpush1.bf16.msra.mxu0 %v1675
        %1697 = vmatprep.subr.bf16.mxu0 0
        %1698 = vmatpush1.bf16.msra.mxu0 %v1676
        %1699 = vmatprep.subr.bf16.mxu0 0
        %1700 = vmatpush1.bf16.msra.mxu0 %v1677
        %1701 = vmatprep.subr.bf16.mxu0 0
        %1702 = vmatpush1.bf16.msra.mxu0 %v1678
        %1703 = vmatprep.subr.bf16.mxu0 0
        %1704 = vmatpush1.bf16.msra.mxu0 0
        %1705 = vmatprep.subr.bf16.mxu0 0
        %1706 = vmatpush1.bf16.msra.mxu0 0
        %1707 = vmatprep.subr.bf16.mxu0 0
        %1708 = vmatpush1.bf16.msra.mxu0 0
        %1709 = vmatprep.subr.bf16.mxu0 0
        %1710 = vmatpush1.bf16.msra.mxu0 0
        %1711 = vmatprep.subr.bf16.mxu0 0
        %1712 = vmatpush1.bf16.msra.mxu0 0
        %1713 = vmatprep.subr.bf16.mxu0 0
        %1714 = vmatpush1.bf16.msra.mxu0 0
        %1715 = vmatprep.subr.bf16.mxu0 0
        %1716 = vmatpush1.bf16.msra.mxu0 0
        %1717 = vmatprep.subr.bf16.mxu0 0
        %1718 = vmatpush1.bf16.msra.mxu0 0
        %1719 = vmatprep.mubr.bf16.mxu0 0
        %1720 = vmatmul.mubr.bf16.gmra.mrb[0].mxu0 %v1607
        %v1721 = vpop.f32.mrb[0].mxu0
        %v1722 = vadd.f32 0.0, %v1721
        %v1723 = vpop.f32.mrb[0].mxu0
        %v1724 = vpop.f32.mrb[0].mxu0
        %v1725 = vadd.f32 0.0, %v1724
        %v1726 = vpop.f32.mrb[0].mxu0
        %1727 = vmatprep.mubr.bf16.mxu0 0
        %1728 = vmatmul.mubr.bf16.gmra.mrb[0].mxu0 %v1608
        %v1729 = vpop.f32.mrb[0].mxu0
        %v1730 = vadd.f32 0.0, %v1729
        %v1731 = vpop.f32.mrb[0].mxu0
        %v1732 = vpop.f32.mrb[0].mxu0
        %v1733 = vadd.f32 0.0, %v1732
        %v1734 = vpop.f32.mrb[0].mxu0
        %1735 = vmatprep.mubr.bf16.mxu0 0
        %1736 = vmatmul.mubr.bf16.gmra.mrb[0].mxu0 %v1609
        %v1737 = vpop.f32.mrb[0].mxu0
        %v1738 = vadd.f32 0.0, %v1737
        %v1739 = vpop.f32.mrb[0].mxu0
        %v1740 = vpop.f32.mrb[0].mxu0
        %v1741 = vadd.f32 0.0, %v1740
        %v1742 = vpop.f32.mrb[0].mxu0
        %1743 = vmatprep.mubr.bf16.mxu0 0
        %1744 = vmatmul.mubr.bf16.gmra.mrb[0].mxu0 %v1610
        %v1745 = vpop.f32.mrb[0].mxu0
        %v1746 = vadd.f32 0.0, %v1745
        %v1747 = vpop.f32.mrb[0].mxu0
        %v1748 = vpop.f32.mrb[0].mxu0
        %v1749 = vadd.f32 0.0, %v1748
        %v1750 = vpop.f32.mrb[0].mxu0
        %1751 = vmatprep.mubr.bf16.mxu0 0
        %1752 = vmatmul.mubr.bf16.gmra.mrb[0].mxu0 %v1611
        %v1753 = vpop.f32.mrb[0].mxu0
        %v1754 = vadd.f32 0.0, %v1753
        %v1755 = vpop.f32.mrb[0].mxu0
        %v1756 = vpop.f32.mrb[0].mxu0
        %v1757 = vadd.f32 0.0, %v1756
        %v1758 = vpop.f32.mrb[0].mxu0
        %1759 = vmatprep.mubr.bf16.mxu0 0
        %1760 = vmatmul.mubr.bf16.gmra.mrb[0].mxu0 %v1612
        %v1761 = vpop.f32.mrb[0].mxu0
        %v1762 = vadd.f32 0.0, %v1761
        %v1763 = vpop.f32.mrb[0].mxu0
        %v1764 = vpop.f32.mrb[0].mxu0
        %v1765 = vadd.f32 0.0, %v1764
        %v1766 = vpop.f32.mrb[0].mxu0
        %1767 = vmatprep.mubr.bf16.mxu0 0
        %1768 = vmatmul.mubr.bf16.gmra.mrb[0].mxu0 %v1613
        %v1769 = vpop.f32.mrb[0].mxu0
        %v1770 = vadd.f32 0.0, %v1769
        %v1771 = vpop.f32.mrb[0].mxu0
        %v1772 = vpop.f32.mrb[0].mxu0
        %v1773 = vadd.f32 0.0, %v1772
        %v1774 = vpop.f32.mrb[0].mxu0
        %1775 = vmatprep.mubr.bf16.mxu0 0
        %1776 = vmatmul.mubr.bf16.gmra.mrb[0].mxu0 %v1614
        %v1777 = vpop.f32.mrb[0].mxu0
        %v1778 = vadd.f32 0.0, %v1777
        %v1779 = vpop.f32.mrb[0].mxu0
        %v1780 = vpop.f32.mrb[0].mxu0
        %v1781 = vadd.f32 0.0, %v1780
        %v1782 = vpop.f32.mrb[0].mxu0
        %1783 = vmatprep.mubr.bf16.mxu0 0
        %1784 = vmatmul.mubr.bf16.gmra.mrb[0].mxu0 %v1615
        %v1785 = vpop.f32.mrb[0].mxu0
        %v1786 = vadd.f32 0.0, %v1785
        %v1787 = vpop.f32.mrb[0].mxu0
        %v1788 = vpop.f32.mrb[0].mxu0
        %v1789 = vadd.f32 0.0, %v1788
        %v1790 = vpop.f32.mrb[0].mxu0
        %1791 = vmatprep.mubr.bf16.mxu0 0
        %1792 = vmatmul.mubr.bf16.gmra.mrb[0].mxu0 %v1616
        %v1793 = vpop.f32.mrb[0].mxu0
        %v1794 = vadd.f32 0.0, %v1793
        %v1795 = vpop.f32.mrb[0].mxu0
        %v1796 = vpop.f32.mrb[0].mxu0
        %v1797 = vadd.f32 0.0, %v1796
        %v1798 = vpop.f32.mrb[0].mxu0
        %1799 = vmatprep.mubr.bf16.mxu0 0
        %1800 = vmatmul.mubr.bf16.gmra.mrb[0].mxu0 %v1617
        %v1801 = vpop.f32.mrb[0].mxu0
        %v1802 = vadd.f32 0.0, %v1801
        %v1803 = vpop.f32.mrb[0].mxu0
        %v1804 = vpop.f32.mrb[0].mxu0
        %v1805 = vadd.f32 0.0, %v1804
        %v1806 = vpop.f32.mrb[0].mxu0
        %1807 = vmatprep.mubr.bf16.mxu0 0
        %1808 = vmatmul.mubr.bf16.gmra.mrb[0].mxu0 %v1618
        %v1809 = vpop.f32.mrb[0].mxu0
        %v1810 = vadd.f32 0.0, %v1809
        %v1811 = vpop.f32.mrb[0].mxu0
        %v1812 = vpop.f32.mrb[0].mxu0
        %v1813 = vadd.f32 0.0, %v1812
        %v1814 = vpop.f32.mrb[0].mxu0
        %1815 = vmatprep.mubr.bf16.mxu0 0
        %1816 = vmatmul.mubr.bf16.gmra.mrb[0].mxu0 %v1619
        %v1817 = vpop.f32.mrb[0].mxu0
        %v1818 = vadd.f32 0.0, %v1817
        %v1819 = vpop.f32.mrb[0].mxu0
        %v1820 = vpop.f32.mrb[0].mxu0
        %v1821 = vadd.f32 0.0, %v1820
        %v1822 = vpop.f32.mrb[0].mxu0
        %1823 = vmatprep.mubr.bf16.mxu0 0
        %1824 = vmatmul.mubr.bf16.gmra.mrb[0].mxu0 %v1620
        %v1825 = vpop.f32.mrb[0].mxu0
        %v1826 = vadd.f32 0.0, %v1825
        %v1827 = vpop.f32.mrb[0].mxu0
        %v1828 = vpop.f32.mrb[0].mxu0
        %v1829 = vadd.f32 0.0, %v1828
        %v1830 = vpop.f32.mrb[0].mxu0
        %1831 = vmatprep.mubr.bf16.mxu0 0
        %1832 = vmatmul.mubr.bf16.gmra.mrb[0].mxu0 %v1621
        %v1833 = vpop.f32.mrb[0].mxu0
        %v1834 = vadd.f32 0.0, %v1833
        %v1835 = vpop.f32.mrb[0].mxu0
        %v1836 = vpop.f32.mrb[0].mxu0
        %v1837 = vadd.f32 0.0, %v1836
        %v1838 = vpop.f32.mrb[0].mxu0
        %1839 = vmatprep.mubr.bf16.mxu0 0
        %1840 = vmatmul.mubr.bf16.gmra.mrb[0].mxu0 %v1622
        %v1841 = vpop.f32.mrb[0].mxu0
        %v1842 = vadd.f32 0.0, %v1841
        %v1843 = vpop.f32.mrb[0].mxu0
        %v1844 = vpop.f32.mrb[0].mxu0
        %v1845 = vadd.f32 0.0, %v1844
        %v1846 = vpop.f32.mrb[0].mxu0
        %1847 = vdwg.mxu0
        %v1848 = vadd.f32 %v1301, %v1722
        %v1849 = vadd.f32 %v1304, %v1725
        %v1850 = vadd.f32 %v1309, %v1730
        %v1851 = vadd.f32 %v1312, %v1733
        %v1852 = vadd.f32 %v1317, %v1738
        %v1853 = vadd.f32 %v1320, %v1741
        %v1854 = vadd.f32 %v1325, %v1746
        %v1855 = vadd.f32 %v1328, %v1749
        %v1856 = vadd.f32 %v1333, %v1754
        %v1857 = vadd.f32 %v1336, %v1757
        %v1858 = vadd.f32 %v1341, %v1762
        %v1859 = vadd.f32 %v1344, %v1765
        %v1860 = vadd.f32 %v1349, %v1770
        %v1861 = vadd.f32 %v1352, %v1773
        %v1862 = vadd.f32 %v1357, %v1778
        %v1863 = vadd.f32 %v1360, %v1781
        %v1864 = vadd.f32 %v1365, %v1786
        %v1865 = vadd.f32 %v1368, %v1789
        %v1866 = vadd.f32 %v1373, %v1794
        %v1867 = vadd.f32 %v1376, %v1797
        %v1868 = vadd.f32 %v1381, %v1802
        %v1869 = vadd.f32 %v1384, %v1805
        %v1870 = vadd.f32 %v1389, %v1810
        %v1871 = vadd.f32 %v1392, %v1813
        %v1872 = vadd.f32 %v1397, %v1818
        %v1873 = vadd.f32 %v1400, %v1821
        %v1874 = vadd.f32 %v1405, %v1826
        %v1875 = vadd.f32 %v1408, %v1829
        %v1876 = vadd.f32 %v1413, %v1834
        %v1877 = vadd.f32 %v1416, %v1837
        %v1878 = vadd.f32 %v1421, %v1842
        %v1879 = vadd.f32 %v1424, %v1845
        %s1880 = scalar_lea.vmem %s2, 192
        %v1881 = vld [vmem:[%s1880] sm:$0xf]
        %v1882 = vld [vmem:[%s1880 + $0x4] sm:$0xf]
        %v1883 = vld [vmem:[%s1880 + $0x8] sm:$0xf]
        %v1884 = vld [vmem:[%s1880 + $0xc] sm:$0xf]
        %v1885 = vld [vmem:[%s1880 + $0x10] sm:$0xf]
        %v1886 = vld [vmem:[%s1880 + $0x14] sm:$0xf]
        %v1887 = vld [vmem:[%s1880 + $0x18] sm:$0xf]
        %v1888 = vld [vmem:[%s1880 + $0x1c] sm:$0xf]
        %v1889 = vld [vmem:[%s1880 + $0x20] sm:$0xf]
        %v1890 = vld [vmem:[%s1880 + $0x24] sm:$0xf]
        %v1891 = vld [vmem:[%s1880 + $0x28] sm:$0xf]
        %v1892 = vld [vmem:[%s1880 + $0x2c] sm:$0xf]
        %v1893 = vld [vmem:[%s1880 + $0x30] sm:$0xf]
        %v1894 = vld [vmem:[%s1880 + $0x34] sm:$0xf]
        %v1895 = vld [vmem:[%s1880 + $0x38] sm:$0xf]
        %v1896 = vld [vmem:[%s1880 + $0x3c] sm:$0xf]
        %v1899 = vunpack.c.l.b16 %v423
        %v1900 = vunpack.c.l.b16 %v424
        %v1901 = vpack.c.b16 %v1900, %v1899
        %v1919 = vunpack.c.l.b16 %v1881
        %v1920 = vunpack.c.l.b16 %v1882
        %v1921 = vunpack.c.l.b16 %v1883
        %v1922 = vunpack.c.l.b16 %v1884
        %v1923 = vunpack.c.l.b16 %v1885
        %v1924 = vunpack.c.l.b16 %v1886
        %v1925 = vunpack.c.l.b16 %v1887
        %v1926 = vunpack.c.l.b16 %v1888
        %v1927 = vunpack.c.l.b16 %v1889
        %v1928 = vunpack.c.l.b16 %v1890
        %v1929 = vunpack.c.l.b16 %v1891
        %v1930 = vunpack.c.l.b16 %v1892
        %v1931 = vunpack.c.l.b16 %v1893
        %v1932 = vunpack.c.l.b16 %v1894
        %v1933 = vunpack.c.l.b16 %v1895
        %v1934 = vunpack.c.l.b16 %v1896
        %v1935 = vpack.c.b16 %v1920, %v1919
        %v1936 = vpack.c.b16 %v1922, %v1921
        %v1937 = vpack.c.b16 %v1924, %v1923
        %v1938 = vpack.c.b16 %v1926, %v1925
        %v1939 = vpack.c.b16 %v1928, %v1927
        %v1940 = vpack.c.b16 %v1930, %v1929
        %v1941 = vpack.c.b16 %v1932, %v1931
        %v1942 = vpack.c.b16 %v1934, %v1933
        %1951 = vmatprep.subr.bf16.mxu0 0
        %1952 = vmatpush1.bf16.msra.mxu0 %v1935
        %1953 = vmatprep.subr.bf16.mxu0 0
        %1954 = vmatpush1.bf16.msra.mxu0 %v1936
        %1955 = vmatprep.subr.bf16.mxu0 0
        %1956 = vmatpush1.bf16.msra.mxu0 %v1937
        %1957 = vmatprep.subr.bf16.mxu0 0
        %1958 = vmatpush1.bf16.msra.mxu0 %v1938
        %1959 = vmatprep.subr.bf16.mxu0 0
        %1960 = vmatpush1.bf16.msra.mxu0 %v1939
        %1961 = vmatprep.subr.bf16.mxu0 0
        %1962 = vmatpush1.bf16.msra.mxu0 %v1940
        %1963 = vmatprep.subr.bf16.mxu0 0
        %1964 = vmatpush1.bf16.msra.mxu0 %v1941
        %1965 = vmatprep.subr.bf16.mxu0 0
        %1966 = vmatpush1.bf16.msra.mxu0 %v1942
        %1967 = vmatprep.subr.bf16.mxu0 0
        %1968 = vmatpush1.bf16.msra.mxu0 0
        %1969 = vmatprep.subr.bf16.mxu0 0
        %1970 = vmatpush1.bf16.msra.mxu0 0
        %1971 = vmatprep.subr.bf16.mxu0 0
        %1972 = vmatpush1.bf16.msra.mxu0 0
        %1973 = vmatprep.subr.bf16.mxu0 0
        %1974 = vmatpush1.bf16.msra.mxu0 0
        %1975 = vmatprep.subr.bf16.mxu0 0
        %1976 = vmatpush1.bf16.msra.mxu0 0
        %1977 = vmatprep.subr.bf16.mxu0 0
        %1978 = vmatpush1.bf16.msra.mxu0 0
        %1979 = vmatprep.subr.bf16.mxu0 0
        %1980 = vmatpush1.bf16.msra.mxu0 0
        %1981 = vmatprep.subr.bf16.mxu0 0
        %1982 = vmatpush1.bf16.msra.mxu0 0
        %1983 = vmatprep.mubr.bf16.mxu0 0
        %1984 = vmatmul.mubr.bf16.gmra.mrb[0].mxu0 %v1187
        %v1985 = vpop.f32.mrb[0].mxu0
        %v1986 = vadd.f32 0.0, %v1985
        %v1987 = vpop.f32.mrb[0].mxu0
        %v1988 = vpop.f32.mrb[0].mxu0
        %v1989 = vadd.f32 0.0, %v1988
        %v1990 = vpop.f32.mrb[0].mxu0
        %1991 = vmatprep.mubr.bf16.mxu0 0
        %1992 = vmatmul.mubr.bf16.gmra.mrb[0].mxu0 %v1188
        %v1993 = vpop.f32.mrb[0].mxu0
        %v1994 = vadd.f32 0.0, %v1993
        %v1995 = vpop.f32.mrb[0].mxu0
        %v1996 = vpop.f32.mrb[0].mxu0
        %v1997 = vadd.f32 0.0, %v1996
        %v1998 = vpop.f32.mrb[0].mxu0
        %1999 = vmatprep.mubr.bf16.mxu0 0
        %2000 = vmatmul.mubr.bf16.gmra.mrb[0].mxu0 %v1189
        %v2001 = vpop.f32.mrb[0].mxu0
        %v2002 = vadd.f32 0.0, %v2001
        %v2003 = vpop.f32.mrb[0].mxu0
        %v2004 = vpop.f32.mrb[0].mxu0
        %v2005 = vadd.f32 0.0, %v2004
        %v2006 = vpop.f32.mrb[0].mxu0
        %2007 = vmatprep.mubr.bf16.mxu0 0
        %2008 = vmatmul.mubr.bf16.gmra.mrb[0].mxu0 %v1190
        %v2009 = vpop.f32.mrb[0].mxu0
        %v2010 = vadd.f32 0.0, %v2009
        %v2011 = vpop.f32.mrb[0].mxu0
        %v2012 = vpop.f32.mrb[0].mxu0
        %v2013 = vadd.f32 0.0, %v2012
        %v2014 = vpop.f32.mrb[0].mxu0
        %2015 = vmatprep.mubr.bf16.mxu0 0
        %2016 = vmatmul.mubr.bf16.gmra.mrb[0].mxu0 %v1191
        %v2017 = vpop.f32.mrb[0].mxu0
        %v2018 = vadd.f32 0.0, %v2017
        %v2019 = vpop.f32.mrb[0].mxu0
        %v2020 = vpop.f32.mrb[0].mxu0
        %v2021 = vadd.f32 0.0, %v2020
        %v2022 = vpop.f32.mrb[0].mxu0
        %2023 = vmatprep.mubr.bf16.mxu0 0
        %2024 = vmatmul.mubr.bf16.gmra.mrb[0].mxu0 %v1192
        %v2025 = vpop.f32.mrb[0].mxu0
        %v2026 = vadd.f32 0.0, %v2025
        %v2027 = vpop.f32.mrb[0].mxu0
        %v2028 = vpop.f32.mrb[0].mxu0
        %v2029 = vadd.f32 0.0, %v2028
        %v2030 = vpop.f32.mrb[0].mxu0
        %2031 = vmatprep.mubr.bf16.mxu0 0
        %2032 = vmatmul.mubr.bf16.gmra.mrb[0].mxu0 %v1193
        %v2033 = vpop.f32.mrb[0].mxu0
        %v2034 = vadd.f32 0.0, %v2033
        %v2035 = vpop.f32.mrb[0].mxu0
        %v2036 = vpop.f32.mrb[0].mxu0
        %v2037 = vadd.f32 0.0, %v2036
        %v2038 = vpop.f32.mrb[0].mxu0
        %2039 = vmatprep.mubr.bf16.mxu0 0
        %2040 = vmatmul.mubr.bf16.gmra.mrb[0].mxu0 %v1194
        %v2041 = vpop.f32.mrb[0].mxu0
        %v2042 = vadd.f32 0.0, %v2041
        %v2043 = vpop.f32.mrb[0].mxu0
        %v2044 = vpop.f32.mrb[0].mxu0
        %v2045 = vadd.f32 0.0, %v2044
        %v2046 = vpop.f32.mrb[0].mxu0
        %2047 = vmatprep.mubr.bf16.mxu0 0
        %2048 = vmatmul.mubr.bf16.gmra.mrb[0].mxu0 %v1195
        %v2049 = vpop.f32.mrb[0].mxu0
        %v2050 = vadd.f32 0.0, %v2049
        %v2051 = vpop.f32.mrb[0].mxu0
        %v2052 = vpop.f32.mrb[0].mxu0
        %v2053 = vadd.f32 0.0, %v2052
        %v2054 = vpop.f32.mrb[0].mxu0
        %2055 = vmatprep.mubr.bf16.mxu0 0
        %2056 = vmatmul.mubr.bf16.gmra.mrb[0].mxu0 %v1196
        %v2057 = vpop.f32.mrb[0].mxu0
        %v2058 = vadd.f32 0.0, %v2057
        %v2059 = vpop.f32.mrb[0].mxu0
        %v2060 = vpop.f32.mrb[0].mxu0
        %v2061 = vadd.f32 0.0, %v2060
        %v2062 = vpop.f32.mrb[0].mxu0
        %2063 = vmatprep.mubr.bf16.mxu0 0
        %2064 = vmatmul.mubr.bf16.gmra.mrb[0].mxu0 %v1197
        %v2065 = vpop.f32.mrb[0].mxu0
        %v2066 = vadd.f32 0.0, %v2065
        %v2067 = vpop.f32.mrb[0].mxu0
        %v2068 = vpop.f32.mrb[0].mxu0
        %v2069 = vadd.f32 0.0, %v2068
        %v2070 = vpop.f32.mrb[0].mxu0
        %2071 = vmatprep.mubr.bf16.mxu0 0
        %2072 = vmatmul.mubr.bf16.gmra.mrb[0].mxu0 %v1198
        %v2073 = vpop.f32.mrb[0].mxu0
        %v2074 = vadd.f32 0.0, %v2073
        %v2075 = vpop.f32.mrb[0].mxu0
        %v2076 = vpop.f32.mrb[0].mxu0
        %v2077 = vadd.f32 0.0, %v2076
        %v2078 = vpop.f32.mrb[0].mxu0
        %2079 = vmatprep.mubr.bf16.mxu0 0
        %2080 = vmatmul.mubr.bf16.gmra.mrb[0].mxu0 %v1199
        %v2081 = vpop.f32.mrb[0].mxu0
        %v2082 = vadd.f32 0.0, %v2081
        %v2083 = vpop.f32.mrb[0].mxu0
        %v2084 = vpop.f32.mrb[0].mxu0
        %v2085 = vadd.f32 0.0, %v2084
        %v2086 = vpop.f32.mrb[0].mxu0
        %2087 = vmatprep.mubr.bf16.mxu0 0
        %2088 = vmatmul.mubr.bf16.gmra.mrb[0].mxu0 %v1200
        %v2089 = vpop.f32.mrb[0].mxu0
        %v2090 = vadd.f32 0.0, %v2089
        %v2091 = vpop.f32.mrb[0].mxu0
        %v2092 = vpop.f32.mrb[0].mxu0
        %v2093 = vadd.f32 0.0, %v2092
        %v2094 = vpop.f32.mrb[0].mxu0
        %2095 = vmatprep.mubr.bf16.mxu0 0
        %2096 = vmatmul.mubr.bf16.gmra.mrb[0].mxu0 %v1201
        %v2097 = vpop.f32.mrb[0].mxu0
        %v2098 = vadd.f32 0.0, %v2097
        %v2099 = vpop.f32.mrb[0].mxu0
        %v2100 = vpop.f32.mrb[0].mxu0
        %v2101 = vadd.f32 0.0, %v2100
        %v2102 = vpop.f32.mrb[0].mxu0
        %2103 = vmatprep.mubr.bf16.mxu0 0
        %2104 = vmatmul.mubr.bf16.gmra.mrb[0].mxu0 %v1901
        %v2105 = vpop.f32.mrb[0].mxu0
        %v2106 = vadd.f32 0.0, %v2105
        %v2107 = vpop.f32.mrb[0].mxu0
        %v2108 = vpop.f32.mrb[0].mxu0
        %v2109 = vadd.f32 0.0, %v2108
        %v2110 = vpop.f32.mrb[0].mxu0
        %2111 = vdwg.mxu0
        %v2112 = vadd.f32 %v1848, %v1986
        %v2113 = vadd.f32 %v1849, %v1989
        %v2114 = vadd.f32 %v1850, %v1994
        %v2115 = vadd.f32 %v1851, %v1997
        %v2116 = vadd.f32 %v1852, %v2002
        %v2117 = vadd.f32 %v1853, %v2005
        %v2118 = vadd.f32 %v1854, %v2010
        %v2119 = vadd.f32 %v1855, %v2013
        %v2120 = vadd.f32 %v1856, %v2018
        %v2121 = vadd.f32 %v1857, %v2021
        %v2122 = vadd.f32 %v1858, %v2026
        %v2123 = vadd.f32 %v1859, %v2029
        %v2124 = vadd.f32 %v1860, %v2034
        %v2125 = vadd.f32 %v1861, %v2037
        %v2126 = vadd.f32 %v1862, %v2042
        %v2127 = vadd.f32 %v1863, %v2045
        %v2128 = vadd.f32 %v1864, %v2050
        %v2129 = vadd.f32 %v1865, %v2053
        %v2130 = vadd.f32 %v1866, %v2058
        %v2131 = vadd.f32 %v1867, %v2061
        %v2132 = vadd.f32 %v1868, %v2066
        %v2133 = vadd.f32 %v1869, %v2069
        %v2134 = vadd.f32 %v1870, %v2074
        %v2135 = vadd.f32 %v1871, %v2077
        %v2136 = vadd.f32 %v1872, %v2082
        %v2137 = vadd.f32 %v1873, %v2085
        %v2138 = vadd.f32 %v1874, %v2090
        %v2139 = vadd.f32 %v1875, %v2093
        %v2140 = vadd.f32 %v1876, %v2098
        %v2141 = vadd.f32 %v1877, %v2101
        %v2142 = vadd.f32 %v1878, %v2106
        %v2143 = vadd.f32 %v1879, %v2109
        %v2145 = vshrl.u32 %v423, 16
        %v2147 = vrot.slane %v2145, 4
        %v2148 = vshll.u32 %v423, 16
        %v2150 = vrot.slane %v2148, 5
        %v2151 = vor.u32 %v2147, %v2150
        %v2152 = vrot.slane %v2151, 4
        %v2154 = vshll.u32 %v424, 16
        %v2156 = vrot.slane %v2154, 5
        %v2157 = vsel %vm447, %v2152, %v2156
        %v2158 = vshrl.u32 %v424, 16
        %v2160 = vrot.slane %v2158, 4
        %v2161 = vor.u32 %v2160, %v2156
        %v2162 = vrot.slane %v2161, 4
        %v2164 = vshll.u32 %v425, 16
        %v2166 = vrot.slane %v2164, 5
        %v2167 = vsel %vm447, %v2162, %v2166
        %s2168 = scalar_lea.vmem %s2, 256
        %v2169 = vld [vmem:[%s2168] sm:$0xf]
        %v2170 = vld [vmem:[%s2168 + $0x4] sm:$0xf]
        %v2171 = vld [vmem:[%s2168 + $0x8] sm:$0xf]
        %v2172 = vld [vmem:[%s2168 + $0xc] sm:$0xf]
        %v2173 = vld [vmem:[%s2168 + $0x10] sm:$0xf]
        %v2174 = vld [vmem:[%s2168 + $0x14] sm:$0xf]
        %v2175 = vld [vmem:[%s2168 + $0x18] sm:$0xf]
        %v2176 = vld [vmem:[%s2168 + $0x1c] sm:$0xf]
        %v2177 = vld [vmem:[%s2168 + $0x20] sm:$0xf]
        %v2178 = vld [vmem:[%s2168 + $0x24] sm:$0xf]
        %v2179 = vld [vmem:[%s2168 + $0x28] sm:$0xf]
        %v2180 = vld [vmem:[%s2168 + $0x2c] sm:$0xf]
        %v2181 = vld [vmem:[%s2168 + $0x30] sm:$0xf]
        %v2182 = vld [vmem:[%s2168 + $0x34] sm:$0xf]
        %v2183 = vld [vmem:[%s2168 + $0x38] sm:$0xf]
        %v2184 = vld [vmem:[%s2168 + $0x3c] sm:$0xf]
        %v2185 = vunpack.c.l.b16 %v2157
        %v2186 = vunpack.c.l.b16 %v2167
        %v2187 = vpack.c.b16 %v2186, %v2185
        %v2205 = vunpack.c.l.b16 %v2169
        %v2206 = vunpack.c.l.b16 %v2170
        %v2207 = vunpack.c.l.b16 %v2171
        %v2208 = vunpack.c.l.b16 %v2172
        %v2209 = vunpack.c.l.b16 %v2173
        %v2210 = vunpack.c.l.b16 %v2174
        %v2211 = vunpack.c.l.b16 %v2175
        %v2212 = vunpack.c.l.b16 %v2176
        %v2213 = vunpack.c.l.b16 %v2177
        %v2214 = vunpack.c.l.b16 %v2178
        %v2215 = vunpack.c.l.b16 %v2179
        %v2216 = vunpack.c.l.b16 %v2180
        %v2217 = vunpack.c.l.b16 %v2181
        %v2218 = vunpack.c.l.b16 %v2182
        %v2219 = vunpack.c.l.b16 %v2183
        %v2220 = vunpack.c.l.b16 %v2184
        %v2221 = vpack.c.b16 %v2206, %v2205
        %v2222 = vpack.c.b16 %v2208, %v2207
        %v2223 = vpack.c.b16 %v2210, %v2209
        %v2224 = vpack.c.b16 %v2212, %v2211
        %v2225 = vpack.c.b16 %v2214, %v2213
        %v2226 = vpack.c.b16 %v2216, %v2215
        %v2227 = vpack.c.b16 %v2218, %v2217
        %v2228 = vpack.c.b16 %v2220, %v2219
        %2237 = vmatprep.subr.bf16.mxu0 0
        %2238 = vmatpush1.bf16.msra.mxu0 %v2221
        %2239 = vmatprep.subr.bf16.mxu0 0
        %2240 = vmatpush1.bf16.msra.mxu0 %v2222
        %2241 = vmatprep.subr.bf16.mxu0 0
        %2242 = vmatpush1.bf16.msra.mxu0 %v2223
        %2243 = vmatprep.subr.bf16.mxu0 0
        %2244 = vmatpush1.bf16.msra.mxu0 %v2224
        %2245 = vmatprep.subr.bf16.mxu0 0
        %2246 = vmatpush1.bf16.msra.mxu0 %v2225
        %2247 = vmatprep.subr.bf16.mxu0 0
        %2248 = vmatpush1.bf16.msra.mxu0 %v2226
        %2249 = vmatprep.subr.bf16.mxu0 0
        %2250 = vmatpush1.bf16.msra.mxu0 %v2227
        %2251 = vmatprep.subr.bf16.mxu0 0
        %2252 = vmatpush1.bf16.msra.mxu0 %v2228
        %2253 = vmatprep.subr.bf16.mxu0 0
        %2254 = vmatpush1.bf16.msra.mxu0 0
        %2255 = vmatprep.subr.bf16.mxu0 0
        %2256 = vmatpush1.bf16.msra.mxu0 0
        %2257 = vmatprep.subr.bf16.mxu0 0
        %2258 = vmatpush1.bf16.msra.mxu0 0
        %2259 = vmatprep.subr.bf16.mxu0 0
        %2260 = vmatpush1.bf16.msra.mxu0 0
        %2261 = vmatprep.subr.bf16.mxu0 0
        %2262 = vmatpush1.bf16.msra.mxu0 0
        %2263 = vmatprep.subr.bf16.mxu0 0
        %2264 = vmatpush1.bf16.msra.mxu0 0
        %2265 = vmatprep.subr.bf16.mxu0 0
        %2266 = vmatpush1.bf16.msra.mxu0 0
        %2267 = vmatprep.subr.bf16.mxu0 0
        %2268 = vmatpush1.bf16.msra.mxu0 0
        %2269 = vmatprep.mubr.bf16.mxu0 0
        %2270 = vmatmul.mubr.bf16.gmra.mrb[0].mxu0 %v882
        %v2271 = vpop.f32.mrb[0].mxu0
        %v2272 = vadd.f32 0.0, %v2271
        %v2273 = vpop.f32.mrb[0].mxu0
        %v2274 = vpop.f32.mrb[0].mxu0
        %v2275 = vadd.f32 0.0, %v2274
        %v2276 = vpop.f32.mrb[0].mxu0
        %2277 = vmatprep.mubr.bf16.mxu0 0
        %2278 = vmatmul.mubr.bf16.gmra.mrb[0].mxu0 %v883
        %v2279 = vpop.f32.mrb[0].mxu0
        %v2280 = vadd.f32 0.0, %v2279
        %v2281 = vpop.f32.mrb[0].mxu0
        %v2282 = vpop.f32.mrb[0].mxu0
        %v2283 = vadd.f32 0.0, %v2282
        %v2284 = vpop.f32.mrb[0].mxu0
        %2285 = vmatprep.mubr.bf16.mxu0 0
        %2286 = vmatmul.mubr.bf16.gmra.mrb[0].mxu0 %v884
        %v2287 = vpop.f32.mrb[0].mxu0
        %v2288 = vadd.f32 0.0, %v2287
        %v2289 = vpop.f32.mrb[0].mxu0
        %v2290 = vpop.f32.mrb[0].mxu0
        %v2291 = vadd.f32 0.0, %v2290
        %v2292 = vpop.f32.mrb[0].mxu0
        %2293 = vmatprep.mubr.bf16.mxu0 0
        %2294 = vmatmul.mubr.bf16.gmra.mrb[0].mxu0 %v885
        %v2295 = vpop.f32.mrb[0].mxu0
        %v2296 = vadd.f32 0.0, %v2295
        %v2297 = vpop.f32.mrb[0].mxu0
        %v2298 = vpop.f32.mrb[0].mxu0
        %v2299 = vadd.f32 0.0, %v2298
        %v2300 = vpop.f32.mrb[0].mxu0
        %2301 = vmatprep.mubr.bf16.mxu0 0
        %2302 = vmatmul.mubr.bf16.gmra.mrb[0].mxu0 %v886
        %v2303 = vpop.f32.mrb[0].mxu0
        %v2304 = vadd.f32 0.0, %v2303
        %v2305 = vpop.f32.mrb[0].mxu0
        %v2306 = vpop.f32.mrb[0].mxu0
        %v2307 = vadd.f32 0.0, %v2306
        %v2308 = vpop.f32.mrb[0].mxu0
        %2309 = vmatprep.mubr.bf16.mxu0 0
        %2310 = vmatmul.mubr.bf16.gmra.mrb[0].mxu0 %v887
        %v2311 = vpop.f32.mrb[0].mxu0
        %v2312 = vadd.f32 0.0, %v2311
        %v2313 = vpop.f32.mrb[0].mxu0
        %v2314 = vpop.f32.mrb[0].mxu0
        %v2315 = vadd.f32 0.0, %v2314
        %v2316 = vpop.f32.mrb[0].mxu0
        %2317 = vmatprep.mubr.bf16.mxu0 0
        %2318 = vmatmul.mubr.bf16.gmra.mrb[0].mxu0 %v888
        %v2319 = vpop.f32.mrb[0].mxu0
        %v2320 = vadd.f32 0.0, %v2319
        %v2321 = vpop.f32.mrb[0].mxu0
        %v2322 = vpop.f32.mrb[0].mxu0
        %v2323 = vadd.f32 0.0, %v2322
        %v2324 = vpop.f32.mrb[0].mxu0
        %2325 = vmatprep.mubr.bf16.mxu0 0
        %2326 = vmatmul.mubr.bf16.gmra.mrb[0].mxu0 %v889
        %v2327 = vpop.f32.mrb[0].mxu0
        %v2328 = vadd.f32 0.0, %v2327
        %v2329 = vpop.f32.mrb[0].mxu0
        %v2330 = vpop.f32.mrb[0].mxu0
        %v2331 = vadd.f32 0.0, %v2330
        %v2332 = vpop.f32.mrb[0].mxu0
        %2333 = vmatprep.mubr.bf16.mxu0 0
        %2334 = vmatmul.mubr.bf16.gmra.mrb[0].mxu0 %v890
        %v2335 = vpop.f32.mrb[0].mxu0
        %v2336 = vadd.f32 0.0, %v2335
        %v2337 = vpop.f32.mrb[0].mxu0
        %v2338 = vpop.f32.mrb[0].mxu0
        %v2339 = vadd.f32 0.0, %v2338
        %v2340 = vpop.f32.mrb[0].mxu0
        %2341 = vmatprep.mubr.bf16.mxu0 0
        %2342 = vmatmul.mubr.bf16.gmra.mrb[0].mxu0 %v891
        %v2343 = vpop.f32.mrb[0].mxu0
        %v2344 = vadd.f32 0.0, %v2343
        %v2345 = vpop.f32.mrb[0].mxu0
        %v2346 = vpop.f32.mrb[0].mxu0
        %v2347 = vadd.f32 0.0, %v2346
        %v2348 = vpop.f32.mrb[0].mxu0
        %2349 = vmatprep.mubr.bf16.mxu0 0
        %2350 = vmatmul.mubr.bf16.gmra.mrb[0].mxu0 %v892
        %v2351 = vpop.f32.mrb[0].mxu0
        %v2352 = vadd.f32 0.0, %v2351
        %v2353 = vpop.f32.mrb[0].mxu0
        %v2354 = vpop.f32.mrb[0].mxu0
        %v2355 = vadd.f32 0.0, %v2354
        %v2356 = vpop.f32.mrb[0].mxu0
        %2357 = vmatprep.mubr.bf16.mxu0 0
        %2358 = vmatmul.mubr.bf16.gmra.mrb[0].mxu0 %v893
        %v2359 = vpop.f32.mrb[0].mxu0
        %v2360 = vadd.f32 0.0, %v2359
        %v2361 = vpop.f32.mrb[0].mxu0
        %v2362 = vpop.f32.mrb[0].mxu0
        %v2363 = vadd.f32 0.0, %v2362
        %v2364 = vpop.f32.mrb[0].mxu0
        %2365 = vmatprep.mubr.bf16.mxu0 0
        %2366 = vmatmul.mubr.bf16.gmra.mrb[0].mxu0 %v894
        %v2367 = vpop.f32.mrb[0].mxu0
        %v2368 = vadd.f32 0.0, %v2367
        %v2369 = vpop.f32.mrb[0].mxu0
        %v2370 = vpop.f32.mrb[0].mxu0
        %v2371 = vadd.f32 0.0, %v2370
        %v2372 = vpop.f32.mrb[0].mxu0
        %2373 = vmatprep.mubr.bf16.mxu0 0
        %2374 = vmatmul.mubr.bf16.gmra.mrb[0].mxu0 %v895
        %v2375 = vpop.f32.mrb[0].mxu0
        %v2376 = vadd.f32 0.0, %v2375
        %v2377 = vpop.f32.mrb[0].mxu0
        %v2378 = vpop.f32.mrb[0].mxu0
        %v2379 = vadd.f32 0.0, %v2378
        %v2380 = vpop.f32.mrb[0].mxu0
        %2381 = vmatprep.mubr.bf16.mxu0 0
        %2382 = vmatmul.mubr.bf16.gmra.mrb[0].mxu0 %v896
        %v2383 = vpop.f32.mrb[0].mxu0
        %v2384 = vadd.f32 0.0, %v2383
        %v2385 = vpop.f32.mrb[0].mxu0
        %v2386 = vpop.f32.mrb[0].mxu0
        %v2387 = vadd.f32 0.0, %v2386
        %v2388 = vpop.f32.mrb[0].mxu0
        %2389 = vmatprep.mubr.bf16.mxu0 0
        %2390 = vmatmul.mubr.bf16.gmra.mrb[0].mxu0 %v2187
        %v2391 = vpop.f32.mrb[0].mxu0
        %v2392 = vadd.f32 0.0, %v2391
        %v2393 = vpop.f32.mrb[0].mxu0
        %v2394 = vpop.f32.mrb[0].mxu0
        %v2395 = vadd.f32 0.0, %v2394
        %v2396 = vpop.f32.mrb[0].mxu0
        %2397 = vdwg.mxu0
        %v2398 = vadd.f32 %v2112, %v2272
        %v2399 = vadd.f32 %v2113, %v2275
        %v2400 = vadd.f32 %v2114, %v2280
        %v2401 = vadd.f32 %v2115, %v2283
        %v2402 = vadd.f32 %v2116, %v2288
        %v2403 = vadd.f32 %v2117, %v2291
        %v2404 = vadd.f32 %v2118, %v2296
        %v2405 = vadd.f32 %v2119, %v2299
        %v2406 = vadd.f32 %v2120, %v2304
        %v2407 = vadd.f32 %v2121, %v2307
        %v2408 = vadd.f32 %v2122, %v2312
        %v2409 = vadd.f32 %v2123, %v2315
        %v2410 = vadd.f32 %v2124, %v2320
        %v2411 = vadd.f32 %v2125, %v2323
        %v2412 = vadd.f32 %v2126, %v2328
        %v2413 = vadd.f32 %v2127, %v2331
        %v2414 = vadd.f32 %v2128, %v2336
        %v2415 = vadd.f32 %v2129, %v2339
        %v2416 = vadd.f32 %v2130, %v2344
        %v2417 = vadd.f32 %v2131, %v2347
        %v2418 = vadd.f32 %v2132, %v2352
        %v2419 = vadd.f32 %v2133, %v2355
        %v2420 = vadd.f32 %v2134, %v2360
        %v2421 = vadd.f32 %v2135, %v2363
        %v2422 = vadd.f32 %v2136, %v2368
        %v2423 = vadd.f32 %v2137, %v2371
        %v2424 = vadd.f32 %v2138, %v2376
        %v2425 = vadd.f32 %v2139, %v2379
        %v2426 = vadd.f32 %v2140, %v2384
        %v2427 = vadd.f32 %v2141, %v2387
        %v2428 = vadd.f32 %v2142, %v2392
        %v2429 = vadd.f32 %v2143, %v2395
        %v2431 = vrot.slane %v423, 5
        %v2432 = vrot.slane %v2431, 4
        %v2433 = vrot.slane %v424, 5
        %v2434 = vsel %vm1445, %v2432, %v2433
        %v2435 = vrot.slane %v2433, 4
        %v2436 = vrot.slane %v425, 5
        %v2437 = vsel %vm1445, %v2435, %v2436
        %s2438 = scalar_lea.vmem %s2, 320
        %v2439 = vld [vmem:[%s2438] sm:$0xf]
        %v2440 = vld [vmem:[%s2438 + $0x4] sm:$0xf]
        %v2441 = vld [vmem:[%s2438 + $0x8] sm:$0xf]
        %v2442 = vld [vmem:[%s2438 + $0xc] sm:$0xf]
        %v2443 = vld [vmem:[%s2438 + $0x10] sm:$0xf]
        %v2444 = vld [vmem:[%s2438 + $0x14] sm:$0xf]
        %v2445 = vld [vmem:[%s2438 + $0x18] sm:$0xf]
        %v2446 = vld [vmem:[%s2438 + $0x1c] sm:$0xf]
        %v2447 = vld [vmem:[%s2438 + $0x20] sm:$0xf]
        %v2448 = vld [vmem:[%s2438 + $0x24] sm:$0xf]
        %v2449 = vld [vmem:[%s2438 + $0x28] sm:$0xf]
        %v2450 = vld [vmem:[%s2438 + $0x2c] sm:$0xf]
        %v2451 = vld [vmem:[%s2438 + $0x30] sm:$0xf]
        %v2452 = vld [vmem:[%s2438 + $0x34] sm:$0xf]
        %v2453 = vld [vmem:[%s2438 + $0x38] sm:$0xf]
        %v2454 = vld [vmem:[%s2438 + $0x3c] sm:$0xf]
        %v2455 = vunpack.c.l.b16 %v2434
        %v2456 = vunpack.c.l.b16 %v2437
        %v2457 = vpack.c.b16 %v2456, %v2455
        %v2475 = vunpack.c.l.b16 %v2439
        %v2476 = vunpack.c.l.b16 %v2440
        %v2477 = vunpack.c.l.b16 %v2441
        %v2478 = vunpack.c.l.b16 %v2442
        %v2479 = vunpack.c.l.b16 %v2443
        %v2480 = vunpack.c.l.b16 %v2444
        %v2481 = vunpack.c.l.b16 %v2445
        %v2482 = vunpack.c.l.b16 %v2446
        %v2483 = vunpack.c.l.b16 %v2447
        %v2484 = vunpack.c.l.b16 %v2448
        %v2485 = vunpack.c.l.b16 %v2449
        %v2486 = vunpack.c.l.b16 %v2450
        %v2487 = vunpack.c.l.b16 %v2451
        %v2488 = vunpack.c.l.b16 %v2452
        %v2489 = vunpack.c.l.b16 %v2453
        %v2490 = vunpack.c.l.b16 %v2454
        %v2491 = vpack.c.b16 %v2476, %v2475
        %v2492 = vpack.c.b16 %v2478, %v2477
        %v2493 = vpack.c.b16 %v2480, %v2479
        %v2494 = vpack.c.b16 %v2482, %v2481
        %v2495 = vpack.c.b16 %v2484, %v2483
        %v2496 = vpack.c.b16 %v2486, %v2485
        %v2497 = vpack.c.b16 %v2488, %v2487
        %v2498 = vpack.c.b16 %v2490, %v2489
        %2507 = vmatprep.subr.bf16.mxu0 0
        %2508 = vmatpush1.bf16.msra.mxu0 %v2491
        %2509 = vmatprep.subr.bf16.mxu0 0
        %2510 = vmatpush1.bf16.msra.mxu0 %v2492
        %2511 = vmatprep.subr.bf16.mxu0 0
        %2512 = vmatpush1.bf16.msra.mxu0 %v2493
        %2513 = vmatprep.subr.bf16.mxu0 0
        %2514 = vmatpush1.bf16.msra.mxu0 %v2494
        %2515 = vmatprep.subr.bf16.mxu0 0
        %2516 = vmatpush1.bf16.msra.mxu0 %v2495
        %2517 = vmatprep.subr.bf16.mxu0 0
        %2518 = vmatpush1.bf16.msra.mxu0 %v2496
        %2519 = vmatprep.subr.bf16.mxu0 0
        %2520 = vmatpush1.bf16.msra.mxu0 %v2497
        %2521 = vmatprep.subr.bf16.mxu0 0
        %2522 = vmatpush1.bf16.msra.mxu0 %v2498
        %2523 = vmatprep.subr.bf16.mxu0 0
        %2524 = vmatpush1.bf16.msra.mxu0 0
        %2525 = vmatprep.subr.bf16.mxu0 0
        %2526 = vmatpush1.bf16.msra.mxu0 0
        %2527 = vmatprep.subr.bf16.mxu0 0
        %2528 = vmatpush1.bf16.msra.mxu0 0
        %2529 = vmatprep.subr.bf16.mxu0 0
        %2530 = vmatpush1.bf16.msra.mxu0 0
        %2531 = vmatprep.subr.bf16.mxu0 0
        %2532 = vmatpush1.bf16.msra.mxu0 0
        %2533 = vmatprep.subr.bf16.mxu0 0
        %2534 = vmatpush1.bf16.msra.mxu0 0
        %2535 = vmatprep.subr.bf16.mxu0 0
        %2536 = vmatpush1.bf16.msra.mxu0 0
        %2537 = vmatprep.subr.bf16.mxu0 0
        %2538 = vmatpush1.bf16.msra.mxu0 0
        %2539 = vmatprep.mubr.bf16.mxu0 0
        %2540 = vmatmul.mubr.bf16.gmra.mrb[0].mxu0 %v1608
        %v2541 = vpop.f32.mrb[0].mxu0
        %v2542 = vadd.f32 0.0, %v2541
        %v2543 = vpop.f32.mrb[0].mxu0
        %v2544 = vpop.f32.mrb[0].mxu0
        %v2545 = vadd.f32 0.0, %v2544
        %v2546 = vpop.f32.mrb[0].mxu0
        %2547 = vmatprep.mubr.bf16.mxu0 0
        %2548 = vmatmul.mubr.bf16.gmra.mrb[0].mxu0 %v1609
        %v2549 = vpop.f32.mrb[0].mxu0
        %v2550 = vadd.f32 0.0, %v2549
        %v2551 = vpop.f32.mrb[0].mxu0
        %v2552 = vpop.f32.mrb[0].mxu0
        %v2553 = vadd.f32 0.0, %v2552
        %v2554 = vpop.f32.mrb[0].mxu0
        %2555 = vmatprep.mubr.bf16.mxu0 0
        %2556 = vmatmul.mubr.bf16.gmra.mrb[0].mxu0 %v1610
        %v2557 = vpop.f32.mrb[0].mxu0
        %v2558 = vadd.f32 0.0, %v2557
        %v2559 = vpop.f32.mrb[0].mxu0
        %v2560 = vpop.f32.mrb[0].mxu0
        %v2561 = vadd.f32 0.0, %v2560
        %v2562 = vpop.f32.mrb[0].mxu0
        %2563 = vmatprep.mubr.bf16.mxu0 0
        %2564 = vmatmul.mubr.bf16.gmra.mrb[0].mxu0 %v1611
        %v2565 = vpop.f32.mrb[0].mxu0
        %v2566 = vadd.f32 0.0, %v2565
        %v2567 = vpop.f32.mrb[0].mxu0
        %v2568 = vpop.f32.mrb[0].mxu0
        %v2569 = vadd.f32 0.0, %v2568
        %v2570 = vpop.f32.mrb[0].mxu0
        %2571 = vmatprep.mubr.bf16.mxu0 0
        %2572 = vmatmul.mubr.bf16.gmra.mrb[0].mxu0 %v1612
        %v2573 = vpop.f32.mrb[0].mxu0
        %v2574 = vadd.f32 0.0, %v2573
        %v2575 = vpop.f32.mrb[0].mxu0
        %v2576 = vpop.f32.mrb[0].mxu0
        %v2577 = vadd.f32 0.0, %v2576
        %v2578 = vpop.f32.mrb[0].mxu0
        %2579 = vmatprep.mubr.bf16.mxu0 0
        %2580 = vmatmul.mubr.bf16.gmra.mrb[0].mxu0 %v1613
        %v2581 = vpop.f32.mrb[0].mxu0
        %v2582 = vadd.f32 0.0, %v2581
        %v2583 = vpop.f32.mrb[0].mxu0
        %v2584 = vpop.f32.mrb[0].mxu0
        %v2585 = vadd.f32 0.0, %v2584
        %v2586 = vpop.f32.mrb[0].mxu0
        %2587 = vmatprep.mubr.bf16.mxu0 0
        %2588 = vmatmul.mubr.bf16.gmra.mrb[0].mxu0 %v1614
        %v2589 = vpop.f32.mrb[0].mxu0
        %v2590 = vadd.f32 0.0, %v2589
        %v2591 = vpop.f32.mrb[0].mxu0
        %v2592 = vpop.f32.mrb[0].mxu0
        %v2593 = vadd.f32 0.0, %v2592
        %v2594 = vpop.f32.mrb[0].mxu0
        %2595 = vmatprep.mubr.bf16.mxu0 0
        %2596 = vmatmul.mubr.bf16.gmra.mrb[0].mxu0 %v1615
        %v2597 = vpop.f32.mrb[0].mxu0
        %v2598 = vadd.f32 0.0, %v2597
        %v2599 = vpop.f32.mrb[0].mxu0
        %v2600 = vpop.f32.mrb[0].mxu0
        %v2601 = vadd.f32 0.0, %v2600
        %v2602 = vpop.f32.mrb[0].mxu0
        %2603 = vmatprep.mubr.bf16.mxu0 0
        %2604 = vmatmul.mubr.bf16.gmra.mrb[0].mxu0 %v1616
        %v2605 = vpop.f32.mrb[0].mxu0
        %v2606 = vadd.f32 0.0, %v2605
        %v2607 = vpop.f32.mrb[0].mxu0
        %v2608 = vpop.f32.mrb[0].mxu0
        %v2609 = vadd.f32 0.0, %v2608
        %v2610 = vpop.f32.mrb[0].mxu0
        %2611 = vmatprep.mubr.bf16.mxu0 0
        %2612 = vmatmul.mubr.bf16.gmra.mrb[0].mxu0 %v1617
        %v2613 = vpop.f32.mrb[0].mxu0
        %v2614 = vadd.f32 0.0, %v2613
        %v2615 = vpop.f32.mrb[0].mxu0
        %v2616 = vpop.f32.mrb[0].mxu0
        %v2617 = vadd.f32 0.0, %v2616
        %v2618 = vpop.f32.mrb[0].mxu0
        %2619 = vmatprep.mubr.bf16.mxu0 0
        %2620 = vmatmul.mubr.bf16.gmra.mrb[0].mxu0 %v1618
        %v2621 = vpop.f32.mrb[0].mxu0
        %v2622 = vadd.f32 0.0, %v2621
        %v2623 = vpop.f32.mrb[0].mxu0
        %v2624 = vpop.f32.mrb[0].mxu0
        %v2625 = vadd.f32 0.0, %v2624
        %v2626 = vpop.f32.mrb[0].mxu0
        %2627 = vmatprep.mubr.bf16.mxu0 0
        %2628 = vmatmul.mubr.bf16.gmra.mrb[0].mxu0 %v1619
        %v2629 = vpop.f32.mrb[0].mxu0
        %v2630 = vadd.f32 0.0, %v2629
        %v2631 = vpop.f32.mrb[0].mxu0
        %v2632 = vpop.f32.mrb[0].mxu0
        %v2633 = vadd.f32 0.0, %v2632
        %v2634 = vpop.f32.mrb[0].mxu0
        %2635 = vmatprep.mubr.bf16.mxu0 0
        %2636 = vmatmul.mubr.bf16.gmra.mrb[0].mxu0 %v1620
        %v2637 = vpop.f32.mrb[0].mxu0
        %v2638 = vadd.f32 0.0, %v2637
        %v2639 = vpop.f32.mrb[0].mxu0
        %v2640 = vpop.f32.mrb[0].mxu0
        %v2641 = vadd.f32 0.0, %v2640
        %v2642 = vpop.f32.mrb[0].mxu0
        %2643 = vmatprep.mubr.bf16.mxu0 0
        %2644 = vmatmul.mubr.bf16.gmra.mrb[0].mxu0 %v1621
        %v2645 = vpop.f32.mrb[0].mxu0
        %v2646 = vadd.f32 0.0, %v2645
        %v2647 = vpop.f32.mrb[0].mxu0
        %v2648 = vpop.f32.mrb[0].mxu0
        %v2649 = vadd.f32 0.0, %v2648
        %v2650 = vpop.f32.mrb[0].mxu0
        %2651 = vmatprep.mubr.bf16.mxu0 0
        %2652 = vmatmul.mubr.bf16.gmra.mrb[0].mxu0 %v1622
        %v2653 = vpop.f32.mrb[0].mxu0
        %v2654 = vadd.f32 0.0, %v2653
        %v2655 = vpop.f32.mrb[0].mxu0
        %v2656 = vpop.f32.mrb[0].mxu0
        %v2657 = vadd.f32 0.0, %v2656
        %v2658 = vpop.f32.mrb[0].mxu0
        %2659 = vmatprep.mubr.bf16.mxu0 0
        %2660 = vmatmul.mubr.bf16.gmra.mrb[0].mxu0 %v2457
        %v2661 = vpop.f32.mrb[0].mxu0
        %v2662 = vadd.f32 0.0, %v2661
        %v2663 = vpop.f32.mrb[0].mxu0
        %v2664 = vpop.f32.mrb[0].mxu0
        %v2665 = vadd.f32 0.0, %v2664
        %v2666 = vpop.f32.mrb[0].mxu0
        %2667 = vdwg.mxu0
        %v2668 = vadd.f32 %v2398, %v2542
        %v2669 = vadd.f32 %v2399, %v2545
        %v2670 = vadd.f32 %v2400, %v2550
        %v2671 = vadd.f32 %v2401, %v2553
        %v2672 = vadd.f32 %v2402, %v2558
        %v2673 = vadd.f32 %v2403, %v2561
        %v2674 = vadd.f32 %v2404, %v2566
        %v2675 = vadd.f32 %v2405, %v2569
        %v2676 = vadd.f32 %v2406, %v2574
        %v2677 = vadd.f32 %v2407, %v2577
        %v2678 = vadd.f32 %v2408, %v2582
        %v2679 = vadd.f32 %v2409, %v2585
        %v2680 = vadd.f32 %v2410, %v2590
        %v2681 = vadd.f32 %v2411, %v2593
        %v2682 = vadd.f32 %v2412, %v2598
        %v2683 = vadd.f32 %v2413, %v2601
        %v2684 = vadd.f32 %v2414, %v2606
        %v2685 = vadd.f32 %v2415, %v2609
        %v2686 = vadd.f32 %v2416, %v2614
        %v2687 = vadd.f32 %v2417, %v2617
        %v2688 = vadd.f32 %v2418, %v2622
        %v2689 = vadd.f32 %v2419, %v2625
        %v2690 = vadd.f32 %v2420, %v2630
        %v2691 = vadd.f32 %v2421, %v2633
        %v2692 = vadd.f32 %v2422, %v2638
        %v2693 = vadd.f32 %v2423, %v2641
        %v2694 = vadd.f32 %v2424, %v2646
        %v2695 = vadd.f32 %v2425, %v2649
        %v2696 = vadd.f32 %v2426, %v2654
        %v2697 = vadd.f32 %v2427, %v2657
        %v2698 = vadd.f32 %v2428, %v2662
        %v2699 = vadd.f32 %v2429, %v2665
        %s2700 = scalar_lea.vmem %s2, 384
        %v2701 = vld [vmem:[%s2700] sm:$0xf]
        %v2702 = vld [vmem:[%s2700 + $0x4] sm:$0xf]
        %v2703 = vld [vmem:[%s2700 + $0x8] sm:$0xf]
        %v2704 = vld [vmem:[%s2700 + $0xc] sm:$0xf]
        %v2705 = vld [vmem:[%s2700 + $0x10] sm:$0xf]
        %v2706 = vld [vmem:[%s2700 + $0x14] sm:$0xf]
        %v2707 = vld [vmem:[%s2700 + $0x18] sm:$0xf]
        %v2708 = vld [vmem:[%s2700 + $0x1c] sm:$0xf]
        %v2709 = vld [vmem:[%s2700 + $0x20] sm:$0xf]
        %v2710 = vld [vmem:[%s2700 + $0x24] sm:$0xf]
        %v2711 = vld [vmem:[%s2700 + $0x28] sm:$0xf]
        %v2712 = vld [vmem:[%s2700 + $0x2c] sm:$0xf]
        %v2713 = vld [vmem:[%s2700 + $0x30] sm:$0xf]
        %v2714 = vld [vmem:[%s2700 + $0x34] sm:$0xf]
        %v2715 = vld [vmem:[%s2700 + $0x38] sm:$0xf]
        %v2716 = vld [vmem:[%s2700 + $0x3c] sm:$0xf]
        %v2719 = vunpack.c.l.b16 %v426
        %v2720 = vunpack.c.l.b16 %v427
        %v2721 = vpack.c.b16 %v2720, %v2719
        %v2739 = vunpack.c.l.b16 %v2701
        %v2740 = vunpack.c.l.b16 %v2702
        %v2741 = vunpack.c.l.b16 %v2703
        %v2742 = vunpack.c.l.b16 %v2704
        %v2743 = vunpack.c.l.b16 %v2705
        %v2744 = vunpack.c.l.b16 %v2706
        %v2745 = vunpack.c.l.b16 %v2707
        %v2746 = vunpack.c.l.b16 %v2708
        %v2747 = vunpack.c.l.b16 %v2709
        %v2748 = vunpack.c.l.b16 %v2710
        %v2749 = vunpack.c.l.b16 %v2711
        %v2750 = vunpack.c.l.b16 %v2712
        %v2751 = vunpack.c.l.b16 %v2713
        %v2752 = vunpack.c.l.b16 %v2714
        %v2753 = vunpack.c.l.b16 %v2715
        %v2754 = vunpack.c.l.b16 %v2716
        %v2755 = vpack.c.b16 %v2740, %v2739
        %v2756 = vpack.c.b16 %v2742, %v2741
        %v2757 = vpack.c.b16 %v2744, %v2743
        %v2758 = vpack.c.b16 %v2746, %v2745
        %v2759 = vpack.c.b16 %v2748, %v2747
        %v2760 = vpack.c.b16 %v2750, %v2749
        %v2761 = vpack.c.b16 %v2752, %v2751
        %v2762 = vpack.c.b16 %v2754, %v2753
        %2771 = vmatprep.subr.bf16.mxu0 0
        %2772 = vmatpush1.bf16.msra.mxu0 %v2755
        %2773 = vmatprep.subr.bf16.mxu0 0
        %2774 = vmatpush1.bf16.msra.mxu0 %v2756
        %2775 = vmatprep.subr.bf16.mxu0 0
        %2776 = vmatpush1.bf16.msra.mxu0 %v2757
        %2777 = vmatprep.subr.bf16.mxu0 0
        %2778 = vmatpush1.bf16.msra.mxu0 %v2758
        %2779 = vmatprep.subr.bf16.mxu0 0
        %2780 = vmatpush1.bf16.msra.mxu0 %v2759
        %2781 = vmatprep.subr.bf16.mxu0 0
        %2782 = vmatpush1.bf16.msra.mxu0 %v2760
        %2783 = vmatprep.subr.bf16.mxu0 0
        %2784 = vmatpush1.bf16.msra.mxu0 %v2761
        %2785 = vmatprep.subr.bf16.mxu0 0
        %2786 = vmatpush1.bf16.msra.mxu0 %v2762
        %2787 = vmatprep.subr.bf16.mxu0 0
        %2788 = vmatpush1.bf16.msra.mxu0 0
        %2789 = vmatprep.subr.bf16.mxu0 0
        %2790 = vmatpush1.bf16.msra.mxu0 0
        %2791 = vmatprep.subr.bf16.mxu0 0
        %2792 = vmatpush1.bf16.msra.mxu0 0
        %2793 = vmatprep.subr.bf16.mxu0 0
        %2794 = vmatpush1.bf16.msra.mxu0 0
        %2795 = vmatprep.subr.bf16.mxu0 0
        %2796 = vmatpush1.bf16.msra.mxu0 0
        %2797 = vmatprep.subr.bf16.mxu0 0
        %2798 = vmatpush1.bf16.msra.mxu0 0
        %2799 = vmatprep.subr.bf16.mxu0 0
        %2800 = vmatpush1.bf16.msra.mxu0 0
        %2801 = vmatprep.subr.bf16.mxu0 0
        %2802 = vmatpush1.bf16.msra.mxu0 0
        %2803 = vmatprep.mubr.bf16.mxu0 0
        %2804 = vmatmul.mubr.bf16.gmra.mrb[0].mxu0 %v1188
        %v2805 = vpop.f32.mrb[0].mxu0
        %v2806 = vadd.f32 0.0, %v2805
        %v2807 = vpop.f32.mrb[0].mxu0
        %v2808 = vpop.f32.mrb[0].mxu0
        %v2809 = vadd.f32 0.0, %v2808
        %v2810 = vpop.f32.mrb[0].mxu0
        %2811 = vmatprep.mubr.bf16.mxu0 0
        %2812 = vmatmul.mubr.bf16.gmra.mrb[0].mxu0 %v1189
        %v2813 = vpop.f32.mrb[0].mxu0
        %v2814 = vadd.f32 0.0, %v2813
        %v2815 = vpop.f32.mrb[0].mxu0
        %v2816 = vpop.f32.mrb[0].mxu0
        %v2817 = vadd.f32 0.0, %v2816
        %v2818 = vpop.f32.mrb[0].mxu0
        %2819 = vmatprep.mubr.bf16.mxu0 0
        %2820 = vmatmul.mubr.bf16.gmra.mrb[0].mxu0 %v1190
        %v2821 = vpop.f32.mrb[0].mxu0
        %v2822 = vadd.f32 0.0, %v2821
        %v2823 = vpop.f32.mrb[0].mxu0
        %v2824 = vpop.f32.mrb[0].mxu0
        %v2825 = vadd.f32 0.0, %v2824
        %v2826 = vpop.f32.mrb[0].mxu0
        %2827 = vmatprep.mubr.bf16.mxu0 0
        %2828 = vmatmul.mubr.bf16.gmra.mrb[0].mxu0 %v1191
        %v2829 = vpop.f32.mrb[0].mxu0
        %v2830 = vadd.f32 0.0, %v2829
        %v2831 = vpop.f32.mrb[0].mxu0
        %v2832 = vpop.f32.mrb[0].mxu0
        %v2833 = vadd.f32 0.0, %v2832
        %v2834 = vpop.f32.mrb[0].mxu0
        %2835 = vmatprep.mubr.bf16.mxu0 0
        %2836 = vmatmul.mubr.bf16.gmra.mrb[0].mxu0 %v1192
        %v2837 = vpop.f32.mrb[0].mxu0
        %v2838 = vadd.f32 0.0, %v2837
        %v2839 = vpop.f32.mrb[0].mxu0
        %v2840 = vpop.f32.mrb[0].mxu0
        %v2841 = vadd.f32 0.0, %v2840
        %v2842 = vpop.f32.mrb[0].mxu0
        %2843 = vmatprep.mubr.bf16.mxu0 0
        %2844 = vmatmul.mubr.bf16.gmra.mrb[0].mxu0 %v1193
        %v2845 = vpop.f32.mrb[0].mxu0
        %v2846 = vadd.f32 0.0, %v2845
        %v2847 = vpop.f32.mrb[0].mxu0
        %v2848 = vpop.f32.mrb[0].mxu0
        %v2849 = vadd.f32 0.0, %v2848
        %v2850 = vpop.f32.mrb[0].mxu0
        %2851 = vmatprep.mubr.bf16.mxu0 0
        %2852 = vmatmul.mubr.bf16.gmra.mrb[0].mxu0 %v1194
        %v2853 = vpop.f32.mrb[0].mxu0
        %v2854 = vadd.f32 0.0, %v2853
        %v2855 = vpop.f32.mrb[0].mxu0
        %v2856 = vpop.f32.mrb[0].mxu0
        %v2857 = vadd.f32 0.0, %v2856
        %v2858 = vpop.f32.mrb[0].mxu0
        %2859 = vmatprep.mubr.bf16.mxu0 0
        %2860 = vmatmul.mubr.bf16.gmra.mrb[0].mxu0 %v1195
        %v2861 = vpop.f32.mrb[0].mxu0
        %v2862 = vadd.f32 0.0, %v2861
        %v2863 = vpop.f32.mrb[0].mxu0
        %v2864 = vpop.f32.mrb[0].mxu0
        %v2865 = vadd.f32 0.0, %v2864
        %v2866 = vpop.f32.mrb[0].mxu0
        %2867 = vmatprep.mubr.bf16.mxu0 0
        %2868 = vmatmul.mubr.bf16.gmra.mrb[0].mxu0 %v1196
        %v2869 = vpop.f32.mrb[0].mxu0
        %v2870 = vadd.f32 0.0, %v2869
        %v2871 = vpop.f32.mrb[0].mxu0
        %v2872 = vpop.f32.mrb[0].mxu0
        %v2873 = vadd.f32 0.0, %v2872
        %v2874 = vpop.f32.mrb[0].mxu0
        %2875 = vmatprep.mubr.bf16.mxu0 0
        %2876 = vmatmul.mubr.bf16.gmra.mrb[0].mxu0 %v1197
        %v2877 = vpop.f32.mrb[0].mxu0
        %v2878 = vadd.f32 0.0, %v2877
        %v2879 = vpop.f32.mrb[0].mxu0
        %v2880 = vpop.f32.mrb[0].mxu0
        %v2881 = vadd.f32 0.0, %v2880
        %v2882 = vpop.f32.mrb[0].mxu0
        %2883 = vmatprep.mubr.bf16.mxu0 0
        %2884 = vmatmul.mubr.bf16.gmra.mrb[0].mxu0 %v1198
        %v2885 = vpop.f32.mrb[0].mxu0
        %v2886 = vadd.f32 0.0, %v2885
        %v2887 = vpop.f32.mrb[0].mxu0
        %v2888 = vpop.f32.mrb[0].mxu0
        %v2889 = vadd.f32 0.0, %v2888
        %v2890 = vpop.f32.mrb[0].mxu0
        %2891 = vmatprep.mubr.bf16.mxu0 0
        %2892 = vmatmul.mubr.bf16.gmra.mrb[0].mxu0 %v1199
        %v2893 = vpop.f32.mrb[0].mxu0
        %v2894 = vadd.f32 0.0, %v2893
        %v2895 = vpop.f32.mrb[0].mxu0
        %v2896 = vpop.f32.mrb[0].mxu0
        %v2897 = vadd.f32 0.0, %v2896
        %v2898 = vpop.f32.mrb[0].mxu0
        %2899 = vmatprep.mubr.bf16.mxu0 0
        %2900 = vmatmul.mubr.bf16.gmra.mrb[0].mxu0 %v1200
        %v2901 = vpop.f32.mrb[0].mxu0
        %v2902 = vadd.f32 0.0, %v2901
        %v2903 = vpop.f32.mrb[0].mxu0
        %v2904 = vpop.f32.mrb[0].mxu0
        %v2905 = vadd.f32 0.0, %v2904
        %v2906 = vpop.f32.mrb[0].mxu0
        %2907 = vmatprep.mubr.bf16.mxu0 0
        %2908 = vmatmul.mubr.bf16.gmra.mrb[0].mxu0 %v1201
        %v2909 = vpop.f32.mrb[0].mxu0
        %v2910 = vadd.f32 0.0, %v2909
        %v2911 = vpop.f32.mrb[0].mxu0
        %v2912 = vpop.f32.mrb[0].mxu0
        %v2913 = vadd.f32 0.0, %v2912
        %v2914 = vpop.f32.mrb[0].mxu0
        %2915 = vmatprep.mubr.bf16.mxu0 0
        %2916 = vmatmul.mubr.bf16.gmra.mrb[0].mxu0 %v1901
        %v2917 = vpop.f32.mrb[0].mxu0
        %v2918 = vadd.f32 0.0, %v2917
        %v2919 = vpop.f32.mrb[0].mxu0
        %v2920 = vpop.f32.mrb[0].mxu0
        %v2921 = vadd.f32 0.0, %v2920
        %v2922 = vpop.f32.mrb[0].mxu0
        %2923 = vmatprep.mubr.bf16.mxu0 0
        %2924 = vmatmul.mubr.bf16.gmra.mrb[0].mxu0 %v2721
        %v2925 = vpop.f32.mrb[0].mxu0
        %v2926 = vadd.f32 0.0, %v2925
        %v2927 = vpop.f32.mrb[0].mxu0
        %v2928 = vpop.f32.mrb[0].mxu0
        %v2929 = vadd.f32 0.0, %v2928
        %v2930 = vpop.f32.mrb[0].mxu0
        %2931 = vdwg.mxu0
        %v2932 = vadd.f32 %v2668, %v2806
        %v2933 = vadd.f32 %v2669, %v2809
        %v2934 = vadd.f32 %v2670, %v2814
        %v2935 = vadd.f32 %v2671, %v2817
        %v2936 = vadd.f32 %v2672, %v2822
        %v2937 = vadd.f32 %v2673, %v2825
        %v2938 = vadd.f32 %v2674, %v2830
        %v2939 = vadd.f32 %v2675, %v2833
        %v2940 = vadd.f32 %v2676, %v2838
        %v2941 = vadd.f32 %v2677, %v2841
        %v2942 = vadd.f32 %v2678, %v2846
        %v2943 = vadd.f32 %v2679, %v2849
        %v2944 = vadd.f32 %v2680, %v2854
        %v2945 = vadd.f32 %v2681, %v2857
        %v2946 = vadd.f32 %v2682, %v2862
        %v2947 = vadd.f32 %v2683, %v2865
        %v2948 = vadd.f32 %v2684, %v2870
        %v2949 = vadd.f32 %v2685, %v2873
        %v2950 = vadd.f32 %v2686, %v2878
        %v2951 = vadd.f32 %v2687, %v2881
        %v2952 = vadd.f32 %v2688, %v2886
        %v2953 = vadd.f32 %v2689, %v2889
        %v2954 = vadd.f32 %v2690, %v2894
        %v2955 = vadd.f32 %v2691, %v2897
        %v2956 = vadd.f32 %v2692, %v2902
        %v2957 = vadd.f32 %v2693, %v2905
        %v2958 = vadd.f32 %v2694, %v2910
        %v2959 = vadd.f32 %v2695, %v2913
        %v2960 = vadd.f32 %v2696, %v2918
        %v2961 = vadd.f32 %v2697, %v2921
        %v2962 = vadd.f32 %v2698, %v2926
        %v2963 = vadd.f32 %v2699, %v2929
        %v2965 = vshrl.u32 %v426, 16
        %v2967 = vrot.slane %v2965, 4
        %v2968 = vshll.u32 %v426, 16
        %v2970 = vrot.slane %v2968, 5
        %v2971 = vor.u32 %v2967, %v2970
        %v2972 = vrot.slane %v2971, 4
        %v2974 = vshll.u32 %v427, 16
        %v2976 = vrot.slane %v2974, 5
        %v2977 = vsel %vm447, %v2972, %v2976
        %v2978 = vshrl.u32 %v427, 16
        %v2980 = vrot.slane %v2978, 4
        %v2981 = vor.u32 %v2980, %v2976
        %v2982 = vrot.slane %v2981, 4
        %v2984 = vshll.u32 %v428, 16
        %v2986 = vrot.slane %v2984, 5
        %v2987 = vsel %vm447, %v2982, %v2986
        %s2988 = scalar_lea.vmem %s2, 448
        %v2989 = vld [vmem:[%s2988] sm:$0xf]
        %v2990 = vld [vmem:[%s2988 + $0x4] sm:$0xf]
        %v2991 = vld [vmem:[%s2988 + $0x8] sm:$0xf]
        %v2992 = vld [vmem:[%s2988 + $0xc] sm:$0xf]
        %v2993 = vld [vmem:[%s2988 + $0x10] sm:$0xf]
        %v2994 = vld [vmem:[%s2988 + $0x14] sm:$0xf]
        %v2995 = vld [vmem:[%s2988 + $0x18] sm:$0xf]
        %v2996 = vld [vmem:[%s2988 + $0x1c] sm:$0xf]
        %v2997 = vld [vmem:[%s2988 + $0x20] sm:$0xf]
        %v2998 = vld [vmem:[%s2988 + $0x24] sm:$0xf]
        %v2999 = vld [vmem:[%s2988 + $0x28] sm:$0xf]
        %v3000 = vld [vmem:[%s2988 + $0x2c] sm:$0xf]
        %v3001 = vld [vmem:[%s2988 + $0x30] sm:$0xf]
        %v3002 = vld [vmem:[%s2988 + $0x34] sm:$0xf]
        %v3003 = vld [vmem:[%s2988 + $0x38] sm:$0xf]
        %v3004 = vld [vmem:[%s2988 + $0x3c] sm:$0xf]
        %v3005 = vunpack.c.l.b16 %v2977
        %v3006 = vunpack.c.l.b16 %v2987
        %v3007 = vpack.c.b16 %v3006, %v3005
        %v3025 = vunpack.c.l.b16 %v2989
        %v3026 = vunpack.c.l.b16 %v2990
        %v3027 = vunpack.c.l.b16 %v2991
        %v3028 = vunpack.c.l.b16 %v2992
        %v3029 = vunpack.c.l.b16 %v2993
        %v3030 = vunpack.c.l.b16 %v2994
        %v3031 = vunpack.c.l.b16 %v2995
        %v3032 = vunpack.c.l.b16 %v2996
        %v3033 = vunpack.c.l.b16 %v2997
        %v3034 = vunpack.c.l.b16 %v2998
        %v3035 = vunpack.c.l.b16 %v2999
        %v3036 = vunpack.c.l.b16 %v3000
        %v3037 = vunpack.c.l.b16 %v3001
        %v3038 = vunpack.c.l.b16 %v3002
        %v3039 = vunpack.c.l.b16 %v3003
        %v3040 = vunpack.c.l.b16 %v3004
        %v3041 = vpack.c.b16 %v3026, %v3025
        %v3042 = vpack.c.b16 %v3028, %v3027
        %v3043 = vpack.c.b16 %v3030, %v3029
        %v3044 = vpack.c.b16 %v3032, %v3031
        %v3045 = vpack.c.b16 %v3034, %v3033
        %v3046 = vpack.c.b16 %v3036, %v3035
        %v3047 = vpack.c.b16 %v3038, %v3037
        %v3048 = vpack.c.b16 %v3040, %v3039
        %3057 = vmatprep.subr.bf16.mxu0 0
        %3058 = vmatpush1.bf16.msra.mxu0 %v3041
        %3059 = vmatprep.subr.bf16.mxu0 0
        %3060 = vmatpush1.bf16.msra.mxu0 %v3042
        %3061 = vmatprep.subr.bf16.mxu0 0
        %3062 = vmatpush1.bf16.msra.mxu0 %v3043
        %3063 = vmatprep.subr.bf16.mxu0 0
        %3064 = vmatpush1.bf16.msra.mxu0 %v3044
        %3065 = vmatprep.subr.bf16.mxu0 0
        %3066 = vmatpush1.bf16.msra.mxu0 %v3045
        %3067 = vmatprep.subr.bf16.mxu0 0
        %3068 = vmatpush1.bf16.msra.mxu0 %v3046
        %3069 = vmatprep.subr.bf16.mxu0 0
        %3070 = vmatpush1.bf16.msra.mxu0 %v3047
        %3071 = vmatprep.subr.bf16.mxu0 0
        %3072 = vmatpush1.bf16.msra.mxu0 %v3048
        %3073 = vmatprep.subr.bf16.mxu0 0
        %3074 = vmatpush1.bf16.msra.mxu0 0
        %3075 = vmatprep.subr.bf16.mxu0 0
        %3076 = vmatpush1.bf16.msra.mxu0 0
        %3077 = vmatprep.subr.bf16.mxu0 0
        %3078 = vmatpush1.bf16.msra.mxu0 0
        %3079 = vmatprep.subr.bf16.mxu0 0
        %3080 = vmatpush1.bf16.msra.mxu0 0
        %3081 = vmatprep.subr.bf16.mxu0 0
        %3082 = vmatpush1.bf16.msra.mxu0 0
        %3083 = vmatprep.subr.bf16.mxu0 0
        %3084 = vmatpush1.bf16.msra.mxu0 0
        %3085 = vmatprep.subr.bf16.mxu0 0
        %3086 = vmatpush1.bf16.msra.mxu0 0
        %3087 = vmatprep.subr.bf16.mxu0 0
        %3088 = vmatpush1.bf16.msra.mxu0 0
        %3089 = vmatprep.mubr.bf16.mxu0 0
        %3090 = vmatmul.mubr.bf16.gmra.mrb[0].mxu0 %v883
        %v3091 = vpop.f32.mrb[0].mxu0
        %v3092 = vadd.f32 0.0, %v3091
        %v3093 = vpop.f32.mrb[0].mxu0
        %v3094 = vpop.f32.mrb[0].mxu0
        %v3095 = vadd.f32 0.0, %v3094
        %v3096 = vpop.f32.mrb[0].mxu0
        %3097 = vmatprep.mubr.bf16.mxu0 0
        %3098 = vmatmul.mubr.bf16.gmra.mrb[0].mxu0 %v884
        %v3099 = vpop.f32.mrb[0].mxu0
        %v3100 = vadd.f32 0.0, %v3099
        %v3101 = vpop.f32.mrb[0].mxu0
        %v3102 = vpop.f32.mrb[0].mxu0
        %v3103 = vadd.f32 0.0, %v3102
        %v3104 = vpop.f32.mrb[0].mxu0
        %3105 = vmatprep.mubr.bf16.mxu0 0
        %3106 = vmatmul.mubr.bf16.gmra.mrb[0].mxu0 %v885
        %v3107 = vpop.f32.mrb[0].mxu0
        %v3108 = vadd.f32 0.0, %v3107
        %v3109 = vpop.f32.mrb[0].mxu0
        %v3110 = vpop.f32.mrb[0].mxu0
        %v3111 = vadd.f32 0.0, %v3110
        %v3112 = vpop.f32.mrb[0].mxu0
        %3113 = vmatprep.mubr.bf16.mxu0 0
        %3114 = vmatmul.mubr.bf16.gmra.mrb[0].mxu0 %v886
        %v3115 = vpop.f32.mrb[0].mxu0
        %v3116 = vadd.f32 0.0, %v3115
        %v3117 = vpop.f32.mrb[0].mxu0
        %v3118 = vpop.f32.mrb[0].mxu0
        %v3119 = vadd.f32 0.0, %v3118
        %v3120 = vpop.f32.mrb[0].mxu0
        %3121 = vmatprep.mubr.bf16.mxu0 0
        %3122 = vmatmul.mubr.bf16.gmra.mrb[0].mxu0 %v887
        %v3123 = vpop.f32.mrb[0].mxu0
        %v3124 = vadd.f32 0.0, %v3123
        %v3125 = vpop.f32.mrb[0].mxu0
        %v3126 = vpop.f32.mrb[0].mxu0
        %v3127 = vadd.f32 0.0, %v3126
        %v3128 = vpop.f32.mrb[0].mxu0
        %3129 = vmatprep.mubr.bf16.mxu0 0
        %3130 = vmatmul.mubr.bf16.gmra.mrb[0].mxu0 %v888
        %v3131 = vpop.f32.mrb[0].mxu0
        %v3132 = vadd.f32 0.0, %v3131
        %v3133 = vpop.f32.mrb[0].mxu0
        %v3134 = vpop.f32.mrb[0].mxu0
        %v3135 = vadd.f32 0.0, %v3134
        %v3136 = vpop.f32.mrb[0].mxu0
        %3137 = vmatprep.mubr.bf16.mxu0 0
        %3138 = vmatmul.mubr.bf16.gmra.mrb[0].mxu0 %v889
        %v3139 = vpop.f32.mrb[0].mxu0
        %v3140 = vadd.f32 0.0, %v3139
        %v3141 = vpop.f32.mrb[0].mxu0
        %v3142 = vpop.f32.mrb[0].mxu0
        %v3143 = vadd.f32 0.0, %v3142
        %v3144 = vpop.f32.mrb[0].mxu0
        %3145 = vmatprep.mubr.bf16.mxu0 0
        %3146 = vmatmul.mubr.bf16.gmra.mrb[0].mxu0 %v890
        %v3147 = vpop.f32.mrb[0].mxu0
        %v3148 = vadd.f32 0.0, %v3147
        %v3149 = vpop.f32.mrb[0].mxu0
        %v3150 = vpop.f32.mrb[0].mxu0
        %v3151 = vadd.f32 0.0, %v3150
        %v3152 = vpop.f32.mrb[0].mxu0
        %3153 = vmatprep.mubr.bf16.mxu0 0
        %3154 = vmatmul.mubr.bf16.gmra.mrb[0].mxu0 %v891
        %v3155 = vpop.f32.mrb[0].mxu0
        %v3156 = vadd.f32 0.0, %v3155
        %v3157 = vpop.f32.mrb[0].mxu0
        %v3158 = vpop.f32.mrb[0].mxu0
        %v3159 = vadd.f32 0.0, %v3158
        %v3160 = vpop.f32.mrb[0].mxu0
        %3161 = vmatprep.mubr.bf16.mxu0 0
        %3162 = vmatmul.mubr.bf16.gmra.mrb[0].mxu0 %v892
        %v3163 = vpop.f32.mrb[0].mxu0
        %v3164 = vadd.f32 0.0, %v3163
        %v3165 = vpop.f32.mrb[0].mxu0
        %v3166 = vpop.f32.mrb[0].mxu0
        %v3167 = vadd.f32 0.0, %v3166
        %v3168 = vpop.f32.mrb[0].mxu0
        %3169 = vmatprep.mubr.bf16.mxu0 0
        %3170 = vmatmul.mubr.bf16.gmra.mrb[0].mxu0 %v893
        %v3171 = vpop.f32.mrb[0].mxu0
        %v3172 = vadd.f32 0.0, %v3171
        %v3173 = vpop.f32.mrb[0].mxu0
        %v3174 = vpop.f32.mrb[0].mxu0
        %v3175 = vadd.f32 0.0, %v3174
        %v3176 = vpop.f32.mrb[0].mxu0
        %3177 = vmatprep.mubr.bf16.mxu0 0
        %3178 = vmatmul.mubr.bf16.gmra.mrb[0].mxu0 %v894
        %v3179 = vpop.f32.mrb[0].mxu0
        %v3180 = vadd.f32 0.0, %v3179
        %v3181 = vpop.f32.mrb[0].mxu0
        %v3182 = vpop.f32.mrb[0].mxu0
        %v3183 = vadd.f32 0.0, %v3182
        %v3184 = vpop.f32.mrb[0].mxu0
        %3185 = vmatprep.mubr.bf16.mxu0 0
        %3186 = vmatmul.mubr.bf16.gmra.mrb[0].mxu0 %v895
        %v3187 = vpop.f32.mrb[0].mxu0
        %v3188 = vadd.f32 0.0, %v3187
        %v3189 = vpop.f32.mrb[0].mxu0
        %v3190 = vpop.f32.mrb[0].mxu0
        %v3191 = vadd.f32 0.0, %v3190
        %v3192 = vpop.f32.mrb[0].mxu0
        %3193 = vmatprep.mubr.bf16.mxu0 0
        %3194 = vmatmul.mubr.bf16.gmra.mrb[0].mxu0 %v896
        %v3195 = vpop.f32.mrb[0].mxu0
        %v3196 = vadd.f32 0.0, %v3195
        %v3197 = vpop.f32.mrb[0].mxu0
        %v3198 = vpop.f32.mrb[0].mxu0
        %v3199 = vadd.f32 0.0, %v3198
        %v3200 = vpop.f32.mrb[0].mxu0
        %3201 = vmatprep.mubr.bf16.mxu0 0
        %3202 = vmatmul.mubr.bf16.gmra.mrb[0].mxu0 %v2187
        %v3203 = vpop.f32.mrb[0].mxu0
        %v3204 = vadd.f32 0.0, %v3203
        %v3205 = vpop.f32.mrb[0].mxu0
        %v3206 = vpop.f32.mrb[0].mxu0
        %v3207 = vadd.f32 0.0, %v3206
        %v3208 = vpop.f32.mrb[0].mxu0
        %3209 = vmatprep.mubr.bf16.mxu0 0
        %3210 = vmatmul.mubr.bf16.gmra.mrb[0].mxu0 %v3007
        %v3211 = vpop.f32.mrb[0].mxu0
        %v3212 = vadd.f32 0.0, %v3211
        %v3213 = vpop.f32.mrb[0].mxu0
        %v3214 = vpop.f32.mrb[0].mxu0
        %v3215 = vadd.f32 0.0, %v3214
        %v3216 = vpop.f32.mrb[0].mxu0
        %3217 = vdwg.mxu0
        %v3218 = vadd.f32 %v2932, %v3092
        %v3219 = vadd.f32 %v2933, %v3095
        %v3220 = vadd.f32 %v2934, %v3100
        %v3221 = vadd.f32 %v2935, %v3103
        %v3222 = vadd.f32 %v2936, %v3108
        %v3223 = vadd.f32 %v2937, %v3111
        %v3224 = vadd.f32 %v2938, %v3116
        %v3225 = vadd.f32 %v2939, %v3119
        %v3226 = vadd.f32 %v2940, %v3124
        %v3227 = vadd.f32 %v2941, %v3127
        %v3228 = vadd.f32 %v2942, %v3132
        %v3229 = vadd.f32 %v2943, %v3135
        %v3230 = vadd.f32 %v2944, %v3140
        %v3231 = vadd.f32 %v2945, %v3143
        %v3232 = vadd.f32 %v2946, %v3148
        %v3233 = vadd.f32 %v2947, %v3151
        %v3234 = vadd.f32 %v2948, %v3156
        %v3235 = vadd.f32 %v2949, %v3159
        %v3236 = vadd.f32 %v2950, %v3164
        %v3237 = vadd.f32 %v2951, %v3167
        %v3238 = vadd.f32 %v2952, %v3172
        %v3239 = vadd.f32 %v2953, %v3175
        %v3240 = vadd.f32 %v2954, %v3180
        %v3241 = vadd.f32 %v2955, %v3183
        %v3242 = vadd.f32 %v2956, %v3188
        %v3243 = vadd.f32 %v2957, %v3191
        %v3244 = vadd.f32 %v2958, %v3196
        %v3245 = vadd.f32 %v2959, %v3199
        %v3246 = vadd.f32 %v2960, %v3204
        %v3247 = vadd.f32 %v2961, %v3207
        %v3248 = vadd.f32 %v2962, %v3212
        %v3249 = vadd.f32 %v2963, %v3215
        %v3251 = vrot.slane %v426, 5
        %v3252 = vrot.slane %v3251, 4
        %v3253 = vrot.slane %v427, 5
        %v3254 = vsel %vm1445, %v3252, %v3253
        %v3255 = vrot.slane %v3253, 4
        %v3256 = vrot.slane %v428, 5
        %v3257 = vsel %vm1445, %v3255, %v3256
        %s3258 = scalar_lea.vmem %s2, 512
        %v3259 = vld [vmem:[%s3258] sm:$0xf]
        %v3260 = vld [vmem:[%s3258 + $0x4] sm:$0xf]
        %v3261 = vld [vmem:[%s3258 + $0x8] sm:$0xf]
        %v3262 = vld [vmem:[%s3258 + $0xc] sm:$0xf]
        %v3263 = vld [vmem:[%s3258 + $0x10] sm:$0xf]
        %v3264 = vld [vmem:[%s3258 + $0x14] sm:$0xf]
        %v3265 = vld [vmem:[%s3258 + $0x18] sm:$0xf]
        %v3266 = vld [vmem:[%s3258 + $0x1c] sm:$0xf]
        %v3267 = vld [vmem:[%s3258 + $0x20] sm:$0xf]
        %v3268 = vld [vmem:[%s3258 + $0x24] sm:$0xf]
        %v3269 = vld [vmem:[%s3258 + $0x28] sm:$0xf]
        %v3270 = vld [vmem:[%s3258 + $0x2c] sm:$0xf]
        %v3271 = vld [vmem:[%s3258 + $0x30] sm:$0xf]
        %v3272 = vld [vmem:[%s3258 + $0x34] sm:$0xf]
        %v3273 = vld [vmem:[%s3258 + $0x38] sm:$0xf]
        %v3274 = vld [vmem:[%s3258 + $0x3c] sm:$0xf]
        %v3275 = vunpack.c.l.b16 %v3254
        %v3276 = vunpack.c.l.b16 %v3257
        %v3277 = vpack.c.b16 %v3276, %v3275
        %v3295 = vunpack.c.l.b16 %v3259
        %v3296 = vunpack.c.l.b16 %v3260
        %v3297 = vunpack.c.l.b16 %v3261
        %v3298 = vunpack.c.l.b16 %v3262
        %v3299 = vunpack.c.l.b16 %v3263
        %v3300 = vunpack.c.l.b16 %v3264
        %v3301 = vunpack.c.l.b16 %v3265
        %v3302 = vunpack.c.l.b16 %v3266
        %v3303 = vunpack.c.l.b16 %v3267
        %v3304 = vunpack.c.l.b16 %v3268
        %v3305 = vunpack.c.l.b16 %v3269
        %v3306 = vunpack.c.l.b16 %v3270
        %v3307 = vunpack.c.l.b16 %v3271
        %v3308 = vunpack.c.l.b16 %v3272
        %v3309 = vunpack.c.l.b16 %v3273
        %v3310 = vunpack.c.l.b16 %v3274
        %v3311 = vpack.c.b16 %v3296, %v3295
        %v3312 = vpack.c.b16 %v3298, %v3297
        %v3313 = vpack.c.b16 %v3300, %v3299
        %v3314 = vpack.c.b16 %v3302, %v3301
        %v3315 = vpack.c.b16 %v3304, %v3303
        %v3316 = vpack.c.b16 %v3306, %v3305
        %v3317 = vpack.c.b16 %v3308, %v3307
        %v3318 = vpack.c.b16 %v3310, %v3309
        %3327 = vmatprep.subr.bf16.mxu0 0
        %3328 = vmatpush1.bf16.msra.mxu0 %v3311
        %3329 = vmatprep.subr.bf16.mxu0 0
        %3330 = vmatpush1.bf16.msra.mxu0 %v3312
        %3331 = vmatprep.subr.bf16.mxu0 0
        %3332 = vmatpush1.bf16.msra.mxu0 %v3313
        %3333 = vmatprep.subr.bf16.mxu0 0
        %3334 = vmatpush1.bf16.msra.mxu0 %v3314
        %3335 = vmatprep.subr.bf16.mxu0 0
        %3336 = vmatpush1.bf16.msra.mxu0 %v3315
        %3337 = vmatprep.subr.bf16.mxu0 0
        %3338 = vmatpush1.bf16.msra.mxu0 %v3316
        %3339 = vmatprep.subr.bf16.mxu0 0
        %3340 = vmatpush1.bf16.msra.mxu0 %v3317
        %3341 = vmatprep.subr.bf16.mxu0 0
        %3342 = vmatpush1.bf16.msra.mxu0 %v3318
        %3343 = vmatprep.subr.bf16.mxu0 0
        %3344 = vmatpush1.bf16.msra.mxu0 0
        %3345 = vmatprep.subr.bf16.mxu0 0
        %3346 = vmatpush1.bf16.msra.mxu0 0
        %3347 = vmatprep.subr.bf16.mxu0 0
        %3348 = vmatpush1.bf16.msra.mxu0 0
        %3349 = vmatprep.subr.bf16.mxu0 0
        %3350 = vmatpush1.bf16.msra.mxu0 0
        %3351 = vmatprep.subr.bf16.mxu0 0
        %3352 = vmatpush1.bf16.msra.mxu0 0
        %3353 = vmatprep.subr.bf16.mxu0 0
        %3354 = vmatpush1.bf16.msra.mxu0 0
        %3355 = vmatprep.subr.bf16.mxu0 0
        %3356 = vmatpush1.bf16.msra.mxu0 0
        %3357 = vmatprep.subr.bf16.mxu0 0
        %3358 = vmatpush1.bf16.msra.mxu0 0
        %3359 = vmatprep.mubr.bf16.mxu0 0
        %3360 = vmatmul.mubr.bf16.gmra.mrb[0].mxu0 %v1609
        %v3361 = vpop.f32.mrb[0].mxu0
        %v3362 = vadd.f32 0.0, %v3361
        %v3363 = vpop.f32.mrb[0].mxu0
        %v3364 = vpop.f32.mrb[0].mxu0
        %v3365 = vadd.f32 0.0, %v3364
        %v3366 = vpop.f32.mrb[0].mxu0
        %3367 = vmatprep.mubr.bf16.mxu0 0
        %3368 = vmatmul.mubr.bf16.gmra.mrb[0].mxu0 %v1610
        %v3369 = vpop.f32.mrb[0].mxu0
        %v3370 = vadd.f32 0.0, %v3369
        %v3371 = vpop.f32.mrb[0].mxu0
        %v3372 = vpop.f32.mrb[0].mxu0
        %v3373 = vadd.f32 0.0, %v3372
        %v3374 = vpop.f32.mrb[0].mxu0
        %3375 = vmatprep.mubr.bf16.mxu0 0
        %3376 = vmatmul.mubr.bf16.gmra.mrb[0].mxu0 %v1611
        %v3377 = vpop.f32.mrb[0].mxu0
        %v3378 = vadd.f32 0.0, %v3377
        %v3379 = vpop.f32.mrb[0].mxu0
        %v3380 = vpop.f32.mrb[0].mxu0
        %v3381 = vadd.f32 0.0, %v3380
        %v3382 = vpop.f32.mrb[0].mxu0
        %3383 = vmatprep.mubr.bf16.mxu0 0
        %3384 = vmatmul.mubr.bf16.gmra.mrb[0].mxu0 %v1612
        %v3385 = vpop.f32.mrb[0].mxu0
        %v3386 = vadd.f32 0.0, %v3385
        %v3387 = vpop.f32.mrb[0].mxu0
        %v3388 = vpop.f32.mrb[0].mxu0
        %v3389 = vadd.f32 0.0, %v3388
        %v3390 = vpop.f32.mrb[0].mxu0
        %3391 = vmatprep.mubr.bf16.mxu0 0
        %3392 = vmatmul.mubr.bf16.gmra.mrb[0].mxu0 %v1613
        %v3393 = vpop.f32.mrb[0].mxu0
        %v3394 = vadd.f32 0.0, %v3393
        %v3395 = vpop.f32.mrb[0].mxu0
        %v3396 = vpop.f32.mrb[0].mxu0
        %v3397 = vadd.f32 0.0, %v3396
        %v3398 = vpop.f32.mrb[0].mxu0
        %3399 = vmatprep.mubr.bf16.mxu0 0
        %3400 = vmatmul.mubr.bf16.gmra.mrb[0].mxu0 %v1614
        %v3401 = vpop.f32.mrb[0].mxu0
        %v3402 = vadd.f32 0.0, %v3401
        %v3403 = vpop.f32.mrb[0].mxu0
        %v3404 = vpop.f32.mrb[0].mxu0
        %v3405 = vadd.f32 0.0, %v3404
        %v3406 = vpop.f32.mrb[0].mxu0
        %3407 = vmatprep.mubr.bf16.mxu0 0
        %3408 = vmatmul.mubr.bf16.gmra.mrb[0].mxu0 %v1615
        %v3409 = vpop.f32.mrb[0].mxu0
        %v3410 = vadd.f32 0.0, %v3409
        %v3411 = vpop.f32.mrb[0].mxu0
        %v3412 = vpop.f32.mrb[0].mxu0
        %v3413 = vadd.f32 0.0, %v3412
        %v3414 = vpop.f32.mrb[0].mxu0
        %3415 = vmatprep.mubr.bf16.mxu0 0
        %3416 = vmatmul.mubr.bf16.gmra.mrb[0].mxu0 %v1616
        %v3417 = vpop.f32.mrb[0].mxu0
        %v3418 = vadd.f32 0.0, %v3417
        %v3419 = vpop.f32.mrb[0].mxu0
        %v3420 = vpop.f32.mrb[0].mxu0
        %v3421 = vadd.f32 0.0, %v3420
        %v3422 = vpop.f32.mrb[0].mxu0
        %3423 = vmatprep.mubr.bf16.mxu0 0
        %3424 = vmatmul.mubr.bf16.gmra.mrb[0].mxu0 %v1617
        %v3425 = vpop.f32.mrb[0].mxu0
        %v3426 = vadd.f32 0.0, %v3425
        %v3427 = vpop.f32.mrb[0].mxu0
        %v3428 = vpop.f32.mrb[0].mxu0
        %v3429 = vadd.f32 0.0, %v3428
        %v3430 = vpop.f32.mrb[0].mxu0
        %3431 = vmatprep.mubr.bf16.mxu0 0
        %3432 = vmatmul.mubr.bf16.gmra.mrb[0].mxu0 %v1618
        %v3433 = vpop.f32.mrb[0].mxu0
        %v3434 = vadd.f32 0.0, %v3433
        %v3435 = vpop.f32.mrb[0].mxu0
        %v3436 = vpop.f32.mrb[0].mxu0
        %v3437 = vadd.f32 0.0, %v3436
        %v3438 = vpop.f32.mrb[0].mxu0
        %3439 = vmatprep.mubr.bf16.mxu0 0
        %3440 = vmatmul.mubr.bf16.gmra.mrb[0].mxu0 %v1619
        %v3441 = vpop.f32.mrb[0].mxu0
        %v3442 = vadd.f32 0.0, %v3441
        %v3443 = vpop.f32.mrb[0].mxu0
        %v3444 = vpop.f32.mrb[0].mxu0
        %v3445 = vadd.f32 0.0, %v3444
        %v3446 = vpop.f32.mrb[0].mxu0
        %3447 = vmatprep.mubr.bf16.mxu0 0
        %3448 = vmatmul.mubr.bf16.gmra.mrb[0].mxu0 %v1620
        %v3449 = vpop.f32.mrb[0].mxu0
        %v3450 = vadd.f32 0.0, %v3449
        %v3451 = vpop.f32.mrb[0].mxu0
        %v3452 = vpop.f32.mrb[0].mxu0
        %v3453 = vadd.f32 0.0, %v3452
        %v3454 = vpop.f32.mrb[0].mxu0
        %3455 = vmatprep.mubr.bf16.mxu0 0
        %3456 = vmatmul.mubr.bf16.gmra.mrb[0].mxu0 %v1621
        %v3457 = vpop.f32.mrb[0].mxu0
        %v3458 = vadd.f32 0.0, %v3457
        %v3459 = vpop.f32.mrb[0].mxu0
        %v3460 = vpop.f32.mrb[0].mxu0
        %v3461 = vadd.f32 0.0, %v3460
        %v3462 = vpop.f32.mrb[0].mxu0
        %3463 = vmatprep.mubr.bf16.mxu0 0
        %3464 = vmatmul.mubr.bf16.gmra.mrb[0].mxu0 %v1622
        %v3465 = vpop.f32.mrb[0].mxu0
        %v3466 = vadd.f32 0.0, %v3465
        %v3467 = vpop.f32.mrb[0].mxu0
        %v3468 = vpop.f32.mrb[0].mxu0
        %v3469 = vadd.f32 0.0, %v3468
        %v3470 = vpop.f32.mrb[0].mxu0
        %3471 = vmatprep.mubr.bf16.mxu0 0
        %3472 = vmatmul.mubr.bf16.gmra.mrb[0].mxu0 %v2457
        %v3473 = vpop.f32.mrb[0].mxu0
        %v3474 = vadd.f32 0.0, %v3473
        %v3475 = vpop.f32.mrb[0].mxu0
        %v3476 = vpop.f32.mrb[0].mxu0
        %v3477 = vadd.f32 0.0, %v3476
        %v3478 = vpop.f32.mrb[0].mxu0
        %3479 = vmatprep.mubr.bf16.mxu0 0
        %3480 = vmatmul.mubr.bf16.gmra.mrb[0].mxu0 %v3277
        %v3481 = vpop.f32.mrb[0].mxu0
        %v3482 = vadd.f32 0.0, %v3481
        %v3483 = vpop.f32.mrb[0].mxu0
        %v3484 = vpop.f32.mrb[0].mxu0
        %v3485 = vadd.f32 0.0, %v3484
        %v3486 = vpop.f32.mrb[0].mxu0
        %3487 = vdwg.mxu0
        %v3488 = vadd.f32 %v3218, %v3362
        %v3489 = vadd.f32 %v3219, %v3365
        %v3490 = vadd.f32 %v3220, %v3370
        %v3491 = vadd.f32 %v3221, %v3373
        %v3492 = vadd.f32 %v3222, %v3378
        %v3493 = vadd.f32 %v3223, %v3381
        %v3494 = vadd.f32 %v3224, %v3386
        %v3495 = vadd.f32 %v3225, %v3389
        %v3496 = vadd.f32 %v3226, %v3394
        %v3497 = vadd.f32 %v3227, %v3397
        %v3498 = vadd.f32 %v3228, %v3402
        %v3499 = vadd.f32 %v3229, %v3405
        %v3500 = vadd.f32 %v3230, %v3410
        %v3501 = vadd.f32 %v3231, %v3413
        %v3502 = vadd.f32 %v3232, %v3418
        %v3503 = vadd.f32 %v3233, %v3421
        %v3504 = vadd.f32 %v3234, %v3426
        %v3505 = vadd.f32 %v3235, %v3429
        %v3506 = vadd.f32 %v3236, %v3434
        %v3507 = vadd.f32 %v3237, %v3437
        %v3508 = vadd.f32 %v3238, %v3442
        %v3509 = vadd.f32 %v3239, %v3445
        %v3510 = vadd.f32 %v3240, %v3450
        %v3511 = vadd.f32 %v3241, %v3453
        %v3512 = vadd.f32 %v3242, %v3458
        %v3513 = vadd.f32 %v3243, %v3461
        %v3514 = vadd.f32 %v3244, %v3466
        %v3515 = vadd.f32 %v3245, %v3469
        %v3516 = vadd.f32 %v3246, %v3474
        %v3517 = vadd.f32 %v3247, %v3477
        %v3518 = vadd.f32 %v3248, %v3482
        %v3519 = vadd.f32 %v3249, %v3485
        %v3520 = vld [vmem:[%s3] sm:$0x1]
        %v3522 = vlaneseq
        %v3523 = vshrl.u32 %v3522, 7
        %v3524 = vsub.s32 0, %v3523
        %v3525 = vrot.slane %v3520, %v3524
        %v3527 = vadd.f32 %v3488, %v3525
        %v3528 = vadd.f32 %v3489, %v3525
        %v3529 = vadd.f32 %v3490, %v3525
        %v3530 = vadd.f32 %v3491, %v3525
        %v3531 = vadd.f32 %v3492, %v3525
        %v3532 = vadd.f32 %v3493, %v3525
        %v3533 = vadd.f32 %v3494, %v3525
        %v3534 = vadd.f32 %v3495, %v3525
        %v3535 = vadd.f32 %v3496, %v3525
        %v3536 = vadd.f32 %v3497, %v3525
        %v3537 = vadd.f32 %v3498, %v3525
        %v3538 = vadd.f32 %v3499, %v3525
        %v3539 = vadd.f32 %v3500, %v3525
        %v3540 = vadd.f32 %v3501, %v3525
        %v3541 = vadd.f32 %v3502, %v3525
        %v3542 = vadd.f32 %v3503, %v3525
        %v3543 = vadd.f32 %v3504, %v3525
        %v3544 = vadd.f32 %v3505, %v3525
        %v3545 = vadd.f32 %v3506, %v3525
        %v3546 = vadd.f32 %v3507, %v3525
        %v3547 = vadd.f32 %v3508, %v3525
        %v3548 = vadd.f32 %v3509, %v3525
        %v3549 = vadd.f32 %v3510, %v3525
        %v3550 = vadd.f32 %v3511, %v3525
        %v3551 = vadd.f32 %v3512, %v3525
        %v3552 = vadd.f32 %v3513, %v3525
        %v3553 = vadd.f32 %v3514, %v3525
        %v3554 = vadd.f32 %v3515, %v3525
        %v3555 = vadd.f32 %v3516, %v3525
        %v3556 = vadd.f32 %v3517, %v3525
        %v3557 = vadd.f32 %v3518, %v3525
        %v3558 = vadd.f32 %v3519, %v3525
        %v3559 = vld [vmem:[%s371] sm:$0xff]
        %v3560 = vld [vmem:[%s371 + $0x8] sm:$0xff]
        %v3561 = vld [vmem:[%s371 + $0x10] sm:$0xff]
        %v3562 = vld [vmem:[%s371 + $0x18] sm:$0xff]
        %v3563 = vld [vmem:[%s371 + $0x20] sm:$0xff]
        %v3564 = vld [vmem:[%s371 + $0x28] sm:$0xff]
        %v3565 = vld [vmem:[%s371 + $0x30] sm:$0xff]
        %v3566 = vld [vmem:[%s371 + $0x38] sm:$0xff]
        %v3567 = vld [vmem:[%s371 + $0x40] sm:$0xff]
        %v3568 = vld [vmem:[%s371 + $0x48] sm:$0xff]
        %v3569 = vld [vmem:[%s371 + $0x50] sm:$0xff]
        %v3570 = vld [vmem:[%s371 + $0x58] sm:$0xff]
        %v3571 = vld [vmem:[%s371 + $0x60] sm:$0xff]
        %v3572 = vld [vmem:[%s371 + $0x68] sm:$0xff]
        %v3573 = vld [vmem:[%s371 + $0x70] sm:$0xff]
        %v3574 = vld [vmem:[%s371 + $0x78] sm:$0xff]
        %v3575 = vld [vmem:[%s371 + $0x80] sm:$0xff]
        %v3576 = vld [vmem:[%s371 + $0x88] sm:$0xff]
        %v3577 = vld [vmem:[%s371 + $0x90] sm:$0xff]
        %v3578 = vld [vmem:[%s371 + $0x98] sm:$0xff]
        %v3579 = vld [vmem:[%s371 + $0xa0] sm:$0xff]
        %v3580 = vld [vmem:[%s371 + $0xa8] sm:$0xff]
        %v3581 = vld [vmem:[%s371 + $0xb0] sm:$0xff]
        %v3582 = vld [vmem:[%s371 + $0xb8] sm:$0xff]
        %v3583 = vld [vmem:[%s371 + $0xc0] sm:$0xff]
        %v3584 = vld [vmem:[%s371 + $0xc8] sm:$0xff]
        %v3585 = vld [vmem:[%s371 + $0xd0] sm:$0xff]
        %v3586 = vld [vmem:[%s371 + $0xd8] sm:$0xff]
        %v3587 = vld [vmem:[%s371 + $0xe0] sm:$0xff]
        %v3588 = vld [vmem:[%s371 + $0xe8] sm:$0xff]
        %v3589 = vld [vmem:[%s371 + $0xf0] sm:$0xff]
        %v3590 = vld [vmem:[%s371 + $0xf8] sm:$0xff]
        %v3591 = vadd.f32 %v3527, %v3559
        %v3592 = vadd.f32 %v3528, %v3560
        %v3593 = vadd.f32 %v3529, %v3561
        %v3594 = vadd.f32 %v3530, %v3562
        %v3595 = vadd.f32 %v3531, %v3563
        %v3596 = vadd.f32 %v3532, %v3564
        %v3597 = vadd.f32 %v3533, %v3565
        %v3598 = vadd.f32 %v3534, %v3566
        %v3599 = vadd.f32 %v3535, %v3567
        %v3600 = vadd.f32 %v3536, %v3568
        %v3601 = vadd.f32 %v3537, %v3569
        %v3602 = vadd.f32 %v3538, %v3570
        %v3603 = vadd.f32 %v3539, %v3571
        %v3604 = vadd.f32 %v3540, %v3572
        %v3605 = vadd.f32 %v3541, %v3573
        %v3606 = vadd.f32 %v3542, %v3574
        %v3607 = vadd.f32 %v3543, %v3575
        %v3608 = vadd.f32 %v3544, %v3576
        %v3609 = vadd.f32 %v3545, %v3577
        %v3610 = vadd.f32 %v3546, %v3578
        %v3611 = vadd.f32 %v3547, %v3579
        %v3612 = vadd.f32 %v3548, %v3580
        %v3613 = vadd.f32 %v3549, %v3581
        %v3614 = vadd.f32 %v3550, %v3582
        %v3615 = vadd.f32 %v3551, %v3583
        %v3616 = vadd.f32 %v3552, %v3584
        %v3617 = vadd.f32 %v3553, %v3585
        %v3618 = vadd.f32 %v3554, %v3586
        %v3619 = vadd.f32 %v3555, %v3587
        %v3620 = vadd.f32 %v3556, %v3588
        %v3621 = vadd.f32 %v3557, %v3589
        %v3622 = vadd.f32 %v3558, %v3590
        %3623 = vst [vmem:[%s325] sm:$0xff] %v3591
        %3624 = vst [vmem:[%s325 + $0x8] sm:$0xff] %v3592
        %3625 = vst [vmem:[%s325 + $0x10] sm:$0xff] %v3593
        %3626 = vst [vmem:[%s325 + $0x18] sm:$0xff] %v3594
        %3627 = vst [vmem:[%s325 + $0x20] sm:$0xff] %v3595
        %3628 = vst [vmem:[%s325 + $0x28] sm:$0xff] %v3596
        %3629 = vst [vmem:[%s325 + $0x30] sm:$0xff] %v3597
        %3630 = vst [vmem:[%s325 + $0x38] sm:$0xff] %v3598
        %3631 = vst [vmem:[%s325 + $0x40] sm:$0xff] %v3599
        %3632 = vst [vmem:[%s325 + $0x48] sm:$0xff] %v3600
        %3633 = vst [vmem:[%s325 + $0x50] sm:$0xff] %v3601
        %3634 = vst [vmem:[%s325 + $0x58] sm:$0xff] %v3602
        %3635 = vst [vmem:[%s325 + $0x60] sm:$0xff] %v3603
        %3636 = vst [vmem:[%s325 + $0x68] sm:$0xff] %v3604
        %3637 = vst [vmem:[%s325 + $0x70] sm:$0xff] %v3605
        %3638 = vst [vmem:[%s325 + $0x78] sm:$0xff] %v3606
        %3639 = vst [vmem:[%s325 + $0x80] sm:$0xff] %v3607
        %3640 = vst [vmem:[%s325 + $0x88] sm:$0xff] %v3608
        %3641 = vst [vmem:[%s325 + $0x90] sm:$0xff] %v3609
        %3642 = vst [vmem:[%s325 + $0x98] sm:$0xff] %v3610
        %3643 = vst [vmem:[%s325 + $0xa0] sm:$0xff] %v3611
        %3644 = vst [vmem:[%s325 + $0xa8] sm:$0xff] %v3612
        %3645 = vst [vmem:[%s325 + $0xb0] sm:$0xff] %v3613
        %3646 = vst [vmem:[%s325 + $0xb8] sm:$0xff] %v3614
        %3647 = vst [vmem:[%s325 + $0xc0] sm:$0xff] %v3615
        %3648 = vst [vmem:[%s325 + $0xc8] sm:$0xff] %v3616
        %3649 = vst [vmem:[%s325 + $0xd0] sm:$0xff] %v3617
        %3650 = vst [vmem:[%s325 + $0xd8] sm:$0xff] %v3618
        %3651 = vst [vmem:[%s325 + $0xe0] sm:$0xff] %v3619
        %3652 = vst [vmem:[%s325 + $0xe8] sm:$0xff] %v3620
        %3653 = vst [vmem:[%s325 + $0xf0] sm:$0xff] %v3621
        %3654 = vst [vmem:[%s325 + $0xf8] sm:$0xff] %v3622
        %s3655 = sand.u32 %s171, 1
        %s3656 = scalar_lea.sflag [#allocation3], %s3655
        %s3657 = sand.u32 %s171, 1
        %s3658 = smul.addr %s3657, 256
        %s3659 = scalar_lea.vmem [#allocation2], %s3658
        // Predicated region
        $region41: #{residual_group_forward.13} parent=39 // pred_check
          %p3660 = pneg %p181
        $region42: #{residual_group_forward.13} parent=39 // pred_check_branch
          %3662 = sbr.rel (%p3660) target = $region44
        $region43: #{residual_group_forward.13} parent=39 // pred_region
          %s3663 = smul.u32 16, %s24
          %s3665 = ssub.s32 4096, 4096
          %3666 = vsyncadd %s3656, %s3665
          %s3667 = smul.addr %s3663, 2
          %s3668 = smul.addr %s23, 32
          %s3669 = sadd.s32 %s3667, %s3668
          %s3670 = smul.addr %s3669, 128
          %s3671 = scalar_lea.hbm %s5, %s3670
          %s3672 = sshll.u32 %s3659, 4
          %s3673 = int_to_ptr.vmem [resolvable:$true] %s3672
          %3678 = dma.vmem_to_hbm [thread:$0]  %s3673, 4096, %s3671, %s3656, 128, 128, 8
        $region44: #{residual_group_forward.13} parent=39 // pred_fallthru
          _
      $region40: #{residual_group_forward.13} parent=5 // pred_fallthru
        _
      %p3679 = scmp.le.s32.totalorder 2, %s14
      // Predicated region
      $region45: #{residual_group_forward.13} parent=5 // pred_check
        %p3680 = pneg %p3679
      $region46: #{residual_group_forward.13} parent=5 // pred_check_branch
        %3682 = sbr.rel (%p3680) target = $region48
      $region47: #{residual_group_forward.13} parent=5 // pred_region
        %s3683 = ssub.s32 %s14, 2
        // Predicated region
        $region49: #{residual_group_forward.13} parent=47 // pred_check
          %p3684 = pneg %p187
        $region50: #{residual_group_forward.13} parent=47 // pred_check_branch
          %3686 = sbr.rel (%p3684) target = $region52
        $region51: #{residual_group_forward.13} parent=47 // pred_region
          %s3687 = sand.u32 %s172, 1
          %s3688 = scalar_lea.sflag [#allocation3], %s3687
          %s3689 = sand.u32 %s172, 1
          %s3690 = smul.addr %s3689, 256
          %s3691 = scalar_lea.vmem [#allocation2], %s3690
          %3692 = dma.done %s3688, 4096
        $region52: #{residual_group_forward.13} parent=47 // pred_fallthru
          _
      $region48: #{residual_group_forward.13} parent=5 // pred_fallthru
        _
    $region6: #{residual_group_forward.13} parent=1 // loop_footer
      %s18 = sadd.s32 1, %s14
    $region7: #{residual_group_forward.13} parent=1 // loop_footer_branch
      %13 = sbr.rel target = $region3
    $region8: #{residual_group_forward.13} parent=1 // loop_exit
      _
    %3693 = vsyncpa [#allocation3], 1
    %s3694 = scalar_lea.sflag [#allocation3], 1
    %3695 = vsyncpa %s3694, 1

// kernel: residual_group_forward.7
$region0: #{residual_group_forward.7}
  #allocation0 [shape = 'u32[]', space=smem, size = 0x4, offset = 0x4, fixed_abs, tag = 'smem constant byte address 0x4 - core index']
  #allocation1 [shape = 'u32[144,128]{1,0:T(1,128)}', space=vmem, size = 0x12000, scoped, tag = 'internal scratch']
  %s0 = inlined_call_operand.vmem [shape: bf16[2,18,18,128], index: 0, kind: input, shape index: {}, may-alias: {0,1}]
  %s1 = inlined_call_operand.vmem [shape: bf16[2,18,18,128], index: 1, kind: input, shape index: {}, may-alias: {0,1}]
  %s2 = inlined_call_operand.vmem [shape: bf16[3,3,128,128], index: 2, kind: input, shape index: {}]
  %s3 = inlined_call_operand.vmem [shape: f32[1,128], index: 3, kind: input, shape index: {}]
  %s4 = inlined_call_operand.vmem [shape: bf16[2,16,16,128], index: 4, kind: output, shape index: {}]
  %s5 = sld [smem:[#allocation0]]
  $region49: #{residual_group_forward.7} parent=0
    _
  %s7 = ssub.s32 1, %s5
  %s8 = scalar_select 0, %s7, %s5
  loop: start=0, step=1, limit=4
  $region2: #{residual_group_forward.7} parent=0 // loop_pre_header
    _
  $region3: #{residual_group_forward.7} parent=0 // loop_header
    %s10 = sphi 0, %s14
    %p11 = scmp.ge.s32.totalorder %s10, 4
    %s17 = sphi 0, %s29
    %s18 = sphi 0, %s25
    %s19 = sphi 0, %s17
    %s20 = sphi 0, %s18
    %s21 = sphi 0, %s19
    %s22 = sphi 0, %s20
    %s34 = sphi 0, %s36
    %s37 = sphi 0, %s34
    %s38 = sphi 0, %s37
    %s54 = sphi 0, %s38
    %s66 = sphi 0, %s68
    %s69 = sphi 0, %s66
    %s70 = sphi 0, %s69
    %s86 = sphi 0, %s70
    %s90 = sphi 0, %s90
    %s92 = sphi 0, %s90
    %s93 = sphi 0, %s92
    %s107 = sphi 0, %s93
    %s111 = sphi 0, %s111
    %s113 = sphi 0, %s111
    %s114 = sphi 0, %s113
    %s128 = sphi 0, %s114
    %s136 = sphi 0, %s138
    %s139 = sphi 0, %s136
    %s140 = sphi 0, %s139
    %s156 = sphi 0, %s140
  $region4: #{residual_group_forward.7} parent=0 // loop_header_branch
    %13 = sbr.rel (%p11) target = $region8
  $region5: #{residual_group_forward.7} parent=0 // loop_body
    %s15 = ssub.s32 %s10, 1
    %s16 = ssub.s32 %s10, 2
    %s23 = sadd.s32 1, %s18
    %p24 = scmp.ge.s32.totalorder %s23, 1
    %s25 = scalar_select %p24, 0, %s23
    %s26 = sadd.s32 1, %s17
    %s27 = scalar_select %p24, %s26, %s17
    %p28 = scmp.ge.s32.totalorder %s27, 2
    %s29 = scalar_select %p28, 0, %s27
    %s30 = ssub.s32 %s17, %s29
    %s31 = ssub.s32 %s18, %s25
    %s32 = sor.u32 %s30, %s31
    %p33 = scmp.eq.s32.totalorder %s32, 0
    %s35 = sadd.s32 %s34, 1
    %s36 = scalar_select %p33, %s34, %s35
    %p39 = pneg %p33
    %p40 = scmp.eq.s32.totalorder %s10, 1
    %p41 = por %p39, %p40
    %p42 = scmp.ne.s32.totalorder %s34, %s37
    %p43 = scmp.eq.s32.totalorder %s10, 0
    %p44 = por %p42, %p43
    %p45 = scmp.ne.s32.totalorder %s34, %s37
    %p46 = scmp.eq.s32.totalorder %s15, 1
    %p47 = por %p45, %p46
    %p48 = scmp.ne.s32.totalorder %s37, %s38
    %p49 = scmp.eq.s32.totalorder %s15, 0
    %p50 = por %p48, %p49
    %p51 = scmp.ne.s32.totalorder %s37, %s38
    %p52 = scmp.eq.s32.totalorder %s16, 1
    %p53 = por %p51, %p52
    %p55 = scmp.ne.s32.totalorder %s38, %s54
    %p56 = scmp.eq.s32.totalorder %s16, 0
    %p57 = por %p55, %p56
    %s58 = sadd.s32 %s18, 1
    %s59 = smul.u32 %s58, 8
    %s60 = sadd.s32 %s25, 1
    %s61 = smul.u32 %s60, 8
    %s62 = ssub.s32 %s17, %s29
    %s63 = ssub.s32 %s59, %s61
    %s64 = sor.u32 %s62, %s63
    %p65 = scmp.eq.s32.totalorder %s64, 0
    %s67 = sadd.s32 %s66, 1
    %s68 = scalar_select %p65, %s66, %s67
    %p71 = pneg %p65
    %p72 = scmp.eq.s32.totalorder %s10, 1
    %p73 = por %p71, %p72
    %p74 = scmp.ne.s32.totalorder %s66, %s69
    %p75 = scmp.eq.s32.totalorder %s10, 0
    %p76 = por %p74, %p75
    %p77 = scmp.ne.s32.totalorder %s66, %s69
    %p78 = scmp.eq.s32.totalorder %s15, 1
    %p79 = por %p77, %p78
    %p80 = scmp.ne.s32.totalorder %s69, %s70
    %p81 = scmp.eq.s32.totalorder %s15, 0
    %p82 = por %p80, %p81
    %p83 = scmp.ne.s32.totalorder %s69, %s70
    %p84 = scmp.eq.s32.totalorder %s16, 1
    %p85 = por %p83, %p84
    %p87 = scmp.ne.s32.totalorder %s70, %s86
    %p88 = scmp.eq.s32.totalorder %s16, 0
    %p89 = por %p87, %p88
    %s91 = sadd.s32 %s90, 1
    %p94 = scmp.eq.s32.totalorder %s10, 1
    %p95 = scmp.ne.s32.totalorder %s90, %s92
    %p96 = scmp.eq.s32.totalorder %s10, 0
    %p97 = por %p95, %p96
    %p98 = scmp.ne.s32.totalorder %s90, %s92
    %p99 = scmp.eq.s32.totalorder %s15, 1
    %p100 = por %p98, %p99
    %p101 = scmp.ne.s32.totalorder %s92, %s93
    %p102 = scmp.eq.s32.totalorder %s15, 0
    %p103 = por %p101, %p102
    %p104 = scmp.ne.s32.totalorder %s92, %s93
    %p105 = scmp.eq.s32.totalorder %s16, 1
    %p106 = por %p104, %p105
    %p108 = scmp.ne.s32.totalorder %s93, %s107
    %p109 = scmp.eq.s32.totalorder %s16, 0
    %p110 = por %p108, %p109
    %s112 = sadd.s32 %s111, 1
    %p115 = scmp.eq.s32.totalorder %s10, 1
    %p116 = scmp.ne.s32.totalorder %s111, %s113
    %p117 = scmp.eq.s32.totalorder %s10, 0
    %p118 = por %p116, %p117
    %p119 = scmp.ne.s32.totalorder %s111, %s113
    %p120 = scmp.eq.s32.totalorder %s15, 1
    %p121 = por %p119, %p120
    %p122 = scmp.ne.s32.totalorder %s113, %s114
    %p123 = scmp.eq.s32.totalorder %s15, 0
    %p124 = por %p122, %p123
    %p125 = scmp.ne.s32.totalorder %s113, %s114
    %p126 = scmp.eq.s32.totalorder %s16, 1
    %p127 = por %p125, %p126
    %p129 = scmp.ne.s32.totalorder %s114, %s128
    %p130 = scmp.eq.s32.totalorder %s16, 0
    %p131 = por %p129, %p130
    %s132 = ssub.s32 %s17, %s29
    %s133 = ssub.s32 %s18, %s25
    %s134 = sor.u32 %s132, %s133
    %p135 = scmp.eq.s32.totalorder %s134, 0
    %s137 = sadd.s32 %s136, 1
    %s138 = scalar_select %p135, %s136, %s137
    %p141 = pneg %p135
    %p142 = scmp.eq.s32.totalorder %s10, 1
    %p143 = por %p141, %p142
    %p144 = scmp.ne.s32.totalorder %s136, %s139
    %p145 = scmp.eq.s32.totalorder %s10, 0
    %p146 = por %p144, %p145
    %p147 = scmp.ne.s32.totalorder %s136, %s139
    %p148 = scmp.eq.s32.totalorder %s15, 1
    %p149 = por %p147, %p148
    %p150 = scmp.ne.s32.totalorder %s139, %s140
    %p151 = scmp.eq.s32.totalorder %s15, 0
    %p152 = por %p150, %p151
    %p153 = scmp.ne.s32.totalorder %s139, %s140
    %p154 = scmp.eq.s32.totalorder %s16, 1
    %p155 = por %p153, %p154
    %p157 = scmp.ne.s32.totalorder %s140, %s156
    %p158 = scmp.eq.s32.totalorder %s16, 0
    %p159 = por %p157, %p158
    %p160 = scmp.le.s32.totalorder 1, %s10
    %p161 = scmp.lt.s32.totalorder %s10, 3
    %p162 = pnand %p160, %p161
    %p163 = pneg %p162
    // Predicated region
    $region9: #{residual_group_forward.7} parent=5 // pred_check
      _
    $region10: #{residual_group_forward.7} parent=5 // pred_check_branch
      %165 = sbr.rel (%p162) target = $region12
    $region11: #{residual_group_forward.7} parent=5 // pred_region
      %s166 = ssub.s32 %s10, 1
      // Predicated region
      $region13: #{residual_group_forward.7} parent=11 // pred_check
        %p167 = pneg %p103
      $region14: #{residual_group_forward.7} parent=11 // pred_check_branch
        %169 = sbr.rel (%p167) target = $region16
      $region15: #{residual_group_forward.7} parent=11 // pred_region
        _
      $region16: #{residual_group_forward.7} parent=11 // pred_fallthru
        _
      // Predicated region
      $region17: #{residual_group_forward.7} parent=11 // pred_check
        %p170 = pneg %p124
      $region18: #{residual_group_forward.7} parent=11 // pred_check_branch
        %172 = sbr.rel (%p170) target = $region20
      $region19: #{residual_group_forward.7} parent=11 // pred_region
        _
      $region20: #{residual_group_forward.7} parent=11 // pred_fallthru
        _
    $region12: #{residual_group_forward.7} parent=5 // pred_fallthru
      _
    %p173 = scmp.lt.s32.totalorder %s10, 2
    // Predicated region
    $region21: #{residual_group_forward.7} parent=5 // pred_check
      %p174 = pneg %p173
    $region22: #{residual_group_forward.7} parent=5 // pred_check_branch
      %176 = sbr.rel (%p174) target = $region24
    $region23: #{residual_group_forward.7} parent=5 // pred_region
      // Predicated region
      $region25: #{residual_group_forward.7} parent=23 // pred_check
        %p177 = pneg %p44
      $region26: #{residual_group_forward.7} parent=23 // pred_check_branch
        %179 = sbr.rel (%p177) target = $region28
      $region27: #{residual_group_forward.7} parent=23 // pred_region
        %s180 = smul.u32 16, %s18
        %s181 = ssub.s32 18, %s180
        %p182 = scmp.lt.s32.totalorder %s181, 16
        %s183 = scalar_select %p182, %s181, 16
        %s184 = smul.u32 64, %s183
        %s185 = smul.u32 %s184, 3
        %p186 = scmp.lt.s32.totalorder %s17, 1
        %s187 = scalar_select %p186, %s17, 1
        %p188 = scmp.lt.s32.totalorder %s180, 17
        %s189 = scalar_select %p188, %s180, 17
        %s190 = smul.addr %s189, 3
        %s191 = smul.addr %s187, 54
        %s192 = sadd.s32 %s190, %s191
        %s193 = smul.addr %s192, 4
        %s194 = scalar_lea.vmem %s0, %s193
        %s195 = smul.u32 16, %s18
        %s196 = ssub.s32 18, %s195
        %p197 = scmp.lt.s32.totalorder %s196, 16
        %s198 = scalar_select %p197, %s196, 16
        %s199 = smul.u32 64, %s198
        %s200 = smul.u32 %s199, 3
      $region28: #{residual_group_forward.7} parent=23 // pred_fallthru
        _
      // Predicated region
      $region29: #{residual_group_forward.7} parent=23 // pred_check
        %p201 = pneg %p76
      $region30: #{residual_group_forward.7} parent=23 // pred_check_branch
        %203 = sbr.rel (%p201) target = $region32
      $region31: #{residual_group_forward.7} parent=23 // pred_region
        %s204 = sadd.s32 %s18, 1
        %s205 = smul.u32 %s204, 8
        %s206 = smul.u32 2, %s205
        %p207 = scmp.lt.s32.totalorder %s17, 1
        %s208 = scalar_select %p207, %s17, 1
        %p209 = scmp.lt.s32.totalorder %s206, 17
        %s210 = scalar_select %p209, %s206, 17
        %s211 = smul.addr %s210, 3
        %s212 = smul.addr %s208, 54
        %s213 = sadd.s32 %s211, %s212
        %s214 = smul.addr %s213, 4
        %s215 = scalar_lea.vmem %s1, %s214
        %s216 = sadd.s32 %s18, 1
        %s217 = smul.u32 %s216, 8
        %s218 = smul.u32 2, %s217
      $region32: #{residual_group_forward.7} parent=23 // pred_fallthru
        _
    $region24: #{residual_group_forward.7} parent=5 // pred_fallthru
      _
    %p219 = scmp.le.s32.totalorder 1, %s10
    %p220 = scmp.lt.s32.totalorder %s10, 3
    %p221 = pnand %p219, %p220
    %p222 = pneg %p221
    // Predicated region
    $region33: #{residual_group_forward.7} parent=5 // pred_check
      _
    $region34: #{residual_group_forward.7} parent=5 // pred_check_branch
      %224 = sbr.rel (%p221) target = $region36
    $region35: #{residual_group_forward.7} parent=5 // pred_region
      %s225 = ssub.s32 %s10, 1
      %s226 = smul.u32 16, %s20
      %s227 = ssub.s32 18, %s226
      %p228 = scmp.lt.s32.totalorder %s227, 16
      %s229 = scalar_select %p228, %s227, 16
      %s230 = smul.u32 64, %s229
      %s231 = smul.u32 %s230, 3
      %p232 = scmp.lt.s32.totalorder %s19, 1
      %s233 = scalar_select %p232, %s19, 1
      %p234 = scmp.lt.s32.totalorder %s226, 17
      %s235 = scalar_select %p234, %s226, 17
      %s236 = smul.addr %s235, 3
      %s237 = smul.addr %s233, 54
      %s238 = sadd.s32 %s236, %s237
      %s239 = smul.addr %s238, 4
      %s240 = scalar_lea.vmem %s0, %s239
      %p241 = pneg %p50
      %p242 = pneg %p47
      %s243 = sadd.s32 %s20, 1
      %s244 = smul.u32 %s243, 8
      %s245 = smul.u32 2, %s244
      %p246 = scmp.lt.s32.totalorder %s19, 1
      %s247 = scalar_select %p246, %s19, 1
      %p248 = scmp.lt.s32.totalorder %s245, 17
      %s249 = scalar_select %p248, %s245, 17
      %s250 = smul.addr %s249, 3
      %s251 = smul.addr %s247, 54
      %s252 = sadd.s32 %s250, %s251
      %s253 = smul.addr %s252, 4
      %s254 = scalar_lea.vmem %s1, %s253
      %p255 = pneg %p82
      %p256 = pneg %p79
      %p257 = pneg %p103
      %p258 = pneg %p100
      %p259 = pneg %p124
      %p260 = pneg %p121
      %p261 = pneg %p152
      %p262 = pneg %p149
      %s263 = smul.u32 16, %s20
      %p264 = scmp.lt.s32.totalorder %s19, 1
      %s265 = scalar_select %p264, %s19, 1
      %p266 = scmp.lt.s32.totalorder %s263, 15
      %s267 = scalar_select %p266, %s263, 15
      %s268 = smul.addr %s267, 2
      %s269 = smul.addr %s265, 32
      %s270 = sadd.s32 %s268, %s269
      %s271 = smul.addr %s270, 4
      %s272 = scalar_lea.vmem %s4, %s271
      %s273 = smul.u32 16, %s20
      %s274 = ssub.s32 18, %s273
      %p275 = scmp.lt.s32.totalorder %s274, 16
      %s276 = scalar_select %p275, %s274, 16
      %s277 = smul.u32 64, %s276
      %s278 = smul.u32 %s277, 3
      %p279 = scmp.lt.s32.totalorder %s19, 1
      %s280 = scalar_select %p279, %s19, 1
      %p281 = scmp.lt.s32.totalorder %s273, 17
      %s282 = scalar_select %p281, %s273, 17
      %s283 = smul.addr %s282, 3
      %s284 = smul.addr %s280, 54
      %s285 = sadd.s32 %s283, %s284
      %s286 = smul.addr %s285, 4
      %s287 = scalar_lea.vmem %s0, %s286
      %s288 = smul.u32 16, %s20
      %s289 = ssub.s32 18, %s288
      %p290 = scmp.lt.s32.totalorder %s289, 16
      %s291 = scalar_select %p290, %s289, 16
      %s292 = smul.u32 64, %s291
      %s293 = smul.u32 %s292, 3
      %s294 = sadd.s32 %s20, 1
      %s295 = smul.u32 %s294, 8
      %s296 = smul.u32 2, %s295
      %p297 = scmp.lt.s32.totalorder %s19, 1
      %s298 = scalar_select %p297, %s19, 1
      %p299 = scmp.lt.s32.totalorder %s296, 17
      %s300 = scalar_select %p299, %s296, 17
      %s301 = smul.addr %s300, 3
      %s302 = smul.addr %s298, 54
      %s303 = sadd.s32 %s301, %s302
      %s304 = smul.addr %s303, 4
      %s305 = scalar_lea.vmem %s1, %s304
      %s306 = sadd.s32 %s20, 1
      %s307 = smul.u32 %s306, 8
      %s308 = smul.u32 2, %s307
      %s309 = smul.u32 16, %s20
      %p310 = scmp.lt.s32.totalorder %s19, 1
      %s311 = scalar_select %p310, %s19, 1
      %p312 = scmp.lt.s32.totalorder %s309, 15
      %s313 = scalar_select %p312, %s309, 15
      %s314 = smul.addr %s313, 2
      %s315 = smul.addr %s311, 32
      %s316 = sadd.s32 %s314, %s315
      %s317 = smul.addr %s316, 4
      %s318 = scalar_lea.vmem %s4, %s317
      %s319 = smul.u32 16, %s20
      %v321 = vld [vmem:[%s287] sm:$0xf]
      %v322 = vld [vmem:[%s287 + $0x4] sm:$0xf]
      %v323 = vld [vmem:[%s287 + $0x8] sm:$0x1]
      %v324 = vld [vmem:[%s287 + $0xc] sm:$0xf]
      %v325 = vld [vmem:[%s287 + $0x10] sm:$0xf]
      %v326 = vld [vmem:[%s287 + $0x14] sm:$0x1]
      %v327 = vld [vmem:[%s287 + $0x18] sm:$0xf]
      %v328 = vld [vmem:[%s287 + $0x1c] sm:$0xf]
      %v329 = vld [vmem:[%s287 + $0x20] sm:$0x1]
      %v330 = vld [vmem:[%s287 + $0x24] sm:$0xf]
      %v331 = vld [vmem:[%s287 + $0x28] sm:$0xf]
      %v332 = vld [vmem:[%s287 + $0x2c] sm:$0x1]
      %v333 = vld [vmem:[%s287 + $0x30] sm:$0xf]
      %v334 = vld [vmem:[%s287 + $0x34] sm:$0xf]
      %v335 = vld [vmem:[%s287 + $0x38] sm:$0x1]
      %v336 = vld [vmem:[%s287 + $0x3c] sm:$0xf]
      %v337 = vld [vmem:[%s287 + $0x40] sm:$0xf]
      %v338 = vld [vmem:[%s287 + $0x44] sm:$0x1]
      %v339 = vld [vmem:[%s287 + $0x48] sm:$0xf]
      %v340 = vld [vmem:[%s287 + $0x4c] sm:$0xf]
      %v341 = vld [vmem:[%s287 + $0x50] sm:$0x1]
      %v342 = vld [vmem:[%s287 + $0x54] sm:$0xf]
      %v343 = vld [vmem:[%s287 + $0x58] sm:$0xf]
      %v344 = vld [vmem:[%s287 + $0x5c] sm:$0x1]
      %v345 = vld [vmem:[%s287 + $0x60] sm:$0xf]
      %v346 = vld [vmem:[%s287 + $0x64] sm:$0xf]
      %v347 = vld [vmem:[%s287 + $0x68] sm:$0x1]
      %v348 = vld [vmem:[%s287 + $0x6c] sm:$0xf]
      %v349 = vld [vmem:[%s287 + $0x70] sm:$0xf]
      %v350 = vld [vmem:[%s287 + $0x74] sm:$0x1]
      %v351 = vld [vmem:[%s287 + $0x78] sm:$0xf]
      %v352 = vld [vmem:[%s287 + $0x7c] sm:$0xf]
      %v353 = vld [vmem:[%s287 + $0x80] sm:$0x1]
      %v354 = vld [vmem:[%s287 + $0x84] sm:$0xf]
      %v355 = vld [vmem:[%s287 + $0x88] sm:$0xf]
      %v356 = vld [vmem:[%s287 + $0x8c] sm:$0x1]
      %v357 = vld [vmem:[%s287 + $0x90] sm:$0xf]
      %v358 = vld [vmem:[%s287 + $0x94] sm:$0xf]
      %v359 = vld [vmem:[%s287 + $0x98] sm:$0x1]
      %v360 = vld [vmem:[%s287 + $0x9c] sm:$0xf]
      %v361 = vld [vmem:[%s287 + $0xa0] sm:$0xf]
      %v362 = vld [vmem:[%s287 + $0xa4] sm:$0x1]
      %v363 = vld [vmem:[%s287 + $0xa8] sm:$0xf]
      %v364 = vld [vmem:[%s287 + $0xac] sm:$0xf]
      %v365 = vld [vmem:[%s287 + $0xb0] sm:$0x1]
      %v366 = vld [vmem:[%s287 + $0xb4] sm:$0xf]
      %v367 = vld [vmem:[%s287 + $0xb8] sm:$0xf]
      %v368 = vld [vmem:[%s287 + $0xbc] sm:$0x1]
      %v369 = vld [vmem:[%s305] sm:$0xf]
      %v370 = vld [vmem:[%s305 + $0x4] sm:$0xf]
      %v371 = vld [vmem:[%s305 + $0x8] sm:$0x1]
      %v372 = vld [vmem:[%s305 + $0xc] sm:$0xf]
      %v373 = vld [vmem:[%s305 + $0x10] sm:$0xf]
      %v374 = vld [vmem:[%s305 + $0x14] sm:$0x1]
      %v375 = vld [vmem:[%s2] sm:$0xf]
      %v376 = vld [vmem:[%s2 + $0x4] sm:$0xf]
      %v377 = vld [vmem:[%s2 + $0x8] sm:$0xf]
      %v378 = vld [vmem:[%s2 + $0xc] sm:$0xf]
      %v379 = vld [vmem:[%s2 + $0x10] sm:$0xf]
      %v380 = vld [vmem:[%s2 + $0x14] sm:$0xf]
      %v381 = vld [vmem:[%s2 + $0x18] sm:$0xf]
      %v382 = vld [vmem:[%s2 + $0x1c] sm:$0xf]
      %v383 = vld [vmem:[%s2 + $0x20] sm:$0xf]
      %v384 = vld [vmem:[%s2 + $0x24] sm:$0xf]
      %v385 = vld [vmem:[%s2 + $0x28] sm:$0xf]
      %v386 = vld [vmem:[%s2 + $0x2c] sm:$0xf]
      %v387 = vld [vmem:[%s2 + $0x30] sm:$0xf]
      %v388 = vld [vmem:[%s2 + $0x34] sm:$0xf]
      %v389 = vld [vmem:[%s2 + $0x38] sm:$0xf]
      %v390 = vld [vmem:[%s2 + $0x3c] sm:$0xf]
      %vm391 = vsmask.f32 3328
      %vm392 = vsmask.f32 7440
      %vm393 = vmor %vm391, %vm392
      %v395 = vshrl.u32 %v321, 16
      %v397 = vrot.slane %v395, 4
      %v398 = vshll.u32 %v321, 16
      %v400 = vrot.slane %v398, 5
      %v401 = vor.u32 %v397, %v400
      %v402 = vrot.slane %v401, 4
      %v404 = vshll.u32 %v322, 16
      %v406 = vrot.slane %v404, 5
      %v407 = vsel %vm393, %v402, %v406
      %v408 = vshrl.u32 %v322, 16
      %v410 = vrot.slane %v408, 4
      %v411 = vor.u32 %v410, %v406
      %v412 = vrot.slane %v411, 4
      %v414 = vshll.u32 %v323, 16
      %v416 = vrot.slane %v414, 5
      %v417 = vsel %vm393, %v412, %v416
      %v419 = vshrl.u32 %v324, 16
      %v421 = vrot.slane %v419, 4
      %v422 = vshll.u32 %v324, 16
      %v424 = vrot.slane %v422, 5
      %v425 = vor.u32 %v421, %v424
      %v426 = vrot.slane %v425, 4
      %v428 = vshll.u32 %v325, 16
      %v430 = vrot.slane %v428, 5
      %v431 = vsel %vm393, %v426, %v430
      %v432 = vshrl.u32 %v325, 16
      %v434 = vrot.slane %v432, 4
      %v435 = vor.u32 %v434, %v430
      %v436 = vrot.slane %v435, 4
      %v438 = vshll.u32 %v326, 16
      %v440 = vrot.slane %v438, 5
      %v441 = vsel %vm393, %v436, %v440
      %v443 = vshrl.u32 %v327, 16
      %v445 = vrot.slane %v443, 4
      %v446 = vshll.u32 %v327, 16
      %v448 = vrot.slane %v446, 5
      %v449 = vor.u32 %v445, %v448
      %v450 = vrot.slane %v449, 4
      %v452 = vshll.u32 %v328, 16
      %v454 = vrot.slane %v452, 5
      %v455 = vsel %vm393, %v450, %v454
      %v456 = vshrl.u32 %v328, 16
      %v458 = vrot.slane %v456, 4
      %v459 = vor.u32 %v458, %v454
      %v460 = vrot.slane %v459, 4
      %v462 = vshll.u32 %v329, 16
      %v464 = vrot.slane %v462, 5
      %v465 = vsel %vm393, %v460, %v464
      %v467 = vshrl.u32 %v330, 16
      %v469 = vrot.slane %v467, 4
      %v470 = vshll.u32 %v330, 16
      %v472 = vrot.slane %v470, 5
      %v473 = vor.u32 %v469, %v472
      %v474 = vrot.slane %v473, 4
      %v476 = vshll.u32 %v331, 16
      %v478 = vrot.slane %v476, 5
      %v479 = vsel %vm393, %v474, %v478
      %v480 = vshrl.u32 %v331, 16
      %v482 = vrot.slane %v480, 4
      %v483 = vor.u32 %v482, %v478
      %v484 = vrot.slane %v483, 4
      %v486 = vshll.u32 %v332, 16
      %v488 = vrot.slane %v486, 5
      %v489 = vsel %vm393, %v484, %v488
      %v491 = vshrl.u32 %v333, 16
      %v493 = vrot.slane %v491, 4
      %v494 = vshll.u32 %v333, 16
      %v496 = vrot.slane %v494, 5
      %v497 = vor.u32 %v493, %v496
      %v498 = vrot.slane %v497, 4
      %v500 = vshll.u32 %v334, 16
      %v502 = vrot.slane %v500, 5
      %v503 = vsel %vm393, %v498, %v502
      %v504 = vshrl.u32 %v334, 16
      %v506 = vrot.slane %v504, 4
      %v507 = vor.u32 %v506, %v502
      %v508 = vrot.slane %v507, 4
      %v510 = vshll.u32 %v335, 16
      %v512 = vrot.slane %v510, 5
      %v513 = vsel %vm393, %v508, %v512
      %v515 = vshrl.u32 %v336, 16
      %v517 = vrot.slane %v515, 4
      %v518 = vshll.u32 %v336, 16
      %v520 = vrot.slane %v518, 5
      %v521 = vor.u32 %v517, %v520
      %v522 = vrot.slane %v521, 4
      %v524 = vshll.u32 %v337, 16
      %v526 = vrot.slane %v524, 5
      %v527 = vsel %vm393, %v522, %v526
      %v528 = vshrl.u32 %v337, 16
      %v530 = vrot.slane %v528, 4
      %v531 = vor.u32 %v530, %v526
      %v532 = vrot.slane %v531, 4
      %v534 = vshll.u32 %v338, 16
      %v536 = vrot.slane %v534, 5
      %v537 = vsel %vm393, %v532, %v536
      %v539 = vshrl.u32 %v339, 16
      %v541 = vrot.slane %v539, 4
      %v542 = vshll.u32 %v339, 16
      %v544 = vrot.slane %v542, 5
      %v545 = vor.u32 %v541, %v544
      %v546 = vrot.slane %v545, 4
      %v548 = vshll.u32 %v340, 16
      %v550 = vrot.slane %v548, 5
      %v551 = vsel %vm393, %v546, %v550
      %v552 = vshrl.u32 %v340, 16
      %v554 = vrot.slane %v552, 4
      %v555 = vor.u32 %v554, %v550
      %v556 = vrot.slane %v555, 4
      %v558 = vshll.u32 %v341, 16
      %v560 = vrot.slane %v558, 5
      %v561 = vsel %vm393, %v556, %v560
      %v563 = vshrl.u32 %v342, 16
      %v565 = vrot.slane %v563, 4
      %v566 = vshll.u32 %v342, 16
      %v568 = vrot.slane %v566, 5
      %v569 = vor.u32 %v565, %v568
      %v570 = vrot.slane %v569, 4
      %v572 = vshll.u32 %v343, 16
      %v574 = vrot.slane %v572, 5
      %v575 = vsel %vm393, %v570, %v574
      %v576 = vshrl.u32 %v343, 16
      %v578 = vrot.slane %v576, 4
      %v579 = vor.u32 %v578, %v574
      %v580 = vrot.slane %v579, 4
      %v582 = vshll.u32 %v344, 16
      %v584 = vrot.slane %v582, 5
      %v585 = vsel %vm393, %v580, %v584
      %v587 = vshrl.u32 %v345, 16
      %v589 = vrot.slane %v587, 4
      %v590 = vshll.u32 %v345, 16
      %v592 = vrot.slane %v590, 5
      %v593 = vor.u32 %v589, %v592
      %v594 = vrot.slane %v593, 4
      %v596 = vshll.u32 %v346, 16
      %v598 = vrot.slane %v596, 5
      %v599 = vsel %vm393, %v594, %v598
      %v600 = vshrl.u32 %v346, 16
      %v602 = vrot.slane %v600, 4
      %v603 = vor.u32 %v602, %v598
      %v604 = vrot.slane %v603, 4
      %v606 = vshll.u32 %v347, 16
      %v608 = vrot.slane %v606, 5
      %v609 = vsel %vm393, %v604, %v608
      %v611 = vshrl.u32 %v348, 16
      %v613 = vrot.slane %v611, 4
      %v614 = vshll.u32 %v348, 16
      %v616 = vrot.slane %v614, 5
      %v617 = vor.u32 %v613, %v616
      %v618 = vrot.slane %v617, 4
      %v620 = vshll.u32 %v349, 16
      %v622 = vrot.slane %v620, 5
      %v623 = vsel %vm393, %v618, %v622
      %v624 = vshrl.u32 %v349, 16
      %v626 = vrot.slane %v624, 4
      %v627 = vor.u32 %v626, %v622
      %v628 = vrot.slane %v627, 4
      %v630 = vshll.u32 %v350, 16
      %v632 = vrot.slane %v630, 5
      %v633 = vsel %vm393, %v628, %v632
      %v635 = vshrl.u32 %v351, 16
      %v637 = vrot.slane %v635, 4
      %v638 = vshll.u32 %v351, 16
      %v640 = vrot.slane %v638, 5
      %v641 = vor.u32 %v637, %v640
      %v642 = vrot.slane %v641, 4
      %v644 = vshll.u32 %v352, 16
      %v646 = vrot.slane %v644, 5
      %v647 = vsel %vm393, %v642, %v646
      %v648 = vshrl.u32 %v352, 16
      %v650 = vrot.slane %v648, 4
      %v651 = vor.u32 %v650, %v646
      %v652 = vrot.slane %v651, 4
      %v654 = vshll.u32 %v353, 16
      %v656 = vrot.slane %v654, 5
      %v657 = vsel %vm393, %v652, %v656
      %v659 = vshrl.u32 %v354, 16
      %v661 = vrot.slane %v659, 4
      %v662 = vshll.u32 %v354, 16
      %v664 = vrot.slane %v662, 5
      %v665 = vor.u32 %v661, %v664
      %v666 = vrot.slane %v665, 4
      %v668 = vshll.u32 %v355, 16
      %v670 = vrot.slane %v668, 5
      %v671 = vsel %vm393, %v666, %v670
      %v672 = vshrl.u32 %v355, 16
      %v674 = vrot.slane %v672, 4
      %v675 = vor.u32 %v674, %v670
      %v676 = vrot.slane %v675, 4
      %v678 = vshll.u32 %v356, 16
      %v680 = vrot.slane %v678, 5
      %v681 = vsel %vm393, %v676, %v680
      %v683 = vshrl.u32 %v357, 16
      %v685 = vrot.slane %v683, 4
      %v686 = vshll.u32 %v357, 16
      %v688 = vrot.slane %v686, 5
      %v689 = vor.u32 %v685, %v688
      %v690 = vrot.slane %v689, 4
      %v692 = vshll.u32 %v358, 16
      %v694 = vrot.slane %v692, 5
      %v695 = vsel %vm393, %v690, %v694
      %v696 = vshrl.u32 %v358, 16
      %v698 = vrot.slane %v696, 4
      %v699 = vor.u32 %v698, %v694
      %v700 = vrot.slane %v699, 4
      %v702 = vshll.u32 %v359, 16
      %v704 = vrot.slane %v702, 5
      %v705 = vsel %vm393, %v700, %v704
      %v707 = vshrl.u32 %v360, 16
      %v709 = vrot.slane %v707, 4
      %v710 = vshll.u32 %v360, 16
      %v712 = vrot.slane %v710, 5
      %v713 = vor.u32 %v709, %v712
      %v714 = vrot.slane %v713, 4
      %v716 = vshll.u32 %v361, 16
      %v718 = vrot.slane %v716, 5
      %v719 = vsel %vm393, %v714, %v718
      %v720 = vshrl.u32 %v361, 16
      %v722 = vrot.slane %v720, 4
      %v723 = vor.u32 %v722, %v718
      %v724 = vrot.slane %v723, 4
      %v726 = vshll.u32 %v362, 16
      %v728 = vrot.slane %v726, 5
      %v729 = vsel %vm393, %v724, %v728
      %v731 = vshrl.u32 %v363, 16
      %v733 = vrot.slane %v731, 4
      %v734 = vshll.u32 %v363, 16
      %v736 = vrot.slane %v734, 5
      %v737 = vor.u32 %v733, %v736
      %v738 = vrot.slane %v737, 4
      %v740 = vshll.u32 %v364, 16
      %v742 = vrot.slane %v740, 5
      %v743 = vsel %vm393, %v738, %v742
      %v744 = vshrl.u32 %v364, 16
      %v746 = vrot.slane %v744, 4
      %v747 = vor.u32 %v746, %v742
      %v748 = vrot.slane %v747, 4
      %v750 = vshll.u32 %v365, 16
      %v752 = vrot.slane %v750, 5
      %v753 = vsel %vm393, %v748, %v752
      %v755 = vshrl.u32 %v366, 16
      %v757 = vrot.slane %v755, 4
      %v758 = vshll.u32 %v366, 16
      %v760 = vrot.slane %v758, 5
      %v761 = vor.u32 %v757, %v760
      %v762 = vrot.slane %v761, 4
      %v764 = vshll.u32 %v367, 16
      %v766 = vrot.slane %v764, 5
      %v767 = vsel %vm393, %v762, %v766
      %v768 = vshrl.u32 %v367, 16
      %v770 = vrot.slane %v768, 4
      %v771 = vor.u32 %v770, %v766
      %v772 = vrot.slane %v771, 4
      %v774 = vshll.u32 %v368, 16
      %v776 = vrot.slane %v774, 5
      %v777 = vsel %vm393, %v772, %v776
      %s778 = scalar_lea.vmem %s2, 64
      %v779 = vld [vmem:[%s778] sm:$0xf]
      %v780 = vld [vmem:[%s778 + $0x4] sm:$0xf]
      %v781 = vld [vmem:[%s778 + $0x8] sm:$0xf]
      %v782 = vld [vmem:[%s778 + $0xc] sm:$0xf]
      %v783 = vld [vmem:[%s778 + $0x10] sm:$0xf]
      %v784 = vld [vmem:[%s778 + $0x14] sm:$0xf]
      %v785 = vld [vmem:[%s778 + $0x18] sm:$0xf]
      %v786 = vld [vmem:[%s778 + $0x1c] sm:$0xf]
      %v787 = vld [vmem:[%s778 + $0x20] sm:$0xf]
      %v788 = vld [vmem:[%s778 + $0x24] sm:$0xf]
      %v789 = vld [vmem:[%s778 + $0x28] sm:$0xf]
      %v790 = vld [vmem:[%s778 + $0x2c] sm:$0xf]
      %v791 = vld [vmem:[%s778 + $0x30] sm:$0xf]
      %v792 = vld [vmem:[%s778 + $0x34] sm:$0xf]
      %v793 = vld [vmem:[%s778 + $0x38] sm:$0xf]
      %v794 = vld [vmem:[%s778 + $0x3c] sm:$0xf]
      %v795 = vunpack.c.l.b16 %v407
      %v796 = vunpack.c.l.b16 %v417
      %v797 = vunpack.c.l.b16 %v431
      %v798 = vunpack.c.l.b16 %v441
      %v799 = vunpack.c.l.b16 %v455
      %v800 = vunpack.c.l.b16 %v465
      %v801 = vunpack.c.l.b16 %v479
      %v802 = vunpack.c.l.b16 %v489
      %v803 = vunpack.c.l.b16 %v503
      %v804 = vunpack.c.l.b16 %v513
      %v805 = vunpack.c.l.b16 %v527
      %v806 = vunpack.c.l.b16 %v537
      %v807 = vunpack.c.l.b16 %v551
      %v808 = vunpack.c.l.b16 %v561
      %v809 = vunpack.c.l.b16 %v575
      %v810 = vunpack.c.l.b16 %v585
      %v811 = vunpack.c.l.b16 %v599
      %v812 = vunpack.c.l.b16 %v609
      %v813 = vunpack.c.l.b16 %v623
      %v814 = vunpack.c.l.b16 %v633
      %v815 = vunpack.c.l.b16 %v647
      %v816 = vunpack.c.l.b16 %v657
      %v817 = vunpack.c.l.b16 %v671
      %v818 = vunpack.c.l.b16 %v681
      %v819 = vunpack.c.l.b16 %v695
      %v820 = vunpack.c.l.b16 %v705
      %v821 = vunpack.c.l.b16 %v719
      %v822 = vunpack.c.l.b16 %v729
      %v823 = vunpack.c.l.b16 %v743
      %v824 = vunpack.c.l.b16 %v753
      %v825 = vunpack.c.l.b16 %v767
      %v826 = vunpack.c.l.b16 %v777
      %v827 = vpack.c.b16 %v796, %v795
      %v828 = vpack.c.b16 %v798, %v797
      %v829 = vpack.c.b16 %v800, %v799
      %v830 = vpack.c.b16 %v802, %v801
      %v831 = vpack.c.b16 %v804, %v803
      %v832 = vpack.c.b16 %v806, %v805
      %v833 = vpack.c.b16 %v808, %v807
      %v834 = vpack.c.b16 %v810, %v809
      %v835 = vpack.c.b16 %v812, %v811
      %v836 = vpack.c.b16 %v814, %v813
      %v837 = vpack.c.b16 %v816, %v815
      %v838 = vpack.c.b16 %v818, %v817
      %v839 = vpack.c.b16 %v820, %v819
      %v840 = vpack.c.b16 %v822, %v821
      %v841 = vpack.c.b16 %v824, %v823
      %v842 = vpack.c.b16 %v826, %v825
      %v875 = vunpack.c.l.b16 %v779
      %v876 = vunpack.c.l.b16 %v780
      %v877 = vunpack.c.l.b16 %v781
      %v878 = vunpack.c.l.b16 %v782
      %v879 = vunpack.c.l.b16 %v783
      %v880 = vunpack.c.l.b16 %v784
      %v881 = vunpack.c.l.b16 %v785
      %v882 = vunpack.c.l.b16 %v786
      %v883 = vunpack.c.l.b16 %v787
      %v884 = vunpack.c.l.b16 %v788
      %v885 = vunpack.c.l.b16 %v789
      %v886 = vunpack.c.l.b16 %v790
      %v887 = vunpack.c.l.b16 %v791
      %v888 = vunpack.c.l.b16 %v792
      %v889 = vunpack.c.l.b16 %v793
      %v890 = vunpack.c.l.b16 %v794
      %v891 = vpack.c.b16 %v876, %v875
      %v892 = vpack.c.b16 %v878, %v877
      %v893 = vpack.c.b16 %v880, %v879
      %v894 = vpack.c.b16 %v882, %v881
      %v895 = vpack.c.b16 %v884, %v883
      %v896 = vpack.c.b16 %v886, %v885
      %v897 = vpack.c.b16 %v888, %v887
      %v898 = vpack.c.b16 %v890, %v889
      %907 = vmatprep.subr.bf16.mxu0 0
      %908 = vmatpush1.bf16.msra.mxu0 %v891
      %909 = vmatprep.subr.bf16.mxu0 0
      %910 = vmatpush1.bf16.msra.mxu0 %v892
      %911 = vmatprep.subr.bf16.mxu0 0
      %912 = vmatpush1.bf16.msra.mxu0 %v893
      %913 = vmatprep.subr.bf16.mxu0 0
      %914 = vmatpush1.bf16.msra.mxu0 %v894
      %915 = vmatprep.subr.bf16.mxu0 0
      %916 = vmatpush1.bf16.msra.mxu0 %v895
      %917 = vmatprep.subr.bf16.mxu0 0
      %918 = vmatpush1.bf16.msra.mxu0 %v896
      %919 = vmatprep.subr.bf16.mxu0 0
      %920 = vmatpush1.bf16.msra.mxu0 %v897
      %921 = vmatprep.subr.bf16.mxu0 0
      %922 = vmatpush1.bf16.msra.mxu0 %v898
      %923 = vmatprep.subr.bf16.mxu0 0
      %924 = vmatpush1.bf16.msra.mxu0 0
      %925 = vmatprep.subr.bf16.mxu0 0
      %926 = vmatpush1.bf16.msra.mxu0 0
      %927 = vmatprep.subr.bf16.mxu0 0
      %928 = vmatpush1.bf16.msra.mxu0 0
      %929 = vmatprep.subr.bf16.mxu0 0
      %930 = vmatpush1.bf16.msra.mxu0 0
      %931 = vmatprep.subr.bf16.mxu0 0
      %932 = vmatpush1.bf16.msra.mxu0 0
      %933 = vmatprep.subr.bf16.mxu0 0
      %934 = vmatpush1.bf16.msra.mxu0 0
      %935 = vmatprep.subr.bf16.mxu0 0
      %936 = vmatpush1.bf16.msra.mxu0 0
      %937 = vmatprep.subr.bf16.mxu0 0
      %938 = vmatpush1.bf16.msra.mxu0 0
      %939 = vmatprep.mubr.bf16.mxu0 0
      %940 = vmatmul.mubr.bf16.gmra.mrb[0].mxu0 %v827
      %v941 = vpop.f32.mrb[0].mxu0
      %v942 = vadd.f32 0.0, %v941
      %v943 = vpop.f32.mrb[0].mxu0
      %v944 = vpop.f32.mrb[0].mxu0
      %v945 = vadd.f32 0.0, %v944
      %v946 = vpop.f32.mrb[0].mxu0
      %947 = vmatprep.mubr.bf16.mxu0 0
      %948 = vmatmul.mubr.bf16.gmra.mrb[0].mxu0 %v828
      %v949 = vpop.f32.mrb[0].mxu0
      %v950 = vadd.f32 0.0, %v949
      %v951 = vpop.f32.mrb[0].mxu0
      %v952 = vpop.f32.mrb[0].mxu0
      %v953 = vadd.f32 0.0, %v952
      %v954 = vpop.f32.mrb[0].mxu0
      %955 = vmatprep.mubr.bf16.mxu0 0
      %956 = vmatmul.mubr.bf16.gmra.mrb[0].mxu0 %v829
      %v957 = vpop.f32.mrb[0].mxu0
      %v958 = vadd.f32 0.0, %v957
      %v959 = vpop.f32.mrb[0].mxu0
      %v960 = vpop.f32.mrb[0].mxu0
      %v961 = vadd.f32 0.0, %v960
      %v962 = vpop.f32.mrb[0].mxu0
      %963 = vmatprep.mubr.bf16.mxu0 0
      %964 = vmatmul.mubr.bf16.gmra.mrb[0].mxu0 %v830
      %v965 = vpop.f32.mrb[0].mxu0
      %v966 = vadd.f32 0.0, %v965
      %v967 = vpop.f32.mrb[0].mxu0
      %v968 = vpop.f32.mrb[0].mxu0
      %v969 = vadd.f32 0.0, %v968
      %v970 = vpop.f32.mrb[0].mxu0
      %971 = vmatprep.mubr.bf16.mxu0 0
      %972 = vmatmul.mubr.bf16.gmra.mrb[0].mxu0 %v831
      %v973 = vpop.f32.mrb[0].mxu0
      %v974 = vadd.f32 0.0, %v973
      %v975 = vpop.f32.mrb[0].mxu0
      %v976 = vpop.f32.mrb[0].mxu0
      %v977 = vadd.f32 0.0, %v976
      %v978 = vpop.f32.mrb[0].mxu0
      %979 = vmatprep.mubr.bf16.mxu0 0
      %980 = vmatmul.mubr.bf16.gmra.mrb[0].mxu0 %v832
      %v981 = vpop.f32.mrb[0].mxu0
      %v982 = vadd.f32 0.0, %v981
      %v983 = vpop.f32.mrb[0].mxu0
      %v984 = vpop.f32.mrb[0].mxu0
      %v985 = vadd.f32 0.0, %v984
      %v986 = vpop.f32.mrb[0].mxu0
      %987 = vmatprep.mubr.bf16.mxu0 0
      %988 = vmatmul.mubr.bf16.gmra.mrb[0].mxu0 %v833
      %v989 = vpop.f32.mrb[0].mxu0
      %v990 = vadd.f32 0.0, %v989
      %v991 = vpop.f32.mrb[0].mxu0
      %v992 = vpop.f32.mrb[0].mxu0
      %v993 = vadd.f32 0.0, %v992
      %v994 = vpop.f32.mrb[0].mxu0
      %995 = vmatprep.mubr.bf16.mxu0 0
      %996 = vmatmul.mubr.bf16.gmra.mrb[0].mxu0 %v834
      %v997 = vpop.f32.mrb[0].mxu0
      %v998 = vadd.f32 0.0, %v997
      %v999 = vpop.f32.mrb[0].mxu0
      %v1000 = vpop.f32.mrb[0].mxu0
      %v1001 = vadd.f32 0.0, %v1000
      %v1002 = vpop.f32.mrb[0].mxu0
      %1003 = vmatprep.mubr.bf16.mxu0 0
      %1004 = vmatmul.mubr.bf16.gmra.mrb[0].mxu0 %v835
      %v1005 = vpop.f32.mrb[0].mxu0
      %v1006 = vadd.f32 0.0, %v1005
      %v1007 = vpop.f32.mrb[0].mxu0
      %v1008 = vpop.f32.mrb[0].mxu0
      %v1009 = vadd.f32 0.0, %v1008
      %v1010 = vpop.f32.mrb[0].mxu0
      %1011 = vmatprep.mubr.bf16.mxu0 0
      %1012 = vmatmul.mubr.bf16.gmra.mrb[0].mxu0 %v836
      %v1013 = vpop.f32.mrb[0].mxu0
      %v1014 = vadd.f32 0.0, %v1013
      %v1015 = vpop.f32.mrb[0].mxu0
      %v1016 = vpop.f32.mrb[0].mxu0
      %v1017 = vadd.f32 0.0, %v1016
      %v1018 = vpop.f32.mrb[0].mxu0
      %1019 = vmatprep.mubr.bf16.mxu0 0
      %1020 = vmatmul.mubr.bf16.gmra.mrb[0].mxu0 %v837
      %v1021 = vpop.f32.mrb[0].mxu0
      %v1022 = vadd.f32 0.0, %v1021
      %v1023 = vpop.f32.mrb[0].mxu0
      %v1024 = vpop.f32.mrb[0].mxu0
      %v1025 = vadd.f32 0.0, %v1024
      %v1026 = vpop.f32.mrb[0].mxu0
      %1027 = vmatprep.mubr.bf16.mxu0 0
      %1028 = vmatmul.mubr.bf16.gmra.mrb[0].mxu0 %v838
      %v1029 = vpop.f32.mrb[0].mxu0
      %v1030 = vadd.f32 0.0, %v1029
      %v1031 = vpop.f32.mrb[0].mxu0
      %v1032 = vpop.f32.mrb[0].mxu0
      %v1033 = vadd.f32 0.0, %v1032
      %v1034 = vpop.f32.mrb[0].mxu0
      %1035 = vmatprep.mubr.bf16.mxu0 0
      %1036 = vmatmul.mubr.bf16.gmra.mrb[0].mxu0 %v839
      %v1037 = vpop.f32.mrb[0].mxu0
      %v1038 = vadd.f32 0.0, %v1037
      %v1039 = vpop.f32.mrb[0].mxu0
      %v1040 = vpop.f32.mrb[0].mxu0
      %v1041 = vadd.f32 0.0, %v1040
      %v1042 = vpop.f32.mrb[0].mxu0
      %1043 = vmatprep.mubr.bf16.mxu0 0
      %1044 = vmatmul.mubr.bf16.gmra.mrb[0].mxu0 %v840
      %v1045 = vpop.f32.mrb[0].mxu0
      %v1046 = vadd.f32 0.0, %v1045
      %v1047 = vpop.f32.mrb[0].mxu0
      %v1048 = vpop.f32.mrb[0].mxu0
      %v1049 = vadd.f32 0.0, %v1048
      %v1050 = vpop.f32.mrb[0].mxu0
      %1051 = vmatprep.mubr.bf16.mxu0 0
      %1052 = vmatmul.mubr.bf16.gmra.mrb[0].mxu0 %v841
      %v1053 = vpop.f32.mrb[0].mxu0
      %v1054 = vadd.f32 0.0, %v1053
      %v1055 = vpop.f32.mrb[0].mxu0
      %v1056 = vpop.f32.mrb[0].mxu0
      %v1057 = vadd.f32 0.0, %v1056
      %v1058 = vpop.f32.mrb[0].mxu0
      %1059 = vmatprep.mubr.bf16.mxu0 0
      %1060 = vmatmul.mubr.bf16.gmra.mrb[0].mxu0 %v842
      %v1061 = vpop.f32.mrb[0].mxu0
      %v1062 = vadd.f32 0.0, %v1061
      %v1063 = vpop.f32.mrb[0].mxu0
      %v1064 = vpop.f32.mrb[0].mxu0
      %v1065 = vadd.f32 0.0, %v1064
      %v1066 = vpop.f32.mrb[0].mxu0
      %1067 = vdwg.mxu0
      %v1100 = vunpack.c.l.b16 %v321
      %v1101 = vunpack.c.l.b16 %v322
      %v1102 = vunpack.c.l.b16 %v324
      %v1103 = vunpack.c.l.b16 %v325
      %v1104 = vunpack.c.l.b16 %v327
      %v1105 = vunpack.c.l.b16 %v328
      %v1106 = vunpack.c.l.b16 %v330
      %v1107 = vunpack.c.l.b16 %v331
      %v1108 = vunpack.c.l.b16 %v333
      %v1109 = vunpack.c.l.b16 %v334
      %v1110 = vunpack.c.l.b16 %v336
      %v1111 = vunpack.c.l.b16 %v337
      %v1112 = vunpack.c.l.b16 %v339
      %v1113 = vunpack.c.l.b16 %v340
      %v1114 = vunpack.c.l.b16 %v342
      %v1115 = vunpack.c.l.b16 %v343
      %v1116 = vunpack.c.l.b16 %v345
      %v1117 = vunpack.c.l.b16 %v346
      %v1118 = vunpack.c.l.b16 %v348
      %v1119 = vunpack.c.l.b16 %v349
      %v1120 = vunpack.c.l.b16 %v351
      %v1121 = vunpack.c.l.b16 %v352
      %v1122 = vunpack.c.l.b16 %v354
      %v1123 = vunpack.c.l.b16 %v355
      %v1124 = vunpack.c.l.b16 %v357
      %v1125 = vunpack.c.l.b16 %v358
      %v1126 = vunpack.c.l.b16 %v360
      %v1127 = vunpack.c.l.b16 %v361
      %v1128 = vunpack.c.l.b16 %v363
      %v1129 = vunpack.c.l.b16 %v364
      %v1130 = vunpack.c.l.b16 %v366
      %v1131 = vunpack.c.l.b16 %v367
      %v1132 = vpack.c.b16 %v1101, %v1100
      %v1133 = vpack.c.b16 %v1103, %v1102
      %v1134 = vpack.c.b16 %v1105, %v1104
      %v1135 = vpack.c.b16 %v1107, %v1106
      %v1136 = vpack.c.b16 %v1109, %v1108
      %v1137 = vpack.c.b16 %v1111, %v1110
      %v1138 = vpack.c.b16 %v1113, %v1112
      %v1139 = vpack.c.b16 %v1115, %v1114
      %v1140 = vpack.c.b16 %v1117, %v1116
      %v1141 = vpack.c.b16 %v1119, %v1118
      %v1142 = vpack.c.b16 %v1121, %v1120
      %v1143 = vpack.c.b16 %v1123, %v1122
      %v1144 = vpack.c.b16 %v1125, %v1124
      %v1145 = vpack.c.b16 %v1127, %v1126
      %v1146 = vpack.c.b16 %v1129, %v1128
      %v1147 = vpack.c.b16 %v1131, %v1130
      %v1180 = vunpack.c.l.b16 %v375
      %v1181 = vunpack.c.l.b16 %v376
      %v1182 = vunpack.c.l.b16 %v377
      %v1183 = vunpack.c.l.b16 %v378
      %v1184 = vunpack.c.l.b16 %v379
      %v1185 = vunpack.c.l.b16 %v380
      %v1186 = vunpack.c.l.b16 %v381
      %v1187 = vunpack.c.l.b16 %v382
      %v1188 = vunpack.c.l.b16 %v383
      %v1189 = vunpack.c.l.b16 %v384
      %v1190 = vunpack.c.l.b16 %v385
      %v1191 = vunpack.c.l.b16 %v386
      %v1192 = vunpack.c.l.b16 %v387
      %v1193 = vunpack.c.l.b16 %v388
      %v1194 = vunpack.c.l.b16 %v389
      %v1195 = vunpack.c.l.b16 %v390
      %v1196 = vpack.c.b16 %v1181, %v1180
      %v1197 = vpack.c.b16 %v1183, %v1182
      %v1198 = vpack.c.b16 %v1185, %v1184
      %v1199 = vpack.c.b16 %v1187, %v1186
      %v1200 = vpack.c.b16 %v1189, %v1188
      %v1201 = vpack.c.b16 %v1191, %v1190
      %v1202 = vpack.c.b16 %v1193, %v1192
      %v1203 = vpack.c.b16 %v1195, %v1194
      %1212 = vmatprep.subr.bf16.mxu0 0
      %1213 = vmatpush1.bf16.msra.mxu0 %v1196
      %1214 = vmatprep.subr.bf16.mxu0 0
      %1215 = vmatpush1.bf16.msra.mxu0 %v1197
      %1216 = vmatprep.subr.bf16.mxu0 0
      %1217 = vmatpush1.bf16.msra.mxu0 %v1198
      %1218 = vmatprep.subr.bf16.mxu0 0
      %1219 = vmatpush1.bf16.msra.mxu0 %v1199
      %1220 = vmatprep.subr.bf16.mxu0 0
      %1221 = vmatpush1.bf16.msra.mxu0 %v1200
      %1222 = vmatprep.subr.bf16.mxu0 0
      %1223 = vmatpush1.bf16.msra.mxu0 %v1201
      %1224 = vmatprep.subr.bf16.mxu0 0
      %1225 = vmatpush1.bf16.msra.mxu0 %v1202
      %1226 = vmatprep.subr.bf16.mxu0 0
      %1227 = vmatpush1.bf16.msra.mxu0 %v1203
      %1228 = vmatprep.subr.bf16.mxu0 0
      %1229 = vmatpush1.bf16.msra.mxu0 0
      %1230 = vmatprep.subr.bf16.mxu0 0
      %1231 = vmatpush1.bf16.msra.mxu0 0
      %1232 = vmatprep.subr.bf16.mxu0 0
      %1233 = vmatpush1.bf16.msra.mxu0 0
      %1234 = vmatprep.subr.bf16.mxu0 0
      %1235 = vmatpush1.bf16.msra.mxu0 0
      %1236 = vmatprep.subr.bf16.mxu0 0
      %1237 = vmatpush1.bf16.msra.mxu0 0
      %1238 = vmatprep.subr.bf16.mxu0 0
      %1239 = vmatpush1.bf16.msra.mxu0 0
      %1240 = vmatprep.subr.bf16.mxu0 0
      %1241 = vmatpush1.bf16.msra.mxu0 0
      %1242 = vmatprep.subr.bf16.mxu0 0
      %1243 = vmatpush1.bf16.msra.mxu0 0
      %1244 = vmatprep.mubr.bf16.mxu0 0
      %1245 = vmatmul.mubr.bf16.gmra.mrb[0].mxu0 %v1132
      %v1246 = vpop.f32.mrb[0].mxu0
      %v1247 = vadd.f32 %v942, %v1246
      %v1248 = vpop.f32.mrb[0].mxu0
      %v1249 = vpop.f32.mrb[0].mxu0
      %v1250 = vadd.f32 %v945, %v1249
      %v1251 = vpop.f32.mrb[0].mxu0
      %1252 = vmatprep.mubr.bf16.mxu0 0
      %1253 = vmatmul.mubr.bf16.gmra.mrb[0].mxu0 %v1133
      %v1254 = vpop.f32.mrb[0].mxu0
      %v1255 = vadd.f32 %v950, %v1254
      %v1256 = vpop.f32.mrb[0].mxu0
      %v1257 = vpop.f32.mrb[0].mxu0
      %v1258 = vadd.f32 %v953, %v1257
      %v1259 = vpop.f32.mrb[0].mxu0
      %1260 = vmatprep.mubr.bf16.mxu0 0
      %1261 = vmatmul.mubr.bf16.gmra.mrb[0].mxu0 %v1134
      %v1262 = vpop.f32.mrb[0].mxu0
      %v1263 = vadd.f32 %v958, %v1262
      %v1264 = vpop.f32.mrb[0].mxu0
      %v1265 = vpop.f32.mrb[0].mxu0
      %v1266 = vadd.f32 %v961, %v1265
      %v1267 = vpop.f32.mrb[0].mxu0
      %1268 = vmatprep.mubr.bf16.mxu0 0
      %1269 = vmatmul.mubr.bf16.gmra.mrb[0].mxu0 %v1135
      %v1270 = vpop.f32.mrb[0].mxu0
      %v1271 = vadd.f32 %v966, %v1270
      %v1272 = vpop.f32.mrb[0].mxu0
      %v1273 = vpop.f32.mrb[0].mxu0
      %v1274 = vadd.f32 %v969, %v1273
      %v1275 = vpop.f32.mrb[0].mxu0
      %1276 = vmatprep.mubr.bf16.mxu0 0
      %1277 = vmatmul.mubr.bf16.gmra.mrb[0].mxu0 %v1136
      %v1278 = vpop.f32.mrb[0].mxu0
      %v1279 = vadd.f32 %v974, %v1278
      %v1280 = vpop.f32.mrb[0].mxu0
      %v1281 = vpop.f32.mrb[0].mxu0
      %v1282 = vadd.f32 %v977, %v1281
      %v1283 = vpop.f32.mrb[0].mxu0
      %1284 = vmatprep.mubr.bf16.mxu0 0
      %1285 = vmatmul.mubr.bf16.gmra.mrb[0].mxu0 %v1137
      %v1286 = vpop.f32.mrb[0].mxu0
      %v1287 = vadd.f32 %v982, %v1286
      %v1288 = vpop.f32.mrb[0].mxu0
      %v1289 = vpop.f32.mrb[0].mxu0
      %v1290 = vadd.f32 %v985, %v1289
      %v1291 = vpop.f32.mrb[0].mxu0
      %1292 = vmatprep.mubr.bf16.mxu0 0
      %1293 = vmatmul.mubr.bf16.gmra.mrb[0].mxu0 %v1138
      %v1294 = vpop.f32.mrb[0].mxu0
      %v1295 = vadd.f32 %v990, %v1294
      %v1296 = vpop.f32.mrb[0].mxu0
      %v1297 = vpop.f32.mrb[0].mxu0
      %v1298 = vadd.f32 %v993, %v1297
      %v1299 = vpop.f32.mrb[0].mxu0
      %1300 = vmatprep.mubr.bf16.mxu0 0
      %1301 = vmatmul.mubr.bf16.gmra.mrb[0].mxu0 %v1139
      %v1302 = vpop.f32.mrb[0].mxu0
      %v1303 = vadd.f32 %v998, %v1302
      %v1304 = vpop.f32.mrb[0].mxu0
      %v1305 = vpop.f32.mrb[0].mxu0
      %v1306 = vadd.f32 %v1001, %v1305
      %v1307 = vpop.f32.mrb[0].mxu0
      %1308 = vmatprep.mubr.bf16.mxu0 0
      %1309 = vmatmul.mubr.bf16.gmra.mrb[0].mxu0 %v1140
      %v1310 = vpop.f32.mrb[0].mxu0
      %v1311 = vadd.f32 %v1006, %v1310
      %v1312 = vpop.f32.mrb[0].mxu0
      %v1313 = vpop.f32.mrb[0].mxu0
      %v1314 = vadd.f32 %v1009, %v1313
      %v1315 = vpop.f32.mrb[0].mxu0
      %1316 = vmatprep.mubr.bf16.mxu0 0
      %1317 = vmatmul.mubr.bf16.gmra.mrb[0].mxu0 %v1141
      %v1318 = vpop.f32.mrb[0].mxu0
      %v1319 = vadd.f32 %v1014, %v1318
      %v1320 = vpop.f32.mrb[0].mxu0
      %v1321 = vpop.f32.mrb[0].mxu0
      %v1322 = vadd.f32 %v1017, %v1321
      %v1323 = vpop.f32.mrb[0].mxu0
      %1324 = vmatprep.mubr.bf16.mxu0 0
      %1325 = vmatmul.mubr.bf16.gmra.mrb[0].mxu0 %v1142
      %v1326 = vpop.f32.mrb[0].mxu0
      %v1327 = vadd.f32 %v1022, %v1326
      %v1328 = vpop.f32.mrb[0].mxu0
      %v1329 = vpop.f32.mrb[0].mxu0
      %v1330 = vadd.f32 %v1025, %v1329
      %v1331 = vpop.f32.mrb[0].mxu0
      %1332 = vmatprep.mubr.bf16.mxu0 0
      %1333 = vmatmul.mubr.bf16.gmra.mrb[0].mxu0 %v1143
      %v1334 = vpop.f32.mrb[0].mxu0
      %v1335 = vadd.f32 %v1030, %v1334
      %v1336 = vpop.f32.mrb[0].mxu0
      %v1337 = vpop.f32.mrb[0].mxu0
      %v1338 = vadd.f32 %v1033, %v1337
      %v1339 = vpop.f32.mrb[0].mxu0
      %1340 = vmatprep.mubr.bf16.mxu0 0
      %1341 = vmatmul.mubr.bf16.gmra.mrb[0].mxu0 %v1144
      %v1342 = vpop.f32.mrb[0].mxu0
      %v1343 = vadd.f32 %v1038, %v1342
      %v1344 = vpop.f32.mrb[0].mxu0
      %v1345 = vpop.f32.mrb[0].mxu0
      %v1346 = vadd.f32 %v1041, %v1345
      %v1347 = vpop.f32.mrb[0].mxu0
      %1348 = vmatprep.mubr.bf16.mxu0 0
      %1349 = vmatmul.mubr.bf16.gmra.mrb[0].mxu0 %v1145
      %v1350 = vpop.f32.mrb[0].mxu0
      %v1351 = vadd.f32 %v1046, %v1350
      %v1352 = vpop.f32.mrb[0].mxu0
      %v1353 = vpop.f32.mrb[0].mxu0
      %v1354 = vadd.f32 %v1049, %v1353
      %v1355 = vpop.f32.mrb[0].mxu0
      %1356 = vmatprep.mubr.bf16.mxu0 0
      %1357 = vmatmul.mubr.bf16.gmra.mrb[0].mxu0 %v1146
      %v1358 = vpop.f32.mrb[0].mxu0
      %v1359 = vadd.f32 %v1054, %v1358
      %v1360 = vpop.f32.mrb[0].mxu0
      %v1361 = vpop.f32.mrb[0].mxu0
      %v1362 = vadd.f32 %v1057, %v1361
      %v1363 = vpop.f32.mrb[0].mxu0
      %1364 = vmatprep.mubr.bf16.mxu0 0
      %1365 = vmatmul.mubr.bf16.gmra.mrb[0].mxu0 %v1147
      %v1366 = vpop.f32.mrb[0].mxu0
      %v1367 = vadd.f32 %v1062, %v1366
      %v1368 = vpop.f32.mrb[0].mxu0
      %v1369 = vpop.f32.mrb[0].mxu0
      %v1370 = vadd.f32 %v1065, %v1369
      %v1371 = vpop.f32.mrb[0].mxu0
      %1372 = vdwg.mxu0
      %vm1389 = vcmask 1042432
      %vm1390 = vcmask 1046532
      %vm1391 = vmor %vm1389, %vm1390
      %v1392 = vrot.slane %v321, 5
      %v1393 = vrot.slane %v1392, 4
      %v1394 = vrot.slane %v322, 5
      %v1395 = vsel %vm1391, %v1393, %v1394
      %v1396 = vrot.slane %v1394, 4
      %v1397 = vrot.slane %v323, 5
      %v1398 = vsel %vm1391, %v1396, %v1397
      %v1399 = vrot.slane %v324, 5
      %v1400 = vrot.slane %v1399, 4
      %v1401 = vrot.slane %v325, 5
      %v1402 = vsel %vm1391, %v1400, %v1401
      %v1403 = vrot.slane %v1401, 4
      %v1404 = vrot.slane %v326, 5
      %v1405 = vsel %vm1391, %v1403, %v1404
      %v1406 = vrot.slane %v327, 5
      %v1407 = vrot.slane %v1406, 4
      %v1408 = vrot.slane %v328, 5
      %v1409 = vsel %vm1391, %v1407, %v1408
      %v1410 = vrot.slane %v1408, 4
      %v1411 = vrot.slane %v329, 5
      %v1412 = vsel %vm1391, %v1410, %v1411
      %v1413 = vrot.slane %v330, 5
      %v1414 = vrot.slane %v1413, 4
      %v1415 = vrot.slane %v331, 5
      %v1416 = vsel %vm1391, %v1414, %v1415
      %v1417 = vrot.slane %v1415, 4
      %v1418 = vrot.slane %v332, 5
      %v1419 = vsel %vm1391, %v1417, %v1418
      %v1420 = vrot.slane %v333, 5
      %v1421 = vrot.slane %v1420, 4
      %v1422 = vrot.slane %v334, 5
      %v1423 = vsel %vm1391, %v1421, %v1422
      %v1424 = vrot.slane %v1422, 4
      %v1425 = vrot.slane %v335, 5
      %v1426 = vsel %vm1391, %v1424, %v1425
      %v1427 = vrot.slane %v336, 5
      %v1428 = vrot.slane %v1427, 4
      %v1429 = vrot.slane %v337, 5
      %v1430 = vsel %vm1391, %v1428, %v1429
      %v1431 = vrot.slane %v1429, 4
      %v1432 = vrot.slane %v338, 5
      %v1433 = vsel %vm1391, %v1431, %v1432
      %v1434 = vrot.slane %v339, 5
      %v1435 = vrot.slane %v1434, 4
      %v1436 = vrot.slane %v340, 5
      %v1437 = vsel %vm1391, %v1435, %v1436
      %v1438 = vrot.slane %v1436, 4
      %v1439 = vrot.slane %v341, 5
      %v1440 = vsel %vm1391, %v1438, %v1439
      %v1441 = vrot.slane %v342, 5
      %v1442 = vrot.slane %v1441, 4
      %v1443 = vrot.slane %v343, 5
      %v1444 = vsel %vm1391, %v1442, %v1443
      %v1445 = vrot.slane %v1443, 4
      %v1446 = vrot.slane %v344, 5
      %v1447 = vsel %vm1391, %v1445, %v1446
      %v1448 = vrot.slane %v345, 5
      %v1449 = vrot.slane %v1448, 4
      %v1450 = vrot.slane %v346, 5
      %v1451 = vsel %vm1391, %v1449, %v1450
      %v1452 = vrot.slane %v1450, 4
      %v1453 = vrot.slane %v347, 5
      %v1454 = vsel %vm1391, %v1452, %v1453
      %v1455 = vrot.slane %v348, 5
      %v1456 = vrot.slane %v1455, 4
      %v1457 = vrot.slane %v349, 5
      %v1458 = vsel %vm1391, %v1456, %v1457
      %v1459 = vrot.slane %v1457, 4
      %v1460 = vrot.slane %v350, 5
      %v1461 = vsel %vm1391, %v1459, %v1460
      %v1462 = vrot.slane %v351, 5
      %v1463 = vrot.slane %v1462, 4
      %v1464 = vrot.slane %v352, 5
      %v1465 = vsel %vm1391, %v1463, %v1464
      %v1466 = vrot.slane %v1464, 4
      %v1467 = vrot.slane %v353, 5
      %v1468 = vsel %vm1391, %v1466, %v1467
      %v1469 = vrot.slane %v354, 5
      %v1470 = vrot.slane %v1469, 4
      %v1471 = vrot.slane %v355, 5
      %v1472 = vsel %vm1391, %v1470, %v1471
      %v1473 = vrot.slane %v1471, 4
      %v1474 = vrot.slane %v356, 5
      %v1475 = vsel %vm1391, %v1473, %v1474
      %v1476 = vrot.slane %v357, 5
      %v1477 = vrot.slane %v1476, 4
      %v1478 = vrot.slane %v358, 5
      %v1479 = vsel %vm1391, %v1477, %v1478
      %v1480 = vrot.slane %v1478, 4
      %v1481 = vrot.slane %v359, 5
      %v1482 = vsel %vm1391, %v1480, %v1481
      %v1483 = vrot.slane %v360, 5
      %v1484 = vrot.slane %v1483, 4
      %v1485 = vrot.slane %v361, 5
      %v1486 = vsel %vm1391, %v1484, %v1485
      %v1487 = vrot.slane %v1485, 4
      %v1488 = vrot.slane %v362, 5
      %v1489 = vsel %vm1391, %v1487, %v1488
      %v1490 = vrot.slane %v363, 5
      %v1491 = vrot.slane %v1490, 4
      %v1492 = vrot.slane %v364, 5
      %v1493 = vsel %vm1391, %v1491, %v1492
      %v1494 = vrot.slane %v1492, 4
      %v1495 = vrot.slane %v365, 5
      %v1496 = vsel %vm1391, %v1494, %v1495
      %v1497 = vrot.slane %v366, 5
      %v1498 = vrot.slane %v1497, 4
      %v1499 = vrot.slane %v367, 5
      %v1500 = vsel %vm1391, %v1498, %v1499
      %v1501 = vrot.slane %v1499, 4
      %v1502 = vrot.slane %v368, 5
      %v1503 = vsel %vm1391, %v1501, %v1502
      %s1504 = scalar_lea.vmem %s2, 128
      %v1505 = vld [vmem:[%s1504] sm:$0xf]
      %v1506 = vld [vmem:[%s1504 + $0x4] sm:$0xf]
      %v1507 = vld [vmem:[%s1504 + $0x8] sm:$0xf]
      %v1508 = vld [vmem:[%s1504 + $0xc] sm:$0xf]
      %v1509 = vld [vmem:[%s1504 + $0x10] sm:$0xf]
      %v1510 = vld [vmem:[%s1504 + $0x14] sm:$0xf]
      %v1511 = vld [vmem:[%s1504 + $0x18] sm:$0xf]
      %v1512 = vld [vmem:[%s1504 + $0x1c] sm:$0xf]
      %v1513 = vld [vmem:[%s1504 + $0x20] sm:$0xf]
      %v1514 = vld [vmem:[%s1504 + $0x24] sm:$0xf]
      %v1515 = vld [vmem:[%s1504 + $0x28] sm:$0xf]
      %v1516 = vld [vmem:[%s1504 + $0x2c] sm:$0xf]
      %v1517 = vld [vmem:[%s1504 + $0x30] sm:$0xf]
      %v1518 = vld [vmem:[%s1504 + $0x34] sm:$0xf]
      %v1519 = vld [vmem:[%s1504 + $0x38] sm:$0xf]
      %v1520 = vld [vmem:[%s1504 + $0x3c] sm:$0xf]
      %v1521 = vunpack.c.l.b16 %v1395
      %v1522 = vunpack.c.l.b16 %v1398
      %v1523 = vunpack.c.l.b16 %v1402
      %v1524 = vunpack.c.l.b16 %v1405
      %v1525 = vunpack.c.l.b16 %v1409
      %v1526 = vunpack.c.l.b16 %v1412
      %v1527 = vunpack.c.l.b16 %v1416
      %v1528 = vunpack.c.l.b16 %v1419
      %v1529 = vunpack.c.l.b16 %v1423
      %v1530 = vunpack.c.l.b16 %v1426
      %v1531 = vunpack.c.l.b16 %v1430
      %v1532 = vunpack.c.l.b16 %v1433
      %v1533 = vunpack.c.l.b16 %v1437
      %v1534 = vunpack.c.l.b16 %v1440
      %v1535 = vunpack.c.l.b16 %v1444
      %v1536 = vunpack.c.l.b16 %v1447
      %v1537 = vunpack.c.l.b16 %v1451
      %v1538 = vunpack.c.l.b16 %v1454
      %v1539 = vunpack.c.l.b16 %v1458
      %v1540 = vunpack.c.l.b16 %v1461
      %v1541 = vunpack.c.l.b16 %v1465
      %v1542 = vunpack.c.l.b16 %v1468
      %v1543 = vunpack.c.l.b16 %v1472
      %v1544 = vunpack.c.l.b16 %v1475
      %v1545 = vunpack.c.l.b16 %v1479
      %v1546 = vunpack.c.l.b16 %v1482
      %v1547 = vunpack.c.l.b16 %v1486
      %v1548 = vunpack.c.l.b16 %v1489
      %v1549 = vunpack.c.l.b16 %v1493
      %v1550 = vunpack.c.l.b16 %v1496
      %v1551 = vunpack.c.l.b16 %v1500
      %v1552 = vunpack.c.l.b16 %v1503
      %v1553 = vpack.c.b16 %v1522, %v1521
      %v1554 = vpack.c.b16 %v1524, %v1523
      %v1555 = vpack.c.b16 %v1526, %v1525
      %v1556 = vpack.c.b16 %v1528, %v1527
      %v1557 = vpack.c.b16 %v1530, %v1529
      %v1558 = vpack.c.b16 %v1532, %v1531
      %v1559 = vpack.c.b16 %v1534, %v1533
      %v1560 = vpack.c.b16 %v1536, %v1535
      %v1561 = vpack.c.b16 %v1538, %v1537
      %v1562 = vpack.c.b16 %v1540, %v1539
      %v1563 = vpack.c.b16 %v1542, %v1541
      %v1564 = vpack.c.b16 %v1544, %v1543
      %v1565 = vpack.c.b16 %v1546, %v1545
      %v1566 = vpack.c.b16 %v1548, %v1547
      %v1567 = vpack.c.b16 %v1550, %v1549
      %v1568 = vpack.c.b16 %v1552, %v1551
      %v1601 = vunpack.c.l.b16 %v1505
      %v1602 = vunpack.c.l.b16 %v1506
      %v1603 = vunpack.c.l.b16 %v1507
      %v1604 = vunpack.c.l.b16 %v1508
      %v1605 = vunpack.c.l.b16 %v1509
      %v1606 = vunpack.c.l.b16 %v1510
      %v1607 = vunpack.c.l.b16 %v1511
      %v1608 = vunpack.c.l.b16 %v1512
      %v1609 = vunpack.c.l.b16 %v1513
      %v1610 = vunpack.c.l.b16 %v1514
      %v1611 = vunpack.c.l.b16 %v1515
      %v1612 = vunpack.c.l.b16 %v1516
      %v1613 = vunpack.c.l.b16 %v1517
      %v1614 = vunpack.c.l.b16 %v1518
      %v1615 = vunpack.c.l.b16 %v1519
      %v1616 = vunpack.c.l.b16 %v1520
      %v1617 = vpack.c.b16 %v1602, %v1601
      %v1618 = vpack.c.b16 %v1604, %v1603
      %v1619 = vpack.c.b16 %v1606, %v1605
      %v1620 = vpack.c.b16 %v1608, %v1607
      %v1621 = vpack.c.b16 %v1610, %v1609
      %v1622 = vpack.c.b16 %v1612, %v1611
      %v1623 = vpack.c.b16 %v1614, %v1613
      %v1624 = vpack.c.b16 %v1616, %v1615
      %1633 = vmatprep.subr.bf16.mxu0 0
      %1634 = vmatpush1.bf16.msra.mxu0 %v1617
      %1635 = vmatprep.subr.bf16.mxu0 0
      %1636 = vmatpush1.bf16.msra.mxu0 %v1618
      %1637 = vmatprep.subr.bf16.mxu0 0
      %1638 = vmatpush1.bf16.msra.mxu0 %v1619
      %1639 = vmatprep.subr.bf16.mxu0 0
      %1640 = vmatpush1.bf16.msra.mxu0 %v1620
      %1641 = vmatprep.subr.bf16.mxu0 0
      %1642 = vmatpush1.bf16.msra.mxu0 %v1621
      %1643 = vmatprep.subr.bf16.mxu0 0
      %1644 = vmatpush1.bf16.msra.mxu0 %v1622
      %1645 = vmatprep.subr.bf16.mxu0 0
      %1646 = vmatpush1.bf16.msra.mxu0 %v1623
      %1647 = vmatprep.subr.bf16.mxu0 0
      %1648 = vmatpush1.bf16.msra.mxu0 %v1624
      %1649 = vmatprep.subr.bf16.mxu0 0
      %1650 = vmatpush1.bf16.msra.mxu0 0
      %1651 = vmatprep.subr.bf16.mxu0 0
      %1652 = vmatpush1.bf16.msra.mxu0 0
      %1653 = vmatprep.subr.bf16.mxu0 0
      %1654 = vmatpush1.bf16.msra.mxu0 0
      %1655 = vmatprep.subr.bf16.mxu0 0
      %1656 = vmatpush1.bf16.msra.mxu0 0
      %1657 = vmatprep.subr.bf16.mxu0 0
      %1658 = vmatpush1.bf16.msra.mxu0 0
      %1659 = vmatprep.subr.bf16.mxu0 0
      %1660 = vmatpush1.bf16.msra.mxu0 0
      %1661 = vmatprep.subr.bf16.mxu0 0
      %1662 = vmatpush1.bf16.msra.mxu0 0
      %1663 = vmatprep.subr.bf16.mxu0 0
      %1664 = vmatpush1.bf16.msra.mxu0 0
      %1665 = vmatprep.mubr.bf16.mxu0 0
      %1666 = vmatmul.mubr.bf16.gmra.mrb[0].mxu0 %v1553
      %v1667 = vpop.f32.mrb[0].mxu0
      %v1668 = vadd.f32 0.0, %v1667
      %v1669 = vpop.f32.mrb[0].mxu0
      %v1670 = vpop.f32.mrb[0].mxu0
      %v1671 = vadd.f32 0.0, %v1670
      %v1672 = vpop.f32.mrb[0].mxu0
      %1673 = vmatprep.mubr.bf16.mxu0 0
      %1674 = vmatmul.mubr.bf16.gmra.mrb[0].mxu0 %v1554
      %v1675 = vpop.f32.mrb[0].mxu0
      %v1676 = vadd.f32 0.0, %v1675
      %v1677 = vpop.f32.mrb[0].mxu0
      %v1678 = vpop.f32.mrb[0].mxu0
      %v1679 = vadd.f32 0.0, %v1678
      %v1680 = vpop.f32.mrb[0].mxu0
      %1681 = vmatprep.mubr.bf16.mxu0 0
      %1682 = vmatmul.mubr.bf16.gmra.mrb[0].mxu0 %v1555
      %v1683 = vpop.f32.mrb[0].mxu0
      %v1684 = vadd.f32 0.0, %v1683
      %v1685 = vpop.f32.mrb[0].mxu0
      %v1686 = vpop.f32.mrb[0].mxu0
      %v1687 = vadd.f32 0.0, %v1686
      %v1688 = vpop.f32.mrb[0].mxu0
      %1689 = vmatprep.mubr.bf16.mxu0 0
      %1690 = vmatmul.mubr.bf16.gmra.mrb[0].mxu0 %v1556
      %v1691 = vpop.f32.mrb[0].mxu0
      %v1692 = vadd.f32 0.0, %v1691
      %v1693 = vpop.f32.mrb[0].mxu0
      %v1694 = vpop.f32.mrb[0].mxu0
      %v1695 = vadd.f32 0.0, %v1694
      %v1696 = vpop.f32.mrb[0].mxu0
      %1697 = vmatprep.mubr.bf16.mxu0 0
      %1698 = vmatmul.mubr.bf16.gmra.mrb[0].mxu0 %v1557
      %v1699 = vpop.f32.mrb[0].mxu0
      %v1700 = vadd.f32 0.0, %v1699
      %v1701 = vpop.f32.mrb[0].mxu0
      %v1702 = vpop.f32.mrb[0].mxu0
      %v1703 = vadd.f32 0.0, %v1702
      %v1704 = vpop.f32.mrb[0].mxu0
      %1705 = vmatprep.mubr.bf16.mxu0 0
      %1706 = vmatmul.mubr.bf16.gmra.mrb[0].mxu0 %v1558
      %v1707 = vpop.f32.mrb[0].mxu0
      %v1708 = vadd.f32 0.0, %v1707
      %v1709 = vpop.f32.mrb[0].mxu0
      %v1710 = vpop.f32.mrb[0].mxu0
      %v1711 = vadd.f32 0.0, %v1710
      %v1712 = vpop.f32.mrb[0].mxu0
      %1713 = vmatprep.mubr.bf16.mxu0 0
      %1714 = vmatmul.mubr.bf16.gmra.mrb[0].mxu0 %v1559
      %v1715 = vpop.f32.mrb[0].mxu0
      %v1716 = vadd.f32 0.0, %v1715
      %v1717 = vpop.f32.mrb[0].mxu0
      %v1718 = vpop.f32.mrb[0].mxu0
      %v1719 = vadd.f32 0.0, %v1718
      %v1720 = vpop.f32.mrb[0].mxu0
      %1721 = vmatprep.mubr.bf16.mxu0 0
      %1722 = vmatmul.mubr.bf16.gmra.mrb[0].mxu0 %v1560
      %v1723 = vpop.f32.mrb[0].mxu0
      %v1724 = vadd.f32 0.0, %v1723
      %v1725 = vpop.f32.mrb[0].mxu0
      %v1726 = vpop.f32.mrb[0].mxu0
      %v1727 = vadd.f32 0.0, %v1726
      %v1728 = vpop.f32.mrb[0].mxu0
      %1729 = vmatprep.mubr.bf16.mxu0 0
      %1730 = vmatmul.mubr.bf16.gmra.mrb[0].mxu0 %v1561
      %v1731 = vpop.f32.mrb[0].mxu0
      %v1732 = vadd.f32 0.0, %v1731
      %v1733 = vpop.f32.mrb[0].mxu0
      %v1734 = vpop.f32.mrb[0].mxu0
      %v1735 = vadd.f32 0.0, %v1734
      %v1736 = vpop.f32.mrb[0].mxu0
      %1737 = vmatprep.mubr.bf16.mxu0 0
      %1738 = vmatmul.mubr.bf16.gmra.mrb[0].mxu0 %v1562
      %v1739 = vpop.f32.mrb[0].mxu0
      %v1740 = vadd.f32 0.0, %v1739
      %v1741 = vpop.f32.mrb[0].mxu0
      %v1742 = vpop.f32.mrb[0].mxu0
      %v1743 = vadd.f32 0.0, %v1742
      %v1744 = vpop.f32.mrb[0].mxu0
      %1745 = vmatprep.mubr.bf16.mxu0 0
      %1746 = vmatmul.mubr.bf16.gmra.mrb[0].mxu0 %v1563
      %v1747 = vpop.f32.mrb[0].mxu0
      %v1748 = vadd.f32 0.0, %v1747
      %v1749 = vpop.f32.mrb[0].mxu0
      %v1750 = vpop.f32.mrb[0].mxu0
      %v1751 = vadd.f32 0.0, %v1750
      %v1752 = vpop.f32.mrb[0].mxu0
      %1753 = vmatprep.mubr.bf16.mxu0 0
      %1754 = vmatmul.mubr.bf16.gmra.mrb[0].mxu0 %v1564
      %v1755 = vpop.f32.mrb[0].mxu0
      %v1756 = vadd.f32 0.0, %v1755
      %v1757 = vpop.f32.mrb[0].mxu0
      %v1758 = vpop.f32.mrb[0].mxu0
      %v1759 = vadd.f32 0.0, %v1758
      %v1760 = vpop.f32.mrb[0].mxu0
      %1761 = vmatprep.mubr.bf16.mxu0 0
      %1762 = vmatmul.mubr.bf16.gmra.mrb[0].mxu0 %v1565
      %v1763 = vpop.f32.mrb[0].mxu0
      %v1764 = vadd.f32 0.0, %v1763
      %v1765 = vpop.f32.mrb[0].mxu0
      %v1766 = vpop.f32.mrb[0].mxu0
      %v1767 = vadd.f32 0.0, %v1766
      %v1768 = vpop.f32.mrb[0].mxu0
      %1769 = vmatprep.mubr.bf16.mxu0 0
      %1770 = vmatmul.mubr.bf16.gmra.mrb[0].mxu0 %v1566
      %v1771 = vpop.f32.mrb[0].mxu0
      %v1772 = vadd.f32 0.0, %v1771
      %v1773 = vpop.f32.mrb[0].mxu0
      %v1774 = vpop.f32.mrb[0].mxu0
      %v1775 = vadd.f32 0.0, %v1774
      %v1776 = vpop.f32.mrb[0].mxu0
      %1777 = vmatprep.mubr.bf16.mxu0 0
      %1778 = vmatmul.mubr.bf16.gmra.mrb[0].mxu0 %v1567
      %v1779 = vpop.f32.mrb[0].mxu0
      %v1780 = vadd.f32 0.0, %v1779
      %v1781 = vpop.f32.mrb[0].mxu0
      %v1782 = vpop.f32.mrb[0].mxu0
      %v1783 = vadd.f32 0.0, %v1782
      %v1784 = vpop.f32.mrb[0].mxu0
      %1785 = vmatprep.mubr.bf16.mxu0 0
      %1786 = vmatmul.mubr.bf16.gmra.mrb[0].mxu0 %v1568
      %v1787 = vpop.f32.mrb[0].mxu0
      %v1788 = vadd.f32 0.0, %v1787
      %v1789 = vpop.f32.mrb[0].mxu0
      %v1790 = vpop.f32.mrb[0].mxu0
      %v1791 = vadd.f32 0.0, %v1790
      %v1792 = vpop.f32.mrb[0].mxu0
      %1793 = vdwg.mxu0
      %v1794 = vadd.f32 %v1247, %v1668
      %v1795 = vadd.f32 %v1250, %v1671
      %v1796 = vadd.f32 %v1255, %v1676
      %v1797 = vadd.f32 %v1258, %v1679
      %v1798 = vadd.f32 %v1263, %v1684
      %v1799 = vadd.f32 %v1266, %v1687
      %v1800 = vadd.f32 %v1271, %v1692
      %v1801 = vadd.f32 %v1274, %v1695
      %v1802 = vadd.f32 %v1279, %v1700
      %v1803 = vadd.f32 %v1282, %v1703
      %v1804 = vadd.f32 %v1287, %v1708
      %v1805 = vadd.f32 %v1290, %v1711
      %v1806 = vadd.f32 %v1295, %v1716
      %v1807 = vadd.f32 %v1298, %v1719
      %v1808 = vadd.f32 %v1303, %v1724
      %v1809 = vadd.f32 %v1306, %v1727
      %v1810 = vadd.f32 %v1311, %v1732
      %v1811 = vadd.f32 %v1314, %v1735
      %v1812 = vadd.f32 %v1319, %v1740
      %v1813 = vadd.f32 %v1322, %v1743
      %v1814 = vadd.f32 %v1327, %v1748
      %v1815 = vadd.f32 %v1330, %v1751
      %v1816 = vadd.f32 %v1335, %v1756
      %v1817 = vadd.f32 %v1338, %v1759
      %v1818 = vadd.f32 %v1343, %v1764
      %v1819 = vadd.f32 %v1346, %v1767
      %v1820 = vadd.f32 %v1351, %v1772
      %v1821 = vadd.f32 %v1354, %v1775
      %v1822 = vadd.f32 %v1359, %v1780
      %v1823 = vadd.f32 %v1362, %v1783
      %v1824 = vadd.f32 %v1367, %v1788
      %v1825 = vadd.f32 %v1370, %v1791
      %s1826 = scalar_lea.vmem %s2, 192
      %v1827 = vld [vmem:[%s1826] sm:$0xf]
      %v1828 = vld [vmem:[%s1826 + $0x4] sm:$0xf]
      %v1829 = vld [vmem:[%s1826 + $0x8] sm:$0xf]
      %v1830 = vld [vmem:[%s1826 + $0xc] sm:$0xf]
      %v1831 = vld [vmem:[%s1826 + $0x10] sm:$0xf]
      %v1832 = vld [vmem:[%s1826 + $0x14] sm:$0xf]
      %v1833 = vld [vmem:[%s1826 + $0x18] sm:$0xf]
      %v1834 = vld [vmem:[%s1826 + $0x1c] sm:$0xf]
      %v1835 = vld [vmem:[%s1826 + $0x20] sm:$0xf]
      %v1836 = vld [vmem:[%s1826 + $0x24] sm:$0xf]
      %v1837 = vld [vmem:[%s1826 + $0x28] sm:$0xf]
      %v1838 = vld [vmem:[%s1826 + $0x2c] sm:$0xf]
      %v1839 = vld [vmem:[%s1826 + $0x30] sm:$0xf]
      %v1840 = vld [vmem:[%s1826 + $0x34] sm:$0xf]
      %v1841 = vld [vmem:[%s1826 + $0x38] sm:$0xf]
      %v1842 = vld [vmem:[%s1826 + $0x3c] sm:$0xf]
      %v1845 = vunpack.c.l.b16 %v369
      %v1846 = vunpack.c.l.b16 %v370
      %v1847 = vpack.c.b16 %v1846, %v1845
      %v1865 = vunpack.c.l.b16 %v1827
      %v1866 = vunpack.c.l.b16 %v1828
      %v1867 = vunpack.c.l.b16 %v1829
      %v1868 = vunpack.c.l.b16 %v1830
      %v1869 = vunpack.c.l.b16 %v1831
      %v1870 = vunpack.c.l.b16 %v1832
      %v1871 = vunpack.c.l.b16 %v1833
      %v1872 = vunpack.c.l.b16 %v1834
      %v1873 = vunpack.c.l.b16 %v1835
      %v1874 = vunpack.c.l.b16 %v1836
      %v1875 = vunpack.c.l.b16 %v1837
      %v1876 = vunpack.c.l.b16 %v1838
      %v1877 = vunpack.c.l.b16 %v1839
      %v1878 = vunpack.c.l.b16 %v1840
      %v1879 = vunpack.c.l.b16 %v1841
      %v1880 = vunpack.c.l.b16 %v1842
      %v1881 = vpack.c.b16 %v1866, %v1865
      %v1882 = vpack.c.b16 %v1868, %v1867
      %v1883 = vpack.c.b16 %v1870, %v1869
      %v1884 = vpack.c.b16 %v1872, %v1871
      %v1885 = vpack.c.b16 %v1874, %v1873
      %v1886 = vpack.c.b16 %v1876, %v1875
      %v1887 = vpack.c.b16 %v1878, %v1877
      %v1888 = vpack.c.b16 %v1880, %v1879
      %1897 = vmatprep.subr.bf16.mxu0 0
      %1898 = vmatpush1.bf16.msra.mxu0 %v1881
      %1899 = vmatprep.subr.bf16.mxu0 0
      %1900 = vmatpush1.bf16.msra.mxu0 %v1882
      %1901 = vmatprep.subr.bf16.mxu0 0
      %1902 = vmatpush1.bf16.msra.mxu0 %v1883
      %1903 = vmatprep.subr.bf16.mxu0 0
      %1904 = vmatpush1.bf16.msra.mxu0 %v1884
      %1905 = vmatprep.subr.bf16.mxu0 0
      %1906 = vmatpush1.bf16.msra.mxu0 %v1885
      %1907 = vmatprep.subr.bf16.mxu0 0
      %1908 = vmatpush1.bf16.msra.mxu0 %v1886
      %1909 = vmatprep.subr.bf16.mxu0 0
      %1910 = vmatpush1.bf16.msra.mxu0 %v1887
      %1911 = vmatprep.subr.bf16.mxu0 0
      %1912 = vmatpush1.bf16.msra.mxu0 %v1888
      %1913 = vmatprep.subr.bf16.mxu0 0
      %1914 = vmatpush1.bf16.msra.mxu0 0
      %1915 = vmatprep.subr.bf16.mxu0 0
      %1916 = vmatpush1.bf16.msra.mxu0 0
      %1917 = vmatprep.subr.bf16.mxu0 0
      %1918 = vmatpush1.bf16.msra.mxu0 0
      %1919 = vmatprep.subr.bf16.mxu0 0
      %1920 = vmatpush1.bf16.msra.mxu0 0
      %1921 = vmatprep.subr.bf16.mxu0 0
      %1922 = vmatpush1.bf16.msra.mxu0 0
      %1923 = vmatprep.subr.bf16.mxu0 0
      %1924 = vmatpush1.bf16.msra.mxu0 0
      %1925 = vmatprep.subr.bf16.mxu0 0
      %1926 = vmatpush1.bf16.msra.mxu0 0
      %1927 = vmatprep.subr.bf16.mxu0 0
      %1928 = vmatpush1.bf16.msra.mxu0 0
      %1929 = vmatprep.mubr.bf16.mxu0 0
      %1930 = vmatmul.mubr.bf16.gmra.mrb[0].mxu0 %v1133
      %v1931 = vpop.f32.mrb[0].mxu0
      %v1932 = vadd.f32 0.0, %v1931
      %v1933 = vpop.f32.mrb[0].mxu0
      %v1934 = vpop.f32.mrb[0].mxu0
      %v1935 = vadd.f32 0.0, %v1934
      %v1936 = vpop.f32.mrb[0].mxu0
      %1937 = vmatprep.mubr.bf16.mxu0 0
      %1938 = vmatmul.mubr.bf16.gmra.mrb[0].mxu0 %v1134
      %v1939 = vpop.f32.mrb[0].mxu0
      %v1940 = vadd.f32 0.0, %v1939
      %v1941 = vpop.f32.mrb[0].mxu0
      %v1942 = vpop.f32.mrb[0].mxu0
      %v1943 = vadd.f32 0.0, %v1942
      %v1944 = vpop.f32.mrb[0].mxu0
      %1945 = vmatprep.mubr.bf16.mxu0 0
      %1946 = vmatmul.mubr.bf16.gmra.mrb[0].mxu0 %v1135
      %v1947 = vpop.f32.mrb[0].mxu0
      %v1948 = vadd.f32 0.0, %v1947
      %v1949 = vpop.f32.mrb[0].mxu0
      %v1950 = vpop.f32.mrb[0].mxu0
      %v1951 = vadd.f32 0.0, %v1950
      %v1952 = vpop.f32.mrb[0].mxu0
      %1953 = vmatprep.mubr.bf16.mxu0 0
      %1954 = vmatmul.mubr.bf16.gmra.mrb[0].mxu0 %v1136
      %v1955 = vpop.f32.mrb[0].mxu0
      %v1956 = vadd.f32 0.0, %v1955
      %v1957 = vpop.f32.mrb[0].mxu0
      %v1958 = vpop.f32.mrb[0].mxu0
      %v1959 = vadd.f32 0.0, %v1958
      %v1960 = vpop.f32.mrb[0].mxu0
      %1961 = vmatprep.mubr.bf16.mxu0 0
      %1962 = vmatmul.mubr.bf16.gmra.mrb[0].mxu0 %v1137
      %v1963 = vpop.f32.mrb[0].mxu0
      %v1964 = vadd.f32 0.0, %v1963
      %v1965 = vpop.f32.mrb[0].mxu0
      %v1966 = vpop.f32.mrb[0].mxu0
      %v1967 = vadd.f32 0.0, %v1966
      %v1968 = vpop.f32.mrb[0].mxu0
      %1969 = vmatprep.mubr.bf16.mxu0 0
      %1970 = vmatmul.mubr.bf16.gmra.mrb[0].mxu0 %v1138
      %v1971 = vpop.f32.mrb[0].mxu0
      %v1972 = vadd.f32 0.0, %v1971
      %v1973 = vpop.f32.mrb[0].mxu0
      %v1974 = vpop.f32.mrb[0].mxu0
      %v1975 = vadd.f32 0.0, %v1974
      %v1976 = vpop.f32.mrb[0].mxu0
      %1977 = vmatprep.mubr.bf16.mxu0 0
      %1978 = vmatmul.mubr.bf16.gmra.mrb[0].mxu0 %v1139
      %v1979 = vpop.f32.mrb[0].mxu0
      %v1980 = vadd.f32 0.0, %v1979
      %v1981 = vpop.f32.mrb[0].mxu0
      %v1982 = vpop.f32.mrb[0].mxu0
      %v1983 = vadd.f32 0.0, %v1982
      %v1984 = vpop.f32.mrb[0].mxu0
      %1985 = vmatprep.mubr.bf16.mxu0 0
      %1986 = vmatmul.mubr.bf16.gmra.mrb[0].mxu0 %v1140
      %v1987 = vpop.f32.mrb[0].mxu0
      %v1988 = vadd.f32 0.0, %v1987
      %v1989 = vpop.f32.mrb[0].mxu0
      %v1990 = vpop.f32.mrb[0].mxu0
      %v1991 = vadd.f32 0.0, %v1990
      %v1992 = vpop.f32.mrb[0].mxu0
      %1993 = vmatprep.mubr.bf16.mxu0 0
      %1994 = vmatmul.mubr.bf16.gmra.mrb[0].mxu0 %v1141
      %v1995 = vpop.f32.mrb[0].mxu0
      %v1996 = vadd.f32 0.0, %v1995
      %v1997 = vpop.f32.mrb[0].mxu0
      %v1998 = vpop.f32.mrb[0].mxu0
      %v1999 = vadd.f32 0.0, %v1998
      %v2000 = vpop.f32.mrb[0].mxu0
      %2001 = vmatprep.mubr.bf16.mxu0 0
      %2002 = vmatmul.mubr.bf16.gmra.mrb[0].mxu0 %v1142
      %v2003 = vpop.f32.mrb[0].mxu0
      %v2004 = vadd.f32 0.0, %v2003
      %v2005 = vpop.f32.mrb[0].mxu0
      %v2006 = vpop.f32.mrb[0].mxu0
      %v2007 = vadd.f32 0.0, %v2006
      %v2008 = vpop.f32.mrb[0].mxu0
      %2009 = vmatprep.mubr.bf16.mxu0 0
      %2010 = vmatmul.mubr.bf16.gmra.mrb[0].mxu0 %v1143
      %v2011 = vpop.f32.mrb[0].mxu0
      %v2012 = vadd.f32 0.0, %v2011
      %v2013 = vpop.f32.mrb[0].mxu0
      %v2014 = vpop.f32.mrb[0].mxu0
      %v2015 = vadd.f32 0.0, %v2014
      %v2016 = vpop.f32.mrb[0].mxu0
      %2017 = vmatprep.mubr.bf16.mxu0 0
      %2018 = vmatmul.mubr.bf16.gmra.mrb[0].mxu0 %v1144
      %v2019 = vpop.f32.mrb[0].mxu0
      %v2020 = vadd.f32 0.0, %v2019
      %v2021 = vpop.f32.mrb[0].mxu0
      %v2022 = vpop.f32.mrb[0].mxu0
      %v2023 = vadd.f32 0.0, %v2022
      %v2024 = vpop.f32.mrb[0].mxu0
      %2025 = vmatprep.mubr.bf16.mxu0 0
      %2026 = vmatmul.mubr.bf16.gmra.mrb[0].mxu0 %v1145
      %v2027 = vpop.f32.mrb[0].mxu0
      %v2028 = vadd.f32 0.0, %v2027
      %v2029 = vpop.f32.mrb[0].mxu0
      %v2030 = vpop.f32.mrb[0].mxu0
      %v2031 = vadd.f32 0.0, %v2030
      %v2032 = vpop.f32.mrb[0].mxu0
      %2033 = vmatprep.mubr.bf16.mxu0 0
      %2034 = vmatmul.mubr.bf16.gmra.mrb[0].mxu0 %v1146
      %v2035 = vpop.f32.mrb[0].mxu0
      %v2036 = vadd.f32 0.0, %v2035
      %v2037 = vpop.f32.mrb[0].mxu0
      %v2038 = vpop.f32.mrb[0].mxu0
      %v2039 = vadd.f32 0.0, %v2038
      %v2040 = vpop.f32.mrb[0].mxu0
      %2041 = vmatprep.mubr.bf16.mxu0 0
      %2042 = vmatmul.mubr.bf16.gmra.mrb[0].mxu0 %v1147
      %v2043 = vpop.f32.mrb[0].mxu0
      %v2044 = vadd.f32 0.0, %v2043
      %v2045 = vpop.f32.mrb[0].mxu0
      %v2046 = vpop.f32.mrb[0].mxu0
      %v2047 = vadd.f32 0.0, %v2046
      %v2048 = vpop.f32.mrb[0].mxu0
      %2049 = vmatprep.mubr.bf16.mxu0 0
      %2050 = vmatmul.mubr.bf16.gmra.mrb[0].mxu0 %v1847
      %v2051 = vpop.f32.mrb[0].mxu0
      %v2052 = vadd.f32 0.0, %v2051
      %v2053 = vpop.f32.mrb[0].mxu0
      %v2054 = vpop.f32.mrb[0].mxu0
      %v2055 = vadd.f32 0.0, %v2054
      %v2056 = vpop.f32.mrb[0].mxu0
      %2057 = vdwg.mxu0
      %v2058 = vadd.f32 %v1794, %v1932
      %v2059 = vadd.f32 %v1795, %v1935
      %v2060 = vadd.f32 %v1796, %v1940
      %v2061 = vadd.f32 %v1797, %v1943
      %v2062 = vadd.f32 %v1798, %v1948
      %v2063 = vadd.f32 %v1799, %v1951
      %v2064 = vadd.f32 %v1800, %v1956
      %v2065 = vadd.f32 %v1801, %v1959
      %v2066 = vadd.f32 %v1802, %v1964
      %v2067 = vadd.f32 %v1803, %v1967
      %v2068 = vadd.f32 %v1804, %v1972
      %v2069 = vadd.f32 %v1805, %v1975
      %v2070 = vadd.f32 %v1806, %v1980
      %v2071 = vadd.f32 %v1807, %v1983
      %v2072 = vadd.f32 %v1808, %v1988
      %v2073 = vadd.f32 %v1809, %v1991
      %v2074 = vadd.f32 %v1810, %v1996
      %v2075 = vadd.f32 %v1811, %v1999
      %v2076 = vadd.f32 %v1812, %v2004
      %v2077 = vadd.f32 %v1813, %v2007
      %v2078 = vadd.f32 %v1814, %v2012
      %v2079 = vadd.f32 %v1815, %v2015
      %v2080 = vadd.f32 %v1816, %v2020
      %v2081 = vadd.f32 %v1817, %v2023
      %v2082 = vadd.f32 %v1818, %v2028
      %v2083 = vadd.f32 %v1819, %v2031
      %v2084 = vadd.f32 %v1820, %v2036
      %v2085 = vadd.f32 %v1821, %v2039
      %v2086 = vadd.f32 %v1822, %v2044
      %v2087 = vadd.f32 %v1823, %v2047
      %v2088 = vadd.f32 %v1824, %v2052
      %v2089 = vadd.f32 %v1825, %v2055
      %v2091 = vshrl.u32 %v369, 16
      %v2093 = vrot.slane %v2091, 4
      %v2094 = vshll.u32 %v369, 16
      %v2096 = vrot.slane %v2094, 5
      %v2097 = vor.u32 %v2093, %v2096
      %v2098 = vrot.slane %v2097, 4
      %v2100 = vshll.u32 %v370, 16
      %v2102 = vrot.slane %v2100, 5
      %v2103 = vsel %vm393, %v2098, %v2102
      %v2104 = vshrl.u32 %v370, 16
      %v2106 = vrot.slane %v2104, 4
      %v2107 = vor.u32 %v2106, %v2102
      %v2108 = vrot.slane %v2107, 4
      %v2110 = vshll.u32 %v371, 16
      %v2112 = vrot.slane %v2110, 5
      %v2113 = vsel %vm393, %v2108, %v2112
      %s2114 = scalar_lea.vmem %s2, 256
      %v2115 = vld [vmem:[%s2114] sm:$0xf]
      %v2116 = vld [vmem:[%s2114 + $0x4] sm:$0xf]
      %v2117 = vld [vmem:[%s2114 + $0x8] sm:$0xf]
      %v2118 = vld [vmem:[%s2114 + $0xc] sm:$0xf]
      %v2119 = vld [vmem:[%s2114 + $0x10] sm:$0xf]
      %v2120 = vld [vmem:[%s2114 + $0x14] sm:$0xf]
      %v2121 = vld [vmem:[%s2114 + $0x18] sm:$0xf]
      %v2122 = vld [vmem:[%s2114 + $0x1c] sm:$0xf]
      %v2123 = vld [vmem:[%s2114 + $0x20] sm:$0xf]
      %v2124 = vld [vmem:[%s2114 + $0x24] sm:$0xf]
      %v2125 = vld [vmem:[%s2114 + $0x28] sm:$0xf]
      %v2126 = vld [vmem:[%s2114 + $0x2c] sm:$0xf]
      %v2127 = vld [vmem:[%s2114 + $0x30] sm:$0xf]
      %v2128 = vld [vmem:[%s2114 + $0x34] sm:$0xf]
      %v2129 = vld [vmem:[%s2114 + $0x38] sm:$0xf]
      %v2130 = vld [vmem:[%s2114 + $0x3c] sm:$0xf]
      %v2131 = vunpack.c.l.b16 %v2103
      %v2132 = vunpack.c.l.b16 %v2113
      %v2133 = vpack.c.b16 %v2132, %v2131
      %v2151 = vunpack.c.l.b16 %v2115
      %v2152 = vunpack.c.l.b16 %v2116
      %v2153 = vunpack.c.l.b16 %v2117
      %v2154 = vunpack.c.l.b16 %v2118
      %v2155 = vunpack.c.l.b16 %v2119
      %v2156 = vunpack.c.l.b16 %v2120
      %v2157 = vunpack.c.l.b16 %v2121
      %v2158 = vunpack.c.l.b16 %v2122
      %v2159 = vunpack.c.l.b16 %v2123
      %v2160 = vunpack.c.l.b16 %v2124
      %v2161 = vunpack.c.l.b16 %v2125
      %v2162 = vunpack.c.l.b16 %v2126
      %v2163 = vunpack.c.l.b16 %v2127
      %v2164 = vunpack.c.l.b16 %v2128
      %v2165 = vunpack.c.l.b16 %v2129
      %v2166 = vunpack.c.l.b16 %v2130
      %v2167 = vpack.c.b16 %v2152, %v2151
      %v2168 = vpack.c.b16 %v2154, %v2153
      %v2169 = vpack.c.b16 %v2156, %v2155
      %v2170 = vpack.c.b16 %v2158, %v2157
      %v2171 = vpack.c.b16 %v2160, %v2159
      %v2172 = vpack.c.b16 %v2162, %v2161
      %v2173 = vpack.c.b16 %v2164, %v2163
      %v2174 = vpack.c.b16 %v2166, %v2165
      %2183 = vmatprep.subr.bf16.mxu0 0
      %2184 = vmatpush1.bf16.msra.mxu0 %v2167
      %2185 = vmatprep.subr.bf16.mxu0 0
      %2186 = vmatpush1.bf16.msra.mxu0 %v2168
      %2187 = vmatprep.subr.bf16.mxu0 0
      %2188 = vmatpush1.bf16.msra.mxu0 %v2169
      %2189 = vmatprep.subr.bf16.mxu0 0
      %2190 = vmatpush1.bf16.msra.mxu0 %v2170
      %2191 = vmatprep.subr.bf16.mxu0 0
      %2192 = vmatpush1.bf16.msra.mxu0 %v2171
      %2193 = vmatprep.subr.bf16.mxu0 0
      %2194 = vmatpush1.bf16.msra.mxu0 %v2172
      %2195 = vmatprep.subr.bf16.mxu0 0
      %2196 = vmatpush1.bf16.msra.mxu0 %v2173
      %2197 = vmatprep.subr.bf16.mxu0 0
      %2198 = vmatpush1.bf16.msra.mxu0 %v2174
      %2199 = vmatprep.subr.bf16.mxu0 0
      %2200 = vmatpush1.bf16.msra.mxu0 0
      %2201 = vmatprep.subr.bf16.mxu0 0
      %2202 = vmatpush1.bf16.msra.mxu0 0
      %2203 = vmatprep.subr.bf16.mxu0 0
      %2204 = vmatpush1.bf16.msra.mxu0 0
      %2205 = vmatprep.subr.bf16.mxu0 0
      %2206 = vmatpush1.bf16.msra.mxu0 0
      %2207 = vmatprep.subr.bf16.mxu0 0
      %2208 = vmatpush1.bf16.msra.mxu0 0
      %2209 = vmatprep.subr.bf16.mxu0 0
      %2210 = vmatpush1.bf16.msra.mxu0 0
      %2211 = vmatprep.subr.bf16.mxu0 0
      %2212 = vmatpush1.bf16.msra.mxu0 0
      %2213 = vmatprep.subr.bf16.mxu0 0
      %2214 = vmatpush1.bf16.msra.mxu0 0
      %2215 = vmatprep.mubr.bf16.mxu0 0
      %2216 = vmatmul.mubr.bf16.gmra.mrb[0].mxu0 %v828
      %v2217 = vpop.f32.mrb[0].mxu0
      %v2218 = vadd.f32 0.0, %v2217
      %v2219 = vpop.f32.mrb[0].mxu0
      %v2220 = vpop.f32.mrb[0].mxu0
      %v2221 = vadd.f32 0.0, %v2220
      %v2222 = vpop.f32.mrb[0].mxu0
      %2223 = vmatprep.mubr.bf16.mxu0 0
      %2224 = vmatmul.mubr.bf16.gmra.mrb[0].mxu0 %v829
      %v2225 = vpop.f32.mrb[0].mxu0
      %v2226 = vadd.f32 0.0, %v2225
      %v2227 = vpop.f32.mrb[0].mxu0
      %v2228 = vpop.f32.mrb[0].mxu0
      %v2229 = vadd.f32 0.0, %v2228
      %v2230 = vpop.f32.mrb[0].mxu0
      %2231 = vmatprep.mubr.bf16.mxu0 0
      %2232 = vmatmul.mubr.bf16.gmra.mrb[0].mxu0 %v830
      %v2233 = vpop.f32.mrb[0].mxu0
      %v2234 = vadd.f32 0.0, %v2233
      %v2235 = vpop.f32.mrb[0].mxu0
      %v2236 = vpop.f32.mrb[0].mxu0
      %v2237 = vadd.f32 0.0, %v2236
      %v2238 = vpop.f32.mrb[0].mxu0
      %2239 = vmatprep.mubr.bf16.mxu0 0
      %2240 = vmatmul.mubr.bf16.gmra.mrb[0].mxu0 %v831
      %v2241 = vpop.f32.mrb[0].mxu0
      %v2242 = vadd.f32 0.0, %v2241
      %v2243 = vpop.f32.mrb[0].mxu0
      %v2244 = vpop.f32.mrb[0].mxu0
      %v2245 = vadd.f32 0.0, %v2244
      %v2246 = vpop.f32.mrb[0].mxu0
      %2247 = vmatprep.mubr.bf16.mxu0 0
      %2248 = vmatmul.mubr.bf16.gmra.mrb[0].mxu0 %v832
      %v2249 = vpop.f32.mrb[0].mxu0
      %v2250 = vadd.f32 0.0, %v2249
      %v2251 = vpop.f32.mrb[0].mxu0
      %v2252 = vpop.f32.mrb[0].mxu0
      %v2253 = vadd.f32 0.0, %v2252
      %v2254 = vpop.f32.mrb[0].mxu0
      %2255 = vmatprep.mubr.bf16.mxu0 0
      %2256 = vmatmul.mubr.bf16.gmra.mrb[0].mxu0 %v833
      %v2257 = vpop.f32.mrb[0].mxu0
      %v2258 = vadd.f32 0.0, %v2257
      %v2259 = vpop.f32.mrb[0].mxu0
      %v2260 = vpop.f32.mrb[0].mxu0
      %v2261 = vadd.f32 0.0, %v2260
      %v2262 = vpop.f32.mrb[0].mxu0
      %2263 = vmatprep.mubr.bf16.mxu0 0
      %2264 = vmatmul.mubr.bf16.gmra.mrb[0].mxu0 %v834
      %v2265 = vpop.f32.mrb[0].mxu0
      %v2266 = vadd.f32 0.0, %v2265
      %v2267 = vpop.f32.mrb[0].mxu0
      %v2268 = vpop.f32.mrb[0].mxu0
      %v2269 = vadd.f32 0.0, %v2268
      %v2270 = vpop.f32.mrb[0].mxu0
      %2271 = vmatprep.mubr.bf16.mxu0 0
      %2272 = vmatmul.mubr.bf16.gmra.mrb[0].mxu0 %v835
      %v2273 = vpop.f32.mrb[0].mxu0
      %v2274 = vadd.f32 0.0, %v2273
      %v2275 = vpop.f32.mrb[0].mxu0
      %v2276 = vpop.f32.mrb[0].mxu0
      %v2277 = vadd.f32 0.0, %v2276
      %v2278 = vpop.f32.mrb[0].mxu0
      %2279 = vmatprep.mubr.bf16.mxu0 0
      %2280 = vmatmul.mubr.bf16.gmra.mrb[0].mxu0 %v836
      %v2281 = vpop.f32.mrb[0].mxu0
      %v2282 = vadd.f32 0.0, %v2281
      %v2283 = vpop.f32.mrb[0].mxu0
      %v2284 = vpop.f32.mrb[0].mxu0
      %v2285 = vadd.f32 0.0, %v2284
      %v2286 = vpop.f32.mrb[0].mxu0
      %2287 = vmatprep.mubr.bf16.mxu0 0
      %2288 = vmatmul.mubr.bf16.gmra.mrb[0].mxu0 %v837
      %v2289 = vpop.f32.mrb[0].mxu0
      %v2290 = vadd.f32 0.0, %v2289
      %v2291 = vpop.f32.mrb[0].mxu0
      %v2292 = vpop.f32.mrb[0].mxu0
      %v2293 = vadd.f32 0.0, %v2292
      %v2294 = vpop.f32.mrb[0].mxu0
      %2295 = vmatprep.mubr.bf16.mxu0 0
      %2296 = vmatmul.mubr.bf16.gmra.mrb[0].mxu0 %v838
      %v2297 = vpop.f32.mrb[0].mxu0
      %v2298 = vadd.f32 0.0, %v2297
      %v2299 = vpop.f32.mrb[0].mxu0
      %v2300 = vpop.f32.mrb[0].mxu0
      %v2301 = vadd.f32 0.0, %v2300
      %v2302 = vpop.f32.mrb[0].mxu0
      %2303 = vmatprep.mubr.bf16.mxu0 0
      %2304 = vmatmul.mubr.bf16.gmra.mrb[0].mxu0 %v839
      %v2305 = vpop.f32.mrb[0].mxu0
      %v2306 = vadd.f32 0.0, %v2305
      %v2307 = vpop.f32.mrb[0].mxu0
      %v2308 = vpop.f32.mrb[0].mxu0
      %v2309 = vadd.f32 0.0, %v2308
      %v2310 = vpop.f32.mrb[0].mxu0
      %2311 = vmatprep.mubr.bf16.mxu0 0
      %2312 = vmatmul.mubr.bf16.gmra.mrb[0].mxu0 %v840
      %v2313 = vpop.f32.mrb[0].mxu0
      %v2314 = vadd.f32 0.0, %v2313
      %v2315 = vpop.f32.mrb[0].mxu0
      %v2316 = vpop.f32.mrb[0].mxu0
      %v2317 = vadd.f32 0.0, %v2316
      %v2318 = vpop.f32.mrb[0].mxu0
      %2319 = vmatprep.mubr.bf16.mxu0 0
      %2320 = vmatmul.mubr.bf16.gmra.mrb[0].mxu0 %v841
      %v2321 = vpop.f32.mrb[0].mxu0
      %v2322 = vadd.f32 0.0, %v2321
      %v2323 = vpop.f32.mrb[0].mxu0
      %v2324 = vpop.f32.mrb[0].mxu0
      %v2325 = vadd.f32 0.0, %v2324
      %v2326 = vpop.f32.mrb[0].mxu0
      %2327 = vmatprep.mubr.bf16.mxu0 0
      %2328 = vmatmul.mubr.bf16.gmra.mrb[0].mxu0 %v842
      %v2329 = vpop.f32.mrb[0].mxu0
      %v2330 = vadd.f32 0.0, %v2329
      %v2331 = vpop.f32.mrb[0].mxu0
      %v2332 = vpop.f32.mrb[0].mxu0
      %v2333 = vadd.f32 0.0, %v2332
      %v2334 = vpop.f32.mrb[0].mxu0
      %2335 = vmatprep.mubr.bf16.mxu0 0
      %2336 = vmatmul.mubr.bf16.gmra.mrb[0].mxu0 %v2133
      %v2337 = vpop.f32.mrb[0].mxu0
      %v2338 = vadd.f32 0.0, %v2337
      %v2339 = vpop.f32.mrb[0].mxu0
      %v2340 = vpop.f32.mrb[0].mxu0
      %v2341 = vadd.f32 0.0, %v2340
      %v2342 = vpop.f32.mrb[0].mxu0
      %2343 = vdwg.mxu0
      %v2344 = vadd.f32 %v2058, %v2218
      %v2345 = vadd.f32 %v2059, %v2221
      %v2346 = vadd.f32 %v2060, %v2226
      %v2347 = vadd.f32 %v2061, %v2229
      %v2348 = vadd.f32 %v2062, %v2234
      %v2349 = vadd.f32 %v2063, %v2237
      %v2350 = vadd.f32 %v2064, %v2242
      %v2351 = vadd.f32 %v2065, %v2245
      %v2352 = vadd.f32 %v2066, %v2250
      %v2353 = vadd.f32 %v2067, %v2253
      %v2354 = vadd.f32 %v2068, %v2258
      %v2355 = vadd.f32 %v2069, %v2261
      %v2356 = vadd.f32 %v2070, %v2266
      %v2357 = vadd.f32 %v2071, %v2269
      %v2358 = vadd.f32 %v2072, %v2274
      %v2359 = vadd.f32 %v2073, %v2277
      %v2360 = vadd.f32 %v2074, %v2282
      %v2361 = vadd.f32 %v2075, %v2285
      %v2362 = vadd.f32 %v2076, %v2290
      %v2363 = vadd.f32 %v2077, %v2293
      %v2364 = vadd.f32 %v2078, %v2298
      %v2365 = vadd.f32 %v2079, %v2301
      %v2366 = vadd.f32 %v2080, %v2306
      %v2367 = vadd.f32 %v2081, %v2309
      %v2368 = vadd.f32 %v2082, %v2314
      %v2369 = vadd.f32 %v2083, %v2317
      %v2370 = vadd.f32 %v2084, %v2322
      %v2371 = vadd.f32 %v2085, %v2325
      %v2372 = vadd.f32 %v2086, %v2330
      %v2373 = vadd.f32 %v2087, %v2333
      %v2374 = vadd.f32 %v2088, %v2338
      %v2375 = vadd.f32 %v2089, %v2341
      %v2377 = vrot.slane %v369, 5
      %v2378 = vrot.slane %v2377, 4
      %v2379 = vrot.slane %v370, 5
      %v2380 = vsel %vm1391, %v2378, %v2379
      %v2381 = vrot.slane %v2379, 4
      %v2382 = vrot.slane %v371, 5
      %v2383 = vsel %vm1391, %v2381, %v2382
      %s2384 = scalar_lea.vmem %s2, 320
      %v2385 = vld [vmem:[%s2384] sm:$0xf]
      %v2386 = vld [vmem:[%s2384 + $0x4] sm:$0xf]
      %v2387 = vld [vmem:[%s2384 + $0x8] sm:$0xf]
      %v2388 = vld [vmem:[%s2384 + $0xc] sm:$0xf]
      %v2389 = vld [vmem:[%s2384 + $0x10] sm:$0xf]
      %v2390 = vld [vmem:[%s2384 + $0x14] sm:$0xf]
      %v2391 = vld [vmem:[%s2384 + $0x18] sm:$0xf]
      %v2392 = vld [vmem:[%s2384 + $0x1c] sm:$0xf]
      %v2393 = vld [vmem:[%s2384 + $0x20] sm:$0xf]
      %v2394 = vld [vmem:[%s2384 + $0x24] sm:$0xf]
      %v2395 = vld [vmem:[%s2384 + $0x28] sm:$0xf]
      %v2396 = vld [vmem:[%s2384 + $0x2c] sm:$0xf]
      %v2397 = vld [vmem:[%s2384 + $0x30] sm:$0xf]
      %v2398 = vld [vmem:[%s2384 + $0x34] sm:$0xf]
      %v2399 = vld [vmem:[%s2384 + $0x38] sm:$0xf]
      %v2400 = vld [vmem:[%s2384 + $0x3c] sm:$0xf]
      %v2401 = vunpack.c.l.b16 %v2380
      %v2402 = vunpack.c.l.b16 %v2383
      %v2403 = vpack.c.b16 %v2402, %v2401
      %v2421 = vunpack.c.l.b16 %v2385
      %v2422 = vunpack.c.l.b16 %v2386
      %v2423 = vunpack.c.l.b16 %v2387
      %v2424 = vunpack.c.l.b16 %v2388
      %v2425 = vunpack.c.l.b16 %v2389
      %v2426 = vunpack.c.l.b16 %v2390
      %v2427 = vunpack.c.l.b16 %v2391
      %v2428 = vunpack.c.l.b16 %v2392
      %v2429 = vunpack.c.l.b16 %v2393
      %v2430 = vunpack.c.l.b16 %v2394
      %v2431 = vunpack.c.l.b16 %v2395
      %v2432 = vunpack.c.l.b16 %v2396
      %v2433 = vunpack.c.l.b16 %v2397
      %v2434 = vunpack.c.l.b16 %v2398
      %v2435 = vunpack.c.l.b16 %v2399
      %v2436 = vunpack.c.l.b16 %v2400
      %v2437 = vpack.c.b16 %v2422, %v2421
      %v2438 = vpack.c.b16 %v2424, %v2423
      %v2439 = vpack.c.b16 %v2426, %v2425
      %v2440 = vpack.c.b16 %v2428, %v2427
      %v2441 = vpack.c.b16 %v2430, %v2429
      %v2442 = vpack.c.b16 %v2432, %v2431
      %v2443 = vpack.c.b16 %v2434, %v2433
      %v2444 = vpack.c.b16 %v2436, %v2435
      %2453 = vmatprep.subr.bf16.mxu0 0
      %2454 = vmatpush1.bf16.msra.mxu0 %v2437
      %2455 = vmatprep.subr.bf16.mxu0 0
      %2456 = vmatpush1.bf16.msra.mxu0 %v2438
      %2457 = vmatprep.subr.bf16.mxu0 0
      %2458 = vmatpush1.bf16.msra.mxu0 %v2439
      %2459 = vmatprep.subr.bf16.mxu0 0
      %2460 = vmatpush1.bf16.msra.mxu0 %v2440
      %2461 = vmatprep.subr.bf16.mxu0 0
      %2462 = vmatpush1.bf16.msra.mxu0 %v2441
      %2463 = vmatprep.subr.bf16.mxu0 0
      %2464 = vmatpush1.bf16.msra.mxu0 %v2442
      %2465 = vmatprep.subr.bf16.mxu0 0
      %2466 = vmatpush1.bf16.msra.mxu0 %v2443
      %2467 = vmatprep.subr.bf16.mxu0 0
      %2468 = vmatpush1.bf16.msra.mxu0 %v2444
      %2469 = vmatprep.subr.bf16.mxu0 0
      %2470 = vmatpush1.bf16.msra.mxu0 0
      %2471 = vmatprep.subr.bf16.mxu0 0
      %2472 = vmatpush1.bf16.msra.mxu0 0
      %2473 = vmatprep.subr.bf16.mxu0 0
      %2474 = vmatpush1.bf16.msra.mxu0 0
      %2475 = vmatprep.subr.bf16.mxu0 0
      %2476 = vmatpush1.bf16.msra.mxu0 0
      %2477 = vmatprep.subr.bf16.mxu0 0
      %2478 = vmatpush1.bf16.msra.mxu0 0
      %2479 = vmatprep.subr.bf16.mxu0 0
      %2480 = vmatpush1.bf16.msra.mxu0 0
      %2481 = vmatprep.subr.bf16.mxu0 0
      %2482 = vmatpush1.bf16.msra.mxu0 0
      %2483 = vmatprep.subr.bf16.mxu0 0
      %2484 = vmatpush1.bf16.msra.mxu0 0
      %2485 = vmatprep.mubr.bf16.mxu0 0
      %2486 = vmatmul.mubr.bf16.gmra.mrb[0].mxu0 %v1554
      %v2487 = vpop.f32.mrb[0].mxu0
      %v2488 = vadd.f32 0.0, %v2487
      %v2489 = vpop.f32.mrb[0].mxu0
      %v2490 = vpop.f32.mrb[0].mxu0
      %v2491 = vadd.f32 0.0, %v2490
      %v2492 = vpop.f32.mrb[0].mxu0
      %2493 = vmatprep.mubr.bf16.mxu0 0
      %2494 = vmatmul.mubr.bf16.gmra.mrb[0].mxu0 %v1555
      %v2495 = vpop.f32.mrb[0].mxu0
      %v2496 = vadd.f32 0.0, %v2495
      %v2497 = vpop.f32.mrb[0].mxu0
      %v2498 = vpop.f32.mrb[0].mxu0
      %v2499 = vadd.f32 0.0, %v2498
      %v2500 = vpop.f32.mrb[0].mxu0
      %2501 = vmatprep.mubr.bf16.mxu0 0
      %2502 = vmatmul.mubr.bf16.gmra.mrb[0].mxu0 %v1556
      %v2503 = vpop.f32.mrb[0].mxu0
      %v2504 = vadd.f32 0.0, %v2503
      %v2505 = vpop.f32.mrb[0].mxu0
      %v2506 = vpop.f32.mrb[0].mxu0
      %v2507 = vadd.f32 0.0, %v2506
      %v2508 = vpop.f32.mrb[0].mxu0
      %2509 = vmatprep.mubr.bf16.mxu0 0
      %2510 = vmatmul.mubr.bf16.gmra.mrb[0].mxu0 %v1557
      %v2511 = vpop.f32.mrb[0].mxu0
      %v2512 = vadd.f32 0.0, %v2511
      %v2513 = vpop.f32.mrb[0].mxu0
      %v2514 = vpop.f32.mrb[0].mxu0
      %v2515 = vadd.f32 0.0, %v2514
      %v2516 = vpop.f32.mrb[0].mxu0
      %2517 = vmatprep.mubr.bf16.mxu0 0
      %2518 = vmatmul.mubr.bf16.gmra.mrb[0].mxu0 %v1558
      %v2519 = vpop.f32.mrb[0].mxu0
      %v2520 = vadd.f32 0.0, %v2519
      %v2521 = vpop.f32.mrb[0].mxu0
      %v2522 = vpop.f32.mrb[0].mxu0
      %v2523 = vadd.f32 0.0, %v2522
      %v2524 = vpop.f32.mrb[0].mxu0
      %2525 = vmatprep.mubr.bf16.mxu0 0
      %2526 = vmatmul.mubr.bf16.gmra.mrb[0].mxu0 %v1559
      %v2527 = vpop.f32.mrb[0].mxu0
      %v2528 = vadd.f32 0.0, %v2527
      %v2529 = vpop.f32.mrb[0].mxu0
      %v2530 = vpop.f32.mrb[0].mxu0
      %v2531 = vadd.f32 0.0, %v2530
      %v2532 = vpop.f32.mrb[0].mxu0
      %2533 = vmatprep.mubr.bf16.mxu0 0
      %2534 = vmatmul.mubr.bf16.gmra.mrb[0].mxu0 %v1560
      %v2535 = vpop.f32.mrb[0].mxu0
      %v2536 = vadd.f32 0.0, %v2535
      %v2537 = vpop.f32.mrb[0].mxu0
      %v2538 = vpop.f32.mrb[0].mxu0
      %v2539 = vadd.f32 0.0, %v2538
      %v2540 = vpop.f32.mrb[0].mxu0
      %2541 = vmatprep.mubr.bf16.mxu0 0
      %2542 = vmatmul.mubr.bf16.gmra.mrb[0].mxu0 %v1561
      %v2543 = vpop.f32.mrb[0].mxu0
      %v2544 = vadd.f32 0.0, %v2543
      %v2545 = vpop.f32.mrb[0].mxu0
      %v2546 = vpop.f32.mrb[0].mxu0
      %v2547 = vadd.f32 0.0, %v2546
      %v2548 = vpop.f32.mrb[0].mxu0
      %2549 = vmatprep.mubr.bf16.mxu0 0
      %2550 = vmatmul.mubr.bf16.gmra.mrb[0].mxu0 %v1562
      %v2551 = vpop.f32.mrb[0].mxu0
      %v2552 = vadd.f32 0.0, %v2551
      %v2553 = vpop.f32.mrb[0].mxu0
      %v2554 = vpop.f32.mrb[0].mxu0
      %v2555 = vadd.f32 0.0, %v2554
      %v2556 = vpop.f32.mrb[0].mxu0
      %2557 = vmatprep.mubr.bf16.mxu0 0
      %2558 = vmatmul.mubr.bf16.gmra.mrb[0].mxu0 %v1563
      %v2559 = vpop.f32.mrb[0].mxu0
      %v2560 = vadd.f32 0.0, %v2559
      %v2561 = vpop.f32.mrb[0].mxu0
      %v2562 = vpop.f32.mrb[0].mxu0
      %v2563 = vadd.f32 0.0, %v2562
      %v2564 = vpop.f32.mrb[0].mxu0
      %2565 = vmatprep.mubr.bf16.mxu0 0
      %2566 = vmatmul.mubr.bf16.gmra.mrb[0].mxu0 %v1564
      %v2567 = vpop.f32.mrb[0].mxu0
      %v2568 = vadd.f32 0.0, %v2567
      %v2569 = vpop.f32.mrb[0].mxu0
      %v2570 = vpop.f32.mrb[0].mxu0
      %v2571 = vadd.f32 0.0, %v2570
      %v2572 = vpop.f32.mrb[0].mxu0
      %2573 = vmatprep.mubr.bf16.mxu0 0
      %2574 = vmatmul.mubr.bf16.gmra.mrb[0].mxu0 %v1565
      %v2575 = vpop.f32.mrb[0].mxu0
      %v2576 = vadd.f32 0.0, %v2575
      %v2577 = vpop.f32.mrb[0].mxu0
      %v2578 = vpop.f32.mrb[0].mxu0
      %v2579 = vadd.f32 0.0, %v2578
      %v2580 = vpop.f32.mrb[0].mxu0
      %2581 = vmatprep.mubr.bf16.mxu0 0
      %2582 = vmatmul.mubr.bf16.gmra.mrb[0].mxu0 %v1566
      %v2583 = vpop.f32.mrb[0].mxu0
      %v2584 = vadd.f32 0.0, %v2583
      %v2585 = vpop.f32.mrb[0].mxu0
      %v2586 = vpop.f32.mrb[0].mxu0
      %v2587 = vadd.f32 0.0, %v2586
      %v2588 = vpop.f32.mrb[0].mxu0
      %2589 = vmatprep.mubr.bf16.mxu0 0
      %2590 = vmatmul.mubr.bf16.gmra.mrb[0].mxu0 %v1567
      %v2591 = vpop.f32.mrb[0].mxu0
      %v2592 = vadd.f32 0.0, %v2591
      %v2593 = vpop.f32.mrb[0].mxu0
      %v2594 = vpop.f32.mrb[0].mxu0
      %v2595 = vadd.f32 0.0, %v2594
      %v2596 = vpop.f32.mrb[0].mxu0
      %2597 = vmatprep.mubr.bf16.mxu0 0
      %2598 = vmatmul.mubr.bf16.gmra.mrb[0].mxu0 %v1568
      %v2599 = vpop.f32.mrb[0].mxu0
      %v2600 = vadd.f32 0.0, %v2599
      %v2601 = vpop.f32.mrb[0].mxu0
      %v2602 = vpop.f32.mrb[0].mxu0
      %v2603 = vadd.f32 0.0, %v2602
      %v2604 = vpop.f32.mrb[0].mxu0
      %2605 = vmatprep.mubr.bf16.mxu0 0
      %2606 = vmatmul.mubr.bf16.gmra.mrb[0].mxu0 %v2403
      %v2607 = vpop.f32.mrb[0].mxu0
      %v2608 = vadd.f32 0.0, %v2607
      %v2609 = vpop.f32.mrb[0].mxu0
      %v2610 = vpop.f32.mrb[0].mxu0
      %v2611 = vadd.f32 0.0, %v2610
      %v2612 = vpop.f32.mrb[0].mxu0
      %2613 = vdwg.mxu0
      %v2614 = vadd.f32 %v2344, %v2488
      %v2615 = vadd.f32 %v2345, %v2491
      %v2616 = vadd.f32 %v2346, %v2496
      %v2617 = vadd.f32 %v2347, %v2499
      %v2618 = vadd.f32 %v2348, %v2504
      %v2619 = vadd.f32 %v2349, %v2507
      %v2620 = vadd.f32 %v2350, %v2512
      %v2621 = vadd.f32 %v2351, %v2515
      %v2622 = vadd.f32 %v2352, %v2520
      %v2623 = vadd.f32 %v2353, %v2523
      %v2624 = vadd.f32 %v2354, %v2528
      %v2625 = vadd.f32 %v2355, %v2531
      %v2626 = vadd.f32 %v2356, %v2536
      %v2627 = vadd.f32 %v2357, %v2539
      %v2628 = vadd.f32 %v2358, %v2544
      %v2629 = vadd.f32 %v2359, %v2547
      %v2630 = vadd.f32 %v2360, %v2552
      %v2631 = vadd.f32 %v2361, %v2555
      %v2632 = vadd.f32 %v2362, %v2560
      %v2633 = vadd.f32 %v2363, %v2563
      %v2634 = vadd.f32 %v2364, %v2568
      %v2635 = vadd.f32 %v2365, %v2571
      %v2636 = vadd.f32 %v2366, %v2576
      %v2637 = vadd.f32 %v2367, %v2579
      %v2638 = vadd.f32 %v2368, %v2584
      %v2639 = vadd.f32 %v2369, %v2587
      %v2640 = vadd.f32 %v2370, %v2592
      %v2641 = vadd.f32 %v2371, %v2595
      %v2642 = vadd.f32 %v2372, %v2600
      %v2643 = vadd.f32 %v2373, %v2603
      %v2644 = vadd.f32 %v2374, %v2608
      %v2645 = vadd.f32 %v2375, %v2611
      %s2646 = scalar_lea.vmem %s2, 384
      %v2647 = vld [vmem:[%s2646] sm:$0xf]
      %v2648 = vld [vmem:[%s2646 + $0x4] sm:$0xf]
      %v2649 = vld [vmem:[%s2646 + $0x8] sm:$0xf]
      %v2650 = vld [vmem:[%s2646 + $0xc] sm:$0xf]
      %v2651 = vld [vmem:[%s2646 + $0x10] sm:$0xf]
      %v2652 = vld [vmem:[%s2646 + $0x14] sm:$0xf]
      %v2653 = vld [vmem:[%s2646 + $0x18] sm:$0xf]
      %v2654 = vld [vmem:[%s2646 + $0x1c] sm:$0xf]
      %v2655 = vld [vmem:[%s2646 + $0x20] sm:$0xf]
      %v2656 = vld [vmem:[%s2646 + $0x24] sm:$0xf]
      %v2657 = vld [vmem:[%s2646 + $0x28] sm:$0xf]
      %v2658 = vld [vmem:[%s2646 + $0x2c] sm:$0xf]
      %v2659 = vld [vmem:[%s2646 + $0x30] sm:$0xf]
      %v2660 = vld [vmem:[%s2646 + $0x34] sm:$0xf]
      %v2661 = vld [vmem:[%s2646 + $0x38] sm:$0xf]
      %v2662 = vld [vmem:[%s2646 + $0x3c] sm:$0xf]
      %v2665 = vunpack.c.l.b16 %v372
      %v2666 = vunpack.c.l.b16 %v373
      %v2667 = vpack.c.b16 %v2666, %v2665
      %v2685 = vunpack.c.l.b16 %v2647
      %v2686 = vunpack.c.l.b16 %v2648
      %v2687 = vunpack.c.l.b16 %v2649
      %v2688 = vunpack.c.l.b16 %v2650
      %v2689 = vunpack.c.l.b16 %v2651
      %v2690 = vunpack.c.l.b16 %v2652
      %v2691 = vunpack.c.l.b16 %v2653
      %v2692 = vunpack.c.l.b16 %v2654
      %v2693 = vunpack.c.l.b16 %v2655
      %v2694 = vunpack.c.l.b16 %v2656
      %v2695 = vunpack.c.l.b16 %v2657
      %v2696 = vunpack.c.l.b16 %v2658
      %v2697 = vunpack.c.l.b16 %v2659
      %v2698 = vunpack.c.l.b16 %v2660
      %v2699 = vunpack.c.l.b16 %v2661
      %v2700 = vunpack.c.l.b16 %v2662
      %v2701 = vpack.c.b16 %v2686, %v2685
      %v2702 = vpack.c.b16 %v2688, %v2687
      %v2703 = vpack.c.b16 %v2690, %v2689
      %v2704 = vpack.c.b16 %v2692, %v2691
      %v2705 = vpack.c.b16 %v2694, %v2693
      %v2706 = vpack.c.b16 %v2696, %v2695
      %v2707 = vpack.c.b16 %v2698, %v2697
      %v2708 = vpack.c.b16 %v2700, %v2699
      %2717 = vmatprep.subr.bf16.mxu0 0
      %2718 = vmatpush1.bf16.msra.mxu0 %v2701
      %2719 = vmatprep.subr.bf16.mxu0 0
      %2720 = vmatpush1.bf16.msra.mxu0 %v2702
      %2721 = vmatprep.subr.bf16.mxu0 0
      %2722 = vmatpush1.bf16.msra.mxu0 %v2703
      %2723 = vmatprep.subr.bf16.mxu0 0
      %2724 = vmatpush1.bf16.msra.mxu0 %v2704
      %2725 = vmatprep.subr.bf16.mxu0 0
      %2726 = vmatpush1.bf16.msra.mxu0 %v2705
      %2727 = vmatprep.subr.bf16.mxu0 0
      %2728 = vmatpush1.bf16.msra.mxu0 %v2706
      %2729 = vmatprep.subr.bf16.mxu0 0
      %2730 = vmatpush1.bf16.msra.mxu0 %v2707
      %2731 = vmatprep.subr.bf16.mxu0 0
      %2732 = vmatpush1.bf16.msra.mxu0 %v2708
      %2733 = vmatprep.subr.bf16.mxu0 0
      %2734 = vmatpush1.bf16.msra.mxu0 0
      %2735 = vmatprep.subr.bf16.mxu0 0
      %2736 = vmatpush1.bf16.msra.mxu0 0
      %2737 = vmatprep.subr.bf16.mxu0 0
      %2738 = vmatpush1.bf16.msra.mxu0 0
      %2739 = vmatprep.subr.bf16.mxu0 0
      %2740 = vmatpush1.bf16.msra.mxu0 0
      %2741 = vmatprep.subr.bf16.mxu0 0
      %2742 = vmatpush1.bf16.msra.mxu0 0
      %2743 = vmatprep.subr.bf16.mxu0 0
      %2744 = vmatpush1.bf16.msra.mxu0 0
      %2745 = vmatprep.subr.bf16.mxu0 0
      %2746 = vmatpush1.bf16.msra.mxu0 0
      %2747 = vmatprep.subr.bf16.mxu0 0
      %2748 = vmatpush1.bf16.msra.mxu0 0
      %2749 = vmatprep.mubr.bf16.mxu0 0
      %2750 = vmatmul.mubr.bf16.gmra.mrb[0].mxu0 %v1134
      %v2751 = vpop.f32.mrb[0].mxu0
      %v2752 = vadd.f32 0.0, %v2751
      %v2753 = vpop.f32.mrb[0].mxu0
      %v2754 = vpop.f32.mrb[0].mxu0
      %v2755 = vadd.f32 0.0, %v2754
      %v2756 = vpop.f32.mrb[0].mxu0
      %2757 = vmatprep.mubr.bf16.mxu0 0
      %2758 = vmatmul.mubr.bf16.gmra.mrb[0].mxu0 %v1135
      %v2759 = vpop.f32.mrb[0].mxu0
      %v2760 = vadd.f32 0.0, %v2759
      %v2761 = vpop.f32.mrb[0].mxu0
      %v2762 = vpop.f32.mrb[0].mxu0
      %v2763 = vadd.f32 0.0, %v2762
      %v2764 = vpop.f32.mrb[0].mxu0
      %2765 = vmatprep.mubr.bf16.mxu0 0
      %2766 = vmatmul.mubr.bf16.gmra.mrb[0].mxu0 %v1136
      %v2767 = vpop.f32.mrb[0].mxu0
      %v2768 = vadd.f32 0.0, %v2767
      %v2769 = vpop.f32.mrb[0].mxu0
      %v2770 = vpop.f32.mrb[0].mxu0
      %v2771 = vadd.f32 0.0, %v2770
      %v2772 = vpop.f32.mrb[0].mxu0
      %2773 = vmatprep.mubr.bf16.mxu0 0
      %2774 = vmatmul.mubr.bf16.gmra.mrb[0].mxu0 %v1137
      %v2775 = vpop.f32.mrb[0].mxu0
      %v2776 = vadd.f32 0.0, %v2775
      %v2777 = vpop.f32.mrb[0].mxu0
      %v2778 = vpop.f32.mrb[0].mxu0
      %v2779 = vadd.f32 0.0, %v2778
      %v2780 = vpop.f32.mrb[0].mxu0
      %2781 = vmatprep.mubr.bf16.mxu0 0
      %2782 = vmatmul.mubr.bf16.gmra.mrb[0].mxu0 %v1138
      %v2783 = vpop.f32.mrb[0].mxu0
      %v2784 = vadd.f32 0.0, %v2783
      %v2785 = vpop.f32.mrb[0].mxu0
      %v2786 = vpop.f32.mrb[0].mxu0
      %v2787 = vadd.f32 0.0, %v2786
      %v2788 = vpop.f32.mrb[0].mxu0
      %2789 = vmatprep.mubr.bf16.mxu0 0
      %2790 = vmatmul.mubr.bf16.gmra.mrb[0].mxu0 %v1139
      %v2791 = vpop.f32.mrb[0].mxu0
      %v2792 = vadd.f32 0.0, %v2791
      %v2793 = vpop.f32.mrb[0].mxu0
      %v2794 = vpop.f32.mrb[0].mxu0
      %v2795 = vadd.f32 0.0, %v2794
      %v2796 = vpop.f32.mrb[0].mxu0
      %2797 = vmatprep.mubr.bf16.mxu0 0
      %2798 = vmatmul.mubr.bf16.gmra.mrb[0].mxu0 %v1140
      %v2799 = vpop.f32.mrb[0].mxu0
      %v2800 = vadd.f32 0.0, %v2799
      %v2801 = vpop.f32.mrb[0].mxu0
      %v2802 = vpop.f32.mrb[0].mxu0
      %v2803 = vadd.f32 0.0, %v2802
      %v2804 = vpop.f32.mrb[0].mxu0
      %2805 = vmatprep.mubr.bf16.mxu0 0
      %2806 = vmatmul.mubr.bf16.gmra.mrb[0].mxu0 %v1141
      %v2807 = vpop.f32.mrb[0].mxu0
      %v2808 = vadd.f32 0.0, %v2807
      %v2809 = vpop.f32.mrb[0].mxu0
      %v2810 = vpop.f32.mrb[0].mxu0
      %v2811 = vadd.f32 0.0, %v2810
      %v2812 = vpop.f32.mrb[0].mxu0
      %2813 = vmatprep.mubr.bf16.mxu0 0
      %2814 = vmatmul.mubr.bf16.gmra.mrb[0].mxu0 %v1142
      %v2815 = vpop.f32.mrb[0].mxu0
      %v2816 = vadd.f32 0.0, %v2815
      %v2817 = vpop.f32.mrb[0].mxu0
      %v2818 = vpop.f32.mrb[0].mxu0
      %v2819 = vadd.f32 0.0, %v2818
      %v2820 = vpop.f32.mrb[0].mxu0
      %2821 = vmatprep.mubr.bf16.mxu0 0
      %2822 = vmatmul.mubr.bf16.gmra.mrb[0].mxu0 %v1143
      %v2823 = vpop.f32.mrb[0].mxu0
      %v2824 = vadd.f32 0.0, %v2823
      %v2825 = vpop.f32.mrb[0].mxu0
      %v2826 = vpop.f32.mrb[0].mxu0
      %v2827 = vadd.f32 0.0, %v2826
      %v2828 = vpop.f32.mrb[0].mxu0
      %2829 = vmatprep.mubr.bf16.mxu0 0
      %2830 = vmatmul.mubr.bf16.gmra.mrb[0].mxu0 %v1144
      %v2831 = vpop.f32.mrb[0].mxu0
      %v2832 = vadd.f32 0.0, %v2831
      %v2833 = vpop.f32.mrb[0].mxu0
      %v2834 = vpop.f32.mrb[0].mxu0
      %v2835 = vadd.f32 0.0, %v2834
      %v2836 = vpop.f32.mrb[0].mxu0
      %2837 = vmatprep.mubr.bf16.mxu0 0
      %2838 = vmatmul.mubr.bf16.gmra.mrb[0].mxu0 %v1145
      %v2839 = vpop.f32.mrb[0].mxu0
      %v2840 = vadd.f32 0.0, %v2839
      %v2841 = vpop.f32.mrb[0].mxu0
      %v2842 = vpop.f32.mrb[0].mxu0
      %v2843 = vadd.f32 0.0, %v2842
      %v2844 = vpop.f32.mrb[0].mxu0
      %2845 = vmatprep.mubr.bf16.mxu0 0
      %2846 = vmatmul.mubr.bf16.gmra.mrb[0].mxu0 %v1146
      %v2847 = vpop.f32.mrb[0].mxu0
      %v2848 = vadd.f32 0.0, %v2847
      %v2849 = vpop.f32.mrb[0].mxu0
      %v2850 = vpop.f32.mrb[0].mxu0
      %v2851 = vadd.f32 0.0, %v2850
      %v2852 = vpop.f32.mrb[0].mxu0
      %2853 = vmatprep.mubr.bf16.mxu0 0
      %2854 = vmatmul.mubr.bf16.gmra.mrb[0].mxu0 %v1147
      %v2855 = vpop.f32.mrb[0].mxu0
      %v2856 = vadd.f32 0.0, %v2855
      %v2857 = vpop.f32.mrb[0].mxu0
      %v2858 = vpop.f32.mrb[0].mxu0
      %v2859 = vadd.f32 0.0, %v2858
      %v2860 = vpop.f32.mrb[0].mxu0
      %2861 = vmatprep.mubr.bf16.mxu0 0
      %2862 = vmatmul.mubr.bf16.gmra.mrb[0].mxu0 %v1847
      %v2863 = vpop.f32.mrb[0].mxu0
      %v2864 = vadd.f32 0.0, %v2863
      %v2865 = vpop.f32.mrb[0].mxu0
      %v2866 = vpop.f32.mrb[0].mxu0
      %v2867 = vadd.f32 0.0, %v2866
      %v2868 = vpop.f32.mrb[0].mxu0
      %2869 = vmatprep.mubr.bf16.mxu0 0
      %2870 = vmatmul.mubr.bf16.gmra.mrb[0].mxu0 %v2667
      %v2871 = vpop.f32.mrb[0].mxu0
      %v2872 = vadd.f32 0.0, %v2871
      %v2873 = vpop.f32.mrb[0].mxu0
      %v2874 = vpop.f32.mrb[0].mxu0
      %v2875 = vadd.f32 0.0, %v2874
      %v2876 = vpop.f32.mrb[0].mxu0
      %2877 = vdwg.mxu0
      %v2878 = vadd.f32 %v2614, %v2752
      %v2879 = vadd.f32 %v2615, %v2755
      %v2880 = vadd.f32 %v2616, %v2760
      %v2881 = vadd.f32 %v2617, %v2763
      %v2882 = vadd.f32 %v2618, %v2768
      %v2883 = vadd.f32 %v2619, %v2771
      %v2884 = vadd.f32 %v2620, %v2776
      %v2885 = vadd.f32 %v2621, %v2779
      %v2886 = vadd.f32 %v2622, %v2784
      %v2887 = vadd.f32 %v2623, %v2787
      %v2888 = vadd.f32 %v2624, %v2792
      %v2889 = vadd.f32 %v2625, %v2795
      %v2890 = vadd.f32 %v2626, %v2800
      %v2891 = vadd.f32 %v2627, %v2803
      %v2892 = vadd.f32 %v2628, %v2808
      %v2893 = vadd.f32 %v2629, %v2811
      %v2894 = vadd.f32 %v2630, %v2816
      %v2895 = vadd.f32 %v2631, %v2819
      %v2896 = vadd.f32 %v2632, %v2824
      %v2897 = vadd.f32 %v2633, %v2827
      %v2898 = vadd.f32 %v2634, %v2832
      %v2899 = vadd.f32 %v2635, %v2835
      %v2900 = vadd.f32 %v2636, %v2840
      %v2901 = vadd.f32 %v2637, %v2843
      %v2902 = vadd.f32 %v2638, %v2848
      %v2903 = vadd.f32 %v2639, %v2851
      %v2904 = vadd.f32 %v2640, %v2856
      %v2905 = vadd.f32 %v2641, %v2859
      %v2906 = vadd.f32 %v2642, %v2864
      %v2907 = vadd.f32 %v2643, %v2867
      %v2908 = vadd.f32 %v2644, %v2872
      %v2909 = vadd.f32 %v2645, %v2875
      %v2911 = vshrl.u32 %v372, 16
      %v2913 = vrot.slane %v2911, 4
      %v2914 = vshll.u32 %v372, 16
      %v2916 = vrot.slane %v2914, 5
      %v2917 = vor.u32 %v2913, %v2916
      %v2918 = vrot.slane %v2917, 4
      %v2920 = vshll.u32 %v373, 16
      %v2922 = vrot.slane %v2920, 5
      %v2923 = vsel %vm393, %v2918, %v2922
      %v2924 = vshrl.u32 %v373, 16
      %v2926 = vrot.slane %v2924, 4
      %v2927 = vor.u32 %v2926, %v2922
      %v2928 = vrot.slane %v2927, 4
      %v2930 = vshll.u32 %v374, 16
      %v2932 = vrot.slane %v2930, 5
      %v2933 = vsel %vm393, %v2928, %v2932
      %s2934 = scalar_lea.vmem %s2, 448
      %v2935 = vld [vmem:[%s2934] sm:$0xf]
      %v2936 = vld [vmem:[%s2934 + $0x4] sm:$0xf]
      %v2937 = vld [vmem:[%s2934 + $0x8] sm:$0xf]
      %v2938 = vld [vmem:[%s2934 + $0xc] sm:$0xf]
      %v2939 = vld [vmem:[%s2934 + $0x10] sm:$0xf]
      %v2940 = vld [vmem:[%s2934 + $0x14] sm:$0xf]
      %v2941 = vld [vmem:[%s2934 + $0x18] sm:$0xf]
      %v2942 = vld [vmem:[%s2934 + $0x1c] sm:$0xf]
      %v2943 = vld [vmem:[%s2934 + $0x20] sm:$0xf]
      %v2944 = vld [vmem:[%s2934 + $0x24] sm:$0xf]
      %v2945 = vld [vmem:[%s2934 + $0x28] sm:$0xf]
      %v2946 = vld [vmem:[%s2934 + $0x2c] sm:$0xf]
      %v2947 = vld [vmem:[%s2934 + $0x30] sm:$0xf]
      %v2948 = vld [vmem:[%s2934 + $0x34] sm:$0xf]
      %v2949 = vld [vmem:[%s2934 + $0x38] sm:$0xf]
      %v2950 = vld [vmem:[%s2934 + $0x3c] sm:$0xf]
      %v2951 = vunpack.c.l.b16 %v2923
      %v2952 = vunpack.c.l.b16 %v2933
      %v2953 = vpack.c.b16 %v2952, %v2951
      %v2971 = vunpack.c.l.b16 %v2935
      %v2972 = vunpack.c.l.b16 %v2936
      %v2973 = vunpack.c.l.b16 %v2937
      %v2974 = vunpack.c.l.b16 %v2938
      %v2975 = vunpack.c.l.b16 %v2939
      %v2976 = vunpack.c.l.b16 %v2940
      %v2977 = vunpack.c.l.b16 %v2941
      %v2978 = vunpack.c.l.b16 %v2942
      %v2979 = vunpack.c.l.b16 %v2943
      %v2980 = vunpack.c.l.b16 %v2944
      %v2981 = vunpack.c.l.b16 %v2945
      %v2982 = vunpack.c.l.b16 %v2946
      %v2983 = vunpack.c.l.b16 %v2947
      %v2984 = vunpack.c.l.b16 %v2948
      %v2985 = vunpack.c.l.b16 %v2949
      %v2986 = vunpack.c.l.b16 %v2950
      %v2987 = vpack.c.b16 %v2972, %v2971
      %v2988 = vpack.c.b16 %v2974, %v2973
      %v2989 = vpack.c.b16 %v2976, %v2975
      %v2990 = vpack.c.b16 %v2978, %v2977
      %v2991 = vpack.c.b16 %v2980, %v2979
      %v2992 = vpack.c.b16 %v2982, %v2981
      %v2993 = vpack.c.b16 %v2984, %v2983
      %v2994 = vpack.c.b16 %v2986, %v2985
      %3003 = vmatprep.subr.bf16.mxu0 0
      %3004 = vmatpush1.bf16.msra.mxu0 %v2987
      %3005 = vmatprep.subr.bf16.mxu0 0
      %3006 = vmatpush1.bf16.msra.mxu0 %v2988
      %3007 = vmatprep.subr.bf16.mxu0 0
      %3008 = vmatpush1.bf16.msra.mxu0 %v2989
      %3009 = vmatprep.subr.bf16.mxu0 0
      %3010 = vmatpush1.bf16.msra.mxu0 %v2990
      %3011 = vmatprep.subr.bf16.mxu0 0
      %3012 = vmatpush1.bf16.msra.mxu0 %v2991
      %3013 = vmatprep.subr.bf16.mxu0 0
      %3014 = vmatpush1.bf16.msra.mxu0 %v2992
      %3015 = vmatprep.subr.bf16.mxu0 0
      %3016 = vmatpush1.bf16.msra.mxu0 %v2993
      %3017 = vmatprep.subr.bf16.mxu0 0
      %3018 = vmatpush1.bf16.msra.mxu0 %v2994
      %3019 = vmatprep.subr.bf16.mxu0 0
      %3020 = vmatpush1.bf16.msra.mxu0 0
      %3021 = vmatprep.subr.bf16.mxu0 0
      %3022 = vmatpush1.bf16.msra.mxu0 0
      %3023 = vmatprep.subr.bf16.mxu0 0
      %3024 = vmatpush1.bf16.msra.mxu0 0
      %3025 = vmatprep.subr.bf16.mxu0 0
      %3026 = vmatpush1.bf16.msra.mxu0 0
      %3027 = vmatprep.subr.bf16.mxu0 0
      %3028 = vmatpush1.bf16.msra.mxu0 0
      %3029 = vmatprep.subr.bf16.mxu0 0
      %3030 = vmatpush1.bf16.msra.mxu0 0
      %3031 = vmatprep.subr.bf16.mxu0 0
      %3032 = vmatpush1.bf16.msra.mxu0 0
      %3033 = vmatprep.subr.bf16.mxu0 0
      %3034 = vmatpush1.bf16.msra.mxu0 0
      %3035 = vmatprep.mubr.bf16.mxu0 0
      %3036 = vmatmul.mubr.bf16.gmra.mrb[0].mxu0 %v829
      %v3037 = vpop.f32.mrb[0].mxu0
      %v3038 = vadd.f32 0.0, %v3037
      %v3039 = vpop.f32.mrb[0].mxu0
      %v3040 = vpop.f32.mrb[0].mxu0
      %v3041 = vadd.f32 0.0, %v3040
      %v3042 = vpop.f32.mrb[0].mxu0
      %3043 = vmatprep.mubr.bf16.mxu0 0
      %3044 = vmatmul.mubr.bf16.gmra.mrb[0].mxu0 %v830
      %v3045 = vpop.f32.mrb[0].mxu0
      %v3046 = vadd.f32 0.0, %v3045
      %v3047 = vpop.f32.mrb[0].mxu0
      %v3048 = vpop.f32.mrb[0].mxu0
      %v3049 = vadd.f32 0.0, %v3048
      %v3050 = vpop.f32.mrb[0].mxu0
      %3051 = vmatprep.mubr.bf16.mxu0 0
      %3052 = vmatmul.mubr.bf16.gmra.mrb[0].mxu0 %v831
      %v3053 = vpop.f32.mrb[0].mxu0
      %v3054 = vadd.f32 0.0, %v3053
      %v3055 = vpop.f32.mrb[0].mxu0
      %v3056 = vpop.f32.mrb[0].mxu0
      %v3057 = vadd.f32 0.0, %v3056
      %v3058 = vpop.f32.mrb[0].mxu0
      %3059 = vmatprep.mubr.bf16.mxu0 0
      %3060 = vmatmul.mubr.bf16.gmra.mrb[0].mxu0 %v832
      %v3061 = vpop.f32.mrb[0].mxu0
      %v3062 = vadd.f32 0.0, %v3061
      %v3063 = vpop.f32.mrb[0].mxu0
      %v3064 = vpop.f32.mrb[0].mxu0
      %v3065 = vadd.f32 0.0, %v3064
      %v3066 = vpop.f32.mrb[0].mxu0
      %3067 = vmatprep.mubr.bf16.mxu0 0
      %3068 = vmatmul.mubr.bf16.gmra.mrb[0].mxu0 %v833
      %v3069 = vpop.f32.mrb[0].mxu0
      %v3070 = vadd.f32 0.0, %v3069
      %v3071 = vpop.f32.mrb[0].mxu0
      %v3072 = vpop.f32.mrb[0].mxu0
      %v3073 = vadd.f32 0.0, %v3072
      %v3074 = vpop.f32.mrb[0].mxu0
      %3075 = vmatprep.mubr.bf16.mxu0 0
      %3076 = vmatmul.mubr.bf16.gmra.mrb[0].mxu0 %v834
      %v3077 = vpop.f32.mrb[0].mxu0
      %v3078 = vadd.f32 0.0, %v3077
      %v3079 = vpop.f32.mrb[0].mxu0
      %v3080 = vpop.f32.mrb[0].mxu0
      %v3081 = vadd.f32 0.0, %v3080
      %v3082 = vpop.f32.mrb[0].mxu0
      %3083 = vmatprep.mubr.bf16.mxu0 0
      %3084 = vmatmul.mubr.bf16.gmra.mrb[0].mxu0 %v835
      %v3085 = vpop.f32.mrb[0].mxu0
      %v3086 = vadd.f32 0.0, %v3085
      %v3087 = vpop.f32.mrb[0].mxu0
      %v3088 = vpop.f32.mrb[0].mxu0
      %v3089 = vadd.f32 0.0, %v3088
      %v3090 = vpop.f32.mrb[0].mxu0
      %3091 = vmatprep.mubr.bf16.mxu0 0
      %3092 = vmatmul.mubr.bf16.gmra.mrb[0].mxu0 %v836
      %v3093 = vpop.f32.mrb[0].mxu0
      %v3094 = vadd.f32 0.0, %v3093
      %v3095 = vpop.f32.mrb[0].mxu0
      %v3096 = vpop.f32.mrb[0].mxu0
      %v3097 = vadd.f32 0.0, %v3096
      %v3098 = vpop.f32.mrb[0].mxu0
      %3099 = vmatprep.mubr.bf16.mxu0 0
      %3100 = vmatmul.mubr.bf16.gmra.mrb[0].mxu0 %v837
      %v3101 = vpop.f32.mrb[0].mxu0
      %v3102 = vadd.f32 0.0, %v3101
      %v3103 = vpop.f32.mrb[0].mxu0
      %v3104 = vpop.f32.mrb[0].mxu0
      %v3105 = vadd.f32 0.0, %v3104
      %v3106 = vpop.f32.mrb[0].mxu0
      %3107 = vmatprep.mubr.bf16.mxu0 0
      %3108 = vmatmul.mubr.bf16.gmra.mrb[0].mxu0 %v838
      %v3109 = vpop.f32.mrb[0].mxu0
      %v3110 = vadd.f32 0.0, %v3109
      %v3111 = vpop.f32.mrb[0].mxu0
      %v3112 = vpop.f32.mrb[0].mxu0
      %v3113 = vadd.f32 0.0, %v3112
      %v3114 = vpop.f32.mrb[0].mxu0
      %3115 = vmatprep.mubr.bf16.mxu0 0
      %3116 = vmatmul.mubr.bf16.gmra.mrb[0].mxu0 %v839
      %v3117 = vpop.f32.mrb[0].mxu0
      %v3118 = vadd.f32 0.0, %v3117
      %v3119 = vpop.f32.mrb[0].mxu0
      %v3120 = vpop.f32.mrb[0].mxu0
      %v3121 = vadd.f32 0.0, %v3120
      %v3122 = vpop.f32.mrb[0].mxu0
      %3123 = vmatprep.mubr.bf16.mxu0 0
      %3124 = vmatmul.mubr.bf16.gmra.mrb[0].mxu0 %v840
      %v3125 = vpop.f32.mrb[0].mxu0
      %v3126 = vadd.f32 0.0, %v3125
      %v3127 = vpop.f32.mrb[0].mxu0
      %v3128 = vpop.f32.mrb[0].mxu0
      %v3129 = vadd.f32 0.0, %v3128
      %v3130 = vpop.f32.mrb[0].mxu0
      %3131 = vmatprep.mubr.bf16.mxu0 0
      %3132 = vmatmul.mubr.bf16.gmra.mrb[0].mxu0 %v841
      %v3133 = vpop.f32.mrb[0].mxu0
      %v3134 = vadd.f32 0.0, %v3133
      %v3135 = vpop.f32.mrb[0].mxu0
      %v3136 = vpop.f32.mrb[0].mxu0
      %v3137 = vadd.f32 0.0, %v3136
      %v3138 = vpop.f32.mrb[0].mxu0
      %3139 = vmatprep.mubr.bf16.mxu0 0
      %3140 = vmatmul.mubr.bf16.gmra.mrb[0].mxu0 %v842
      %v3141 = vpop.f32.mrb[0].mxu0
      %v3142 = vadd.f32 0.0, %v3141
      %v3143 = vpop.f32.mrb[0].mxu0
      %v3144 = vpop.f32.mrb[0].mxu0
      %v3145 = vadd.f32 0.0, %v3144
      %v3146 = vpop.f32.mrb[0].mxu0
      %3147 = vmatprep.mubr.bf16.mxu0 0
      %3148 = vmatmul.mubr.bf16.gmra.mrb[0].mxu0 %v2133
      %v3149 = vpop.f32.mrb[0].mxu0
      %v3150 = vadd.f32 0.0, %v3149
      %v3151 = vpop.f32.mrb[0].mxu0
      %v3152 = vpop.f32.mrb[0].mxu0
      %v3153 = vadd.f32 0.0, %v3152
      %v3154 = vpop.f32.mrb[0].mxu0
      %3155 = vmatprep.mubr.bf16.mxu0 0
      %3156 = vmatmul.mubr.bf16.gmra.mrb[0].mxu0 %v2953
      %v3157 = vpop.f32.mrb[0].mxu0
      %v3158 = vadd.f32 0.0, %v3157
      %v3159 = vpop.f32.mrb[0].mxu0
      %v3160 = vpop.f32.mrb[0].mxu0
      %v3161 = vadd.f32 0.0, %v3160
      %v3162 = vpop.f32.mrb[0].mxu0
      %3163 = vdwg.mxu0
      %v3164 = vadd.f32 %v2878, %v3038
      %v3165 = vadd.f32 %v2879, %v3041
      %v3166 = vadd.f32 %v2880, %v3046
      %v3167 = vadd.f32 %v2881, %v3049
      %v3168 = vadd.f32 %v2882, %v3054
      %v3169 = vadd.f32 %v2883, %v3057
      %v3170 = vadd.f32 %v2884, %v3062
      %v3171 = vadd.f32 %v2885, %v3065
      %v3172 = vadd.f32 %v2886, %v3070
      %v3173 = vadd.f32 %v2887, %v3073
      %v3174 = vadd.f32 %v2888, %v3078
      %v3175 = vadd.f32 %v2889, %v3081
      %v3176 = vadd.f32 %v2890, %v3086
      %v3177 = vadd.f32 %v2891, %v3089
      %v3178 = vadd.f32 %v2892, %v3094
      %v3179 = vadd.f32 %v2893, %v3097
      %v3180 = vadd.f32 %v2894, %v3102
      %v3181 = vadd.f32 %v2895, %v3105
      %v3182 = vadd.f32 %v2896, %v3110
      %v3183 = vadd.f32 %v2897, %v3113
      %v3184 = vadd.f32 %v2898, %v3118
      %v3185 = vadd.f32 %v2899, %v3121
      %v3186 = vadd.f32 %v2900, %v3126
      %v3187 = vadd.f32 %v2901, %v3129
      %v3188 = vadd.f32 %v2902, %v3134
      %v3189 = vadd.f32 %v2903, %v3137
      %v3190 = vadd.f32 %v2904, %v3142
      %v3191 = vadd.f32 %v2905, %v3145
      %v3192 = vadd.f32 %v2906, %v3150
      %v3193 = vadd.f32 %v2907, %v3153
      %v3194 = vadd.f32 %v2908, %v3158
      %v3195 = vadd.f32 %v2909, %v3161
      %v3197 = vrot.slane %v372, 5
      %v3198 = vrot.slane %v3197, 4
      %v3199 = vrot.slane %v373, 5
      %v3200 = vsel %vm1391, %v3198, %v3199
      %v3201 = vrot.slane %v3199, 4
      %v3202 = vrot.slane %v374, 5
      %v3203 = vsel %vm1391, %v3201, %v3202
      %s3204 = scalar_lea.vmem %s2, 512
      %v3205 = vld [vmem:[%s3204] sm:$0xf]
      %v3206 = vld [vmem:[%s3204 + $0x4] sm:$0xf]
      %v3207 = vld [vmem:[%s3204 + $0x8] sm:$0xf]
      %v3208 = vld [vmem:[%s3204 + $0xc] sm:$0xf]
      %v3209 = vld [vmem:[%s3204 + $0x10] sm:$0xf]
      %v3210 = vld [vmem:[%s3204 + $0x14] sm:$0xf]
      %v3211 = vld [vmem:[%s3204 + $0x18] sm:$0xf]
      %v3212 = vld [vmem:[%s3204 + $0x1c] sm:$0xf]
      %v3213 = vld [vmem:[%s3204 + $0x20] sm:$0xf]
      %v3214 = vld [vmem:[%s3204 + $0x24] sm:$0xf]
      %v3215 = vld [vmem:[%s3204 + $0x28] sm:$0xf]
      %v3216 = vld [vmem:[%s3204 + $0x2c] sm:$0xf]
      %v3217 = vld [vmem:[%s3204 + $0x30] sm:$0xf]
      %v3218 = vld [vmem:[%s3204 + $0x34] sm:$0xf]
      %v3219 = vld [vmem:[%s3204 + $0x38] sm:$0xf]
      %v3220 = vld [vmem:[%s3204 + $0x3c] sm:$0xf]
      %v3221 = vunpack.c.l.b16 %v3200
      %v3222 = vunpack.c.l.b16 %v3203
      %v3223 = vpack.c.b16 %v3222, %v3221
      %v3241 = vunpack.c.l.b16 %v3205
      %v3242 = vunpack.c.l.b16 %v3206
      %v3243 = vunpack.c.l.b16 %v3207
      %v3244 = vunpack.c.l.b16 %v3208
      %v3245 = vunpack.c.l.b16 %v3209
      %v3246 = vunpack.c.l.b16 %v3210
      %v3247 = vunpack.c.l.b16 %v3211
      %v3248 = vunpack.c.l.b16 %v3212
      %v3249 = vunpack.c.l.b16 %v3213
      %v3250 = vunpack.c.l.b16 %v3214
      %v3251 = vunpack.c.l.b16 %v3215
      %v3252 = vunpack.c.l.b16 %v3216
      %v3253 = vunpack.c.l.b16 %v3217
      %v3254 = vunpack.c.l.b16 %v3218
      %v3255 = vunpack.c.l.b16 %v3219
      %v3256 = vunpack.c.l.b16 %v3220
      %v3257 = vpack.c.b16 %v3242, %v3241
      %v3258 = vpack.c.b16 %v3244, %v3243
      %v3259 = vpack.c.b16 %v3246, %v3245
      %v3260 = vpack.c.b16 %v3248, %v3247
      %v3261 = vpack.c.b16 %v3250, %v3249
      %v3262 = vpack.c.b16 %v3252, %v3251
      %v3263 = vpack.c.b16 %v3254, %v3253
      %v3264 = vpack.c.b16 %v3256, %v3255
      %3273 = vmatprep.subr.bf16.mxu0 0
      %3274 = vmatpush1.bf16.msra.mxu0 %v3257
      %3275 = vmatprep.subr.bf16.mxu0 0
      %3276 = vmatpush1.bf16.msra.mxu0 %v3258
      %3277 = vmatprep.subr.bf16.mxu0 0
      %3278 = vmatpush1.bf16.msra.mxu0 %v3259
      %3279 = vmatprep.subr.bf16.mxu0 0
      %3280 = vmatpush1.bf16.msra.mxu0 %v3260
      %3281 = vmatprep.subr.bf16.mxu0 0
      %3282 = vmatpush1.bf16.msra.mxu0 %v3261
      %3283 = vmatprep.subr.bf16.mxu0 0
      %3284 = vmatpush1.bf16.msra.mxu0 %v3262
      %3285 = vmatprep.subr.bf16.mxu0 0
      %3286 = vmatpush1.bf16.msra.mxu0 %v3263
      %3287 = vmatprep.subr.bf16.mxu0 0
      %3288 = vmatpush1.bf16.msra.mxu0 %v3264
      %3289 = vmatprep.subr.bf16.mxu0 0
      %3290 = vmatpush1.bf16.msra.mxu0 0
      %3291 = vmatprep.subr.bf16.mxu0 0
      %3292 = vmatpush1.bf16.msra.mxu0 0
      %3293 = vmatprep.subr.bf16.mxu0 0
      %3294 = vmatpush1.bf16.msra.mxu0 0
      %3295 = vmatprep.subr.bf16.mxu0 0
      %3296 = vmatpush1.bf16.msra.mxu0 0
      %3297 = vmatprep.subr.bf16.mxu0 0
      %3298 = vmatpush1.bf16.msra.mxu0 0
      %3299 = vmatprep.subr.bf16.mxu0 0
      %3300 = vmatpush1.bf16.msra.mxu0 0
      %3301 = vmatprep.subr.bf16.mxu0 0
      %3302 = vmatpush1.bf16.msra.mxu0 0
      %3303 = vmatprep.subr.bf16.mxu0 0
      %3304 = vmatpush1.bf16.msra.mxu0 0
      %3305 = vmatprep.mubr.bf16.mxu0 0
      %3306 = vmatmul.mubr.bf16.gmra.mrb[0].mxu0 %v1555
      %v3307 = vpop.f32.mrb[0].mxu0
      %v3308 = vadd.f32 0.0, %v3307
      %v3309 = vpop.f32.mrb[0].mxu0
      %v3310 = vpop.f32.mrb[0].mxu0
      %v3311 = vadd.f32 0.0, %v3310
      %v3312 = vpop.f32.mrb[0].mxu0
      %3313 = vmatprep.mubr.bf16.mxu0 0
      %3314 = vmatmul.mubr.bf16.gmra.mrb[0].mxu0 %v1556
      %v3315 = vpop.f32.mrb[0].mxu0
      %v3316 = vadd.f32 0.0, %v3315
      %v3317 = vpop.f32.mrb[0].mxu0
      %v3318 = vpop.f32.mrb[0].mxu0
      %v3319 = vadd.f32 0.0, %v3318
      %v3320 = vpop.f32.mrb[0].mxu0
      %3321 = vmatprep.mubr.bf16.mxu0 0
      %3322 = vmatmul.mubr.bf16.gmra.mrb[0].mxu0 %v1557
      %v3323 = vpop.f32.mrb[0].mxu0
      %v3324 = vadd.f32 0.0, %v3323
      %v3325 = vpop.f32.mrb[0].mxu0
      %v3326 = vpop.f32.mrb[0].mxu0
      %v3327 = vadd.f32 0.0, %v3326
      %v3328 = vpop.f32.mrb[0].mxu0
      %3329 = vmatprep.mubr.bf16.mxu0 0
      %3330 = vmatmul.mubr.bf16.gmra.mrb[0].mxu0 %v1558
      %v3331 = vpop.f32.mrb[0].mxu0
      %v3332 = vadd.f32 0.0, %v3331
      %v3333 = vpop.f32.mrb[0].mxu0
      %v3334 = vpop.f32.mrb[0].mxu0
      %v3335 = vadd.f32 0.0, %v3334
      %v3336 = vpop.f32.mrb[0].mxu0
      %3337 = vmatprep.mubr.bf16.mxu0 0
      %3338 = vmatmul.mubr.bf16.gmra.mrb[0].mxu0 %v1559
      %v3339 = vpop.f32.mrb[0].mxu0
      %v3340 = vadd.f32 0.0, %v3339
      %v3341 = vpop.f32.mrb[0].mxu0
      %v3342 = vpop.f32.mrb[0].mxu0
      %v3343 = vadd.f32 0.0, %v3342
      %v3344 = vpop.f32.mrb[0].mxu0
      %3345 = vmatprep.mubr.bf16.mxu0 0
      %3346 = vmatmul.mubr.bf16.gmra.mrb[0].mxu0 %v1560
      %v3347 = vpop.f32.mrb[0].mxu0
      %v3348 = vadd.f32 0.0, %v3347
      %v3349 = vpop.f32.mrb[0].mxu0
      %v3350 = vpop.f32.mrb[0].mxu0
      %v3351 = vadd.f32 0.0, %v3350
      %v3352 = vpop.f32.mrb[0].mxu0
      %3353 = vmatprep.mubr.bf16.mxu0 0
      %3354 = vmatmul.mubr.bf16.gmra.mrb[0].mxu0 %v1561
      %v3355 = vpop.f32.mrb[0].mxu0
      %v3356 = vadd.f32 0.0, %v3355
      %v3357 = vpop.f32.mrb[0].mxu0
      %v3358 = vpop.f32.mrb[0].mxu0
      %v3359 = vadd.f32 0.0, %v3358
      %v3360 = vpop.f32.mrb[0].mxu0
      %3361 = vmatprep.mubr.bf16.mxu0 0
      %3362 = vmatmul.mubr.bf16.gmra.mrb[0].mxu0 %v1562
      %v3363 = vpop.f32.mrb[0].mxu0
      %v3364 = vadd.f32 0.0, %v3363
      %v3365 = vpop.f32.mrb[0].mxu0
      %v3366 = vpop.f32.mrb[0].mxu0
      %v3367 = vadd.f32 0.0, %v3366
      %v3368 = vpop.f32.mrb[0].mxu0
      %3369 = vmatprep.mubr.bf16.mxu0 0
      %3370 = vmatmul.mubr.bf16.gmra.mrb[0].mxu0 %v1563
      %v3371 = vpop.f32.mrb[0].mxu0
      %v3372 = vadd.f32 0.0, %v3371
      %v3373 = vpop.f32.mrb[0].mxu0
      %v3374 = vpop.f32.mrb[0].mxu0
      %v3375 = vadd.f32 0.0, %v3374
      %v3376 = vpop.f32.mrb[0].mxu0
      %3377 = vmatprep.mubr.bf16.mxu0 0
      %3378 = vmatmul.mubr.bf16.gmra.mrb[0].mxu0 %v1564
      %v3379 = vpop.f32.mrb[0].mxu0
      %v3380 = vadd.f32 0.0, %v3379
      %v3381 = vpop.f32.mrb[0].mxu0
      %v3382 = vpop.f32.mrb[0].mxu0
      %v3383 = vadd.f32 0.0, %v3382
      %v3384 = vpop.f32.mrb[0].mxu0
      %3385 = vmatprep.mubr.bf16.mxu0 0
      %3386 = vmatmul.mubr.bf16.gmra.mrb[0].mxu0 %v1565
      %v3387 = vpop.f32.mrb[0].mxu0
      %v3388 = vadd.f32 0.0, %v3387
      %v3389 = vpop.f32.mrb[0].mxu0
      %v3390 = vpop.f32.mrb[0].mxu0
      %v3391 = vadd.f32 0.0, %v3390
      %v3392 = vpop.f32.mrb[0].mxu0
      %3393 = vmatprep.mubr.bf16.mxu0 0
      %3394 = vmatmul.mubr.bf16.gmra.mrb[0].mxu0 %v1566
      %v3395 = vpop.f32.mrb[0].mxu0
      %v3396 = vadd.f32 0.0, %v3395
      %v3397 = vpop.f32.mrb[0].mxu0
      %v3398 = vpop.f32.mrb[0].mxu0
      %v3399 = vadd.f32 0.0, %v3398
      %v3400 = vpop.f32.mrb[0].mxu0
      %3401 = vmatprep.mubr.bf16.mxu0 0
      %3402 = vmatmul.mubr.bf16.gmra.mrb[0].mxu0 %v1567
      %v3403 = vpop.f32.mrb[0].mxu0
      %v3404 = vadd.f32 0.0, %v3403
      %v3405 = vpop.f32.mrb[0].mxu0
      %v3406 = vpop.f32.mrb[0].mxu0
      %v3407 = vadd.f32 0.0, %v3406
      %v3408 = vpop.f32.mrb[0].mxu0
      %3409 = vmatprep.mubr.bf16.mxu0 0
      %3410 = vmatmul.mubr.bf16.gmra.mrb[0].mxu0 %v1568
      %v3411 = vpop.f32.mrb[0].mxu0
      %v3412 = vadd.f32 0.0, %v3411
      %v3413 = vpop.f32.mrb[0].mxu0
      %v3414 = vpop.f32.mrb[0].mxu0
      %v3415 = vadd.f32 0.0, %v3414
      %v3416 = vpop.f32.mrb[0].mxu0
      %3417 = vmatprep.mubr.bf16.mxu0 0
      %3418 = vmatmul.mubr.bf16.gmra.mrb[0].mxu0 %v2403
      %v3419 = vpop.f32.mrb[0].mxu0
      %v3420 = vadd.f32 0.0, %v3419
      %v3421 = vpop.f32.mrb[0].mxu0
      %v3422 = vpop.f32.mrb[0].mxu0
      %v3423 = vadd.f32 0.0, %v3422
      %v3424 = vpop.f32.mrb[0].mxu0
      %3425 = vmatprep.mubr.bf16.mxu0 0
      %3426 = vmatmul.mubr.bf16.gmra.mrb[0].mxu0 %v3223
      %v3427 = vpop.f32.mrb[0].mxu0
      %v3428 = vadd.f32 0.0, %v3427
      %v3429 = vpop.f32.mrb[0].mxu0
      %v3430 = vpop.f32.mrb[0].mxu0
      %v3431 = vadd.f32 0.0, %v3430
      %v3432 = vpop.f32.mrb[0].mxu0
      %3433 = vdwg.mxu0
      %v3434 = vadd.f32 %v3164, %v3308
      %v3435 = vadd.f32 %v3165, %v3311
      %v3436 = vadd.f32 %v3166, %v3316
      %v3437 = vadd.f32 %v3167, %v3319
      %v3438 = vadd.f32 %v3168, %v3324
      %v3439 = vadd.f32 %v3169, %v3327
      %v3440 = vadd.f32 %v3170, %v3332
      %v3441 = vadd.f32 %v3171, %v3335
      %v3442 = vadd.f32 %v3172, %v3340
      %v3443 = vadd.f32 %v3173, %v3343
      %v3444 = vadd.f32 %v3174, %v3348
      %v3445 = vadd.f32 %v3175, %v3351
      %v3446 = vadd.f32 %v3176, %v3356
      %v3447 = vadd.f32 %v3177, %v3359
      %v3448 = vadd.f32 %v3178, %v3364
      %v3449 = vadd.f32 %v3179, %v3367
      %v3450 = vadd.f32 %v3180, %v3372
      %v3451 = vadd.f32 %v3181, %v3375
      %v3452 = vadd.f32 %v3182, %v3380
      %v3453 = vadd.f32 %v3183, %v3383
      %v3454 = vadd.f32 %v3184, %v3388
      %v3455 = vadd.f32 %v3185, %v3391
      %v3456 = vadd.f32 %v3186, %v3396
      %v3457 = vadd.f32 %v3187, %v3399
      %v3458 = vadd.f32 %v3188, %v3404
      %v3459 = vadd.f32 %v3189, %v3407
      %v3460 = vadd.f32 %v3190, %v3412
      %v3461 = vadd.f32 %v3191, %v3415
      %v3462 = vadd.f32 %v3192, %v3420
      %v3463 = vadd.f32 %v3193, %v3423
      %v3464 = vadd.f32 %v3194, %v3428
      %v3465 = vadd.f32 %v3195, %v3431
      %v3466 = vld [vmem:[%s3] sm:$0x1]
      %v3468 = vlaneseq
      %v3469 = vshrl.u32 %v3468, 7
      %v3470 = vsub.s32 0, %v3469
      %v3471 = vrot.slane %v3466, %v3470
      %v3473 = vadd.f32 %v3434, %v3471
      %v3474 = vadd.f32 %v3435, %v3471
      %v3475 = vadd.f32 %v3436, %v3471
      %v3476 = vadd.f32 %v3437, %v3471
      %v3477 = vadd.f32 %v3438, %v3471
      %v3478 = vadd.f32 %v3439, %v3471
      %v3479 = vadd.f32 %v3440, %v3471
      %v3480 = vadd.f32 %v3441, %v3471
      %v3481 = vadd.f32 %v3442, %v3471
      %v3482 = vadd.f32 %v3443, %v3471
      %v3483 = vadd.f32 %v3444, %v3471
      %v3484 = vadd.f32 %v3445, %v3471
      %v3485 = vadd.f32 %v3446, %v3471
      %v3486 = vadd.f32 %v3447, %v3471
      %v3487 = vadd.f32 %v3448, %v3471
      %v3488 = vadd.f32 %v3449, %v3471
      %v3489 = vadd.f32 %v3450, %v3471
      %v3490 = vadd.f32 %v3451, %v3471
      %v3491 = vadd.f32 %v3452, %v3471
      %v3492 = vadd.f32 %v3453, %v3471
      %v3493 = vadd.f32 %v3454, %v3471
      %v3494 = vadd.f32 %v3455, %v3471
      %v3495 = vadd.f32 %v3456, %v3471
      %v3496 = vadd.f32 %v3457, %v3471
      %v3497 = vadd.f32 %v3458, %v3471
      %v3498 = vadd.f32 %v3459, %v3471
      %v3499 = vadd.f32 %v3460, %v3471
      %v3500 = vadd.f32 %v3461, %v3471
      %v3501 = vadd.f32 %v3462, %v3471
      %v3502 = vadd.f32 %v3463, %v3471
      %v3503 = vadd.f32 %v3464, %v3471
      %v3504 = vadd.f32 %v3465, %v3471
      %v3505 = vmax.f32 %v3473, 0.0
      %v3506 = vmax.f32 %v3474, 0.0
      %v3507 = vmax.f32 %v3475, 0.0
      %v3508 = vmax.f32 %v3476, 0.0
      %v3509 = vmax.f32 %v3477, 0.0
      %v3510 = vmax.f32 %v3478, 0.0
      %v3511 = vmax.f32 %v3479, 0.0
      %v3512 = vmax.f32 %v3480, 0.0
      %v3513 = vmax.f32 %v3481, 0.0
      %v3514 = vmax.f32 %v3482, 0.0
      %v3515 = vmax.f32 %v3483, 0.0
      %v3516 = vmax.f32 %v3484, 0.0
      %v3517 = vmax.f32 %v3485, 0.0
      %v3518 = vmax.f32 %v3486, 0.0
      %v3519 = vmax.f32 %v3487, 0.0
      %v3520 = vmax.f32 %v3488, 0.0
      %v3521 = vmax.f32 %v3489, 0.0
      %v3522 = vmax.f32 %v3490, 0.0
      %v3523 = vmax.f32 %v3491, 0.0
      %v3524 = vmax.f32 %v3492, 0.0
      %v3525 = vmax.f32 %v3493, 0.0
      %v3526 = vmax.f32 %v3494, 0.0
      %v3527 = vmax.f32 %v3495, 0.0
      %v3528 = vmax.f32 %v3496, 0.0
      %v3529 = vmax.f32 %v3497, 0.0
      %v3530 = vmax.f32 %v3498, 0.0
      %v3531 = vmax.f32 %v3499, 0.0
      %v3532 = vmax.f32 %v3500, 0.0
      %v3533 = vmax.f32 %v3501, 0.0
      %v3534 = vmax.f32 %v3502, 0.0
      %v3535 = vmax.f32 %v3503, 0.0
      %v3536 = vmax.f32 %v3504, 0.0
      %v3537 = vpack.c.bf16 %v3506, %v3505
      %v3538 = vpack.c.bf16 %v3508, %v3507
      %v3539 = vpack.c.bf16 %v3510, %v3509
      %v3540 = vpack.c.bf16 %v3512, %v3511
      %v3541 = vpack.c.bf16 %v3514, %v3513
      %v3542 = vpack.c.bf16 %v3516, %v3515
      %v3543 = vpack.c.bf16 %v3518, %v3517
      %v3544 = vpack.c.bf16 %v3520, %v3519
      %v3545 = vpack.c.bf16 %v3522, %v3521
      %v3546 = vpack.c.bf16 %v3524, %v3523
      %v3547 = vpack.c.bf16 %v3526, %v3525
      %v3548 = vpack.c.bf16 %v3528, %v3527
      %v3549 = vpack.c.bf16 %v3530, %v3529
      %v3550 = vpack.c.bf16 %v3532, %v3531
      %v3551 = vpack.c.bf16 %v3534, %v3533
      %v3552 = vpack.c.bf16 %v3536, %v3535
      %v3569 = vunpack.c.l.b16 %v3537
      %v3570 = vunpack.c.h.b16 %v3537
      %v3571 = vunpack.c.l.b16 %v3538
      %v3572 = vunpack.c.h.b16 %v3538
      %v3573 = vunpack.c.l.b16 %v3539
      %v3574 = vunpack.c.h.b16 %v3539
      %v3575 = vunpack.c.l.b16 %v3540
      %v3576 = vunpack.c.h.b16 %v3540
      %v3577 = vunpack.c.l.b16 %v3541
      %v3578 = vunpack.c.h.b16 %v3541
      %v3579 = vunpack.c.l.b16 %v3542
      %v3580 = vunpack.c.h.b16 %v3542
      %v3581 = vunpack.c.l.b16 %v3543
      %v3582 = vunpack.c.h.b16 %v3543
      %v3583 = vunpack.c.l.b16 %v3544
      %v3584 = vunpack.c.h.b16 %v3544
      %v3585 = vunpack.c.l.b16 %v3545
      %v3586 = vunpack.c.h.b16 %v3545
      %v3587 = vunpack.c.l.b16 %v3546
      %v3588 = vunpack.c.h.b16 %v3546
      %v3589 = vunpack.c.l.b16 %v3547
      %v3590 = vunpack.c.h.b16 %v3547
      %v3591 = vunpack.c.l.b16 %v3548
      %v3592 = vunpack.c.h.b16 %v3548
      %v3593 = vunpack.c.l.b16 %v3549
      %v3594 = vunpack.c.h.b16 %v3549
      %v3595 = vunpack.c.l.b16 %v3550
      %v3596 = vunpack.c.h.b16 %v3550
      %v3597 = vunpack.c.l.b16 %v3551
      %v3598 = vunpack.c.h.b16 %v3551
      %v3599 = vunpack.c.l.b16 %v3552
      %v3600 = vunpack.c.h.b16 %v3552
      %v3601 = vpack.c.b16 %v3569, %v3569
      %v3602 = vpack.c.b16 %v3570, %v3570
      %v3603 = vpack.c.b16 %v3571, %v3571
      %v3604 = vpack.c.b16 %v3572, %v3572
      %v3605 = vpack.c.b16 %v3573, %v3573
      %v3606 = vpack.c.b16 %v3574, %v3574
      %v3607 = vpack.c.b16 %v3575, %v3575
      %v3608 = vpack.c.b16 %v3576, %v3576
      %v3609 = vpack.c.b16 %v3577, %v3577
      %v3610 = vpack.c.b16 %v3578, %v3578
      %v3611 = vpack.c.b16 %v3579, %v3579
      %v3612 = vpack.c.b16 %v3580, %v3580
      %v3613 = vpack.c.b16 %v3581, %v3581
      %v3614 = vpack.c.b16 %v3582, %v3582
      %v3615 = vpack.c.b16 %v3583, %v3583
      %v3616 = vpack.c.b16 %v3584, %v3584
      %v3617 = vpack.c.b16 %v3585, %v3585
      %v3618 = vpack.c.b16 %v3586, %v3586
      %v3619 = vpack.c.b16 %v3587, %v3587
      %v3620 = vpack.c.b16 %v3588, %v3588
      %v3621 = vpack.c.b16 %v3589, %v3589
      %v3622 = vpack.c.b16 %v3590, %v3590
      %v3623 = vpack.c.b16 %v3591, %v3591
      %v3624 = vpack.c.b16 %v3592, %v3592
      %v3625 = vpack.c.b16 %v3593, %v3593
      %v3626 = vpack.c.b16 %v3594, %v3594
      %v3627 = vpack.c.b16 %v3595, %v3595
      %v3628 = vpack.c.b16 %v3596, %v3596
      %v3629 = vpack.c.b16 %v3597, %v3597
      %v3630 = vpack.c.b16 %v3598, %v3598
      %v3631 = vpack.c.b16 %v3599, %v3599
      %v3632 = vpack.c.b16 %v3600, %v3600
      %3665 = vst [vmem:[%s318] sm:$0xf] %v3601
      %3666 = vst [vmem:[%s318 + $0x4] sm:$0xf] %v3602
      %3667 = vst [vmem:[%s318 + $0x8] sm:$0xf] %v3603
      %3668 = vst [vmem:[%s318 + $0xc] sm:$0xf] %v3604
      %3669 = vst [vmem:[%s318 + $0x10] sm:$0xf] %v3605
      %3670 = vst [vmem:[%s318 + $0x14] sm:$0xf] %v3606
      %3671 = vst [vmem:[%s318 + $0x18] sm:$0xf] %v3607
      %3672 = vst [vmem:[%s318 + $0x1c] sm:$0xf] %v3608
      %3673 = vst [vmem:[%s318 + $0x20] sm:$0xf] %v3609
      %3674 = vst [vmem:[%s318 + $0x24] sm:$0xf] %v3610
      %3675 = vst [vmem:[%s318 + $0x28] sm:$0xf] %v3611
      %3676 = vst [vmem:[%s318 + $0x2c] sm:$0xf] %v3612
      %3677 = vst [vmem:[%s318 + $0x30] sm:$0xf] %v3613
      %3678 = vst [vmem:[%s318 + $0x34] sm:$0xf] %v3614
      %3679 = vst [vmem:[%s318 + $0x38] sm:$0xf] %v3615
      %3680 = vst [vmem:[%s318 + $0x3c] sm:$0xf] %v3616
      %3681 = vst [vmem:[%s318 + $0x40] sm:$0xf] %v3617
      %3682 = vst [vmem:[%s318 + $0x44] sm:$0xf] %v3618
      %3683 = vst [vmem:[%s318 + $0x48] sm:$0xf] %v3619
      %3684 = vst [vmem:[%s318 + $0x4c] sm:$0xf] %v3620
      %3685 = vst [vmem:[%s318 + $0x50] sm:$0xf] %v3621
      %3686 = vst [vmem:[%s318 + $0x54] sm:$0xf] %v3622
      %3687 = vst [vmem:[%s318 + $0x58] sm:$0xf] %v3623
      %3688 = vst [vmem:[%s318 + $0x5c] sm:$0xf] %v3624
      %3689 = vst [vmem:[%s318 + $0x60] sm:$0xf] %v3625
      %3690 = vst [vmem:[%s318 + $0x64] sm:$0xf] %v3626
      %3691 = vst [vmem:[%s318 + $0x68] sm:$0xf] %v3627
      %3692 = vst [vmem:[%s318 + $0x6c] sm:$0xf] %v3628
      %3693 = vst [vmem:[%s318 + $0x70] sm:$0xf] %v3629
      %3694 = vst [vmem:[%s318 + $0x74] sm:$0xf] %v3630
      %3695 = vst [vmem:[%s318 + $0x78] sm:$0xf] %v3631
      %3696 = vst [vmem:[%s318 + $0x7c] sm:$0xf] %v3632
      %s3697 = smul.u32 16, %s20
      %p3698 = scmp.lt.s32.totalorder %s19, 1
      %s3699 = scalar_select %p3698, %s19, 1
      %p3700 = scmp.lt.s32.totalorder %s3697, 15
      %s3701 = scalar_select %p3700, %s3697, 15
      %s3702 = smul.addr %s3701, 2
      %s3703 = smul.addr %s3699, 32
      %s3704 = sadd.s32 %s3702, %s3703
      %s3705 = smul.addr %s3704, 4
      %s3706 = scalar_lea.vmem %s4, %s3705
      // Predicated region
      $region37: #{residual_group_forward.7} parent=35 // pred_check
        %p3707 = pneg %p149
      $region38: #{residual_group_forward.7} parent=35 // pred_check_branch
        %3709 = sbr.rel (%p3707) target = $region40
      $region39: #{residual_group_forward.7} parent=35 // pred_region
        %s3710 = smul.u32 16, %s20
      $region40: #{residual_group_forward.7} parent=35 // pred_fallthru
        _
    $region36: #{residual_group_forward.7} parent=5 // pred_fallthru
      _
    %p3711 = scmp.le.s32.totalorder 2, %s10
    // Predicated region
    $region41: #{residual_group_forward.7} parent=5 // pred_check
      %p3712 = pneg %p3711
    $region42: #{residual_group_forward.7} parent=5 // pred_check_branch
      %3714 = sbr.rel (%p3712) target = $region44
    $region43: #{residual_group_forward.7} parent=5 // pred_region
      %s3715 = ssub.s32 %s10, 2
      // Predicated region
      $region45: #{residual_group_forward.7} parent=43 // pred_check
        %p3716 = pneg %p155
      $region46: #{residual_group_forward.7} parent=43 // pred_check_branch
        %3718 = sbr.rel (%p3716) target = $region48
      $region47: #{residual_group_forward.7} parent=43 // pred_region
        %s3719 = smul.u32 16, %s22
        %p3720 = scmp.lt.s32.totalorder %s21, 1
        %s3721 = scalar_select %p3720, %s21, 1
        %p3722 = scmp.lt.s32.totalorder %s3719, 15
        %s3723 = scalar_select %p3722, %s3719, 15
        %s3724 = smul.addr %s3723, 2
        %s3725 = smul.addr %s3721, 32
        %s3726 = sadd.s32 %s3724, %s3725
        %s3727 = smul.addr %s3726, 4
        %s3728 = scalar_lea.vmem %s4, %s3727
      $region48: #{residual_group_forward.7} parent=43 // pred_fallthru
        _
    $region44: #{residual_group_forward.7} parent=5 // pred_fallthru
      _
  $region6: #{residual_group_forward.7} parent=0 // loop_footer
    %s14 = sadd.s32 1, %s10
  $region7: #{residual_group_forward.7} parent=0 // loop_footer_branch
    %9 = sbr.rel target = $region3
  $region8: #{residual_group_forward.7} parent=0 // loop_exit
    _

// kernel: residual_group_forward.8
$region0: #{residual_group_forward.8}
  #allocation0 [shape = 'u32[]', space=smem, size = 0x4, offset = 0x4, fixed_abs, tag = 'smem constant byte address 0x4 - core index']
  #allocation1 [shape = 'u32[144,128]{1,0:T(1,128)}', space=vmem, size = 0x12000, scoped, tag = 'internal scratch']
  %s0 = inlined_call_operand.vmem [shape: bf16[2,18,18,128], index: 0, kind: input, shape index: {}, may-alias: {0,1}]
  %s1 = inlined_call_operand.vmem [shape: bf16[2,18,18,128], index: 1, kind: input, shape index: {}, may-alias: {0,1}]
  %s2 = inlined_call_operand.vmem [shape: bf16[3,3,128,128], index: 2, kind: input, shape index: {}]
  %s3 = inlined_call_operand.vmem [shape: f32[1,128], index: 3, kind: input, shape index: {}]
  %s4 = inlined_call_operand.vmem [shape: f32[2,16,16,128], index: 4, kind: output, shape index: {0}]
  %s5 = inlined_call_operand.vmem [shape: f32[2,1,128], index: 5, kind: output, shape index: {1}]
  %6 = xla_tuple %s4, %s5
  %s7 = sld [smem:[#allocation0]]
  $region61: #{residual_group_forward.8} parent=0
    _
  %s9 = ssub.s32 1, %s7
  %s10 = scalar_select 0, %s9, %s7
  loop: start=0, step=1, limit=4
  $region2: #{residual_group_forward.8} parent=0 // loop_pre_header
    _
  $region3: #{residual_group_forward.8} parent=0 // loop_header
    %s12 = sphi 0, %s16
    %p13 = scmp.ge.s32.totalorder %s12, 4
    %s19 = sphi 0, %s31
    %s20 = sphi 0, %s27
    %s21 = sphi 0, %s19
    %s22 = sphi 0, %s20
    %s23 = sphi 0, %s21
    %s24 = sphi 0, %s22
    %s36 = sphi 0, %s38
    %s39 = sphi 0, %s36
    %s40 = sphi 0, %s39
    %s56 = sphi 0, %s40
    %s68 = sphi 0, %s70
    %s71 = sphi 0, %s68
    %s72 = sphi 0, %s71
    %s88 = sphi 0, %s72
    %s92 = sphi 0, %s92
    %s94 = sphi 0, %s92
    %s95 = sphi 0, %s94
    %s109 = sphi 0, %s95
    %s113 = sphi 0, %s113
    %s115 = sphi 0, %s113
    %s116 = sphi 0, %s115
    %s130 = sphi 0, %s116
    %s138 = sphi 0, %s140
    %s141 = sphi 0, %s138
    %s142 = sphi 0, %s141
    %s158 = sphi 0, %s142
    %s164 = sphi 0, %s166
    %s167 = sphi 0, %s164
    %s168 = sphi 0, %s167
    %s184 = sphi 0, %s168
  $region4: #{residual_group_forward.8} parent=0 // loop_header_branch
    %15 = sbr.rel (%p13) target = $region8
  $region5: #{residual_group_forward.8} parent=0 // loop_body
    %s17 = ssub.s32 %s12, 1
    %s18 = ssub.s32 %s12, 2
    %s25 = sadd.s32 1, %s20
    %p26 = scmp.ge.s32.totalorder %s25, 1
    %s27 = scalar_select %p26, 0, %s25
    %s28 = sadd.s32 1, %s19
    %s29 = scalar_select %p26, %s28, %s19
    %p30 = scmp.ge.s32.totalorder %s29, 2
    %s31 = scalar_select %p30, 0, %s29
    %s32 = ssub.s32 %s19, %s31
    %s33 = ssub.s32 %s20, %s27
    %s34 = sor.u32 %s32, %s33
    %p35 = scmp.eq.s32.totalorder %s34, 0
    %s37 = sadd.s32 %s36, 1
    %s38 = scalar_select %p35, %s36, %s37
    %p41 = pneg %p35
    %p42 = scmp.eq.s32.totalorder %s12, 1
    %p43 = por %p41, %p42
    %p44 = scmp.ne.s32.totalorder %s36, %s39
    %p45 = scmp.eq.s32.totalorder %s12, 0
    %p46 = por %p44, %p45
    %p47 = scmp.ne.s32.totalorder %s36, %s39
    %p48 = scmp.eq.s32.totalorder %s17, 1
    %p49 = por %p47, %p48
    %p50 = scmp.ne.s32.totalorder %s39, %s40
    %p51 = scmp.eq.s32.totalorder %s17, 0
    %p52 = por %p50, %p51
    %p53 = scmp.ne.s32.totalorder %s39, %s40
    %p54 = scmp.eq.s32.totalorder %s18, 1
    %p55 = por %p53, %p54
    %p57 = scmp.ne.s32.totalorder %s40, %s56
    %p58 = scmp.eq.s32.totalorder %s18, 0
    %p59 = por %p57, %p58
    %s60 = sadd.s32 %s20, 1
    %s61 = smul.u32 %s60, 8
    %s62 = sadd.s32 %s27, 1
    %s63 = smul.u32 %s62, 8
    %s64 = ssub.s32 %s19, %s31
    %s65 = ssub.s32 %s61, %s63
    %s66 = sor.u32 %s64, %s65
    %p67 = scmp.eq.s32.totalorder %s66, 0
    %s69 = sadd.s32 %s68, 1
    %s70 = scalar_select %p67, %s68, %s69
    %p73 = pneg %p67
    %p74 = scmp.eq.s32.totalorder %s12, 1
    %p75 = por %p73, %p74
    %p76 = scmp.ne.s32.totalorder %s68, %s71
    %p77 = scmp.eq.s32.totalorder %s12, 0
    %p78 = por %p76, %p77
    %p79 = scmp.ne.s32.totalorder %s68, %s71
    %p80 = scmp.eq.s32.totalorder %s17, 1
    %p81 = por %p79, %p80
    %p82 = scmp.ne.s32.totalorder %s71, %s72
    %p83 = scmp.eq.s32.totalorder %s17, 0
    %p84 = por %p82, %p83
    %p85 = scmp.ne.s32.totalorder %s71, %s72
    %p86 = scmp.eq.s32.totalorder %s18, 1
    %p87 = por %p85, %p86
    %p89 = scmp.ne.s32.totalorder %s72, %s88
    %p90 = scmp.eq.s32.totalorder %s18, 0
    %p91 = por %p89, %p90
    %s93 = sadd.s32 %s92, 1
    %p96 = scmp.eq.s32.totalorder %s12, 1
    %p97 = scmp.ne.s32.totalorder %s92, %s94
    %p98 = scmp.eq.s32.totalorder %s12, 0
    %p99 = por %p97, %p98
    %p100 = scmp.ne.s32.totalorder %s92, %s94
    %p101 = scmp.eq.s32.totalorder %s17, 1
    %p102 = por %p100, %p101
    %p103 = scmp.ne.s32.totalorder %s94, %s95
    %p104 = scmp.eq.s32.totalorder %s17, 0
    %p105 = por %p103, %p104
    %p106 = scmp.ne.s32.totalorder %s94, %s95
    %p107 = scmp.eq.s32.totalorder %s18, 1
    %p108 = por %p106, %p107
    %p110 = scmp.ne.s32.totalorder %s95, %s109
    %p111 = scmp.eq.s32.totalorder %s18, 0
    %p112 = por %p110, %p111
    %s114 = sadd.s32 %s113, 1
    %p117 = scmp.eq.s32.totalorder %s12, 1
    %p118 = scmp.ne.s32.totalorder %s113, %s115
    %p119 = scmp.eq.s32.totalorder %s12, 0
    %p120 = por %p118, %p119
    %p121 = scmp.ne.s32.totalorder %s113, %s115
    %p122 = scmp.eq.s32.totalorder %s17, 1
    %p123 = por %p121, %p122
    %p124 = scmp.ne.s32.totalorder %s115, %s116
    %p125 = scmp.eq.s32.totalorder %s17, 0
    %p126 = por %p124, %p125
    %p127 = scmp.ne.s32.totalorder %s115, %s116
    %p128 = scmp.eq.s32.totalorder %s18, 1
    %p129 = por %p127, %p128
    %p131 = scmp.ne.s32.totalorder %s116, %s130
    %p132 = scmp.eq.s32.totalorder %s18, 0
    %p133 = por %p131, %p132
    %s134 = ssub.s32 %s19, %s31
    %s135 = ssub.s32 %s20, %s27
    %s136 = sor.u32 %s134, %s135
    %p137 = scmp.eq.s32.totalorder %s136, 0
    %s139 = sadd.s32 %s138, 1
    %s140 = scalar_select %p137, %s138, %s139
    %p143 = pneg %p137
    %p144 = scmp.eq.s32.totalorder %s12, 1
    %p145 = por %p143, %p144
    %p146 = scmp.ne.s32.totalorder %s138, %s141
    %p147 = scmp.eq.s32.totalorder %s12, 0
    %p148 = por %p146, %p147
    %p149 = scmp.ne.s32.totalorder %s138, %s141
    %p150 = scmp.eq.s32.totalorder %s17, 1
    %p151 = por %p149, %p150
    %p152 = scmp.ne.s32.totalorder %s141, %s142
    %p153 = scmp.eq.s32.totalorder %s17, 0
    %p154 = por %p152, %p153
    %p155 = scmp.ne.s32.totalorder %s141, %s142
    %p156 = scmp.eq.s32.totalorder %s18, 1
    %p157 = por %p155, %p156
    %p159 = scmp.ne.s32.totalorder %s142, %s158
    %p160 = scmp.eq.s32.totalorder %s18, 0
    %p161 = por %p159, %p160
    %s162 = ssub.s32 %s19, %s31
    %p163 = scmp.eq.s32.totalorder %s162, 0
    %s165 = sadd.s32 %s164, 1
    %s166 = scalar_select %p163, %s164, %s165
    %p169 = pneg %p163
    %p170 = scmp.eq.s32.totalorder %s12, 1
    %p171 = por %p169, %p170
    %p172 = scmp.ne.s32.totalorder %s164, %s167
    %p173 = scmp.eq.s32.totalorder %s12, 0
    %p174 = por %p172, %p173
    %p175 = scmp.ne.s32.totalorder %s164, %s167
    %p176 = scmp.eq.s32.totalorder %s17, 1
    %p177 = por %p175, %p176
    %p178 = scmp.ne.s32.totalorder %s167, %s168
    %p179 = scmp.eq.s32.totalorder %s17, 0
    %p180 = por %p178, %p179
    %p181 = scmp.ne.s32.totalorder %s167, %s168
    %p182 = scmp.eq.s32.totalorder %s18, 1
    %p183 = por %p181, %p182
    %p185 = scmp.ne.s32.totalorder %s168, %s184
    %p186 = scmp.eq.s32.totalorder %s18, 0
    %p187 = por %p185, %p186
    %p188 = scmp.le.s32.totalorder 1, %s12
    %p189 = scmp.lt.s32.totalorder %s12, 3
    %p190 = pnand %p188, %p189
    %p191 = pneg %p190
    // Predicated region
    $region9: #{residual_group_forward.8} parent=5 // pred_check
      _
    $region10: #{residual_group_forward.8} parent=5 // pred_check_branch
      %193 = sbr.rel (%p190) target = $region12
    $region11: #{residual_group_forward.8} parent=5 // pred_region
      %s194 = ssub.s32 %s12, 1
      // Predicated region
      $region13: #{residual_group_forward.8} parent=11 // pred_check
        %p195 = pneg %p105
      $region14: #{residual_group_forward.8} parent=11 // pred_check_branch
        %197 = sbr.rel (%p195) target = $region16
      $region15: #{residual_group_forward.8} parent=11 // pred_region
        _
      $region16: #{residual_group_forward.8} parent=11 // pred_fallthru
        _
      // Predicated region
      $region17: #{residual_group_forward.8} parent=11 // pred_check
        %p198 = pneg %p126
      $region18: #{residual_group_forward.8} parent=11 // pred_check_branch
        %200 = sbr.rel (%p198) target = $region20
      $region19: #{residual_group_forward.8} parent=11 // pred_region
        _
      $region20: #{residual_group_forward.8} parent=11 // pred_fallthru
        _
    $region12: #{residual_group_forward.8} parent=5 // pred_fallthru
      _
    %p201 = scmp.lt.s32.totalorder %s12, 2
    // Predicated region
    $region21: #{residual_group_forward.8} parent=5 // pred_check
      %p202 = pneg %p201
    $region22: #{residual_group_forward.8} parent=5 // pred_check_branch
      %204 = sbr.rel (%p202) target = $region24
    $region23: #{residual_group_forward.8} parent=5 // pred_region
      // Predicated region
      $region25: #{residual_group_forward.8} parent=23 // pred_check
        %p205 = pneg %p46
      $region26: #{residual_group_forward.8} parent=23 // pred_check_branch
        %207 = sbr.rel (%p205) target = $region28
      $region27: #{residual_group_forward.8} parent=23 // pred_region
        %s208 = smul.u32 16, %s20
        %s209 = ssub.s32 18, %s208
        %p210 = scmp.lt.s32.totalorder %s209, 16
        %s211 = scalar_select %p210, %s209, 16
        %s212 = smul.u32 64, %s211
        %s213 = smul.u32 %s212, 3
        %p214 = scmp.lt.s32.totalorder %s19, 1
        %s215 = scalar_select %p214, %s19, 1
        %p216 = scmp.lt.s32.totalorder %s208, 17
        %s217 = scalar_select %p216, %s208, 17
        %s218 = smul.addr %s217, 3
        %s219 = smul.addr %s215, 54
        %s220 = sadd.s32 %s218, %s219
        %s221 = smul.addr %s220, 4
        %s222 = scalar_lea.vmem %s0, %s221
        %s223 = smul.u32 16, %s20
        %s224 = ssub.s32 18, %s223
        %p225 = scmp.lt.s32.totalorder %s224, 16
        %s226 = scalar_select %p225, %s224, 16
        %s227 = smul.u32 64, %s226
        %s228 = smul.u32 %s227, 3
      $region28: #{residual_group_forward.8} parent=23 // pred_fallthru
        _
      // Predicated region
      $region29: #{residual_group_forward.8} parent=23 // pred_check
        %p229 = pneg %p78
      $region30: #{residual_group_forward.8} parent=23 // pred_check_branch
        %231 = sbr.rel (%p229) target = $region32
      $region31: #{residual_group_forward.8} parent=23 // pred_region
        %s232 = sadd.s32 %s20, 1
        %s233 = smul.u32 %s232, 8
        %s234 = smul.u32 2, %s233
        %p235 = scmp.lt.s32.totalorder %s19, 1
        %s236 = scalar_select %p235, %s19, 1
        %p237 = scmp.lt.s32.totalorder %s234, 17
        %s238 = scalar_select %p237, %s234, 17
        %s239 = smul.addr %s238, 3
        %s240 = smul.addr %s236, 54
        %s241 = sadd.s32 %s239, %s240
        %s242 = smul.addr %s241, 4
        %s243 = scalar_lea.vmem %s1, %s242
        %s244 = sadd.s32 %s20, 1
        %s245 = smul.u32 %s244, 8
        %s246 = smul.u32 2, %s245
      $region32: #{residual_group_forward.8} parent=23 // pred_fallthru
        _
    $region24: #{residual_group_forward.8} parent=5 // pred_fallthru
      _
    %p247 = scmp.le.s32.totalorder 1, %s12
    %p248 = scmp.lt.s32.totalorder %s12, 3
    %p249 = pnand %p247, %p248
    %p250 = pneg %p249
    // Predicated region
    $region33: #{residual_group_forward.8} parent=5 // pred_check
      _
    $region34: #{residual_group_forward.8} parent=5 // pred_check_branch
      %252 = sbr.rel (%p249) target = $region36
    $region35: #{residual_group_forward.8} parent=5 // pred_region
      %s253 = ssub.s32 %s12, 1
      %s254 = smul.u32 16, %s22
      %s255 = ssub.s32 18, %s254
      %p256 = scmp.lt.s32.totalorder %s255, 16
      %s257 = scalar_select %p256, %s255, 16
      %s258 = smul.u32 64, %s257
      %s259 = smul.u32 %s258, 3
      %p260 = scmp.lt.s32.totalorder %s21, 1
      %s261 = scalar_select %p260, %s21, 1
      %p262 = scmp.lt.s32.totalorder %s254, 17
      %s263 = scalar_select %p262, %s254, 17
      %s264 = smul.addr %s263, 3
      %s265 = smul.addr %s261, 54
      %s266 = sadd.s32 %s264, %s265
      %s267 = smul.addr %s266, 4
      %s268 = scalar_lea.vmem %s0, %s267
      %p269 = pneg %p52
      %p270 = pneg %p49
      %s271 = sadd.s32 %s22, 1
      %s272 = smul.u32 %s271, 8
      %s273 = smul.u32 2, %s272
      %p274 = scmp.lt.s32.totalorder %s21, 1
      %s275 = scalar_select %p274, %s21, 1
      %p276 = scmp.lt.s32.totalorder %s273, 17
      %s277 = scalar_select %p276, %s273, 17
      %s278 = smul.addr %s277, 3
      %s279 = smul.addr %s275, 54
      %s280 = sadd.s32 %s278, %s279
      %s281 = smul.addr %s280, 4
      %s282 = scalar_lea.vmem %s1, %s281
      %p283 = pneg %p84
      %p284 = pneg %p81
      %p285 = pneg %p105
      %p286 = pneg %p102
      %p287 = pneg %p126
      %p288 = pneg %p123
      %p289 = pneg %p154
      %p290 = pneg %p151
      %s291 = smul.u32 16, %s22
      %p292 = scmp.lt.s32.totalorder %s21, 1
      %s293 = scalar_select %p292, %s21, 1
      %p294 = scmp.lt.s32.totalorder %s291, 15
      %s295 = scalar_select %p294, %s291, 15
      %s296 = smul.addr %s295, 2
      %s297 = smul.addr %s293, 32
      %s298 = sadd.s32 %s296, %s297
      %s299 = smul.addr %s298, 8
      %s300 = scalar_lea.vmem %s4, %s299
      %p301 = pneg %p180
      %p302 = pneg %p177
      %p303 = scmp.lt.s32.totalorder %s21, 1
      %s304 = scalar_select %p303, %s21, 1
      %s305 = scalar_lea.vmem %s5, %s304
      %s306 = smul.u32 16, %s22
      %s307 = ssub.s32 18, %s306
      %p308 = scmp.lt.s32.totalorder %s307, 16
      %s309 = scalar_select %p308, %s307, 16
      %s310 = smul.u32 64, %s309
      %s311 = smul.u32 %s310, 3
      %p312 = scmp.lt.s32.totalorder %s21, 1
      %s313 = scalar_select %p312, %s21, 1
      %p314 = scmp.lt.s32.totalorder %s306, 17
      %s315 = scalar_select %p314, %s306, 17
      %s316 = smul.addr %s315, 3
      %s317 = smul.addr %s313, 54
      %s318 = sadd.s32 %s316, %s317
      %s319 = smul.addr %s318, 4
      %s320 = scalar_lea.vmem %s0, %s319
      %s321 = smul.u32 16, %s22
      %s322 = ssub.s32 18, %s321
      %p323 = scmp.lt.s32.totalorder %s322, 16
      %s324 = scalar_select %p323, %s322, 16
      %s325 = smul.u32 64, %s324
      %s326 = smul.u32 %s325, 3
      %s327 = sadd.s32 %s22, 1
      %s328 = smul.u32 %s327, 8
      %s329 = smul.u32 2, %s328
      %p330 = scmp.lt.s32.totalorder %s21, 1
      %s331 = scalar_select %p330, %s21, 1
      %p332 = scmp.lt.s32.totalorder %s329, 17
      %s333 = scalar_select %p332, %s329, 17
      %s334 = smul.addr %s333, 3
      %s335 = smul.addr %s331, 54
      %s336 = sadd.s32 %s334, %s335
      %s337 = smul.addr %s336, 4
      %s338 = scalar_lea.vmem %s1, %s337
      %s339 = sadd.s32 %s22, 1
      %s340 = smul.u32 %s339, 8
      %s341 = smul.u32 2, %s340
      %s342 = smul.u32 16, %s22
      %p343 = scmp.lt.s32.totalorder %s21, 1
      %s344 = scalar_select %p343, %s21, 1
      %p345 = scmp.lt.s32.totalorder %s342, 15
      %s346 = scalar_select %p345, %s342, 15
      %s347 = smul.addr %s346, 2
      %s348 = smul.addr %s344, 32
      %s349 = sadd.s32 %s347, %s348
      %s350 = smul.addr %s349, 8
      %s351 = scalar_lea.vmem %s4, %s350
      %s352 = smul.u32 16, %s22
      %p353 = scmp.lt.s32.totalorder %s21, 1
      %s354 = scalar_select %p353, %s21, 1
      %s355 = scalar_lea.vmem %s5, %s354
      %v357 = vld [vmem:[%s320] sm:$0xf]
      %v358 = vld [vmem:[%s320 + $0x4] sm:$0xf]
      %v359 = vld [vmem:[%s320 + $0x8] sm:$0x1]
      %v360 = vld [vmem:[%s320 + $0xc] sm:$0xf]
      %v361 = vld [vmem:[%s320 + $0x10] sm:$0xf]
      %v362 = vld [vmem:[%s320 + $0x14] sm:$0x1]
      %v363 = vld [vmem:[%s320 + $0x18] sm:$0xf]
      %v364 = vld [vmem:[%s320 + $0x1c] sm:$0xf]
      %v365 = vld [vmem:[%s320 + $0x20] sm:$0x1]
      %v366 = vld [vmem:[%s320 + $0x24] sm:$0xf]
      %v367 = vld [vmem:[%s320 + $0x28] sm:$0xf]
      %v368 = vld [vmem:[%s320 + $0x2c] sm:$0x1]
      %v369 = vld [vmem:[%s320 + $0x30] sm:$0xf]
      %v370 = vld [vmem:[%s320 + $0x34] sm:$0xf]
      %v371 = vld [vmem:[%s320 + $0x38] sm:$0x1]
      %v372 = vld [vmem:[%s320 + $0x3c] sm:$0xf]
      %v373 = vld [vmem:[%s320 + $0x40] sm:$0xf]
      %v374 = vld [vmem:[%s320 + $0x44] sm:$0x1]
      %v375 = vld [vmem:[%s320 + $0x48] sm:$0xf]
      %v376 = vld [vmem:[%s320 + $0x4c] sm:$0xf]
      %v377 = vld [vmem:[%s320 + $0x50] sm:$0x1]
      %v378 = vld [vmem:[%s320 + $0x54] sm:$0xf]
      %v379 = vld [vmem:[%s320 + $0x58] sm:$0xf]
      %v380 = vld [vmem:[%s320 + $0x5c] sm:$0x1]
      %v381 = vld [vmem:[%s320 + $0x60] sm:$0xf]
      %v382 = vld [vmem:[%s320 + $0x64] sm:$0xf]
      %v383 = vld [vmem:[%s320 + $0x68] sm:$0x1]
      %v384 = vld [vmem:[%s320 + $0x6c] sm:$0xf]
      %v385 = vld [vmem:[%s320 + $0x70] sm:$0xf]
      %v386 = vld [vmem:[%s320 + $0x74] sm:$0x1]
      %v387 = vld [vmem:[%s320 + $0x78] sm:$0xf]
      %v388 = vld [vmem:[%s320 + $0x7c] sm:$0xf]
      %v389 = vld [vmem:[%s320 + $0x80] sm:$0x1]
      %v390 = vld [vmem:[%s320 + $0x84] sm:$0xf]
      %v391 = vld [vmem:[%s320 + $0x88] sm:$0xf]
      %v392 = vld [vmem:[%s320 + $0x8c] sm:$0x1]
      %v393 = vld [vmem:[%s320 + $0x90] sm:$0xf]
      %v394 = vld [vmem:[%s320 + $0x94] sm:$0xf]
      %v395 = vld [vmem:[%s320 + $0x98] sm:$0x1]
      %v396 = vld [vmem:[%s320 + $0x9c] sm:$0xf]
      %v397 = vld [vmem:[%s320 + $0xa0] sm:$0xf]
      %v398 = vld [vmem:[%s320 + $0xa4] sm:$0x1]
      %v399 = vld [vmem:[%s320 + $0xa8] sm:$0xf]
      %v400 = vld [vmem:[%s320 + $0xac] sm:$0xf]
      %v401 = vld [vmem:[%s320 + $0xb0] sm:$0x1]
      %v402 = vld [vmem:[%s320 + $0xb4] sm:$0xf]
      %v403 = vld [vmem:[%s320 + $0xb8] sm:$0xf]
      %v404 = vld [vmem:[%s320 + $0xbc] sm:$0x1]
      %v405 = vld [vmem:[%s338] sm:$0xf]
      %v406 = vld [vmem:[%s338 + $0x4] sm:$0xf]
      %v407 = vld [vmem:[%s338 + $0x8] sm:$0x1]
      %v408 = vld [vmem:[%s338 + $0xc] sm:$0xf]
      %v409 = vld [vmem:[%s338 + $0x10] sm:$0xf]
      %v410 = vld [vmem:[%s338 + $0x14] sm:$0x1]
      %v411 = vld [vmem:[%s2] sm:$0xf]
      %v412 = vld [vmem:[%s2 + $0x4] sm:$0xf]
      %v413 = vld [vmem:[%s2 + $0x8] sm:$0xf]
      %v414 = vld [vmem:[%s2 + $0xc] sm:$0xf]
      %v415 = vld [vmem:[%s2 + $0x10] sm:$0xf]
      %v416 = vld [vmem:[%s2 + $0x14] sm:$0xf]
      %v417 = vld [vmem:[%s2 + $0x18] sm:$0xf]
      %v418 = vld [vmem:[%s2 + $0x1c] sm:$0xf]
      %v419 = vld [vmem:[%s2 + $0x20] sm:$0xf]
      %v420 = vld [vmem:[%s2 + $0x24] sm:$0xf]
      %v421 = vld [vmem:[%s2 + $0x28] sm:$0xf]
      %v422 = vld [vmem:[%s2 + $0x2c] sm:$0xf]
      %v423 = vld [vmem:[%s2 + $0x30] sm:$0xf]
      %v424 = vld [vmem:[%s2 + $0x34] sm:$0xf]
      %v425 = vld [vmem:[%s2 + $0x38] sm:$0xf]
      %v426 = vld [vmem:[%s2 + $0x3c] sm:$0xf]
      %vm427 = vsmask.f32 3328
      %vm428 = vsmask.f32 7440
      %vm429 = vmor %vm427, %vm428
      %v431 = vshrl.u32 %v357, 16
      %v433 = vrot.slane %v431, 4
      %v434 = vshll.u32 %v357, 16
      %v436 = vrot.slane %v434, 5
      %v437 = vor.u32 %v433, %v436
      %v438 = vrot.slane %v437, 4
      %v440 = vshll.u32 %v358, 16
      %v442 = vrot.slane %v440, 5
      %v443 = vsel %vm429, %v438, %v442
      %v444 = vshrl.u32 %v358, 16
      %v446 = vrot.slane %v444, 4
      %v447 = vor.u32 %v446, %v442
      %v448 = vrot.slane %v447, 4
      %v450 = vshll.u32 %v359, 16
      %v452 = vrot.slane %v450, 5
      %v453 = vsel %vm429, %v448, %v452
      %v455 = vshrl.u32 %v360, 16
      %v457 = vrot.slane %v455, 4
      %v458 = vshll.u32 %v360, 16
      %v460 = vrot.slane %v458, 5
      %v461 = vor.u32 %v457, %v460
      %v462 = vrot.slane %v461, 4
      %v464 = vshll.u32 %v361, 16
      %v466 = vrot.slane %v464, 5
      %v467 = vsel %vm429, %v462, %v466
      %v468 = vshrl.u32 %v361, 16
      %v470 = vrot.slane %v468, 4
      %v471 = vor.u32 %v470, %v466
      %v472 = vrot.slane %v471, 4
      %v474 = vshll.u32 %v362, 16
      %v476 = vrot.slane %v474, 5
      %v477 = vsel %vm429, %v472, %v476
      %v479 = vshrl.u32 %v363, 16
      %v481 = vrot.slane %v479, 4
      %v482 = vshll.u32 %v363, 16
      %v484 = vrot.slane %v482, 5
      %v485 = vor.u32 %v481, %v484
      %v486 = vrot.slane %v485, 4
      %v488 = vshll.u32 %v364, 16
      %v490 = vrot.slane %v488, 5
      %v491 = vsel %vm429, %v486, %v490
      %v492 = vshrl.u32 %v364, 16
      %v494 = vrot.slane %v492, 4
      %v495 = vor.u32 %v494, %v490
      %v496 = vrot.slane %v495, 4
      %v498 = vshll.u32 %v365, 16
      %v500 = vrot.slane %v498, 5
      %v501 = vsel %vm429, %v496, %v500
      %v503 = vshrl.u32 %v366, 16
      %v505 = vrot.slane %v503, 4
      %v506 = vshll.u32 %v366, 16
      %v508 = vrot.slane %v506, 5
      %v509 = vor.u32 %v505, %v508
      %v510 = vrot.slane %v509, 4
      %v512 = vshll.u32 %v367, 16
      %v514 = vrot.slane %v512, 5
      %v515 = vsel %vm429, %v510, %v514
      %v516 = vshrl.u32 %v367, 16
      %v518 = vrot.slane %v516, 4
      %v519 = vor.u32 %v518, %v514
      %v520 = vrot.slane %v519, 4
      %v522 = vshll.u32 %v368, 16
      %v524 = vrot.slane %v522, 5
      %v525 = vsel %vm429, %v520, %v524
      %v527 = vshrl.u32 %v369, 16
      %v529 = vrot.slane %v527, 4
      %v530 = vshll.u32 %v369, 16
      %v532 = vrot.slane %v530, 5
      %v533 = vor.u32 %v529, %v532
      %v534 = vrot.slane %v533, 4
      %v536 = vshll.u32 %v370, 16
      %v538 = vrot.slane %v536, 5
      %v539 = vsel %vm429, %v534, %v538
      %v540 = vshrl.u32 %v370, 16
      %v542 = vrot.slane %v540, 4
      %v543 = vor.u32 %v542, %v538
      %v544 = vrot.slane %v543, 4
      %v546 = vshll.u32 %v371, 16
      %v548 = vrot.slane %v546, 5
      %v549 = vsel %vm429, %v544, %v548
      %v551 = vshrl.u32 %v372, 16
      %v553 = vrot.slane %v551, 4
      %v554 = vshll.u32 %v372, 16
      %v556 = vrot.slane %v554, 5
      %v557 = vor.u32 %v553, %v556
      %v558 = vrot.slane %v557, 4
      %v560 = vshll.u32 %v373, 16
      %v562 = vrot.slane %v560, 5
      %v563 = vsel %vm429, %v558, %v562
      %v564 = vshrl.u32 %v373, 16
      %v566 = vrot.slane %v564, 4
      %v567 = vor.u32 %v566, %v562
      %v568 = vrot.slane %v567, 4
      %v570 = vshll.u32 %v374, 16
      %v572 = vrot.slane %v570, 5
      %v573 = vsel %vm429, %v568, %v572
      %v575 = vshrl.u32 %v375, 16
      %v577 = vrot.slane %v575, 4
      %v578 = vshll.u32 %v375, 16
      %v580 = vrot.slane %v578, 5
      %v581 = vor.u32 %v577, %v580
      %v582 = vrot.slane %v581, 4
      %v584 = vshll.u32 %v376, 16
      %v586 = vrot.slane %v584, 5
      %v587 = vsel %vm429, %v582, %v586
      %v588 = vshrl.u32 %v376, 16
      %v590 = vrot.slane %v588, 4
      %v591 = vor.u32 %v590, %v586
      %v592 = vrot.slane %v591, 4
      %v594 = vshll.u32 %v377, 16
      %v596 = vrot.slane %v594, 5
      %v597 = vsel %vm429, %v592, %v596
      %v599 = vshrl.u32 %v378, 16
      %v601 = vrot.slane %v599, 4
      %v602 = vshll.u32 %v378, 16
      %v604 = vrot.slane %v602, 5
      %v605 = vor.u32 %v601, %v604
      %v606 = vrot.slane %v605, 4
      %v608 = vshll.u32 %v379, 16
      %v610 = vrot.slane %v608, 5
      %v611 = vsel %vm429, %v606, %v610
      %v612 = vshrl.u32 %v379, 16
      %v614 = vrot.slane %v612, 4
      %v615 = vor.u32 %v614, %v610
      %v616 = vrot.slane %v615, 4
      %v618 = vshll.u32 %v380, 16
      %v620 = vrot.slane %v618, 5
      %v621 = vsel %vm429, %v616, %v620
      %v623 = vshrl.u32 %v381, 16
      %v625 = vrot.slane %v623, 4
      %v626 = vshll.u32 %v381, 16
      %v628 = vrot.slane %v626, 5
      %v629 = vor.u32 %v625, %v628
      %v630 = vrot.slane %v629, 4
      %v632 = vshll.u32 %v382, 16
      %v634 = vrot.slane %v632, 5
      %v635 = vsel %vm429, %v630, %v634
      %v636 = vshrl.u32 %v382, 16
      %v638 = vrot.slane %v636, 4
      %v639 = vor.u32 %v638, %v634
      %v640 = vrot.slane %v639, 4
      %v642 = vshll.u32 %v383, 16
      %v644 = vrot.slane %v642, 5
      %v645 = vsel %vm429, %v640, %v644
      %v647 = vshrl.u32 %v384, 16
      %v649 = vrot.slane %v647, 4
      %v650 = vshll.u32 %v384, 16
      %v652 = vrot.slane %v650, 5
      %v653 = vor.u32 %v649, %v652
      %v654 = vrot.slane %v653, 4
      %v656 = vshll.u32 %v385, 16
      %v658 = vrot.slane %v656, 5
      %v659 = vsel %vm429, %v654, %v658
      %v660 = vshrl.u32 %v385, 16
      %v662 = vrot.slane %v660, 4
      %v663 = vor.u32 %v662, %v658
      %v664 = vrot.slane %v663, 4
      %v666 = vshll.u32 %v386, 16
      %v668 = vrot.slane %v666, 5
      %v669 = vsel %vm429, %v664, %v668
      %v671 = vshrl.u32 %v387, 16
      %v673 = vrot.slane %v671, 4
      %v674 = vshll.u32 %v387, 16
      %v676 = vrot.slane %v674, 5
      %v677 = vor.u32 %v673, %v676
      %v678 = vrot.slane %v677, 4
      %v680 = vshll.u32 %v388, 16
      %v682 = vrot.slane %v680, 5
      %v683 = vsel %vm429, %v678, %v682
      %v684 = vshrl.u32 %v388, 16
      %v686 = vrot.slane %v684, 4
      %v687 = vor.u32 %v686, %v682
      %v688 = vrot.slane %v687, 4
      %v690 = vshll.u32 %v389, 16
      %v692 = vrot.slane %v690, 5
      %v693 = vsel %vm429, %v688, %v692
      %v695 = vshrl.u32 %v390, 16
      %v697 = vrot.slane %v695, 4
      %v698 = vshll.u32 %v390, 16
      %v700 = vrot.slane %v698, 5
      %v701 = vor.u32 %v697, %v700
      %v702 = vrot.slane %v701, 4
      %v704 = vshll.u32 %v391, 16
      %v706 = vrot.slane %v704, 5
      %v707 = vsel %vm429, %v702, %v706
      %v708 = vshrl.u32 %v391, 16
      %v710 = vrot.slane %v708, 4
      %v711 = vor.u32 %v710, %v706
      %v712 = vrot.slane %v711, 4
      %v714 = vshll.u32 %v392, 16
      %v716 = vrot.slane %v714, 5
      %v717 = vsel %vm429, %v712, %v716
      %v719 = vshrl.u32 %v393, 16
      %v721 = vrot.slane %v719, 4
      %v722 = vshll.u32 %v393, 16
      %v724 = vrot.slane %v722, 5
      %v725 = vor.u32 %v721, %v724
      %v726 = vrot.slane %v725, 4
      %v728 = vshll.u32 %v394, 16
      %v730 = vrot.slane %v728, 5
      %v731 = vsel %vm429, %v726, %v730
      %v732 = vshrl.u32 %v394, 16
      %v734 = vrot.slane %v732, 4
      %v735 = vor.u32 %v734, %v730
      %v736 = vrot.slane %v735, 4
      %v738 = vshll.u32 %v395, 16
      %v740 = vrot.slane %v738, 5
      %v741 = vsel %vm429, %v736, %v740
      %v743 = vshrl.u32 %v396, 16
      %v745 = vrot.slane %v743, 4
      %v746 = vshll.u32 %v396, 16
      %v748 = vrot.slane %v746, 5
      %v749 = vor.u32 %v745, %v748
      %v750 = vrot.slane %v749, 4
      %v752 = vshll.u32 %v397, 16
      %v754 = vrot.slane %v752, 5
      %v755 = vsel %vm429, %v750, %v754
      %v756 = vshrl.u32 %v397, 16
      %v758 = vrot.slane %v756, 4
      %v759 = vor.u32 %v758, %v754
      %v760 = vrot.slane %v759, 4
      %v762 = vshll.u32 %v398, 16
      %v764 = vrot.slane %v762, 5
      %v765 = vsel %vm429, %v760, %v764
      %v767 = vshrl.u32 %v399, 16
      %v769 = vrot.slane %v767, 4
      %v770 = vshll.u32 %v399, 16
      %v772 = vrot.slane %v770, 5
      %v773 = vor.u32 %v769, %v772
      %v774 = vrot.slane %v773, 4
      %v776 = vshll.u32 %v400, 16
      %v778 = vrot.slane %v776, 5
      %v779 = vsel %vm429, %v774, %v778
      %v780 = vshrl.u32 %v400, 16
      %v782 = vrot.slane %v780, 4
      %v783 = vor.u32 %v782, %v778
      %v784 = vrot.slane %v783, 4
      %v786 = vshll.u32 %v401, 16
      %v788 = vrot.slane %v786, 5
      %v789 = vsel %vm429, %v784, %v788
      %v791 = vshrl.u32 %v402, 16
      %v793 = vrot.slane %v791, 4
      %v794 = vshll.u32 %v402, 16
      %v796 = vrot.slane %v794, 5
      %v797 = vor.u32 %v793, %v796
      %v798 = vrot.slane %v797, 4
      %v800 = vshll.u32 %v403, 16
      %v802 = vrot.slane %v800, 5
      %v803 = vsel %vm429, %v798, %v802
      %v804 = vshrl.u32 %v403, 16
      %v806 = vrot.slane %v804, 4
      %v807 = vor.u32 %v806, %v802
      %v808 = vrot.slane %v807, 4
      %v810 = vshll.u32 %v404, 16
      %v812 = vrot.slane %v810, 5
      %v813 = vsel %vm429, %v808, %v812
      %s814 = scalar_lea.vmem %s2, 64
      %v815 = vld [vmem:[%s814] sm:$0xf]
      %v816 = vld [vmem:[%s814 + $0x4] sm:$0xf]
      %v817 = vld [vmem:[%s814 + $0x8] sm:$0xf]
      %v818 = vld [vmem:[%s814 + $0xc] sm:$0xf]
      %v819 = vld [vmem:[%s814 + $0x10] sm:$0xf]
      %v820 = vld [vmem:[%s814 + $0x14] sm:$0xf]
      %v821 = vld [vmem:[%s814 + $0x18] sm:$0xf]
      %v822 = vld [vmem:[%s814 + $0x1c] sm:$0xf]
      %v823 = vld [vmem:[%s814 + $0x20] sm:$0xf]
      %v824 = vld [vmem:[%s814 + $0x24] sm:$0xf]
      %v825 = vld [vmem:[%s814 + $0x28] sm:$0xf]
      %v826 = vld [vmem:[%s814 + $0x2c] sm:$0xf]
      %v827 = vld [vmem:[%s814 + $0x30] sm:$0xf]
      %v828 = vld [vmem:[%s814 + $0x34] sm:$0xf]
      %v829 = vld [vmem:[%s814 + $0x38] sm:$0xf]
      %v830 = vld [vmem:[%s814 + $0x3c] sm:$0xf]
      %v831 = vunpack.c.l.b16 %v443
      %v832 = vunpack.c.l.b16 %v453
      %v833 = vunpack.c.l.b16 %v467
      %v834 = vunpack.c.l.b16 %v477
      %v835 = vunpack.c.l.b16 %v491
      %v836 = vunpack.c.l.b16 %v501
      %v837 = vunpack.c.l.b16 %v515
      %v838 = vunpack.c.l.b16 %v525
      %v839 = vunpack.c.l.b16 %v539
      %v840 = vunpack.c.l.b16 %v549
      %v841 = vunpack.c.l.b16 %v563
      %v842 = vunpack.c.l.b16 %v573
      %v843 = vunpack.c.l.b16 %v587
      %v844 = vunpack.c.l.b16 %v597
      %v845 = vunpack.c.l.b16 %v611
      %v846 = vunpack.c.l.b16 %v621
      %v847 = vunpack.c.l.b16 %v635
      %v848 = vunpack.c.l.b16 %v645
      %v849 = vunpack.c.l.b16 %v659
      %v850 = vunpack.c.l.b16 %v669
      %v851 = vunpack.c.l.b16 %v683
      %v852 = vunpack.c.l.b16 %v693
      %v853 = vunpack.c.l.b16 %v707
      %v854 = vunpack.c.l.b16 %v717
      %v855 = vunpack.c.l.b16 %v731
      %v856 = vunpack.c.l.b16 %v741
      %v857 = vunpack.c.l.b16 %v755
      %v858 = vunpack.c.l.b16 %v765
      %v859 = vunpack.c.l.b16 %v779
      %v860 = vunpack.c.l.b16 %v789
      %v861 = vunpack.c.l.b16 %v803
      %v862 = vunpack.c.l.b16 %v813
      %v863 = vpack.c.b16 %v832, %v831
      %v864 = vpack.c.b16 %v834, %v833
      %v865 = vpack.c.b16 %v836, %v835
      %v866 = vpack.c.b16 %v838, %v837
      %v867 = vpack.c.b16 %v840, %v839
      %v868 = vpack.c.b16 %v842, %v841
      %v869 = vpack.c.b16 %v844, %v843
      %v870 = vpack.c.b16 %v846, %v845
      %v871 = vpack.c.b16 %v848, %v847
      %v872 = vpack.c.b16 %v850, %v849
      %v873 = vpack.c.b16 %v852, %v851
      %v874 = vpack.c.b16 %v854, %v853
      %v875 = vpack.c.b16 %v856, %v855
      %v876 = vpack.c.b16 %v858, %v857
      %v877 = vpack.c.b16 %v860, %v859
      %v878 = vpack.c.b16 %v862, %v861
      %v911 = vunpack.c.l.b16 %v815
      %v912 = vunpack.c.l.b16 %v816
      %v913 = vunpack.c.l.b16 %v817
      %v914 = vunpack.c.l.b16 %v818
      %v915 = vunpack.c.l.b16 %v819
      %v916 = vunpack.c.l.b16 %v820
      %v917 = vunpack.c.l.b16 %v821
      %v918 = vunpack.c.l.b16 %v822
      %v919 = vunpack.c.l.b16 %v823
      %v920 = vunpack.c.l.b16 %v824
      %v921 = vunpack.c.l.b16 %v825
      %v922 = vunpack.c.l.b16 %v826
      %v923 = vunpack.c.l.b16 %v827
      %v924 = vunpack.c.l.b16 %v828
      %v925 = vunpack.c.l.b16 %v829
      %v926 = vunpack.c.l.b16 %v830
      %v927 = vpack.c.b16 %v912, %v911
      %v928 = vpack.c.b16 %v914, %v913
      %v929 = vpack.c.b16 %v916, %v915
      %v930 = vpack.c.b16 %v918, %v917
      %v931 = vpack.c.b16 %v920, %v919
      %v932 = vpack.c.b16 %v922, %v921
      %v933 = vpack.c.b16 %v924, %v923
      %v934 = vpack.c.b16 %v926, %v925
      %943 = vmatprep.subr.bf16.mxu0 0
      %944 = vmatpush1.bf16.msra.mxu0 %v927
      %945 = vmatprep.subr.bf16.mxu0 0
      %946 = vmatpush1.bf16.msra.mxu0 %v928
      %947 = vmatprep.subr.bf16.mxu0 0
      %948 = vmatpush1.bf16.msra.mxu0 %v929
      %949 = vmatprep.subr.bf16.mxu0 0
      %950 = vmatpush1.bf16.msra.mxu0 %v930
      %951 = vmatprep.subr.bf16.mxu0 0
      %952 = vmatpush1.bf16.msra.mxu0 %v931
      %953 = vmatprep.subr.bf16.mxu0 0
      %954 = vmatpush1.bf16.msra.mxu0 %v932
      %955 = vmatprep.subr.bf16.mxu0 0
      %956 = vmatpush1.bf16.msra.mxu0 %v933
      %957 = vmatprep.subr.bf16.mxu0 0
      %958 = vmatpush1.bf16.msra.mxu0 %v934
      %959 = vmatprep.subr.bf16.mxu0 0
      %960 = vmatpush1.bf16.msra.mxu0 0
      %961 = vmatprep.subr.bf16.mxu0 0
      %962 = vmatpush1.bf16.msra.mxu0 0
      %963 = vmatprep.subr.bf16.mxu0 0
      %964 = vmatpush1.bf16.msra.mxu0 0
      %965 = vmatprep.subr.bf16.mxu0 0
      %966 = vmatpush1.bf16.msra.mxu0 0
      %967 = vmatprep.subr.bf16.mxu0 0
      %968 = vmatpush1.bf16.msra.mxu0 0
      %969 = vmatprep.subr.bf16.mxu0 0
      %970 = vmatpush1.bf16.msra.mxu0 0
      %971 = vmatprep.subr.bf16.mxu0 0
      %972 = vmatpush1.bf16.msra.mxu0 0
      %973 = vmatprep.subr.bf16.mxu0 0
      %974 = vmatpush1.bf16.msra.mxu0 0
      %975 = vmatprep.mubr.bf16.mxu0 0
      %976 = vmatmul.mubr.bf16.gmra.mrb[0].mxu0 %v863
      %v977 = vpop.f32.mrb[0].mxu0
      %v978 = vadd.f32 0.0, %v977
      %v979 = vpop.f32.mrb[0].mxu0
      %v980 = vpop.f32.mrb[0].mxu0
      %v981 = vadd.f32 0.0, %v980
      %v982 = vpop.f32.mrb[0].mxu0
      %983 = vmatprep.mubr.bf16.mxu0 0
      %984 = vmatmul.mubr.bf16.gmra.mrb[0].mxu0 %v864
      %v985 = vpop.f32.mrb[0].mxu0
      %v986 = vadd.f32 0.0, %v985
      %v987 = vpop.f32.mrb[0].mxu0
      %v988 = vpop.f32.mrb[0].mxu0
      %v989 = vadd.f32 0.0, %v988
      %v990 = vpop.f32.mrb[0].mxu0
      %991 = vmatprep.mubr.bf16.mxu0 0
      %992 = vmatmul.mubr.bf16.gmra.mrb[0].mxu0 %v865
      %v993 = vpop.f32.mrb[0].mxu0
      %v994 = vadd.f32 0.0, %v993
      %v995 = vpop.f32.mrb[0].mxu0
      %v996 = vpop.f32.mrb[0].mxu0
      %v997 = vadd.f32 0.0, %v996
      %v998 = vpop.f32.mrb[0].mxu0
      %999 = vmatprep.mubr.bf16.mxu0 0
      %1000 = vmatmul.mubr.bf16.gmra.mrb[0].mxu0 %v866
      %v1001 = vpop.f32.mrb[0].mxu0
      %v1002 = vadd.f32 0.0, %v1001
      %v1003 = vpop.f32.mrb[0].mxu0
      %v1004 = vpop.f32.mrb[0].mxu0
      %v1005 = vadd.f32 0.0, %v1004
      %v1006 = vpop.f32.mrb[0].mxu0
      %1007 = vmatprep.mubr.bf16.mxu0 0
      %1008 = vmatmul.mubr.bf16.gmra.mrb[0].mxu0 %v867
      %v1009 = vpop.f32.mrb[0].mxu0
      %v1010 = vadd.f32 0.0, %v1009
      %v1011 = vpop.f32.mrb[0].mxu0
      %v1012 = vpop.f32.mrb[0].mxu0
      %v1013 = vadd.f32 0.0, %v1012
      %v1014 = vpop.f32.mrb[0].mxu0
      %1015 = vmatprep.mubr.bf16.mxu0 0
      %1016 = vmatmul.mubr.bf16.gmra.mrb[0].mxu0 %v868
      %v1017 = vpop.f32.mrb[0].mxu0
      %v1018 = vadd.f32 0.0, %v1017
      %v1019 = vpop.f32.mrb[0].mxu0
      %v1020 = vpop.f32.mrb[0].mxu0
      %v1021 = vadd.f32 0.0, %v1020
      %v1022 = vpop.f32.mrb[0].mxu0
      %1023 = vmatprep.mubr.bf16.mxu0 0
      %1024 = vmatmul.mubr.bf16.gmra.mrb[0].mxu0 %v869
      %v1025 = vpop.f32.mrb[0].mxu0
      %v1026 = vadd.f32 0.0, %v1025
      %v1027 = vpop.f32.mrb[0].mxu0
      %v1028 = vpop.f32.mrb[0].mxu0
      %v1029 = vadd.f32 0.0, %v1028
      %v1030 = vpop.f32.mrb[0].mxu0
      %1031 = vmatprep.mubr.bf16.mxu0 0
      %1032 = vmatmul.mubr.bf16.gmra.mrb[0].mxu0 %v870
      %v1033 = vpop.f32.mrb[0].mxu0
      %v1034 = vadd.f32 0.0, %v1033
      %v1035 = vpop.f32.mrb[0].mxu0
      %v1036 = vpop.f32.mrb[0].mxu0
      %v1037 = vadd.f32 0.0, %v1036
      %v1038 = vpop.f32.mrb[0].mxu0
      %1039 = vmatprep.mubr.bf16.mxu0 0
      %1040 = vmatmul.mubr.bf16.gmra.mrb[0].mxu0 %v871
      %v1041 = vpop.f32.mrb[0].mxu0
      %v1042 = vadd.f32 0.0, %v1041
      %v1043 = vpop.f32.mrb[0].mxu0
      %v1044 = vpop.f32.mrb[0].mxu0
      %v1045 = vadd.f32 0.0, %v1044
      %v1046 = vpop.f32.mrb[0].mxu0
      %1047 = vmatprep.mubr.bf16.mxu0 0
      %1048 = vmatmul.mubr.bf16.gmra.mrb[0].mxu0 %v872
      %v1049 = vpop.f32.mrb[0].mxu0
      %v1050 = vadd.f32 0.0, %v1049
      %v1051 = vpop.f32.mrb[0].mxu0
      %v1052 = vpop.f32.mrb[0].mxu0
      %v1053 = vadd.f32 0.0, %v1052
      %v1054 = vpop.f32.mrb[0].mxu0
      %1055 = vmatprep.mubr.bf16.mxu0 0
      %1056 = vmatmul.mubr.bf16.gmra.mrb[0].mxu0 %v873
      %v1057 = vpop.f32.mrb[0].mxu0
      %v1058 = vadd.f32 0.0, %v1057
      %v1059 = vpop.f32.mrb[0].mxu0
      %v1060 = vpop.f32.mrb[0].mxu0
      %v1061 = vadd.f32 0.0, %v1060
      %v1062 = vpop.f32.mrb[0].mxu0
      %1063 = vmatprep.mubr.bf16.mxu0 0
      %1064 = vmatmul.mubr.bf16.gmra.mrb[0].mxu0 %v874
      %v1065 = vpop.f32.mrb[0].mxu0
      %v1066 = vadd.f32 0.0, %v1065
      %v1067 = vpop.f32.mrb[0].mxu0
      %v1068 = vpop.f32.mrb[0].mxu0
      %v1069 = vadd.f32 0.0, %v1068
      %v1070 = vpop.f32.mrb[0].mxu0
      %1071 = vmatprep.mubr.bf16.mxu0 0
      %1072 = vmatmul.mubr.bf16.gmra.mrb[0].mxu0 %v875
      %v1073 = vpop.f32.mrb[0].mxu0
      %v1074 = vadd.f32 0.0, %v1073
      %v1075 = vpop.f32.mrb[0].mxu0
      %v1076 = vpop.f32.mrb[0].mxu0
      %v1077 = vadd.f32 0.0, %v1076
      %v1078 = vpop.f32.mrb[0].mxu0
      %1079 = vmatprep.mubr.bf16.mxu0 0
      %1080 = vmatmul.mubr.bf16.gmra.mrb[0].mxu0 %v876
      %v1081 = vpop.f32.mrb[0].mxu0
      %v1082 = vadd.f32 0.0, %v1081
      %v1083 = vpop.f32.mrb[0].mxu0
      %v1084 = vpop.f32.mrb[0].mxu0
      %v1085 = vadd.f32 0.0, %v1084
      %v1086 = vpop.f32.mrb[0].mxu0
      %1087 = vmatprep.mubr.bf16.mxu0 0
      %1088 = vmatmul.mubr.bf16.gmra.mrb[0].mxu0 %v877
      %v1089 = vpop.f32.mrb[0].mxu0
      %v1090 = vadd.f32 0.0, %v1089
      %v1091 = vpop.f32.mrb[0].mxu0
      %v1092 = vpop.f32.mrb[0].mxu0
      %v1093 = vadd.f32 0.0, %v1092
      %v1094 = vpop.f32.mrb[0].mxu0
      %1095 = vmatprep.mubr.bf16.mxu0 0
      %1096 = vmatmul.mubr.bf16.gmra.mrb[0].mxu0 %v878
      %v1097 = vpop.f32.mrb[0].mxu0
      %v1098 = vadd.f32 0.0, %v1097
      %v1099 = vpop.f32.mrb[0].mxu0
      %v1100 = vpop.f32.mrb[0].mxu0
      %v1101 = vadd.f32 0.0, %v1100
      %v1102 = vpop.f32.mrb[0].mxu0
      %1103 = vdwg.mxu0
      %v1136 = vunpack.c.l.b16 %v357
      %v1137 = vunpack.c.l.b16 %v358
      %v1138 = vunpack.c.l.b16 %v360
      %v1139 = vunpack.c.l.b16 %v361
      %v1140 = vunpack.c.l.b16 %v363
      %v1141 = vunpack.c.l.b16 %v364
      %v1142 = vunpack.c.l.b16 %v366
      %v1143 = vunpack.c.l.b16 %v367
      %v1144 = vunpack.c.l.b16 %v369
      %v1145 = vunpack.c.l.b16 %v370
      %v1146 = vunpack.c.l.b16 %v372
      %v1147 = vunpack.c.l.b16 %v373
      %v1148 = vunpack.c.l.b16 %v375
      %v1149 = vunpack.c.l.b16 %v376
      %v1150 = vunpack.c.l.b16 %v378
      %v1151 = vunpack.c.l.b16 %v379
      %v1152 = vunpack.c.l.b16 %v381
      %v1153 = vunpack.c.l.b16 %v382
      %v1154 = vunpack.c.l.b16 %v384
      %v1155 = vunpack.c.l.b16 %v385
      %v1156 = vunpack.c.l.b16 %v387
      %v1157 = vunpack.c.l.b16 %v388
      %v1158 = vunpack.c.l.b16 %v390
      %v1159 = vunpack.c.l.b16 %v391
      %v1160 = vunpack.c.l.b16 %v393
      %v1161 = vunpack.c.l.b16 %v394
      %v1162 = vunpack.c.l.b16 %v396
      %v1163 = vunpack.c.l.b16 %v397
      %v1164 = vunpack.c.l.b16 %v399
      %v1165 = vunpack.c.l.b16 %v400
      %v1166 = vunpack.c.l.b16 %v402
      %v1167 = vunpack.c.l.b16 %v403
      %v1168 = vpack.c.b16 %v1137, %v1136
      %v1169 = vpack.c.b16 %v1139, %v1138
      %v1170 = vpack.c.b16 %v1141, %v1140
      %v1171 = vpack.c.b16 %v1143, %v1142
      %v1172 = vpack.c.b16 %v1145, %v1144
      %v1173 = vpack.c.b16 %v1147, %v1146
      %v1174 = vpack.c.b16 %v1149, %v1148
      %v1175 = vpack.c.b16 %v1151, %v1150
      %v1176 = vpack.c.b16 %v1153, %v1152
      %v1177 = vpack.c.b16 %v1155, %v1154
      %v1178 = vpack.c.b16 %v1157, %v1156
      %v1179 = vpack.c.b16 %v1159, %v1158
      %v1180 = vpack.c.b16 %v1161, %v1160
      %v1181 = vpack.c.b16 %v1163, %v1162
      %v1182 = vpack.c.b16 %v1165, %v1164
      %v1183 = vpack.c.b16 %v1167, %v1166
      %v1216 = vunpack.c.l.b16 %v411
      %v1217 = vunpack.c.l.b16 %v412
      %v1218 = vunpack.c.l.b16 %v413
      %v1219 = vunpack.c.l.b16 %v414
      %v1220 = vunpack.c.l.b16 %v415
      %v1221 = vunpack.c.l.b16 %v416
      %v1222 = vunpack.c.l.b16 %v417
      %v1223 = vunpack.c.l.b16 %v418
      %v1224 = vunpack.c.l.b16 %v419
      %v1225 = vunpack.c.l.b16 %v420
      %v1226 = vunpack.c.l.b16 %v421
      %v1227 = vunpack.c.l.b16 %v422
      %v1228 = vunpack.c.l.b16 %v423
      %v1229 = vunpack.c.l.b16 %v424
      %v1230 = vunpack.c.l.b16 %v425
      %v1231 = vunpack.c.l.b16 %v426
      %v1232 = vpack.c.b16 %v1217, %v1216
      %v1233 = vpack.c.b16 %v1219, %v1218
      %v1234 = vpack.c.b16 %v1221, %v1220
      %v1235 = vpack.c.b16 %v1223, %v1222
      %v1236 = vpack.c.b16 %v1225, %v1224
      %v1237 = vpack.c.b16 %v1227, %v1226
      %v1238 = vpack.c.b16 %v1229, %v1228
      %v1239 = vpack.c.b16 %v1231, %v1230
      %1248 = vmatprep.subr.bf16.mxu0 0
      %1249 = vmatpush1.bf16.msra.mxu0 %v1232
      %1250 = vmatprep.subr.bf16.mxu0 0
      %1251 = vmatpush1.bf16.msra.mxu0 %v1233
      %1252 = vmatprep.subr.bf16.mxu0 0
      %1253 = vmatpush1.bf16.msra.mxu0 %v1234
      %1254 = vmatprep.subr.bf16.mxu0 0
      %1255 = vmatpush1.bf16.msra.mxu0 %v1235
      %1256 = vmatprep.subr.bf16.mxu0 0
      %1257 = vmatpush1.bf16.msra.mxu0 %v1236
      %1258 = vmatprep.subr.bf16.mxu0 0
      %1259 = vmatpush1.bf16.msra.mxu0 %v1237
      %1260 = vmatprep.subr.bf16.mxu0 0
      %1261 = vmatpush1.bf16.msra.mxu0 %v1238
      %1262 = vmatprep.subr.bf16.mxu0 0
      %1263 = vmatpush1.bf16.msra.mxu0 %v1239
      %1264 = vmatprep.subr.bf16.mxu0 0
      %1265 = vmatpush1.bf16.msra.mxu0 0
      %1266 = vmatprep.subr.bf16.mxu0 0
      %1267 = vmatpush1.bf16.msra.mxu0 0
      %1268 = vmatprep.subr.bf16.mxu0 0
      %1269 = vmatpush1.bf16.msra.mxu0 0
      %1270 = vmatprep.subr.bf16.mxu0 0
      %1271 = vmatpush1.bf16.msra.mxu0 0
      %1272 = vmatprep.subr.bf16.mxu0 0
      %1273 = vmatpush1.bf16.msra.mxu0 0
      %1274 = vmatprep.subr.bf16.mxu0 0
      %1275 = vmatpush1.bf16.msra.mxu0 0
      %1276 = vmatprep.subr.bf16.mxu0 0
      %1277 = vmatpush1.bf16.msra.mxu0 0
      %1278 = vmatprep.subr.bf16.mxu0 0
      %1279 = vmatpush1.bf16.msra.mxu0 0
      %1280 = vmatprep.mubr.bf16.mxu0 0
      %1281 = vmatmul.mubr.bf16.gmra.mrb[0].mxu0 %v1168
      %v1282 = vpop.f32.mrb[0].mxu0
      %v1283 = vadd.f32 %v978, %v1282
      %v1284 = vpop.f32.mrb[0].mxu0
      %v1285 = vpop.f32.mrb[0].mxu0
      %v1286 = vadd.f32 %v981, %v1285
      %v1287 = vpop.f32.mrb[0].mxu0
      %1288 = vmatprep.mubr.bf16.mxu0 0
      %1289 = vmatmul.mubr.bf16.gmra.mrb[0].mxu0 %v1169
      %v1290 = vpop.f32.mrb[0].mxu0
      %v1291 = vadd.f32 %v986, %v1290
      %v1292 = vpop.f32.mrb[0].mxu0
      %v1293 = vpop.f32.mrb[0].mxu0
      %v1294 = vadd.f32 %v989, %v1293
      %v1295 = vpop.f32.mrb[0].mxu0
      %1296 = vmatprep.mubr.bf16.mxu0 0
      %1297 = vmatmul.mubr.bf16.gmra.mrb[0].mxu0 %v1170
      %v1298 = vpop.f32.mrb[0].mxu0
      %v1299 = vadd.f32 %v994, %v1298
      %v1300 = vpop.f32.mrb[0].mxu0
      %v1301 = vpop.f32.mrb[0].mxu0
      %v1302 = vadd.f32 %v997, %v1301
      %v1303 = vpop.f32.mrb[0].mxu0
      %1304 = vmatprep.mubr.bf16.mxu0 0
      %1305 = vmatmul.mubr.bf16.gmra.mrb[0].mxu0 %v1171
      %v1306 = vpop.f32.mrb[0].mxu0
      %v1307 = vadd.f32 %v1002, %v1306
      %v1308 = vpop.f32.mrb[0].mxu0
      %v1309 = vpop.f32.mrb[0].mxu0
      %v1310 = vadd.f32 %v1005, %v1309
      %v1311 = vpop.f32.mrb[0].mxu0
      %1312 = vmatprep.mubr.bf16.mxu0 0
      %1313 = vmatmul.mubr.bf16.gmra.mrb[0].mxu0 %v1172
      %v1314 = vpop.f32.mrb[0].mxu0
      %v1315 = vadd.f32 %v1010, %v1314
      %v1316 = vpop.f32.mrb[0].mxu0
      %v1317 = vpop.f32.mrb[0].mxu0
      %v1318 = vadd.f32 %v1013, %v1317
      %v1319 = vpop.f32.mrb[0].mxu0
      %1320 = vmatprep.mubr.bf16.mxu0 0
      %1321 = vmatmul.mubr.bf16.gmra.mrb[0].mxu0 %v1173
      %v1322 = vpop.f32.mrb[0].mxu0
      %v1323 = vadd.f32 %v1018, %v1322
      %v1324 = vpop.f32.mrb[0].mxu0
      %v1325 = vpop.f32.mrb[0].mxu0
      %v1326 = vadd.f32 %v1021, %v1325
      %v1327 = vpop.f32.mrb[0].mxu0
      %1328 = vmatprep.mubr.bf16.mxu0 0
      %1329 = vmatmul.mubr.bf16.gmra.mrb[0].mxu0 %v1174
      %v1330 = vpop.f32.mrb[0].mxu0
      %v1331 = vadd.f32 %v1026, %v1330
      %v1332 = vpop.f32.mrb[0].mxu0
      %v1333 = vpop.f32.mrb[0].mxu0
      %v1334 = vadd.f32 %v1029, %v1333
      %v1335 = vpop.f32.mrb[0].mxu0
      %1336 = vmatprep.mubr.bf16.mxu0 0
      %1337 = vmatmul.mubr.bf16.gmra.mrb[0].mxu0 %v1175
      %v1338 = vpop.f32.mrb[0].mxu0
      %v1339 = vadd.f32 %v1034, %v1338
      %v1340 = vpop.f32.mrb[0].mxu0
      %v1341 = vpop.f32.mrb[0].mxu0
      %v1342 = vadd.f32 %v1037, %v1341
      %v1343 = vpop.f32.mrb[0].mxu0
      %1344 = vmatprep.mubr.bf16.mxu0 0
      %1345 = vmatmul.mubr.bf16.gmra.mrb[0].mxu0 %v1176
      %v1346 = vpop.f32.mrb[0].mxu0
      %v1347 = vadd.f32 %v1042, %v1346
      %v1348 = vpop.f32.mrb[0].mxu0
      %v1349 = vpop.f32.mrb[0].mxu0
      %v1350 = vadd.f32 %v1045, %v1349
      %v1351 = vpop.f32.mrb[0].mxu0
      %1352 = vmatprep.mubr.bf16.mxu0 0
      %1353 = vmatmul.mubr.bf16.gmra.mrb[0].mxu0 %v1177
      %v1354 = vpop.f32.mrb[0].mxu0
      %v1355 = vadd.f32 %v1050, %v1354
      %v1356 = vpop.f32.mrb[0].mxu0
      %v1357 = vpop.f32.mrb[0].mxu0
      %v1358 = vadd.f32 %v1053, %v1357
      %v1359 = vpop.f32.mrb[0].mxu0
      %1360 = vmatprep.mubr.bf16.mxu0 0
      %1361 = vmatmul.mubr.bf16.gmra.mrb[0].mxu0 %v1178
      %v1362 = vpop.f32.mrb[0].mxu0
      %v1363 = vadd.f32 %v1058, %v1362
      %v1364 = vpop.f32.mrb[0].mxu0
      %v1365 = vpop.f32.mrb[0].mxu0
      %v1366 = vadd.f32 %v1061, %v1365
      %v1367 = vpop.f32.mrb[0].mxu0
      %1368 = vmatprep.mubr.bf16.mxu0 0
      %1369 = vmatmul.mubr.bf16.gmra.mrb[0].mxu0 %v1179
      %v1370 = vpop.f32.mrb[0].mxu0
      %v1371 = vadd.f32 %v1066, %v1370
      %v1372 = vpop.f32.mrb[0].mxu0
      %v1373 = vpop.f32.mrb[0].mxu0
      %v1374 = vadd.f32 %v1069, %v1373
      %v1375 = vpop.f32.mrb[0].mxu0
      %1376 = vmatprep.mubr.bf16.mxu0 0
      %1377 = vmatmul.mubr.bf16.gmra.mrb[0].mxu0 %v1180
      %v1378 = vpop.f32.mrb[0].mxu0
      %v1379 = vadd.f32 %v1074, %v1378
      %v1380 = vpop.f32.mrb[0].mxu0
      %v1381 = vpop.f32.mrb[0].mxu0
      %v1382 = vadd.f32 %v1077, %v1381
      %v1383 = vpop.f32.mrb[0].mxu0
      %1384 = vmatprep.mubr.bf16.mxu0 0
      %1385 = vmatmul.mubr.bf16.gmra.mrb[0].mxu0 %v1181
      %v1386 = vpop.f32.mrb[0].mxu0
      %v1387 = vadd.f32 %v1082, %v1386
      %v1388 = vpop.f32.mrb[0].mxu0
      %v1389 = vpop.f32.mrb[0].mxu0
      %v1390 = vadd.f32 %v1085, %v1389
      %v1391 = vpop.f32.mrb[0].mxu0
      %1392 = vmatprep.mubr.bf16.mxu0 0
      %1393 = vmatmul.mubr.bf16.gmra.mrb[0].mxu0 %v1182
      %v1394 = vpop.f32.mrb[0].mxu0
      %v1395 = vadd.f32 %v1090, %v1394
      %v1396 = vpop.f32.mrb[0].mxu0
      %v1397 = vpop.f32.mrb[0].mxu0
      %v1398 = vadd.f32 %v1093, %v1397
      %v1399 = vpop.f32.mrb[0].mxu0
      %1400 = vmatprep.mubr.bf16.mxu0 0
      %1401 = vmatmul.mubr.bf16.gmra.mrb[0].mxu0 %v1183
      %v1402 = vpop.f32.mrb[0].mxu0
      %v1403 = vadd.f32 %v1098, %v1402
      %v1404 = vpop.f32.mrb[0].mxu0
      %v1405 = vpop.f32.mrb[0].mxu0
      %v1406 = vadd.f32 %v1101, %v1405
      %v1407 = vpop.f32.mrb[0].mxu0
      %1408 = vdwg.mxu0
      %vm1425 = vcmask 1042432
      %vm1426 = vcmask 1046532
      %vm1427 = vmor %vm1425, %vm1426
      %v1428 = vrot.slane %v357, 5
      %v1429 = vrot.slane %v1428, 4
      %v1430 = vrot.slane %v358, 5
      %v1431 = vsel %vm1427, %v1429, %v1430
      %v1432 = vrot.slane %v1430, 4
      %v1433 = vrot.slane %v359, 5
      %v1434 = vsel %vm1427, %v1432, %v1433
      %v1435 = vrot.slane %v360, 5
      %v1436 = vrot.slane %v1435, 4
      %v1437 = vrot.slane %v361, 5
      %v1438 = vsel %vm1427, %v1436, %v1437
      %v1439 = vrot.slane %v1437, 4
      %v1440 = vrot.slane %v362, 5
      %v1441 = vsel %vm1427, %v1439, %v1440
      %v1442 = vrot.slane %v363, 5
      %v1443 = vrot.slane %v1442, 4
      %v1444 = vrot.slane %v364, 5
      %v1445 = vsel %vm1427, %v1443, %v1444
      %v1446 = vrot.slane %v1444, 4
      %v1447 = vrot.slane %v365, 5
      %v1448 = vsel %vm1427, %v1446, %v1447
      %v1449 = vrot.slane %v366, 5
      %v1450 = vrot.slane %v1449, 4
      %v1451 = vrot.slane %v367, 5
      %v1452 = vsel %vm1427, %v1450, %v1451
      %v1453 = vrot.slane %v1451, 4
      %v1454 = vrot.slane %v368, 5
      %v1455 = vsel %vm1427, %v1453, %v1454
      %v1456 = vrot.slane %v369, 5
      %v1457 = vrot.slane %v1456, 4
      %v1458 = vrot.slane %v370, 5
      %v1459 = vsel %vm1427, %v1457, %v1458
      %v1460 = vrot.slane %v1458, 4
      %v1461 = vrot.slane %v371, 5
      %v1462 = vsel %vm1427, %v1460, %v1461
      %v1463 = vrot.slane %v372, 5
      %v1464 = vrot.slane %v1463, 4
      %v1465 = vrot.slane %v373, 5
      %v1466 = vsel %vm1427, %v1464, %v1465
      %v1467 = vrot.slane %v1465, 4
      %v1468 = vrot.slane %v374, 5
      %v1469 = vsel %vm1427, %v1467, %v1468
      %v1470 = vrot.slane %v375, 5
      %v1471 = vrot.slane %v1470, 4
      %v1472 = vrot.slane %v376, 5
      %v1473 = vsel %vm1427, %v1471, %v1472
      %v1474 = vrot.slane %v1472, 4
      %v1475 = vrot.slane %v377, 5
      %v1476 = vsel %vm1427, %v1474, %v1475
      %v1477 = vrot.slane %v378, 5
      %v1478 = vrot.slane %v1477, 4
      %v1479 = vrot.slane %v379, 5
      %v1480 = vsel %vm1427, %v1478, %v1479
      %v1481 = vrot.slane %v1479, 4
      %v1482 = vrot.slane %v380, 5
      %v1483 = vsel %vm1427, %v1481, %v1482
      %v1484 = vrot.slane %v381, 5
      %v1485 = vrot.slane %v1484, 4
      %v1486 = vrot.slane %v382, 5
      %v1487 = vsel %vm1427, %v1485, %v1486
      %v1488 = vrot.slane %v1486, 4
      %v1489 = vrot.slane %v383, 5
      %v1490 = vsel %vm1427, %v1488, %v1489
      %v1491 = vrot.slane %v384, 5
      %v1492 = vrot.slane %v1491, 4
      %v1493 = vrot.slane %v385, 5
      %v1494 = vsel %vm1427, %v1492, %v1493
      %v1495 = vrot.slane %v1493, 4
      %v1496 = vrot.slane %v386, 5
      %v1497 = vsel %vm1427, %v1495, %v1496
      %v1498 = vrot.slane %v387, 5
      %v1499 = vrot.slane %v1498, 4
      %v1500 = vrot.slane %v388, 5
      %v1501 = vsel %vm1427, %v1499, %v1500
      %v1502 = vrot.slane %v1500, 4
      %v1503 = vrot.slane %v389, 5
      %v1504 = vsel %vm1427, %v1502, %v1503
      %v1505 = vrot.slane %v390, 5
      %v1506 = vrot.slane %v1505, 4
      %v1507 = vrot.slane %v391, 5
      %v1508 = vsel %vm1427, %v1506, %v1507
      %v1509 = vrot.slane %v1507, 4
      %v1510 = vrot.slane %v392, 5
      %v1511 = vsel %vm1427, %v1509, %v1510
      %v1512 = vrot.slane %v393, 5
      %v1513 = vrot.slane %v1512, 4
      %v1514 = vrot.slane %v394, 5
      %v1515 = vsel %vm1427, %v1513, %v1514
      %v1516 = vrot.slane %v1514, 4
      %v1517 = vrot.slane %v395, 5
      %v1518 = vsel %vm1427, %v1516, %v1517
      %v1519 = vrot.slane %v396, 5
      %v1520 = vrot.slane %v1519, 4
      %v1521 = vrot.slane %v397, 5
      %v1522 = vsel %vm1427, %v1520, %v1521
      %v1523 = vrot.slane %v1521, 4
      %v1524 = vrot.slane %v398, 5
      %v1525 = vsel %vm1427, %v1523, %v1524
      %v1526 = vrot.slane %v399, 5
      %v1527 = vrot.slane %v1526, 4
      %v1528 = vrot.slane %v400, 5
      %v1529 = vsel %vm1427, %v1527, %v1528
      %v1530 = vrot.slane %v1528, 4
      %v1531 = vrot.slane %v401, 5
      %v1532 = vsel %vm1427, %v1530, %v1531
      %v1533 = vrot.slane %v402, 5
      %v1534 = vrot.slane %v1533, 4
      %v1535 = vrot.slane %v403, 5
      %v1536 = vsel %vm1427, %v1534, %v1535
      %v1537 = vrot.slane %v1535, 4
      %v1538 = vrot.slane %v404, 5
      %v1539 = vsel %vm1427, %v1537, %v1538
      %s1540 = scalar_lea.vmem %s2, 128
      %v1541 = vld [vmem:[%s1540] sm:$0xf]
      %v1542 = vld [vmem:[%s1540 + $0x4] sm:$0xf]
      %v1543 = vld [vmem:[%s1540 + $0x8] sm:$0xf]
      %v1544 = vld [vmem:[%s1540 + $0xc] sm:$0xf]
      %v1545 = vld [vmem:[%s1540 + $0x10] sm:$0xf]
      %v1546 = vld [vmem:[%s1540 + $0x14] sm:$0xf]
      %v1547 = vld [vmem:[%s1540 + $0x18] sm:$0xf]
      %v1548 = vld [vmem:[%s1540 + $0x1c] sm:$0xf]
      %v1549 = vld [vmem:[%s1540 + $0x20] sm:$0xf]
      %v1550 = vld [vmem:[%s1540 + $0x24] sm:$0xf]
      %v1551 = vld [vmem:[%s1540 + $0x28] sm:$0xf]
      %v1552 = vld [vmem:[%s1540 + $0x2c] sm:$0xf]
      %v1553 = vld [vmem:[%s1540 + $0x30] sm:$0xf]
      %v1554 = vld [vmem:[%s1540 + $0x34] sm:$0xf]
      %v1555 = vld [vmem:[%s1540 + $0x38] sm:$0xf]
      %v1556 = vld [vmem:[%s1540 + $0x3c] sm:$0xf]
      %v1557 = vunpack.c.l.b16 %v1431
      %v1558 = vunpack.c.l.b16 %v1434
      %v1559 = vunpack.c.l.b16 %v1438
      %v1560 = vunpack.c.l.b16 %v1441
      %v1561 = vunpack.c.l.b16 %v1445
      %v1562 = vunpack.c.l.b16 %v1448
      %v1563 = vunpack.c.l.b16 %v1452
      %v1564 = vunpack.c.l.b16 %v1455
      %v1565 = vunpack.c.l.b16 %v1459
      %v1566 = vunpack.c.l.b16 %v1462
      %v1567 = vunpack.c.l.b16 %v1466
      %v1568 = vunpack.c.l.b16 %v1469
      %v1569 = vunpack.c.l.b16 %v1473
      %v1570 = vunpack.c.l.b16 %v1476
      %v1571 = vunpack.c.l.b16 %v1480
      %v1572 = vunpack.c.l.b16 %v1483
      %v1573 = vunpack.c.l.b16 %v1487
      %v1574 = vunpack.c.l.b16 %v1490
      %v1575 = vunpack.c.l.b16 %v1494
      %v1576 = vunpack.c.l.b16 %v1497
      %v1577 = vunpack.c.l.b16 %v1501
      %v1578 = vunpack.c.l.b16 %v1504
      %v1579 = vunpack.c.l.b16 %v1508
      %v1580 = vunpack.c.l.b16 %v1511
      %v1581 = vunpack.c.l.b16 %v1515
      %v1582 = vunpack.c.l.b16 %v1518
      %v1583 = vunpack.c.l.b16 %v1522
      %v1584 = vunpack.c.l.b16 %v1525
      %v1585 = vunpack.c.l.b16 %v1529
      %v1586 = vunpack.c.l.b16 %v1532
      %v1587 = vunpack.c.l.b16 %v1536
      %v1588 = vunpack.c.l.b16 %v1539
      %v1589 = vpack.c.b16 %v1558, %v1557
      %v1590 = vpack.c.b16 %v1560, %v1559
      %v1591 = vpack.c.b16 %v1562, %v1561
      %v1592 = vpack.c.b16 %v1564, %v1563
      %v1593 = vpack.c.b16 %v1566, %v1565
      %v1594 = vpack.c.b16 %v1568, %v1567
      %v1595 = vpack.c.b16 %v1570, %v1569
      %v1596 = vpack.c.b16 %v1572, %v1571
      %v1597 = vpack.c.b16 %v1574, %v1573
      %v1598 = vpack.c.b16 %v1576, %v1575
      %v1599 = vpack.c.b16 %v1578, %v1577
      %v1600 = vpack.c.b16 %v1580, %v1579
      %v1601 = vpack.c.b16 %v1582, %v1581
      %v1602 = vpack.c.b16 %v1584, %v1583
      %v1603 = vpack.c.b16 %v1586, %v1585
      %v1604 = vpack.c.b16 %v1588, %v1587
      %v1637 = vunpack.c.l.b16 %v1541
      %v1638 = vunpack.c.l.b16 %v1542
      %v1639 = vunpack.c.l.b16 %v1543
      %v1640 = vunpack.c.l.b16 %v1544
      %v1641 = vunpack.c.l.b16 %v1545
      %v1642 = vunpack.c.l.b16 %v1546
      %v1643 = vunpack.c.l.b16 %v1547
      %v1644 = vunpack.c.l.b16 %v1548
      %v1645 = vunpack.c.l.b16 %v1549
      %v1646 = vunpack.c.l.b16 %v1550
      %v1647 = vunpack.c.l.b16 %v1551
      %v1648 = vunpack.c.l.b16 %v1552
      %v1649 = vunpack.c.l.b16 %v1553
      %v1650 = vunpack.c.l.b16 %v1554
      %v1651 = vunpack.c.l.b16 %v1555
      %v1652 = vunpack.c.l.b16 %v1556
      %v1653 = vpack.c.b16 %v1638, %v1637
      %v1654 = vpack.c.b16 %v1640, %v1639
      %v1655 = vpack.c.b16 %v1642, %v1641
      %v1656 = vpack.c.b16 %v1644, %v1643
      %v1657 = vpack.c.b16 %v1646, %v1645
      %v1658 = vpack.c.b16 %v1648, %v1647
      %v1659 = vpack.c.b16 %v1650, %v1649
      %v1660 = vpack.c.b16 %v1652, %v1651
      %1669 = vmatprep.subr.bf16.mxu0 0
      %1670 = vmatpush1.bf16.msra.mxu0 %v1653
      %1671 = vmatprep.subr.bf16.mxu0 0
      %1672 = vmatpush1.bf16.msra.mxu0 %v1654
      %1673 = vmatprep.subr.bf16.mxu0 0
      %1674 = vmatpush1.bf16.msra.mxu0 %v1655
      %1675 = vmatprep.subr.bf16.mxu0 0
      %1676 = vmatpush1.bf16.msra.mxu0 %v1656
      %1677 = vmatprep.subr.bf16.mxu0 0
      %1678 = vmatpush1.bf16.msra.mxu0 %v1657
      %1679 = vmatprep.subr.bf16.mxu0 0
      %1680 = vmatpush1.bf16.msra.mxu0 %v1658
      %1681 = vmatprep.subr.bf16.mxu0 0
      %1682 = vmatpush1.bf16.msra.mxu0 %v1659
      %1683 = vmatprep.subr.bf16.mxu0 0
      %1684 = vmatpush1.bf16.msra.mxu0 %v1660
      %1685 = vmatprep.subr.bf16.mxu0 0
      %1686 = vmatpush1.bf16.msra.mxu0 0
      %1687 = vmatprep.subr.bf16.mxu0 0
      %1688 = vmatpush1.bf16.msra.mxu0 0
      %1689 = vmatprep.subr.bf16.mxu0 0
      %1690 = vmatpush1.bf16.msra.mxu0 0
      %1691 = vmatprep.subr.bf16.mxu0 0
      %1692 = vmatpush1.bf16.msra.mxu0 0
      %1693 = vmatprep.subr.bf16.mxu0 0
      %1694 = vmatpush1.bf16.msra.mxu0 0
      %1695 = vmatprep.subr.bf16.mxu0 0
      %1696 = vmatpush1.bf16.msra.mxu0 0
      %1697 = vmatprep.subr.bf16.mxu0 0
      %1698 = vmatpush1.bf16.msra.mxu0 0
      %1699 = vmatprep.subr.bf16.mxu0 0
      %1700 = vmatpush1.bf16.msra.mxu0 0
      %1701 = vmatprep.mubr.bf16.mxu0 0
      %1702 = vmatmul.mubr.bf16.gmra.mrb[0].mxu0 %v1589
      %v1703 = vpop.f32.mrb[0].mxu0
      %v1704 = vadd.f32 0.0, %v1703
      %v1705 = vpop.f32.mrb[0].mxu0
      %v1706 = vpop.f32.mrb[0].mxu0
      %v1707 = vadd.f32 0.0, %v1706
      %v1708 = vpop.f32.mrb[0].mxu0
      %1709 = vmatprep.mubr.bf16.mxu0 0
      %1710 = vmatmul.mubr.bf16.gmra.mrb[0].mxu0 %v1590
      %v1711 = vpop.f32.mrb[0].mxu0
      %v1712 = vadd.f32 0.0, %v1711
      %v1713 = vpop.f32.mrb[0].mxu0
      %v1714 = vpop.f32.mrb[0].mxu0
      %v1715 = vadd.f32 0.0, %v1714
      %v1716 = vpop.f32.mrb[0].mxu0
      %1717 = vmatprep.mubr.bf16.mxu0 0
      %1718 = vmatmul.mubr.bf16.gmra.mrb[0].mxu0 %v1591
      %v1719 = vpop.f32.mrb[0].mxu0
      %v1720 = vadd.f32 0.0, %v1719
      %v1721 = vpop.f32.mrb[0].mxu0
      %v1722 = vpop.f32.mrb[0].mxu0
      %v1723 = vadd.f32 0.0, %v1722
      %v1724 = vpop.f32.mrb[0].mxu0
      %1725 = vmatprep.mubr.bf16.mxu0 0
      %1726 = vmatmul.mubr.bf16.gmra.mrb[0].mxu0 %v1592
      %v1727 = vpop.f32.mrb[0].mxu0
      %v1728 = vadd.f32 0.0, %v1727
      %v1729 = vpop.f32.mrb[0].mxu0
      %v1730 = vpop.f32.mrb[0].mxu0
      %v1731 = vadd.f32 0.0, %v1730
      %v1732 = vpop.f32.mrb[0].mxu0
      %1733 = vmatprep.mubr.bf16.mxu0 0
      %1734 = vmatmul.mubr.bf16.gmra.mrb[0].mxu0 %v1593
      %v1735 = vpop.f32.mrb[0].mxu0
      %v1736 = vadd.f32 0.0, %v1735
      %v1737 = vpop.f32.mrb[0].mxu0
      %v1738 = vpop.f32.mrb[0].mxu0
      %v1739 = vadd.f32 0.0, %v1738
      %v1740 = vpop.f32.mrb[0].mxu0
      %1741 = vmatprep.mubr.bf16.mxu0 0
      %1742 = vmatmul.mubr.bf16.gmra.mrb[0].mxu0 %v1594
      %v1743 = vpop.f32.mrb[0].mxu0
      %v1744 = vadd.f32 0.0, %v1743
      %v1745 = vpop.f32.mrb[0].mxu0
      %v1746 = vpop.f32.mrb[0].mxu0
      %v1747 = vadd.f32 0.0, %v1746
      %v1748 = vpop.f32.mrb[0].mxu0
      %1749 = vmatprep.mubr.bf16.mxu0 0
      %1750 = vmatmul.mubr.bf16.gmra.mrb[0].mxu0 %v1595
      %v1751 = vpop.f32.mrb[0].mxu0
      %v1752 = vadd.f32 0.0, %v1751
      %v1753 = vpop.f32.mrb[0].mxu0
      %v1754 = vpop.f32.mrb[0].mxu0
      %v1755 = vadd.f32 0.0, %v1754
      %v1756 = vpop.f32.mrb[0].mxu0
      %1757 = vmatprep.mubr.bf16.mxu0 0
      %1758 = vmatmul.mubr.bf16.gmra.mrb[0].mxu0 %v1596
      %v1759 = vpop.f32.mrb[0].mxu0
      %v1760 = vadd.f32 0.0, %v1759
      %v1761 = vpop.f32.mrb[0].mxu0
      %v1762 = vpop.f32.mrb[0].mxu0
      %v1763 = vadd.f32 0.0, %v1762
      %v1764 = vpop.f32.mrb[0].mxu0
      %1765 = vmatprep.mubr.bf16.mxu0 0
      %1766 = vmatmul.mubr.bf16.gmra.mrb[0].mxu0 %v1597
      %v1767 = vpop.f32.mrb[0].mxu0
      %v1768 = vadd.f32 0.0, %v1767
      %v1769 = vpop.f32.mrb[0].mxu0
      %v1770 = vpop.f32.mrb[0].mxu0
      %v1771 = vadd.f32 0.0, %v1770
      %v1772 = vpop.f32.mrb[0].mxu0
      %1773 = vmatprep.mubr.bf16.mxu0 0
      %1774 = vmatmul.mubr.bf16.gmra.mrb[0].mxu0 %v1598
      %v1775 = vpop.f32.mrb[0].mxu0
      %v1776 = vadd.f32 0.0, %v1775
      %v1777 = vpop.f32.mrb[0].mxu0
      %v1778 = vpop.f32.mrb[0].mxu0
      %v1779 = vadd.f32 0.0, %v1778
      %v1780 = vpop.f32.mrb[0].mxu0
      %1781 = vmatprep.mubr.bf16.mxu0 0
      %1782 = vmatmul.mubr.bf16.gmra.mrb[0].mxu0 %v1599
      %v1783 = vpop.f32.mrb[0].mxu0
      %v1784 = vadd.f32 0.0, %v1783
      %v1785 = vpop.f32.mrb[0].mxu0
      %v1786 = vpop.f32.mrb[0].mxu0
      %v1787 = vadd.f32 0.0, %v1786
      %v1788 = vpop.f32.mrb[0].mxu0
      %1789 = vmatprep.mubr.bf16.mxu0 0
      %1790 = vmatmul.mubr.bf16.gmra.mrb[0].mxu0 %v1600
      %v1791 = vpop.f32.mrb[0].mxu0
      %v1792 = vadd.f32 0.0, %v1791
      %v1793 = vpop.f32.mrb[0].mxu0
      %v1794 = vpop.f32.mrb[0].mxu0
      %v1795 = vadd.f32 0.0, %v1794
      %v1796 = vpop.f32.mrb[0].mxu0
      %1797 = vmatprep.mubr.bf16.mxu0 0
      %1798 = vmatmul.mubr.bf16.gmra.mrb[0].mxu0 %v1601
      %v1799 = vpop.f32.mrb[0].mxu0
      %v1800 = vadd.f32 0.0, %v1799
      %v1801 = vpop.f32.mrb[0].mxu0
      %v1802 = vpop.f32.mrb[0].mxu0
      %v1803 = vadd.f32 0.0, %v1802
      %v1804 = vpop.f32.mrb[0].mxu0
      %1805 = vmatprep.mubr.bf16.mxu0 0
      %1806 = vmatmul.mubr.bf16.gmra.mrb[0].mxu0 %v1602
      %v1807 = vpop.f32.mrb[0].mxu0
      %v1808 = vadd.f32 0.0, %v1807
      %v1809 = vpop.f32.mrb[0].mxu0
      %v1810 = vpop.f32.mrb[0].mxu0
      %v1811 = vadd.f32 0.0, %v1810
      %v1812 = vpop.f32.mrb[0].mxu0
      %1813 = vmatprep.mubr.bf16.mxu0 0
      %1814 = vmatmul.mubr.bf16.gmra.mrb[0].mxu0 %v1603
      %v1815 = vpop.f32.mrb[0].mxu0
      %v1816 = vadd.f32 0.0, %v1815
      %v1817 = vpop.f32.mrb[0].mxu0
      %v1818 = vpop.f32.mrb[0].mxu0
      %v1819 = vadd.f32 0.0, %v1818
      %v1820 = vpop.f32.mrb[0].mxu0
      %1821 = vmatprep.mubr.bf16.mxu0 0
      %1822 = vmatmul.mubr.bf16.gmra.mrb[0].mxu0 %v1604
      %v1823 = vpop.f32.mrb[0].mxu0
      %v1824 = vadd.f32 0.0, %v1823
      %v1825 = vpop.f32.mrb[0].mxu0
      %v1826 = vpop.f32.mrb[0].mxu0
      %v1827 = vadd.f32 0.0, %v1826
      %v1828 = vpop.f32.mrb[0].mxu0
      %1829 = vdwg.mxu0
      %v1830 = vadd.f32 %v1283, %v1704
      %v1831 = vadd.f32 %v1286, %v1707
      %v1832 = vadd.f32 %v1291, %v1712
      %v1833 = vadd.f32 %v1294, %v1715
      %v1834 = vadd.f32 %v1299, %v1720
      %v1835 = vadd.f32 %v1302, %v1723
      %v1836 = vadd.f32 %v1307, %v1728
      %v1837 = vadd.f32 %v1310, %v1731
      %v1838 = vadd.f32 %v1315, %v1736
      %v1839 = vadd.f32 %v1318, %v1739
      %v1840 = vadd.f32 %v1323, %v1744
      %v1841 = vadd.f32 %v1326, %v1747
      %v1842 = vadd.f32 %v1331, %v1752
      %v1843 = vadd.f32 %v1334, %v1755
      %v1844 = vadd.f32 %v1339, %v1760
      %v1845 = vadd.f32 %v1342, %v1763
      %v1846 = vadd.f32 %v1347, %v1768
      %v1847 = vadd.f32 %v1350, %v1771
      %v1848 = vadd.f32 %v1355, %v1776
      %v1849 = vadd.f32 %v1358, %v1779
      %v1850 = vadd.f32 %v1363, %v1784
      %v1851 = vadd.f32 %v1366, %v1787
      %v1852 = vadd.f32 %v1371, %v1792
      %v1853 = vadd.f32 %v1374, %v1795
      %v1854 = vadd.f32 %v1379, %v1800
      %v1855 = vadd.f32 %v1382, %v1803
      %v1856 = vadd.f32 %v1387, %v1808
      %v1857 = vadd.f32 %v1390, %v1811
      %v1858 = vadd.f32 %v1395, %v1816
      %v1859 = vadd.f32 %v1398, %v1819
      %v1860 = vadd.f32 %v1403, %v1824
      %v1861 = vadd.f32 %v1406, %v1827
      %s1862 = scalar_lea.vmem %s2, 192
      %v1863 = vld [vmem:[%s1862] sm:$0xf]
      %v1864 = vld [vmem:[%s1862 + $0x4] sm:$0xf]
      %v1865 = vld [vmem:[%s1862 + $0x8] sm:$0xf]
      %v1866 = vld [vmem:[%s1862 + $0xc] sm:$0xf]
      %v1867 = vld [vmem:[%s1862 + $0x10] sm:$0xf]
      %v1868 = vld [vmem:[%s1862 + $0x14] sm:$0xf]
      %v1869 = vld [vmem:[%s1862 + $0x18] sm:$0xf]
      %v1870 = vld [vmem:[%s1862 + $0x1c] sm:$0xf]
      %v1871 = vld [vmem:[%s1862 + $0x20] sm:$0xf]
      %v1872 = vld [vmem:[%s1862 + $0x24] sm:$0xf]
      %v1873 = vld [vmem:[%s1862 + $0x28] sm:$0xf]
      %v1874 = vld [vmem:[%s1862 + $0x2c] sm:$0xf]
      %v1875 = vld [vmem:[%s1862 + $0x30] sm:$0xf]
      %v1876 = vld [vmem:[%s1862 + $0x34] sm:$0xf]
      %v1877 = vld [vmem:[%s1862 + $0x38] sm:$0xf]
      %v1878 = vld [vmem:[%s1862 + $0x3c] sm:$0xf]
      %v1881 = vunpack.c.l.b16 %v405
      %v1882 = vunpack.c.l.b16 %v406
      %v1883 = vpack.c.b16 %v1882, %v1881
      %v1901 = vunpack.c.l.b16 %v1863
      %v1902 = vunpack.c.l.b16 %v1864
      %v1903 = vunpack.c.l.b16 %v1865
      %v1904 = vunpack.c.l.b16 %v1866
      %v1905 = vunpack.c.l.b16 %v1867
      %v1906 = vunpack.c.l.b16 %v1868
      %v1907 = vunpack.c.l.b16 %v1869
      %v1908 = vunpack.c.l.b16 %v1870
      %v1909 = vunpack.c.l.b16 %v1871
      %v1910 = vunpack.c.l.b16 %v1872
      %v1911 = vunpack.c.l.b16 %v1873
      %v1912 = vunpack.c.l.b16 %v1874
      %v1913 = vunpack.c.l.b16 %v1875
      %v1914 = vunpack.c.l.b16 %v1876
      %v1915 = vunpack.c.l.b16 %v1877
      %v1916 = vunpack.c.l.b16 %v1878
      %v1917 = vpack.c.b16 %v1902, %v1901
      %v1918 = vpack.c.b16 %v1904, %v1903
      %v1919 = vpack.c.b16 %v1906, %v1905
      %v1920 = vpack.c.b16 %v1908, %v1907
      %v1921 = vpack.c.b16 %v1910, %v1909
      %v1922 = vpack.c.b16 %v1912, %v1911
      %v1923 = vpack.c.b16 %v1914, %v1913
      %v1924 = vpack.c.b16 %v1916, %v1915
      %1933 = vmatprep.subr.bf16.mxu0 0
      %1934 = vmatpush1.bf16.msra.mxu0 %v1917
      %1935 = vmatprep.subr.bf16.mxu0 0
      %1936 = vmatpush1.bf16.msra.mxu0 %v1918
      %1937 = vmatprep.subr.bf16.mxu0 0
      %1938 = vmatpush1.bf16.msra.mxu0 %v1919
      %1939 = vmatprep.subr.bf16.mxu0 0
      %1940 = vmatpush1.bf16.msra.mxu0 %v1920
      %1941 = vmatprep.subr.bf16.mxu0 0
      %1942 = vmatpush1.bf16.msra.mxu0 %v1921
      %1943 = vmatprep.subr.bf16.mxu0 0
      %1944 = vmatpush1.bf16.msra.mxu0 %v1922
      %1945 = vmatprep.subr.bf16.mxu0 0
      %1946 = vmatpush1.bf16.msra.mxu0 %v1923
      %1947 = vmatprep.subr.bf16.mxu0 0
      %1948 = vmatpush1.bf16.msra.mxu0 %v1924
      %1949 = vmatprep.subr.bf16.mxu0 0
      %1950 = vmatpush1.bf16.msra.mxu0 0
      %1951 = vmatprep.subr.bf16.mxu0 0
      %1952 = vmatpush1.bf16.msra.mxu0 0
      %1953 = vmatprep.subr.bf16.mxu0 0
      %1954 = vmatpush1.bf16.msra.mxu0 0
      %1955 = vmatprep.subr.bf16.mxu0 0
      %1956 = vmatpush1.bf16.msra.mxu0 0
      %1957 = vmatprep.subr.bf16.mxu0 0
      %1958 = vmatpush1.bf16.msra.mxu0 0
      %1959 = vmatprep.subr.bf16.mxu0 0
      %1960 = vmatpush1.bf16.msra.mxu0 0
      %1961 = vmatprep.subr.bf16.mxu0 0
      %1962 = vmatpush1.bf16.msra.mxu0 0
      %1963 = vmatprep.subr.bf16.mxu0 0
      %1964 = vmatpush1.bf16.msra.mxu0 0
      %1965 = vmatprep.mubr.bf16.mxu0 0
      %1966 = vmatmul.mubr.bf16.gmra.mrb[0].mxu0 %v1169
      %v1967 = vpop.f32.mrb[0].mxu0
      %v1968 = vadd.f32 0.0, %v1967
      %v1969 = vpop.f32.mrb[0].mxu0
      %v1970 = vpop.f32.mrb[0].mxu0
      %v1971 = vadd.f32 0.0, %v1970
      %v1972 = vpop.f32.mrb[0].mxu0
      %1973 = vmatprep.mubr.bf16.mxu0 0
      %1974 = vmatmul.mubr.bf16.gmra.mrb[0].mxu0 %v1170
      %v1975 = vpop.f32.mrb[0].mxu0
      %v1976 = vadd.f32 0.0, %v1975
      %v1977 = vpop.f32.mrb[0].mxu0
      %v1978 = vpop.f32.mrb[0].mxu0
      %v1979 = vadd.f32 0.0, %v1978
      %v1980 = vpop.f32.mrb[0].mxu0
      %1981 = vmatprep.mubr.bf16.mxu0 0
      %1982 = vmatmul.mubr.bf16.gmra.mrb[0].mxu0 %v1171
      %v1983 = vpop.f32.mrb[0].mxu0
      %v1984 = vadd.f32 0.0, %v1983
      %v1985 = vpop.f32.mrb[0].mxu0
      %v1986 = vpop.f32.mrb[0].mxu0
      %v1987 = vadd.f32 0.0, %v1986
      %v1988 = vpop.f32.mrb[0].mxu0
      %1989 = vmatprep.mubr.bf16.mxu0 0
      %1990 = vmatmul.mubr.bf16.gmra.mrb[0].mxu0 %v1172
      %v1991 = vpop.f32.mrb[0].mxu0
      %v1992 = vadd.f32 0.0, %v1991
      %v1993 = vpop.f32.mrb[0].mxu0
      %v1994 = vpop.f32.mrb[0].mxu0
      %v1995 = vadd.f32 0.0, %v1994
      %v1996 = vpop.f32.mrb[0].mxu0
      %1997 = vmatprep.mubr.bf16.mxu0 0
      %1998 = vmatmul.mubr.bf16.gmra.mrb[0].mxu0 %v1173
      %v1999 = vpop.f32.mrb[0].mxu0
      %v2000 = vadd.f32 0.0, %v1999
      %v2001 = vpop.f32.mrb[0].mxu0
      %v2002 = vpop.f32.mrb[0].mxu0
      %v2003 = vadd.f32 0.0, %v2002
      %v2004 = vpop.f32.mrb[0].mxu0
      %2005 = vmatprep.mubr.bf16.mxu0 0
      %2006 = vmatmul.mubr.bf16.gmra.mrb[0].mxu0 %v1174
      %v2007 = vpop.f32.mrb[0].mxu0
      %v2008 = vadd.f32 0.0, %v2007
      %v2009 = vpop.f32.mrb[0].mxu0
      %v2010 = vpop.f32.mrb[0].mxu0
      %v2011 = vadd.f32 0.0, %v2010
      %v2012 = vpop.f32.mrb[0].mxu0
      %2013 = vmatprep.mubr.bf16.mxu0 0
      %2014 = vmatmul.mubr.bf16.gmra.mrb[0].mxu0 %v1175
      %v2015 = vpop.f32.mrb[0].mxu0
      %v2016 = vadd.f32 0.0, %v2015
      %v2017 = vpop.f32.mrb[0].mxu0
      %v2018 = vpop.f32.mrb[0].mxu0
      %v2019 = vadd.f32 0.0, %v2018
      %v2020 = vpop.f32.mrb[0].mxu0
      %2021 = vmatprep.mubr.bf16.mxu0 0
      %2022 = vmatmul.mubr.bf16.gmra.mrb[0].mxu0 %v1176
      %v2023 = vpop.f32.mrb[0].mxu0
      %v2024 = vadd.f32 0.0, %v2023
      %v2025 = vpop.f32.mrb[0].mxu0
      %v2026 = vpop.f32.mrb[0].mxu0
      %v2027 = vadd.f32 0.0, %v2026
      %v2028 = vpop.f32.mrb[0].mxu0
      %2029 = vmatprep.mubr.bf16.mxu0 0
      %2030 = vmatmul.mubr.bf16.gmra.mrb[0].mxu0 %v1177
      %v2031 = vpop.f32.mrb[0].mxu0
      %v2032 = vadd.f32 0.0, %v2031
      %v2033 = vpop.f32.mrb[0].mxu0
      %v2034 = vpop.f32.mrb[0].mxu0
      %v2035 = vadd.f32 0.0, %v2034
      %v2036 = vpop.f32.mrb[0].mxu0
      %2037 = vmatprep.mubr.bf16.mxu0 0
      %2038 = vmatmul.mubr.bf16.gmra.mrb[0].mxu0 %v1178
      %v2039 = vpop.f32.mrb[0].mxu0
      %v2040 = vadd.f32 0.0, %v2039
      %v2041 = vpop.f32.mrb[0].mxu0
      %v2042 = vpop.f32.mrb[0].mxu0
      %v2043 = vadd.f32 0.0, %v2042
      %v2044 = vpop.f32.mrb[0].mxu0
      %2045 = vmatprep.mubr.bf16.mxu0 0
      %2046 = vmatmul.mubr.bf16.gmra.mrb[0].mxu0 %v1179
      %v2047 = vpop.f32.mrb[0].mxu0
      %v2048 = vadd.f32 0.0, %v2047
      %v2049 = vpop.f32.mrb[0].mxu0
      %v2050 = vpop.f32.mrb[0].mxu0
      %v2051 = vadd.f32 0.0, %v2050
      %v2052 = vpop.f32.mrb[0].mxu0
      %2053 = vmatprep.mubr.bf16.mxu0 0
      %2054 = vmatmul.mubr.bf16.gmra.mrb[0].mxu0 %v1180
      %v2055 = vpop.f32.mrb[0].mxu0
      %v2056 = vadd.f32 0.0, %v2055
      %v2057 = vpop.f32.mrb[0].mxu0
      %v2058 = vpop.f32.mrb[0].mxu0
      %v2059 = vadd.f32 0.0, %v2058
      %v2060 = vpop.f32.mrb[0].mxu0
      %2061 = vmatprep.mubr.bf16.mxu0 0
      %2062 = vmatmul.mubr.bf16.gmra.mrb[0].mxu0 %v1181
      %v2063 = vpop.f32.mrb[0].mxu0
      %v2064 = vadd.f32 0.0, %v2063
      %v2065 = vpop.f32.mrb[0].mxu0
      %v2066 = vpop.f32.mrb[0].mxu0
      %v2067 = vadd.f32 0.0, %v2066
      %v2068 = vpop.f32.mrb[0].mxu0
      %2069 = vmatprep.mubr.bf16.mxu0 0
      %2070 = vmatmul.mubr.bf16.gmra.mrb[0].mxu0 %v1182
      %v2071 = vpop.f32.mrb[0].mxu0
      %v2072 = vadd.f32 0.0, %v2071
      %v2073 = vpop.f32.mrb[0].mxu0
      %v2074 = vpop.f32.mrb[0].mxu0
      %v2075 = vadd.f32 0.0, %v2074
      %v2076 = vpop.f32.mrb[0].mxu0
      %2077 = vmatprep.mubr.bf16.mxu0 0
      %2078 = vmatmul.mubr.bf16.gmra.mrb[0].mxu0 %v1183
      %v2079 = vpop.f32.mrb[0].mxu0
      %v2080 = vadd.f32 0.0, %v2079
      %v2081 = vpop.f32.mrb[0].mxu0
      %v2082 = vpop.f32.mrb[0].mxu0
      %v2083 = vadd.f32 0.0, %v2082
      %v2084 = vpop.f32.mrb[0].mxu0
      %2085 = vmatprep.mubr.bf16.mxu0 0
      %2086 = vmatmul.mubr.bf16.gmra.mrb[0].mxu0 %v1883
      %v2087 = vpop.f32.mrb[0].mxu0
      %v2088 = vadd.f32 0.0, %v2087
      %v2089 = vpop.f32.mrb[0].mxu0
      %v2090 = vpop.f32.mrb[0].mxu0
      %v2091 = vadd.f32 0.0, %v2090
      %v2092 = vpop.f32.mrb[0].mxu0
      %2093 = vdwg.mxu0
      %v2094 = vadd.f32 %v1830, %v1968
      %v2095 = vadd.f32 %v1831, %v1971
      %v2096 = vadd.f32 %v1832, %v1976
      %v2097 = vadd.f32 %v1833, %v1979
      %v2098 = vadd.f32 %v1834, %v1984
      %v2099 = vadd.f32 %v1835, %v1987
      %v2100 = vadd.f32 %v1836, %v1992
      %v2101 = vadd.f32 %v1837, %v1995
      %v2102 = vadd.f32 %v1838, %v2000
      %v2103 = vadd.f32 %v1839, %v2003
      %v2104 = vadd.f32 %v1840, %v2008
      %v2105 = vadd.f32 %v1841, %v2011
      %v2106 = vadd.f32 %v1842, %v2016
      %v2107 = vadd.f32 %v1843, %v2019
      %v2108 = vadd.f32 %v1844, %v2024
      %v2109 = vadd.f32 %v1845, %v2027
      %v2110 = vadd.f32 %v1846, %v2032
      %v2111 = vadd.f32 %v1847, %v2035
      %v2112 = vadd.f32 %v1848, %v2040
      %v2113 = vadd.f32 %v1849, %v2043
      %v2114 = vadd.f32 %v1850, %v2048
      %v2115 = vadd.f32 %v1851, %v2051
      %v2116 = vadd.f32 %v1852, %v2056
      %v2117 = vadd.f32 %v1853, %v2059
      %v2118 = vadd.f32 %v1854, %v2064
      %v2119 = vadd.f32 %v1855, %v2067
      %v2120 = vadd.f32 %v1856, %v2072
      %v2121 = vadd.f32 %v1857, %v2075
      %v2122 = vadd.f32 %v1858, %v2080
      %v2123 = vadd.f32 %v1859, %v2083
      %v2124 = vadd.f32 %v1860, %v2088
      %v2125 = vadd.f32 %v1861, %v2091
      %v2127 = vshrl.u32 %v405, 16
      %v2129 = vrot.slane %v2127, 4
      %v2130 = vshll.u32 %v405, 16
      %v2132 = vrot.slane %v2130, 5
      %v2133 = vor.u32 %v2129, %v2132
      %v2134 = vrot.slane %v2133, 4
      %v2136 = vshll.u32 %v406, 16
      %v2138 = vrot.slane %v2136, 5
      %v2139 = vsel %vm429, %v2134, %v2138
      %v2140 = vshrl.u32 %v406, 16
      %v2142 = vrot.slane %v2140, 4
      %v2143 = vor.u32 %v2142, %v2138
      %v2144 = vrot.slane %v2143, 4
      %v2146 = vshll.u32 %v407, 16
      %v2148 = vrot.slane %v2146, 5
      %v2149 = vsel %vm429, %v2144, %v2148
      %s2150 = scalar_lea.vmem %s2, 256
      %v2151 = vld [vmem:[%s2150] sm:$0xf]
      %v2152 = vld [vmem:[%s2150 + $0x4] sm:$0xf]
      %v2153 = vld [vmem:[%s2150 + $0x8] sm:$0xf]
      %v2154 = vld [vmem:[%s2150 + $0xc] sm:$0xf]
      %v2155 = vld [vmem:[%s2150 + $0x10] sm:$0xf]
      %v2156 = vld [vmem:[%s2150 + $0x14] sm:$0xf]
      %v2157 = vld [vmem:[%s2150 + $0x18] sm:$0xf]
      %v2158 = vld [vmem:[%s2150 + $0x1c] sm:$0xf]
      %v2159 = vld [vmem:[%s2150 + $0x20] sm:$0xf]
      %v2160 = vld [vmem:[%s2150 + $0x24] sm:$0xf]
      %v2161 = vld [vmem:[%s2150 + $0x28] sm:$0xf]
      %v2162 = vld [vmem:[%s2150 + $0x2c] sm:$0xf]
      %v2163 = vld [vmem:[%s2150 + $0x30] sm:$0xf]
      %v2164 = vld [vmem:[%s2150 + $0x34] sm:$0xf]
      %v2165 = vld [vmem:[%s2150 + $0x38] sm:$0xf]
      %v2166 = vld [vmem:[%s2150 + $0x3c] sm:$0xf]
      %v2167 = vunpack.c.l.b16 %v2139
      %v2168 = vunpack.c.l.b16 %v2149
      %v2169 = vpack.c.b16 %v2168, %v2167
      %v2187 = vunpack.c.l.b16 %v2151
      %v2188 = vunpack.c.l.b16 %v2152
      %v2189 = vunpack.c.l.b16 %v2153
      %v2190 = vunpack.c.l.b16 %v2154
      %v2191 = vunpack.c.l.b16 %v2155
      %v2192 = vunpack.c.l.b16 %v2156
      %v2193 = vunpack.c.l.b16 %v2157
      %v2194 = vunpack.c.l.b16 %v2158
      %v2195 = vunpack.c.l.b16 %v2159
      %v2196 = vunpack.c.l.b16 %v2160
      %v2197 = vunpack.c.l.b16 %v2161
      %v2198 = vunpack.c.l.b16 %v2162
      %v2199 = vunpack.c.l.b16 %v2163
      %v2200 = vunpack.c.l.b16 %v2164
      %v2201 = vunpack.c.l.b16 %v2165
      %v2202 = vunpack.c.l.b16 %v2166
      %v2203 = vpack.c.b16 %v2188, %v2187
      %v2204 = vpack.c.b16 %v2190, %v2189
      %v2205 = vpack.c.b16 %v2192, %v2191
      %v2206 = vpack.c.b16 %v2194, %v2193
      %v2207 = vpack.c.b16 %v2196, %v2195
      %v2208 = vpack.c.b16 %v2198, %v2197
      %v2209 = vpack.c.b16 %v2200, %v2199
      %v2210 = vpack.c.b16 %v2202, %v2201
      %2219 = vmatprep.subr.bf16.mxu0 0
      %2220 = vmatpush1.bf16.msra.mxu0 %v2203
      %2221 = vmatprep.subr.bf16.mxu0 0
      %2222 = vmatpush1.bf16.msra.mxu0 %v2204
      %2223 = vmatprep.subr.bf16.mxu0 0
      %2224 = vmatpush1.bf16.msra.mxu0 %v2205
      %2225 = vmatprep.subr.bf16.mxu0 0
      %2226 = vmatpush1.bf16.msra.mxu0 %v2206
      %2227 = vmatprep.subr.bf16.mxu0 0
      %2228 = vmatpush1.bf16.msra.mxu0 %v2207
      %2229 = vmatprep.subr.bf16.mxu0 0
      %2230 = vmatpush1.bf16.msra.mxu0 %v2208
      %2231 = vmatprep.subr.bf16.mxu0 0
      %2232 = vmatpush1.bf16.msra.mxu0 %v2209
      %2233 = vmatprep.subr.bf16.mxu0 0
      %2234 = vmatpush1.bf16.msra.mxu0 %v2210
      %2235 = vmatprep.subr.bf16.mxu0 0
      %2236 = vmatpush1.bf16.msra.mxu0 0
      %2237 = vmatprep.subr.bf16.mxu0 0
      %2238 = vmatpush1.bf16.msra.mxu0 0
      %2239 = vmatprep.subr.bf16.mxu0 0
      %2240 = vmatpush1.bf16.msra.mxu0 0
      %2241 = vmatprep.subr.bf16.mxu0 0
      %2242 = vmatpush1.bf16.msra.mxu0 0
      %2243 = vmatprep.subr.bf16.mxu0 0
      %2244 = vmatpush1.bf16.msra.mxu0 0
      %2245 = vmatprep.subr.bf16.mxu0 0
      %2246 = vmatpush1.bf16.msra.mxu0 0
      %2247 = vmatprep.subr.bf16.mxu0 0
      %2248 = vmatpush1.bf16.msra.mxu0 0
      %2249 = vmatprep.subr.bf16.mxu0 0
      %2250 = vmatpush1.bf16.msra.mxu0 0
      %2251 = vmatprep.mubr.bf16.mxu0 0
      %2252 = vmatmul.mubr.bf16.gmra.mrb[0].mxu0 %v864
      %v2253 = vpop.f32.mrb[0].mxu0
      %v2254 = vadd.f32 0.0, %v2253
      %v2255 = vpop.f32.mrb[0].mxu0
      %v2256 = vpop.f32.mrb[0].mxu0
      %v2257 = vadd.f32 0.0, %v2256
      %v2258 = vpop.f32.mrb[0].mxu0
      %2259 = vmatprep.mubr.bf16.mxu0 0
      %2260 = vmatmul.mubr.bf16.gmra.mrb[0].mxu0 %v865
      %v2261 = vpop.f32.mrb[0].mxu0
      %v2262 = vadd.f32 0.0, %v2261
      %v2263 = vpop.f32.mrb[0].mxu0
      %v2264 = vpop.f32.mrb[0].mxu0
      %v2265 = vadd.f32 0.0, %v2264
      %v2266 = vpop.f32.mrb[0].mxu0
      %2267 = vmatprep.mubr.bf16.mxu0 0
      %2268 = vmatmul.mubr.bf16.gmra.mrb[0].mxu0 %v866
      %v2269 = vpop.f32.mrb[0].mxu0
      %v2270 = vadd.f32 0.0, %v2269
      %v2271 = vpop.f32.mrb[0].mxu0
      %v2272 = vpop.f32.mrb[0].mxu0
      %v2273 = vadd.f32 0.0, %v2272
      %v2274 = vpop.f32.mrb[0].mxu0
      %2275 = vmatprep.mubr.bf16.mxu0 0
      %2276 = vmatmul.mubr.bf16.gmra.mrb[0].mxu0 %v867
      %v2277 = vpop.f32.mrb[0].mxu0
      %v2278 = vadd.f32 0.0, %v2277
      %v2279 = vpop.f32.mrb[0].mxu0
      %v2280 = vpop.f32.mrb[0].mxu0
      %v2281 = vadd.f32 0.0, %v2280
      %v2282 = vpop.f32.mrb[0].mxu0
      %2283 = vmatprep.mubr.bf16.mxu0 0
      %2284 = vmatmul.mubr.bf16.gmra.mrb[0].mxu0 %v868
      %v2285 = vpop.f32.mrb[0].mxu0
      %v2286 = vadd.f32 0.0, %v2285
      %v2287 = vpop.f32.mrb[0].mxu0
      %v2288 = vpop.f32.mrb[0].mxu0
      %v2289 = vadd.f32 0.0, %v2288
      %v2290 = vpop.f32.mrb[0].mxu0
      %2291 = vmatprep.mubr.bf16.mxu0 0
      %2292 = vmatmul.mubr.bf16.gmra.mrb[0].mxu0 %v869
      %v2293 = vpop.f32.mrb[0].mxu0
      %v2294 = vadd.f32 0.0, %v2293
      %v2295 = vpop.f32.mrb[0].mxu0
      %v2296 = vpop.f32.mrb[0].mxu0
      %v2297 = vadd.f32 0.0, %v2296
      %v2298 = vpop.f32.mrb[0].mxu0
      %2299 = vmatprep.mubr.bf16.mxu0 0
      %2300 = vmatmul.mubr.bf16.gmra.mrb[0].mxu0 %v870
      %v2301 = vpop.f32.mrb[0].mxu0
      %v2302 = vadd.f32 0.0, %v2301
      %v2303 = vpop.f32.mrb[0].mxu0
      %v2304 = vpop.f32.mrb[0].mxu0
      %v2305 = vadd.f32 0.0, %v2304
      %v2306 = vpop.f32.mrb[0].mxu0
      %2307 = vmatprep.mubr.bf16.mxu0 0
      %2308 = vmatmul.mubr.bf16.gmra.mrb[0].mxu0 %v871
      %v2309 = vpop.f32.mrb[0].mxu0
      %v2310 = vadd.f32 0.0, %v2309
      %v2311 = vpop.f32.mrb[0].mxu0
      %v2312 = vpop.f32.mrb[0].mxu0
      %v2313 = vadd.f32 0.0, %v2312
      %v2314 = vpop.f32.mrb[0].mxu0
      %2315 = vmatprep.mubr.bf16.mxu0 0
      %2316 = vmatmul.mubr.bf16.gmra.mrb[0].mxu0 %v872
      %v2317 = vpop.f32.mrb[0].mxu0
      %v2318 = vadd.f32 0.0, %v2317
      %v2319 = vpop.f32.mrb[0].mxu0
      %v2320 = vpop.f32.mrb[0].mxu0
      %v2321 = vadd.f32 0.0, %v2320
      %v2322 = vpop.f32.mrb[0].mxu0
      %2323 = vmatprep.mubr.bf16.mxu0 0
      %2324 = vmatmul.mubr.bf16.gmra.mrb[0].mxu0 %v873
      %v2325 = vpop.f32.mrb[0].mxu0
      %v2326 = vadd.f32 0.0, %v2325
      %v2327 = vpop.f32.mrb[0].mxu0
      %v2328 = vpop.f32.mrb[0].mxu0
      %v2329 = vadd.f32 0.0, %v2328
      %v2330 = vpop.f32.mrb[0].mxu0
      %2331 = vmatprep.mubr.bf16.mxu0 0
      %2332 = vmatmul.mubr.bf16.gmra.mrb[0].mxu0 %v874
      %v2333 = vpop.f32.mrb[0].mxu0
      %v2334 = vadd.f32 0.0, %v2333
      %v2335 = vpop.f32.mrb[0].mxu0
      %v2336 = vpop.f32.mrb[0].mxu0
      %v2337 = vadd.f32 0.0, %v2336
      %v2338 = vpop.f32.mrb[0].mxu0
      %2339 = vmatprep.mubr.bf16.mxu0 0
      %2340 = vmatmul.mubr.bf16.gmra.mrb[0].mxu0 %v875
      %v2341 = vpop.f32.mrb[0].mxu0
      %v2342 = vadd.f32 0.0, %v2341
      %v2343 = vpop.f32.mrb[0].mxu0
      %v2344 = vpop.f32.mrb[0].mxu0
      %v2345 = vadd.f32 0.0, %v2344
      %v2346 = vpop.f32.mrb[0].mxu0
      %2347 = vmatprep.mubr.bf16.mxu0 0
      %2348 = vmatmul.mubr.bf16.gmra.mrb[0].mxu0 %v876
      %v2349 = vpop.f32.mrb[0].mxu0
      %v2350 = vadd.f32 0.0, %v2349
      %v2351 = vpop.f32.mrb[0].mxu0
      %v2352 = vpop.f32.mrb[0].mxu0
      %v2353 = vadd.f32 0.0, %v2352
      %v2354 = vpop.f32.mrb[0].mxu0
      %2355 = vmatprep.mubr.bf16.mxu0 0
      %2356 = vmatmul.mubr.bf16.gmra.mrb[0].mxu0 %v877
      %v2357 = vpop.f32.mrb[0].mxu0
      %v2358 = vadd.f32 0.0, %v2357
      %v2359 = vpop.f32.mrb[0].mxu0
      %v2360 = vpop.f32.mrb[0].mxu0
      %v2361 = vadd.f32 0.0, %v2360
      %v2362 = vpop.f32.mrb[0].mxu0
      %2363 = vmatprep.mubr.bf16.mxu0 0
      %2364 = vmatmul.mubr.bf16.gmra.mrb[0].mxu0 %v878
      %v2365 = vpop.f32.mrb[0].mxu0
      %v2366 = vadd.f32 0.0, %v2365
      %v2367 = vpop.f32.mrb[0].mxu0
      %v2368 = vpop.f32.mrb[0].mxu0
      %v2369 = vadd.f32 0.0, %v2368
      %v2370 = vpop.f32.mrb[0].mxu0
      %2371 = vmatprep.mubr.bf16.mxu0 0
      %2372 = vmatmul.mubr.bf16.gmra.mrb[0].mxu0 %v2169
      %v2373 = vpop.f32.mrb[0].mxu0
      %v2374 = vadd.f32 0.0, %v2373
      %v2375 = vpop.f32.mrb[0].mxu0
      %v2376 = vpop.f32.mrb[0].mxu0
      %v2377 = vadd.f32 0.0, %v2376
      %v2378 = vpop.f32.mrb[0].mxu0
      %2379 = vdwg.mxu0
      %v2380 = vadd.f32 %v2094, %v2254
      %v2381 = vadd.f32 %v2095, %v2257
      %v2382 = vadd.f32 %v2096, %v2262
      %v2383 = vadd.f32 %v2097, %v2265
      %v2384 = vadd.f32 %v2098, %v2270
      %v2385 = vadd.f32 %v2099, %v2273
      %v2386 = vadd.f32 %v2100, %v2278
      %v2387 = vadd.f32 %v2101, %v2281
      %v2388 = vadd.f32 %v2102, %v2286
      %v2389 = vadd.f32 %v2103, %v2289
      %v2390 = vadd.f32 %v2104, %v2294
      %v2391 = vadd.f32 %v2105, %v2297
      %v2392 = vadd.f32 %v2106, %v2302
      %v2393 = vadd.f32 %v2107, %v2305
      %v2394 = vadd.f32 %v2108, %v2310
      %v2395 = vadd.f32 %v2109, %v2313
      %v2396 = vadd.f32 %v2110, %v2318
      %v2397 = vadd.f32 %v2111, %v2321
      %v2398 = vadd.f32 %v2112, %v2326
      %v2399 = vadd.f32 %v2113, %v2329
      %v2400 = vadd.f32 %v2114, %v2334
      %v2401 = vadd.f32 %v2115, %v2337
      %v2402 = vadd.f32 %v2116, %v2342
      %v2403 = vadd.f32 %v2117, %v2345
      %v2404 = vadd.f32 %v2118, %v2350
      %v2405 = vadd.f32 %v2119, %v2353
      %v2406 = vadd.f32 %v2120, %v2358
      %v2407 = vadd.f32 %v2121, %v2361
      %v2408 = vadd.f32 %v2122, %v2366
      %v2409 = vadd.f32 %v2123, %v2369
      %v2410 = vadd.f32 %v2124, %v2374
      %v2411 = vadd.f32 %v2125, %v2377
      %v2413 = vrot.slane %v405, 5
      %v2414 = vrot.slane %v2413, 4
      %v2415 = vrot.slane %v406, 5
      %v2416 = vsel %vm1427, %v2414, %v2415
      %v2417 = vrot.slane %v2415, 4
      %v2418 = vrot.slane %v407, 5
      %v2419 = vsel %vm1427, %v2417, %v2418
      %s2420 = scalar_lea.vmem %s2, 320
      %v2421 = vld [vmem:[%s2420] sm:$0xf]
      %v2422 = vld [vmem:[%s2420 + $0x4] sm:$0xf]
      %v2423 = vld [vmem:[%s2420 + $0x8] sm:$0xf]
      %v2424 = vld [vmem:[%s2420 + $0xc] sm:$0xf]
      %v2425 = vld [vmem:[%s2420 + $0x10] sm:$0xf]
      %v2426 = vld [vmem:[%s2420 + $0x14] sm:$0xf]
      %v2427 = vld [vmem:[%s2420 + $0x18] sm:$0xf]
      %v2428 = vld [vmem:[%s2420 + $0x1c] sm:$0xf]
      %v2429 = vld [vmem:[%s2420 + $0x20] sm:$0xf]
      %v2430 = vld [vmem:[%s2420 + $0x24] sm:$0xf]
      %v2431 = vld [vmem:[%s2420 + $0x28] sm:$0xf]
      %v2432 = vld [vmem:[%s2420 + $0x2c] sm:$0xf]
      %v2433 = vld [vmem:[%s2420 + $0x30] sm:$0xf]
      %v2434 = vld [vmem:[%s2420 + $0x34] sm:$0xf]
      %v2435 = vld [vmem:[%s2420 + $0x38] sm:$0xf]
      %v2436 = vld [vmem:[%s2420 + $0x3c] sm:$0xf]
      %v2437 = vunpack.c.l.b16 %v2416
      %v2438 = vunpack.c.l.b16 %v2419
      %v2439 = vpack.c.b16 %v2438, %v2437
      %v2457 = vunpack.c.l.b16 %v2421
      %v2458 = vunpack.c.l.b16 %v2422
      %v2459 = vunpack.c.l.b16 %v2423
      %v2460 = vunpack.c.l.b16 %v2424
      %v2461 = vunpack.c.l.b16 %v2425
      %v2462 = vunpack.c.l.b16 %v2426
      %v2463 = vunpack.c.l.b16 %v2427
      %v2464 = vunpack.c.l.b16 %v2428
      %v2465 = vunpack.c.l.b16 %v2429
      %v2466 = vunpack.c.l.b16 %v2430
      %v2467 = vunpack.c.l.b16 %v2431
      %v2468 = vunpack.c.l.b16 %v2432
      %v2469 = vunpack.c.l.b16 %v2433
      %v2470 = vunpack.c.l.b16 %v2434
      %v2471 = vunpack.c.l.b16 %v2435
      %v2472 = vunpack.c.l.b16 %v2436
      %v2473 = vpack.c.b16 %v2458, %v2457
      %v2474 = vpack.c.b16 %v2460, %v2459
      %v2475 = vpack.c.b16 %v2462, %v2461
      %v2476 = vpack.c.b16 %v2464, %v2463
      %v2477 = vpack.c.b16 %v2466, %v2465
      %v2478 = vpack.c.b16 %v2468, %v2467
      %v2479 = vpack.c.b16 %v2470, %v2469
      %v2480 = vpack.c.b16 %v2472, %v2471
      %2489 = vmatprep.subr.bf16.mxu0 0
      %2490 = vmatpush1.bf16.msra.mxu0 %v2473
      %2491 = vmatprep.subr.bf16.mxu0 0
      %2492 = vmatpush1.bf16.msra.mxu0 %v2474
      %2493 = vmatprep.subr.bf16.mxu0 0
      %2494 = vmatpush1.bf16.msra.mxu0 %v2475
      %2495 = vmatprep.subr.bf16.mxu0 0
      %2496 = vmatpush1.bf16.msra.mxu0 %v2476
      %2497 = vmatprep.subr.bf16.mxu0 0
      %2498 = vmatpush1.bf16.msra.mxu0 %v2477
      %2499 = vmatprep.subr.bf16.mxu0 0
      %2500 = vmatpush1.bf16.msra.mxu0 %v2478
      %2501 = vmatprep.subr.bf16.mxu0 0
      %2502 = vmatpush1.bf16.msra.mxu0 %v2479
      %2503 = vmatprep.subr.bf16.mxu0 0
      %2504 = vmatpush1.bf16.msra.mxu0 %v2480
      %2505 = vmatprep.subr.bf16.mxu0 0
      %2506 = vmatpush1.bf16.msra.mxu0 0
      %2507 = vmatprep.subr.bf16.mxu0 0
      %2508 = vmatpush1.bf16.msra.mxu0 0
      %2509 = vmatprep.subr.bf16.mxu0 0
      %2510 = vmatpush1.bf16.msra.mxu0 0
      %2511 = vmatprep.subr.bf16.mxu0 0
      %2512 = vmatpush1.bf16.msra.mxu0 0
      %2513 = vmatprep.subr.bf16.mxu0 0
      %2514 = vmatpush1.bf16.msra.mxu0 0
      %2515 = vmatprep.subr.bf16.mxu0 0
      %2516 = vmatpush1.bf16.msra.mxu0 0
      %2517 = vmatprep.subr.bf16.mxu0 0
      %2518 = vmatpush1.bf16.msra.mxu0 0
      %2519 = vmatprep.subr.bf16.mxu0 0
      %2520 = vmatpush1.bf16.msra.mxu0 0
      %2521 = vmatprep.mubr.bf16.mxu0 0
      %2522 = vmatmul.mubr.bf16.gmra.mrb[0].mxu0 %v1590
      %v2523 = vpop.f32.mrb[0].mxu0
      %v2524 = vadd.f32 0.0, %v2523
      %v2525 = vpop.f32.mrb[0].mxu0
      %v2526 = vpop.f32.mrb[0].mxu0
      %v2527 = vadd.f32 0.0, %v2526
      %v2528 = vpop.f32.mrb[0].mxu0
      %2529 = vmatprep.mubr.bf16.mxu0 0
      %2530 = vmatmul.mubr.bf16.gmra.mrb[0].mxu0 %v1591
      %v2531 = vpop.f32.mrb[0].mxu0
      %v2532 = vadd.f32 0.0, %v2531
      %v2533 = vpop.f32.mrb[0].mxu0
      %v2534 = vpop.f32.mrb[0].mxu0
      %v2535 = vadd.f32 0.0, %v2534
      %v2536 = vpop.f32.mrb[0].mxu0
      %2537 = vmatprep.mubr.bf16.mxu0 0
      %2538 = vmatmul.mubr.bf16.gmra.mrb[0].mxu0 %v1592
      %v2539 = vpop.f32.mrb[0].mxu0
      %v2540 = vadd.f32 0.0, %v2539
      %v2541 = vpop.f32.mrb[0].mxu0
      %v2542 = vpop.f32.mrb[0].mxu0
      %v2543 = vadd.f32 0.0, %v2542
      %v2544 = vpop.f32.mrb[0].mxu0
      %2545 = vmatprep.mubr.bf16.mxu0 0
      %2546 = vmatmul.mubr.bf16.gmra.mrb[0].mxu0 %v1593
      %v2547 = vpop.f32.mrb[0].mxu0
      %v2548 = vadd.f32 0.0, %v2547
      %v2549 = vpop.f32.mrb[0].mxu0
      %v2550 = vpop.f32.mrb[0].mxu0
      %v2551 = vadd.f32 0.0, %v2550
      %v2552 = vpop.f32.mrb[0].mxu0
      %2553 = vmatprep.mubr.bf16.mxu0 0
      %2554 = vmatmul.mubr.bf16.gmra.mrb[0].mxu0 %v1594
      %v2555 = vpop.f32.mrb[0].mxu0
      %v2556 = vadd.f32 0.0, %v2555
      %v2557 = vpop.f32.mrb[0].mxu0
      %v2558 = vpop.f32.mrb[0].mxu0
      %v2559 = vadd.f32 0.0, %v2558
      %v2560 = vpop.f32.mrb[0].mxu0
      %2561 = vmatprep.mubr.bf16.mxu0 0
      %2562 = vmatmul.mubr.bf16.gmra.mrb[0].mxu0 %v1595
      %v2563 = vpop.f32.mrb[0].mxu0
      %v2564 = vadd.f32 0.0, %v2563
      %v2565 = vpop.f32.mrb[0].mxu0
      %v2566 = vpop.f32.mrb[0].mxu0
      %v2567 = vadd.f32 0.0, %v2566
      %v2568 = vpop.f32.mrb[0].mxu0
      %2569 = vmatprep.mubr.bf16.mxu0 0
      %2570 = vmatmul.mubr.bf16.gmra.mrb[0].mxu0 %v1596
      %v2571 = vpop.f32.mrb[0].mxu0
      %v2572 = vadd.f32 0.0, %v2571
      %v2573 = vpop.f32.mrb[0].mxu0
      %v2574 = vpop.f32.mrb[0].mxu0
      %v2575 = vadd.f32 0.0, %v2574
      %v2576 = vpop.f32.mrb[0].mxu0
      %2577 = vmatprep.mubr.bf16.mxu0 0
      %2578 = vmatmul.mubr.bf16.gmra.mrb[0].mxu0 %v1597
      %v2579 = vpop.f32.mrb[0].mxu0
      %v2580 = vadd.f32 0.0, %v2579
      %v2581 = vpop.f32.mrb[0].mxu0
      %v2582 = vpop.f32.mrb[0].mxu0
      %v2583 = vadd.f32 0.0, %v2582
      %v2584 = vpop.f32.mrb[0].mxu0
      %2585 = vmatprep.mubr.bf16.mxu0 0
      %2586 = vmatmul.mubr.bf16.gmra.mrb[0].mxu0 %v1598
      %v2587 = vpop.f32.mrb[0].mxu0
      %v2588 = vadd.f32 0.0, %v2587
      %v2589 = vpop.f32.mrb[0].mxu0
      %v2590 = vpop.f32.mrb[0].mxu0
      %v2591 = vadd.f32 0.0, %v2590
      %v2592 = vpop.f32.mrb[0].mxu0
      %2593 = vmatprep.mubr.bf16.mxu0 0
      %2594 = vmatmul.mubr.bf16.gmra.mrb[0].mxu0 %v1599
      %v2595 = vpop.f32.mrb[0].mxu0
      %v2596 = vadd.f32 0.0, %v2595
      %v2597 = vpop.f32.mrb[0].mxu0
      %v2598 = vpop.f32.mrb[0].mxu0
      %v2599 = vadd.f32 0.0, %v2598
      %v2600 = vpop.f32.mrb[0].mxu0
      %2601 = vmatprep.mubr.bf16.mxu0 0
      %2602 = vmatmul.mubr.bf16.gmra.mrb[0].mxu0 %v1600
      %v2603 = vpop.f32.mrb[0].mxu0
      %v2604 = vadd.f32 0.0, %v2603
      %v2605 = vpop.f32.mrb[0].mxu0
      %v2606 = vpop.f32.mrb[0].mxu0
      %v2607 = vadd.f32 0.0, %v2606
      %v2608 = vpop.f32.mrb[0].mxu0
      %2609 = vmatprep.mubr.bf16.mxu0 0
      %2610 = vmatmul.mubr.bf16.gmra.mrb[0].mxu0 %v1601
      %v2611 = vpop.f32.mrb[0].mxu0
      %v2612 = vadd.f32 0.0, %v2611
      %v2613 = vpop.f32.mrb[0].mxu0
      %v2614 = vpop.f32.mrb[0].mxu0
      %v2615 = vadd.f32 0.0, %v2614
      %v2616 = vpop.f32.mrb[0].mxu0
      %2617 = vmatprep.mubr.bf16.mxu0 0
      %2618 = vmatmul.mubr.bf16.gmra.mrb[0].mxu0 %v1602
      %v2619 = vpop.f32.mrb[0].mxu0
      %v2620 = vadd.f32 0.0, %v2619
      %v2621 = vpop.f32.mrb[0].mxu0
      %v2622 = vpop.f32.mrb[0].mxu0
      %v2623 = vadd.f32 0.0, %v2622
      %v2624 = vpop.f32.mrb[0].mxu0
      %2625 = vmatprep.mubr.bf16.mxu0 0
      %2626 = vmatmul.mubr.bf16.gmra.mrb[0].mxu0 %v1603
      %v2627 = vpop.f32.mrb[0].mxu0
      %v2628 = vadd.f32 0.0, %v2627
      %v2629 = vpop.f32.mrb[0].mxu0
      %v2630 = vpop.f32.mrb[0].mxu0
      %v2631 = vadd.f32 0.0, %v2630
      %v2632 = vpop.f32.mrb[0].mxu0
      %2633 = vmatprep.mubr.bf16.mxu0 0
      %2634 = vmatmul.mubr.bf16.gmra.mrb[0].mxu0 %v1604
      %v2635 = vpop.f32.mrb[0].mxu0
      %v2636 = vadd.f32 0.0, %v2635
      %v2637 = vpop.f32.mrb[0].mxu0
      %v2638 = vpop.f32.mrb[0].mxu0
      %v2639 = vadd.f32 0.0, %v2638
      %v2640 = vpop.f32.mrb[0].mxu0
      %2641 = vmatprep.mubr.bf16.mxu0 0
      %2642 = vmatmul.mubr.bf16.gmra.mrb[0].mxu0 %v2439
      %v2643 = vpop.f32.mrb[0].mxu0
      %v2644 = vadd.f32 0.0, %v2643
      %v2645 = vpop.f32.mrb[0].mxu0
      %v2646 = vpop.f32.mrb[0].mxu0
      %v2647 = vadd.f32 0.0, %v2646
      %v2648 = vpop.f32.mrb[0].mxu0
      %2649 = vdwg.mxu0
      %v2650 = vadd.f32 %v2380, %v2524
      %v2651 = vadd.f32 %v2381, %v2527
      %v2652 = vadd.f32 %v2382, %v2532
      %v2653 = vadd.f32 %v2383, %v2535
      %v2654 = vadd.f32 %v2384, %v2540
      %v2655 = vadd.f32 %v2385, %v2543
      %v2656 = vadd.f32 %v2386, %v2548
      %v2657 = vadd.f32 %v2387, %v2551
      %v2658 = vadd.f32 %v2388, %v2556
      %v2659 = vadd.f32 %v2389, %v2559
      %v2660 = vadd.f32 %v2390, %v2564
      %v2661 = vadd.f32 %v2391, %v2567
      %v2662 = vadd.f32 %v2392, %v2572
      %v2663 = vadd.f32 %v2393, %v2575
      %v2664 = vadd.f32 %v2394, %v2580
      %v2665 = vadd.f32 %v2395, %v2583
      %v2666 = vadd.f32 %v2396, %v2588
      %v2667 = vadd.f32 %v2397, %v2591
      %v2668 = vadd.f32 %v2398, %v2596
      %v2669 = vadd.f32 %v2399, %v2599
      %v2670 = vadd.f32 %v2400, %v2604
      %v2671 = vadd.f32 %v2401, %v2607
      %v2672 = vadd.f32 %v2402, %v2612
      %v2673 = vadd.f32 %v2403, %v2615
      %v2674 = vadd.f32 %v2404, %v2620
      %v2675 = vadd.f32 %v2405, %v2623
      %v2676 = vadd.f32 %v2406, %v2628
      %v2677 = vadd.f32 %v2407, %v2631
      %v2678 = vadd.f32 %v2408, %v2636
      %v2679 = vadd.f32 %v2409, %v2639
      %v2680 = vadd.f32 %v2410, %v2644
      %v2681 = vadd.f32 %v2411, %v2647
      %s2682 = scalar_lea.vmem %s2, 384
      %v2683 = vld [vmem:[%s2682] sm:$0xf]
      %v2684 = vld [vmem:[%s2682 + $0x4] sm:$0xf]
      %v2685 = vld [vmem:[%s2682 + $0x8] sm:$0xf]
      %v2686 = vld [vmem:[%s2682 + $0xc] sm:$0xf]
      %v2687 = vld [vmem:[%s2682 + $0x10] sm:$0xf]
      %v2688 = vld [vmem:[%s2682 + $0x14] sm:$0xf]
      %v2689 = vld [vmem:[%s2682 + $0x18] sm:$0xf]
      %v2690 = vld [vmem:[%s2682 + $0x1c] sm:$0xf]
      %v2691 = vld [vmem:[%s2682 + $0x20] sm:$0xf]
      %v2692 = vld [vmem:[%s2682 + $0x24] sm:$0xf]
      %v2693 = vld [vmem:[%s2682 + $0x28] sm:$0xf]
      %v2694 = vld [vmem:[%s2682 + $0x2c] sm:$0xf]
      %v2695 = vld [vmem:[%s2682 + $0x30] sm:$0xf]
      %v2696 = vld [vmem:[%s2682 + $0x34] sm:$0xf]
      %v2697 = vld [vmem:[%s2682 + $0x38] sm:$0xf]
      %v2698 = vld [vmem:[%s2682 + $0x3c] sm:$0xf]
      %v2701 = vunpack.c.l.b16 %v408
      %v2702 = vunpack.c.l.b16 %v409
      %v2703 = vpack.c.b16 %v2702, %v2701
      %v2721 = vunpack.c.l.b16 %v2683
      %v2722 = vunpack.c.l.b16 %v2684
      %v2723 = vunpack.c.l.b16 %v2685
      %v2724 = vunpack.c.l.b16 %v2686
      %v2725 = vunpack.c.l.b16 %v2687
      %v2726 = vunpack.c.l.b16 %v2688
      %v2727 = vunpack.c.l.b16 %v2689
      %v2728 = vunpack.c.l.b16 %v2690
      %v2729 = vunpack.c.l.b16 %v2691
      %v2730 = vunpack.c.l.b16 %v2692
      %v2731 = vunpack.c.l.b16 %v2693
      %v2732 = vunpack.c.l.b16 %v2694
      %v2733 = vunpack.c.l.b16 %v2695
      %v2734 = vunpack.c.l.b16 %v2696
      %v2735 = vunpack.c.l.b16 %v2697
      %v2736 = vunpack.c.l.b16 %v2698
      %v2737 = vpack.c.b16 %v2722, %v2721
      %v2738 = vpack.c.b16 %v2724, %v2723
      %v2739 = vpack.c.b16 %v2726, %v2725
      %v2740 = vpack.c.b16 %v2728, %v2727
      %v2741 = vpack.c.b16 %v2730, %v2729
      %v2742 = vpack.c.b16 %v2732, %v2731
      %v2743 = vpack.c.b16 %v2734, %v2733
      %v2744 = vpack.c.b16 %v2736, %v2735
      %2753 = vmatprep.subr.bf16.mxu0 0
      %2754 = vmatpush1.bf16.msra.mxu0 %v2737
      %2755 = vmatprep.subr.bf16.mxu0 0
      %2756 = vmatpush1.bf16.msra.mxu0 %v2738
      %2757 = vmatprep.subr.bf16.mxu0 0
      %2758 = vmatpush1.bf16.msra.mxu0 %v2739
      %2759 = vmatprep.subr.bf16.mxu0 0
      %2760 = vmatpush1.bf16.msra.mxu0 %v2740
      %2761 = vmatprep.subr.bf16.mxu0 0
      %2762 = vmatpush1.bf16.msra.mxu0 %v2741
      %2763 = vmatprep.subr.bf16.mxu0 0
      %2764 = vmatpush1.bf16.msra.mxu0 %v2742
      %2765 = vmatprep.subr.bf16.mxu0 0
      %2766 = vmatpush1.bf16.msra.mxu0 %v2743
      %2767 = vmatprep.subr.bf16.mxu0 0
      %2768 = vmatpush1.bf16.msra.mxu0 %v2744
      %2769 = vmatprep.subr.bf16.mxu0 0
      %2770 = vmatpush1.bf16.msra.mxu0 0
      %2771 = vmatprep.subr.bf16.mxu0 0
      %2772 = vmatpush1.bf16.msra.mxu0 0
      %2773 = vmatprep.subr.bf16.mxu0 0
      %2774 = vmatpush1.bf16.msra.mxu0 0
      %2775 = vmatprep.subr.bf16.mxu0 0
      %2776 = vmatpush1.bf16.msra.mxu0 0
      %2777 = vmatprep.subr.bf16.mxu0 0
      %2778 = vmatpush1.bf16.msra.mxu0 0
      %2779 = vmatprep.subr.bf16.mxu0 0
      %2780 = vmatpush1.bf16.msra.mxu0 0
      %2781 = vmatprep.subr.bf16.mxu0 0
      %2782 = vmatpush1.bf16.msra.mxu0 0
      %2783 = vmatprep.subr.bf16.mxu0 0
      %2784 = vmatpush1.bf16.msra.mxu0 0
      %2785 = vmatprep.mubr.bf16.mxu0 0
      %2786 = vmatmul.mubr.bf16.gmra.mrb[0].mxu0 %v1170
      %v2787 = vpop.f32.mrb[0].mxu0
      %v2788 = vadd.f32 0.0, %v2787
      %v2789 = vpop.f32.mrb[0].mxu0
      %v2790 = vpop.f32.mrb[0].mxu0
      %v2791 = vadd.f32 0.0, %v2790
      %v2792 = vpop.f32.mrb[0].mxu0
      %2793 = vmatprep.mubr.bf16.mxu0 0
      %2794 = vmatmul.mubr.bf16.gmra.mrb[0].mxu0 %v1171
      %v2795 = vpop.f32.mrb[0].mxu0
      %v2796 = vadd.f32 0.0, %v2795
      %v2797 = vpop.f32.mrb[0].mxu0
      %v2798 = vpop.f32.mrb[0].mxu0
      %v2799 = vadd.f32 0.0, %v2798
      %v2800 = vpop.f32.mrb[0].mxu0
      %2801 = vmatprep.mubr.bf16.mxu0 0
      %2802 = vmatmul.mubr.bf16.gmra.mrb[0].mxu0 %v1172
      %v2803 = vpop.f32.mrb[0].mxu0
      %v2804 = vadd.f32 0.0, %v2803
      %v2805 = vpop.f32.mrb[0].mxu0
      %v2806 = vpop.f32.mrb[0].mxu0
      %v2807 = vadd.f32 0.0, %v2806
      %v2808 = vpop.f32.mrb[0].mxu0
      %2809 = vmatprep.mubr.bf16.mxu0 0
      %2810 = vmatmul.mubr.bf16.gmra.mrb[0].mxu0 %v1173
      %v2811 = vpop.f32.mrb[0].mxu0
      %v2812 = vadd.f32 0.0, %v2811
      %v2813 = vpop.f32.mrb[0].mxu0
      %v2814 = vpop.f32.mrb[0].mxu0
      %v2815 = vadd.f32 0.0, %v2814
      %v2816 = vpop.f32.mrb[0].mxu0
      %2817 = vmatprep.mubr.bf16.mxu0 0
      %2818 = vmatmul.mubr.bf16.gmra.mrb[0].mxu0 %v1174
      %v2819 = vpop.f32.mrb[0].mxu0
      %v2820 = vadd.f32 0.0, %v2819
      %v2821 = vpop.f32.mrb[0].mxu0
      %v2822 = vpop.f32.mrb[0].mxu0
      %v2823 = vadd.f32 0.0, %v2822
      %v2824 = vpop.f32.mrb[0].mxu0
      %2825 = vmatprep.mubr.bf16.mxu0 0
      %2826 = vmatmul.mubr.bf16.gmra.mrb[0].mxu0 %v1175
      %v2827 = vpop.f32.mrb[0].mxu0
      %v2828 = vadd.f32 0.0, %v2827
      %v2829 = vpop.f32.mrb[0].mxu0
      %v2830 = vpop.f32.mrb[0].mxu0
      %v2831 = vadd.f32 0.0, %v2830
      %v2832 = vpop.f32.mrb[0].mxu0
      %2833 = vmatprep.mubr.bf16.mxu0 0
      %2834 = vmatmul.mubr.bf16.gmra.mrb[0].mxu0 %v1176
      %v2835 = vpop.f32.mrb[0].mxu0
      %v2836 = vadd.f32 0.0, %v2835
      %v2837 = vpop.f32.mrb[0].mxu0
      %v2838 = vpop.f32.mrb[0].mxu0
      %v2839 = vadd.f32 0.0, %v2838
      %v2840 = vpop.f32.mrb[0].mxu0
      %2841 = vmatprep.mubr.bf16.mxu0 0
      %2842 = vmatmul.mubr.bf16.gmra.mrb[0].mxu0 %v1177
      %v2843 = vpop.f32.mrb[0].mxu0
      %v2844 = vadd.f32 0.0, %v2843
      %v2845 = vpop.f32.mrb[0].mxu0
      %v2846 = vpop.f32.mrb[0].mxu0
      %v2847 = vadd.f32 0.0, %v2846
      %v2848 = vpop.f32.mrb[0].mxu0
      %2849 = vmatprep.mubr.bf16.mxu0 0
      %2850 = vmatmul.mubr.bf16.gmra.mrb[0].mxu0 %v1178
      %v2851 = vpop.f32.mrb[0].mxu0
      %v2852 = vadd.f32 0.0, %v2851
      %v2853 = vpop.f32.mrb[0].mxu0
      %v2854 = vpop.f32.mrb[0].mxu0
      %v2855 = vadd.f32 0.0, %v2854
      %v2856 = vpop.f32.mrb[0].mxu0
      %2857 = vmatprep.mubr.bf16.mxu0 0
      %2858 = vmatmul.mubr.bf16.gmra.mrb[0].mxu0 %v1179
      %v2859 = vpop.f32.mrb[0].mxu0
      %v2860 = vadd.f32 0.0, %v2859
      %v2861 = vpop.f32.mrb[0].mxu0
      %v2862 = vpop.f32.mrb[0].mxu0
      %v2863 = vadd.f32 0.0, %v2862
      %v2864 = vpop.f32.mrb[0].mxu0
      %2865 = vmatprep.mubr.bf16.mxu0 0
      %2866 = vmatmul.mubr.bf16.gmra.mrb[0].mxu0 %v1180
      %v2867 = vpop.f32.mrb[0].mxu0
      %v2868 = vadd.f32 0.0, %v2867
      %v2869 = vpop.f32.mrb[0].mxu0
      %v2870 = vpop.f32.mrb[0].mxu0
      %v2871 = vadd.f32 0.0, %v2870
      %v2872 = vpop.f32.mrb[0].mxu0
      %2873 = vmatprep.mubr.bf16.mxu0 0
      %2874 = vmatmul.mubr.bf16.gmra.mrb[0].mxu0 %v1181
      %v2875 = vpop.f32.mrb[0].mxu0
      %v2876 = vadd.f32 0.0, %v2875
      %v2877 = vpop.f32.mrb[0].mxu0
      %v2878 = vpop.f32.mrb[0].mxu0
      %v2879 = vadd.f32 0.0, %v2878
      %v2880 = vpop.f32.mrb[0].mxu0
      %2881 = vmatprep.mubr.bf16.mxu0 0
      %2882 = vmatmul.mubr.bf16.gmra.mrb[0].mxu0 %v1182
      %v2883 = vpop.f32.mrb[0].mxu0
      %v2884 = vadd.f32 0.0, %v2883
      %v2885 = vpop.f32.mrb[0].mxu0
      %v2886 = vpop.f32.mrb[0].mxu0
      %v2887 = vadd.f32 0.0, %v2886
      %v2888 = vpop.f32.mrb[0].mxu0
      %2889 = vmatprep.mubr.bf16.mxu0 0
      %2890 = vmatmul.mubr.bf16.gmra.mrb[0].mxu0 %v1183
      %v2891 = vpop.f32.mrb[0].mxu0
      %v2892 = vadd.f32 0.0, %v2891
      %v2893 = vpop.f32.mrb[0].mxu0
      %v2894 = vpop.f32.mrb[0].mxu0
      %v2895 = vadd.f32 0.0, %v2894
      %v2896 = vpop.f32.mrb[0].mxu0
      %2897 = vmatprep.mubr.bf16.mxu0 0
      %2898 = vmatmul.mubr.bf16.gmra.mrb[0].mxu0 %v1883
      %v2899 = vpop.f32.mrb[0].mxu0
      %v2900 = vadd.f32 0.0, %v2899
      %v2901 = vpop.f32.mrb[0].mxu0
      %v2902 = vpop.f32.mrb[0].mxu0
      %v2903 = vadd.f32 0.0, %v2902
      %v2904 = vpop.f32.mrb[0].mxu0
      %2905 = vmatprep.mubr.bf16.mxu0 0
      %2906 = vmatmul.mubr.bf16.gmra.mrb[0].mxu0 %v2703
      %v2907 = vpop.f32.mrb[0].mxu0
      %v2908 = vadd.f32 0.0, %v2907
      %v2909 = vpop.f32.mrb[0].mxu0
      %v2910 = vpop.f32.mrb[0].mxu0
      %v2911 = vadd.f32 0.0, %v2910
      %v2912 = vpop.f32.mrb[0].mxu0
      %2913 = vdwg.mxu0
      %v2914 = vadd.f32 %v2650, %v2788
      %v2915 = vadd.f32 %v2651, %v2791
      %v2916 = vadd.f32 %v2652, %v2796
      %v2917 = vadd.f32 %v2653, %v2799
      %v2918 = vadd.f32 %v2654, %v2804
      %v2919 = vadd.f32 %v2655, %v2807
      %v2920 = vadd.f32 %v2656, %v2812
      %v2921 = vadd.f32 %v2657, %v2815
      %v2922 = vadd.f32 %v2658, %v2820
      %v2923 = vadd.f32 %v2659, %v2823
      %v2924 = vadd.f32 %v2660, %v2828
      %v2925 = vadd.f32 %v2661, %v2831
      %v2926 = vadd.f32 %v2662, %v2836
      %v2927 = vadd.f32 %v2663, %v2839
      %v2928 = vadd.f32 %v2664, %v2844
      %v2929 = vadd.f32 %v2665, %v2847
      %v2930 = vadd.f32 %v2666, %v2852
      %v2931 = vadd.f32 %v2667, %v2855
      %v2932 = vadd.f32 %v2668, %v2860
      %v2933 = vadd.f32 %v2669, %v2863
      %v2934 = vadd.f32 %v2670, %v2868
      %v2935 = vadd.f32 %v2671, %v2871
      %v2936 = vadd.f32 %v2672, %v2876
      %v2937 = vadd.f32 %v2673, %v2879
      %v2938 = vadd.f32 %v2674, %v2884
      %v2939 = vadd.f32 %v2675, %v2887
      %v2940 = vadd.f32 %v2676, %v2892
      %v2941 = vadd.f32 %v2677, %v2895
      %v2942 = vadd.f32 %v2678, %v2900
      %v2943 = vadd.f32 %v2679, %v2903
      %v2944 = vadd.f32 %v2680, %v2908
      %v2945 = vadd.f32 %v2681, %v2911
      %v2947 = vshrl.u32 %v408, 16
      %v2949 = vrot.slane %v2947, 4
      %v2950 = vshll.u32 %v408, 16
      %v2952 = vrot.slane %v2950, 5
      %v2953 = vor.u32 %v2949, %v2952
      %v2954 = vrot.slane %v2953, 4
      %v2956 = vshll.u32 %v409, 16
      %v2958 = vrot.slane %v2956, 5
      %v2959 = vsel %vm429, %v2954, %v2958
      %v2960 = vshrl.u32 %v409, 16
      %v2962 = vrot.slane %v2960, 4
      %v2963 = vor.u32 %v2962, %v2958
      %v2964 = vrot.slane %v2963, 4
      %v2966 = vshll.u32 %v410, 16
      %v2968 = vrot.slane %v2966, 5
      %v2969 = vsel %vm429, %v2964, %v2968
      %s2970 = scalar_lea.vmem %s2, 448
      %v2971 = vld [vmem:[%s2970] sm:$0xf]
      %v2972 = vld [vmem:[%s2970 + $0x4] sm:$0xf]
      %v2973 = vld [vmem:[%s2970 + $0x8] sm:$0xf]
      %v2974 = vld [vmem:[%s2970 + $0xc] sm:$0xf]
      %v2975 = vld [vmem:[%s2970 + $0x10] sm:$0xf]
      %v2976 = vld [vmem:[%s2970 + $0x14] sm:$0xf]
      %v2977 = vld [vmem:[%s2970 + $0x18] sm:$0xf]
      %v2978 = vld [vmem:[%s2970 + $0x1c] sm:$0xf]
      %v2979 = vld [vmem:[%s2970 + $0x20] sm:$0xf]
      %v2980 = vld [vmem:[%s2970 + $0x24] sm:$0xf]
      %v2981 = vld [vmem:[%s2970 + $0x28] sm:$0xf]
      %v2982 = vld [vmem:[%s2970 + $0x2c] sm:$0xf]
      %v2983 = vld [vmem:[%s2970 + $0x30] sm:$0xf]
      %v2984 = vld [vmem:[%s2970 + $0x34] sm:$0xf]
      %v2985 = vld [vmem:[%s2970 + $0x38] sm:$0xf]
      %v2986 = vld [vmem:[%s2970 + $0x3c] sm:$0xf]
      %v2987 = vunpack.c.l.b16 %v2959
      %v2988 = vunpack.c.l.b16 %v2969
      %v2989 = vpack.c.b16 %v2988, %v2987
      %v3007 = vunpack.c.l.b16 %v2971
      %v3008 = vunpack.c.l.b16 %v2972
      %v3009 = vunpack.c.l.b16 %v2973
      %v3010 = vunpack.c.l.b16 %v2974
      %v3011 = vunpack.c.l.b16 %v2975
      %v3012 = vunpack.c.l.b16 %v2976
      %v3013 = vunpack.c.l.b16 %v2977
      %v3014 = vunpack.c.l.b16 %v2978
      %v3015 = vunpack.c.l.b16 %v2979
      %v3016 = vunpack.c.l.b16 %v2980
      %v3017 = vunpack.c.l.b16 %v2981
      %v3018 = vunpack.c.l.b16 %v2982
      %v3019 = vunpack.c.l.b16 %v2983
      %v3020 = vunpack.c.l.b16 %v2984
      %v3021 = vunpack.c.l.b16 %v2985
      %v3022 = vunpack.c.l.b16 %v2986
      %v3023 = vpack.c.b16 %v3008, %v3007
      %v3024 = vpack.c.b16 %v3010, %v3009
      %v3025 = vpack.c.b16 %v3012, %v3011
      %v3026 = vpack.c.b16 %v3014, %v3013
      %v3027 = vpack.c.b16 %v3016, %v3015
      %v3028 = vpack.c.b16 %v3018, %v3017
      %v3029 = vpack.c.b16 %v3020, %v3019
      %v3030 = vpack.c.b16 %v3022, %v3021
      %3039 = vmatprep.subr.bf16.mxu0 0
      %3040 = vmatpush1.bf16.msra.mxu0 %v3023
      %3041 = vmatprep.subr.bf16.mxu0 0
      %3042 = vmatpush1.bf16.msra.mxu0 %v3024
      %3043 = vmatprep.subr.bf16.mxu0 0
      %3044 = vmatpush1.bf16.msra.mxu0 %v3025
      %3045 = vmatprep.subr.bf16.mxu0 0
      %3046 = vmatpush1.bf16.msra.mxu0 %v3026
      %3047 = vmatprep.subr.bf16.mxu0 0
      %3048 = vmatpush1.bf16.msra.mxu0 %v3027
      %3049 = vmatprep.subr.bf16.mxu0 0
      %3050 = vmatpush1.bf16.msra.mxu0 %v3028
      %3051 = vmatprep.subr.bf16.mxu0 0
      %3052 = vmatpush1.bf16.msra.mxu0 %v3029
      %3053 = vmatprep.subr.bf16.mxu0 0
      %3054 = vmatpush1.bf16.msra.mxu0 %v3030
      %3055 = vmatprep.subr.bf16.mxu0 0
      %3056 = vmatpush1.bf16.msra.mxu0 0
      %3057 = vmatprep.subr.bf16.mxu0 0
      %3058 = vmatpush1.bf16.msra.mxu0 0
      %3059 = vmatprep.subr.bf16.mxu0 0
      %3060 = vmatpush1.bf16.msra.mxu0 0
      %3061 = vmatprep.subr.bf16.mxu0 0
      %3062 = vmatpush1.bf16.msra.mxu0 0
      %3063 = vmatprep.subr.bf16.mxu0 0
      %3064 = vmatpush1.bf16.msra.mxu0 0
      %3065 = vmatprep.subr.bf16.mxu0 0
      %3066 = vmatpush1.bf16.msra.mxu0 0
      %3067 = vmatprep.subr.bf16.mxu0 0
      %3068 = vmatpush1.bf16.msra.mxu0 0
      %3069 = vmatprep.subr.bf16.mxu0 0
      %3070 = vmatpush1.bf16.msra.mxu0 0
      %3071 = vmatprep.mubr.bf16.mxu0 0
      %3072 = vmatmul.mubr.bf16.gmra.mrb[0].mxu0 %v865
      %v3073 = vpop.f32.mrb[0].mxu0
      %v3074 = vadd.f32 0.0, %v3073
      %v3075 = vpop.f32.mrb[0].mxu0
      %v3076 = vpop.f32.mrb[0].mxu0
      %v3077 = vadd.f32 0.0, %v3076
      %v3078 = vpop.f32.mrb[0].mxu0
      %3079 = vmatprep.mubr.bf16.mxu0 0
      %3080 = vmatmul.mubr.bf16.gmra.mrb[0].mxu0 %v866
      %v3081 = vpop.f32.mrb[0].mxu0
      %v3082 = vadd.f32 0.0, %v3081
      %v3083 = vpop.f32.mrb[0].mxu0
      %v3084 = vpop.f32.mrb[0].mxu0
      %v3085 = vadd.f32 0.0, %v3084
      %v3086 = vpop.f32.mrb[0].mxu0
      %3087 = vmatprep.mubr.bf16.mxu0 0
      %3088 = vmatmul.mubr.bf16.gmra.mrb[0].mxu0 %v867
      %v3089 = vpop.f32.mrb[0].mxu0
      %v3090 = vadd.f32 0.0, %v3089
      %v3091 = vpop.f32.mrb[0].mxu0
      %v3092 = vpop.f32.mrb[0].mxu0
      %v3093 = vadd.f32 0.0, %v3092
      %v3094 = vpop.f32.mrb[0].mxu0
      %3095 = vmatprep.mubr.bf16.mxu0 0
      %3096 = vmatmul.mubr.bf16.gmra.mrb[0].mxu0 %v868
      %v3097 = vpop.f32.mrb[0].mxu0
      %v3098 = vadd.f32 0.0, %v3097
      %v3099 = vpop.f32.mrb[0].mxu0
      %v3100 = vpop.f32.mrb[0].mxu0
      %v3101 = vadd.f32 0.0, %v3100
      %v3102 = vpop.f32.mrb[0].mxu0
      %3103 = vmatprep.mubr.bf16.mxu0 0
      %3104 = vmatmul.mubr.bf16.gmra.mrb[0].mxu0 %v869
      %v3105 = vpop.f32.mrb[0].mxu0
      %v3106 = vadd.f32 0.0, %v3105
      %v3107 = vpop.f32.mrb[0].mxu0
      %v3108 = vpop.f32.mrb[0].mxu0
      %v3109 = vadd.f32 0.0, %v3108
      %v3110 = vpop.f32.mrb[0].mxu0
      %3111 = vmatprep.mubr.bf16.mxu0 0
      %3112 = vmatmul.mubr.bf16.gmra.mrb[0].mxu0 %v870
      %v3113 = vpop.f32.mrb[0].mxu0
      %v3114 = vadd.f32 0.0, %v3113
      %v3115 = vpop.f32.mrb[0].mxu0
      %v3116 = vpop.f32.mrb[0].mxu0
      %v3117 = vadd.f32 0.0, %v3116
      %v3118 = vpop.f32.mrb[0].mxu0
      %3119 = vmatprep.mubr.bf16.mxu0 0
      %3120 = vmatmul.mubr.bf16.gmra.mrb[0].mxu0 %v871
      %v3121 = vpop.f32.mrb[0].mxu0
      %v3122 = vadd.f32 0.0, %v3121
      %v3123 = vpop.f32.mrb[0].mxu0
      %v3124 = vpop.f32.mrb[0].mxu0
      %v3125 = vadd.f32 0.0, %v3124
      %v3126 = vpop.f32.mrb[0].mxu0
      %3127 = vmatprep.mubr.bf16.mxu0 0
      %3128 = vmatmul.mubr.bf16.gmra.mrb[0].mxu0 %v872
      %v3129 = vpop.f32.mrb[0].mxu0
      %v3130 = vadd.f32 0.0, %v3129
      %v3131 = vpop.f32.mrb[0].mxu0
      %v3132 = vpop.f32.mrb[0].mxu0
      %v3133 = vadd.f32 0.0, %v3132
      %v3134 = vpop.f32.mrb[0].mxu0
      %3135 = vmatprep.mubr.bf16.mxu0 0
      %3136 = vmatmul.mubr.bf16.gmra.mrb[0].mxu0 %v873
      %v3137 = vpop.f32.mrb[0].mxu0
      %v3138 = vadd.f32 0.0, %v3137
      %v3139 = vpop.f32.mrb[0].mxu0
      %v3140 = vpop.f32.mrb[0].mxu0
      %v3141 = vadd.f32 0.0, %v3140
      %v3142 = vpop.f32.mrb[0].mxu0
      %3143 = vmatprep.mubr.bf16.mxu0 0
      %3144 = vmatmul.mubr.bf16.gmra.mrb[0].mxu0 %v874
      %v3145 = vpop.f32.mrb[0].mxu0
      %v3146 = vadd.f32 0.0, %v3145
      %v3147 = vpop.f32.mrb[0].mxu0
      %v3148 = vpop.f32.mrb[0].mxu0
      %v3149 = vadd.f32 0.0, %v3148
      %v3150 = vpop.f32.mrb[0].mxu0
      %3151 = vmatprep.mubr.bf16.mxu0 0
      %3152 = vmatmul.mubr.bf16.gmra.mrb[0].mxu0 %v875
      %v3153 = vpop.f32.mrb[0].mxu0
      %v3154 = vadd.f32 0.0, %v3153
      %v3155 = vpop.f32.mrb[0].mxu0
      %v3156 = vpop.f32.mrb[0].mxu0
      %v3157 = vadd.f32 0.0, %v3156
      %v3158 = vpop.f32.mrb[0].mxu0
      %3159 = vmatprep.mubr.bf16.mxu0 0
      %3160 = vmatmul.mubr.bf16.gmra.mrb[0].mxu0 %v876
      %v3161 = vpop.f32.mrb[0].mxu0
      %v3162 = vadd.f32 0.0, %v3161
      %v3163 = vpop.f32.mrb[0].mxu0
      %v3164 = vpop.f32.mrb[0].mxu0
      %v3165 = vadd.f32 0.0, %v3164
      %v3166 = vpop.f32.mrb[0].mxu0
      %3167 = vmatprep.mubr.bf16.mxu0 0
      %3168 = vmatmul.mubr.bf16.gmra.mrb[0].mxu0 %v877
      %v3169 = vpop.f32.mrb[0].mxu0
      %v3170 = vadd.f32 0.0, %v3169
      %v3171 = vpop.f32.mrb[0].mxu0
      %v3172 = vpop.f32.mrb[0].mxu0
      %v3173 = vadd.f32 0.0, %v3172
      %v3174 = vpop.f32.mrb[0].mxu0
      %3175 = vmatprep.mubr.bf16.mxu0 0
      %3176 = vmatmul.mubr.bf16.gmra.mrb[0].mxu0 %v878
      %v3177 = vpop.f32.mrb[0].mxu0
      %v3178 = vadd.f32 0.0, %v3177
      %v3179 = vpop.f32.mrb[0].mxu0
      %v3180 = vpop.f32.mrb[0].mxu0
      %v3181 = vadd.f32 0.0, %v3180
      %v3182 = vpop.f32.mrb[0].mxu0
      %3183 = vmatprep.mubr.bf16.mxu0 0
      %3184 = vmatmul.mubr.bf16.gmra.mrb[0].mxu0 %v2169
      %v3185 = vpop.f32.mrb[0].mxu0
      %v3186 = vadd.f32 0.0, %v3185
      %v3187 = vpop.f32.mrb[0].mxu0
      %v3188 = vpop.f32.mrb[0].mxu0
      %v3189 = vadd.f32 0.0, %v3188
      %v3190 = vpop.f32.mrb[0].mxu0
      %3191 = vmatprep.mubr.bf16.mxu0 0
      %3192 = vmatmul.mubr.bf16.gmra.mrb[0].mxu0 %v2989
      %v3193 = vpop.f32.mrb[0].mxu0
      %v3194 = vadd.f32 0.0, %v3193
      %v3195 = vpop.f32.mrb[0].mxu0
      %v3196 = vpop.f32.mrb[0].mxu0
      %v3197 = vadd.f32 0.0, %v3196
      %v3198 = vpop.f32.mrb[0].mxu0
      %3199 = vdwg.mxu0
      %v3200 = vadd.f32 %v2914, %v3074
      %v3201 = vadd.f32 %v2915, %v3077
      %v3202 = vadd.f32 %v2916, %v3082
      %v3203 = vadd.f32 %v2917, %v3085
      %v3204 = vadd.f32 %v2918, %v3090
      %v3205 = vadd.f32 %v2919, %v3093
      %v3206 = vadd.f32 %v2920, %v3098
      %v3207 = vadd.f32 %v2921, %v3101
      %v3208 = vadd.f32 %v2922, %v3106
      %v3209 = vadd.f32 %v2923, %v3109
      %v3210 = vadd.f32 %v2924, %v3114
      %v3211 = vadd.f32 %v2925, %v3117
      %v3212 = vadd.f32 %v2926, %v3122
      %v3213 = vadd.f32 %v2927, %v3125
      %v3214 = vadd.f32 %v2928, %v3130
      %v3215 = vadd.f32 %v2929, %v3133
      %v3216 = vadd.f32 %v2930, %v3138
      %v3217 = vadd.f32 %v2931, %v3141
      %v3218 = vadd.f32 %v2932, %v3146
      %v3219 = vadd.f32 %v2933, %v3149
      %v3220 = vadd.f32 %v2934, %v3154
      %v3221 = vadd.f32 %v2935, %v3157
      %v3222 = vadd.f32 %v2936, %v3162
      %v3223 = vadd.f32 %v2937, %v3165
      %v3224 = vadd.f32 %v2938, %v3170
      %v3225 = vadd.f32 %v2939, %v3173
      %v3226 = vadd.f32 %v2940, %v3178
      %v3227 = vadd.f32 %v2941, %v3181
      %v3228 = vadd.f32 %v2942, %v3186
      %v3229 = vadd.f32 %v2943, %v3189
      %v3230 = vadd.f32 %v2944, %v3194
      %v3231 = vadd.f32 %v2945, %v3197
      %v3233 = vrot.slane %v408, 5
      %v3234 = vrot.slane %v3233, 4
      %v3235 = vrot.slane %v409, 5
      %v3236 = vsel %vm1427, %v3234, %v3235
      %v3237 = vrot.slane %v3235, 4
      %v3238 = vrot.slane %v410, 5
      %v3239 = vsel %vm1427, %v3237, %v3238
      %s3240 = scalar_lea.vmem %s2, 512
      %v3241 = vld [vmem:[%s3240] sm:$0xf]
      %v3242 = vld [vmem:[%s3240 + $0x4] sm:$0xf]
      %v3243 = vld [vmem:[%s3240 + $0x8] sm:$0xf]
      %v3244 = vld [vmem:[%s3240 + $0xc] sm:$0xf]
      %v3245 = vld [vmem:[%s3240 + $0x10] sm:$0xf]
      %v3246 = vld [vmem:[%s3240 + $0x14] sm:$0xf]
      %v3247 = vld [vmem:[%s3240 + $0x18] sm:$0xf]
      %v3248 = vld [vmem:[%s3240 + $0x1c] sm:$0xf]
      %v3249 = vld [vmem:[%s3240 + $0x20] sm:$0xf]
      %v3250 = vld [vmem:[%s3240 + $0x24] sm:$0xf]
      %v3251 = vld [vmem:[%s3240 + $0x28] sm:$0xf]
      %v3252 = vld [vmem:[%s3240 + $0x2c] sm:$0xf]
      %v3253 = vld [vmem:[%s3240 + $0x30] sm:$0xf]
      %v3254 = vld [vmem:[%s3240 + $0x34] sm:$0xf]
      %v3255 = vld [vmem:[%s3240 + $0x38] sm:$0xf]
      %v3256 = vld [vmem:[%s3240 + $0x3c] sm:$0xf]
      %v3257 = vunpack.c.l.b16 %v3236
      %v3258 = vunpack.c.l.b16 %v3239
      %v3259 = vpack.c.b16 %v3258, %v3257
      %v3277 = vunpack.c.l.b16 %v3241
      %v3278 = vunpack.c.l.b16 %v3242
      %v3279 = vunpack.c.l.b16 %v3243
      %v3280 = vunpack.c.l.b16 %v3244
      %v3281 = vunpack.c.l.b16 %v3245
      %v3282 = vunpack.c.l.b16 %v3246
      %v3283 = vunpack.c.l.b16 %v3247
      %v3284 = vunpack.c.l.b16 %v3248
      %v3285 = vunpack.c.l.b16 %v3249
      %v3286 = vunpack.c.l.b16 %v3250
      %v3287 = vunpack.c.l.b16 %v3251
      %v3288 = vunpack.c.l.b16 %v3252
      %v3289 = vunpack.c.l.b16 %v3253
      %v3290 = vunpack.c.l.b16 %v3254
      %v3291 = vunpack.c.l.b16 %v3255
      %v3292 = vunpack.c.l.b16 %v3256
      %v3293 = vpack.c.b16 %v3278, %v3277
      %v3294 = vpack.c.b16 %v3280, %v3279
      %v3295 = vpack.c.b16 %v3282, %v3281
      %v3296 = vpack.c.b16 %v3284, %v3283
      %v3297 = vpack.c.b16 %v3286, %v3285
      %v3298 = vpack.c.b16 %v3288, %v3287
      %v3299 = vpack.c.b16 %v3290, %v3289
      %v3300 = vpack.c.b16 %v3292, %v3291
      %3309 = vmatprep.subr.bf16.mxu0 0
      %3310 = vmatpush1.bf16.msra.mxu0 %v3293
      %3311 = vmatprep.subr.bf16.mxu0 0
      %3312 = vmatpush1.bf16.msra.mxu0 %v3294
      %3313 = vmatprep.subr.bf16.mxu0 0
      %3314 = vmatpush1.bf16.msra.mxu0 %v3295
      %3315 = vmatprep.subr.bf16.mxu0 0
      %3316 = vmatpush1.bf16.msra.mxu0 %v3296
      %3317 = vmatprep.subr.bf16.mxu0 0
      %3318 = vmatpush1.bf16.msra.mxu0 %v3297
      %3319 = vmatprep.subr.bf16.mxu0 0
      %3320 = vmatpush1.bf16.msra.mxu0 %v3298
      %3321 = vmatprep.subr.bf16.mxu0 0
      %3322 = vmatpush1.bf16.msra.mxu0 %v3299
      %3323 = vmatprep.subr.bf16.mxu0 0
      %3324 = vmatpush1.bf16.msra.mxu0 %v3300
      %3325 = vmatprep.subr.bf16.mxu0 0
      %3326 = vmatpush1.bf16.msra.mxu0 0
      %3327 = vmatprep.subr.bf16.mxu0 0
      %3328 = vmatpush1.bf16.msra.mxu0 0
      %3329 = vmatprep.subr.bf16.mxu0 0
      %3330 = vmatpush1.bf16.msra.mxu0 0
      %3331 = vmatprep.subr.bf16.mxu0 0
      %3332 = vmatpush1.bf16.msra.mxu0 0
      %3333 = vmatprep.subr.bf16.mxu0 0
      %3334 = vmatpush1.bf16.msra.mxu0 0
      %3335 = vmatprep.subr.bf16.mxu0 0
      %3336 = vmatpush1.bf16.msra.mxu0 0
      %3337 = vmatprep.subr.bf16.mxu0 0
      %3338 = vmatpush1.bf16.msra.mxu0 0
      %3339 = vmatprep.subr.bf16.mxu0 0
      %3340 = vmatpush1.bf16.msra.mxu0 0
      %3341 = vmatprep.mubr.bf16.mxu0 0
      %3342 = vmatmul.mubr.bf16.gmra.mrb[0].mxu0 %v1591
      %v3343 = vpop.f32.mrb[0].mxu0
      %v3344 = vadd.f32 0.0, %v3343
      %v3345 = vpop.f32.mrb[0].mxu0
      %v3346 = vpop.f32.mrb[0].mxu0
      %v3347 = vadd.f32 0.0, %v3346
      %v3348 = vpop.f32.mrb[0].mxu0
      %3349 = vmatprep.mubr.bf16.mxu0 0
      %3350 = vmatmul.mubr.bf16.gmra.mrb[0].mxu0 %v1592
      %v3351 = vpop.f32.mrb[0].mxu0
      %v3352 = vadd.f32 0.0, %v3351
      %v3353 = vpop.f32.mrb[0].mxu0
      %v3354 = vpop.f32.mrb[0].mxu0
      %v3355 = vadd.f32 0.0, %v3354
      %v3356 = vpop.f32.mrb[0].mxu0
      %3357 = vmatprep.mubr.bf16.mxu0 0
      %3358 = vmatmul.mubr.bf16.gmra.mrb[0].mxu0 %v1593
      %v3359 = vpop.f32.mrb[0].mxu0
      %v3360 = vadd.f32 0.0, %v3359
      %v3361 = vpop.f32.mrb[0].mxu0
      %v3362 = vpop.f32.mrb[0].mxu0
      %v3363 = vadd.f32 0.0, %v3362
      %v3364 = vpop.f32.mrb[0].mxu0
      %3365 = vmatprep.mubr.bf16.mxu0 0
      %3366 = vmatmul.mubr.bf16.gmra.mrb[0].mxu0 %v1594
      %v3367 = vpop.f32.mrb[0].mxu0
      %v3368 = vadd.f32 0.0, %v3367
      %v3369 = vpop.f32.mrb[0].mxu0
      %v3370 = vpop.f32.mrb[0].mxu0
      %v3371 = vadd.f32 0.0, %v3370
      %v3372 = vpop.f32.mrb[0].mxu0
      %3373 = vmatprep.mubr.bf16.mxu0 0
      %3374 = vmatmul.mubr.bf16.gmra.mrb[0].mxu0 %v1595
      %v3375 = vpop.f32.mrb[0].mxu0
      %v3376 = vadd.f32 0.0, %v3375
      %v3377 = vpop.f32.mrb[0].mxu0
      %v3378 = vpop.f32.mrb[0].mxu0
      %v3379 = vadd.f32 0.0, %v3378
      %v3380 = vpop.f32.mrb[0].mxu0
      %3381 = vmatprep.mubr.bf16.mxu0 0
      %3382 = vmatmul.mubr.bf16.gmra.mrb[0].mxu0 %v1596
      %v3383 = vpop.f32.mrb[0].mxu0
      %v3384 = vadd.f32 0.0, %v3383
      %v3385 = vpop.f32.mrb[0].mxu0
      %v3386 = vpop.f32.mrb[0].mxu0
      %v3387 = vadd.f32 0.0, %v3386
      %v3388 = vpop.f32.mrb[0].mxu0
      %3389 = vmatprep.mubr.bf16.mxu0 0
      %3390 = vmatmul.mubr.bf16.gmra.mrb[0].mxu0 %v1597
      %v3391 = vpop.f32.mrb[0].mxu0
      %v3392 = vadd.f32 0.0, %v3391
      %v3393 = vpop.f32.mrb[0].mxu0
      %v3394 = vpop.f32.mrb[0].mxu0
      %v3395 = vadd.f32 0.0, %v3394
      %v3396 = vpop.f32.mrb[0].mxu0
      %3397 = vmatprep.mubr.bf16.mxu0 0
      %3398 = vmatmul.mubr.bf16.gmra.mrb[0].mxu0 %v1598
      %v3399 = vpop.f32.mrb[0].mxu0
      %v3400 = vadd.f32 0.0, %v3399
      %v3401 = vpop.f32.mrb[0].mxu0
      %v3402 = vpop.f32.mrb[0].mxu0
      %v3403 = vadd.f32 0.0, %v3402
      %v3404 = vpop.f32.mrb[0].mxu0
      %3405 = vmatprep.mubr.bf16.mxu0 0
      %3406 = vmatmul.mubr.bf16.gmra.mrb[0].mxu0 %v1599
      %v3407 = vpop.f32.mrb[0].mxu0
      %v3408 = vadd.f32 0.0, %v3407
      %v3409 = vpop.f32.mrb[0].mxu0
      %v3410 = vpop.f32.mrb[0].mxu0
      %v3411 = vadd.f32 0.0, %v3410
      %v3412 = vpop.f32.mrb[0].mxu0
      %3413 = vmatprep.mubr.bf16.mxu0 0
      %3414 = vmatmul.mubr.bf16.gmra.mrb[0].mxu0 %v1600
      %v3415 = vpop.f32.mrb[0].mxu0
      %v3416 = vadd.f32 0.0, %v3415
      %v3417 = vpop.f32.mrb[0].mxu0
      %v3418 = vpop.f32.mrb[0].mxu0
      %v3419 = vadd.f32 0.0, %v3418
      %v3420 = vpop.f32.mrb[0].mxu0
      %3421 = vmatprep.mubr.bf16.mxu0 0
      %3422 = vmatmul.mubr.bf16.gmra.mrb[0].mxu0 %v1601
      %v3423 = vpop.f32.mrb[0].mxu0
      %v3424 = vadd.f32 0.0, %v3423
      %v3425 = vpop.f32.mrb[0].mxu0
      %v3426 = vpop.f32.mrb[0].mxu0
      %v3427 = vadd.f32 0.0, %v3426
      %v3428 = vpop.f32.mrb[0].mxu0
      %3429 = vmatprep.mubr.bf16.mxu0 0
      %3430 = vmatmul.mubr.bf16.gmra.mrb[0].mxu0 %v1602
      %v3431 = vpop.f32.mrb[0].mxu0
      %v3432 = vadd.f32 0.0, %v3431
      %v3433 = vpop.f32.mrb[0].mxu0
      %v3434 = vpop.f32.mrb[0].mxu0
      %v3435 = vadd.f32 0.0, %v3434
      %v3436 = vpop.f32.mrb[0].mxu0
      %3437 = vmatprep.mubr.bf16.mxu0 0
      %3438 = vmatmul.mubr.bf16.gmra.mrb[0].mxu0 %v1603
      %v3439 = vpop.f32.mrb[0].mxu0
      %v3440 = vadd.f32 0.0, %v3439
      %v3441 = vpop.f32.mrb[0].mxu0
      %v3442 = vpop.f32.mrb[0].mxu0
      %v3443 = vadd.f32 0.0, %v3442
      %v3444 = vpop.f32.mrb[0].mxu0
      %3445 = vmatprep.mubr.bf16.mxu0 0
      %3446 = vmatmul.mubr.bf16.gmra.mrb[0].mxu0 %v1604
      %v3447 = vpop.f32.mrb[0].mxu0
      %v3448 = vadd.f32 0.0, %v3447
      %v3449 = vpop.f32.mrb[0].mxu0
      %v3450 = vpop.f32.mrb[0].mxu0
      %v3451 = vadd.f32 0.0, %v3450
      %v3452 = vpop.f32.mrb[0].mxu0
      %3453 = vmatprep.mubr.bf16.mxu0 0
      %3454 = vmatmul.mubr.bf16.gmra.mrb[0].mxu0 %v2439
      %v3455 = vpop.f32.mrb[0].mxu0
      %v3456 = vadd.f32 0.0, %v3455
      %v3457 = vpop.f32.mrb[0].mxu0
      %v3458 = vpop.f32.mrb[0].mxu0
      %v3459 = vadd.f32 0.0, %v3458
      %v3460 = vpop.f32.mrb[0].mxu0
      %3461 = vmatprep.mubr.bf16.mxu0 0
      %3462 = vmatmul.mubr.bf16.gmra.mrb[0].mxu0 %v3259
      %v3463 = vpop.f32.mrb[0].mxu0
      %v3464 = vadd.f32 0.0, %v3463
      %v3465 = vpop.f32.mrb[0].mxu0
      %v3466 = vpop.f32.mrb[0].mxu0
      %v3467 = vadd.f32 0.0, %v3466
      %v3468 = vpop.f32.mrb[0].mxu0
      %3469 = vdwg.mxu0
      %v3470 = vadd.f32 %v3200, %v3344
      %v3471 = vadd.f32 %v3201, %v3347
      %v3472 = vadd.f32 %v3202, %v3352
      %v3473 = vadd.f32 %v3203, %v3355
      %v3474 = vadd.f32 %v3204, %v3360
      %v3475 = vadd.f32 %v3205, %v3363
      %v3476 = vadd.f32 %v3206, %v3368
      %v3477 = vadd.f32 %v3207, %v3371
      %v3478 = vadd.f32 %v3208, %v3376
      %v3479 = vadd.f32 %v3209, %v3379
      %v3480 = vadd.f32 %v3210, %v3384
      %v3481 = vadd.f32 %v3211, %v3387
      %v3482 = vadd.f32 %v3212, %v3392
      %v3483 = vadd.f32 %v3213, %v3395
      %v3484 = vadd.f32 %v3214, %v3400
      %v3485 = vadd.f32 %v3215, %v3403
      %v3486 = vadd.f32 %v3216, %v3408
      %v3487 = vadd.f32 %v3217, %v3411
      %v3488 = vadd.f32 %v3218, %v3416
      %v3489 = vadd.f32 %v3219, %v3419
      %v3490 = vadd.f32 %v3220, %v3424
      %v3491 = vadd.f32 %v3221, %v3427
      %v3492 = vadd.f32 %v3222, %v3432
      %v3493 = vadd.f32 %v3223, %v3435
      %v3494 = vadd.f32 %v3224, %v3440
      %v3495 = vadd.f32 %v3225, %v3443
      %v3496 = vadd.f32 %v3226, %v3448
      %v3497 = vadd.f32 %v3227, %v3451
      %v3498 = vadd.f32 %v3228, %v3456
      %v3499 = vadd.f32 %v3229, %v3459
      %v3500 = vadd.f32 %v3230, %v3464
      %v3501 = vadd.f32 %v3231, %v3467
      %v3502 = vld [vmem:[%s3] sm:$0x1]
      %v3504 = vlaneseq
      %v3505 = vshrl.u32 %v3504, 7
      %v3506 = vsub.s32 0, %v3505
      %v3507 = vrot.slane %v3502, %v3506
      %v3509 = vadd.f32 %v3470, %v3507
      %v3510 = vadd.f32 %v3471, %v3507
      %v3511 = vadd.f32 %v3472, %v3507
      %v3512 = vadd.f32 %v3473, %v3507
      %v3513 = vadd.f32 %v3474, %v3507
      %v3514 = vadd.f32 %v3475, %v3507
      %v3515 = vadd.f32 %v3476, %v3507
      %v3516 = vadd.f32 %v3477, %v3507
      %v3517 = vadd.f32 %v3478, %v3507
      %v3518 = vadd.f32 %v3479, %v3507
      %v3519 = vadd.f32 %v3480, %v3507
      %v3520 = vadd.f32 %v3481, %v3507
      %v3521 = vadd.f32 %v3482, %v3507
      %v3522 = vadd.f32 %v3483, %v3507
      %v3523 = vadd.f32 %v3484, %v3507
      %v3524 = vadd.f32 %v3485, %v3507
      %v3525 = vadd.f32 %v3486, %v3507
      %v3526 = vadd.f32 %v3487, %v3507
      %v3527 = vadd.f32 %v3488, %v3507
      %v3528 = vadd.f32 %v3489, %v3507
      %v3529 = vadd.f32 %v3490, %v3507
      %v3530 = vadd.f32 %v3491, %v3507
      %v3531 = vadd.f32 %v3492, %v3507
      %v3532 = vadd.f32 %v3493, %v3507
      %v3533 = vadd.f32 %v3494, %v3507
      %v3534 = vadd.f32 %v3495, %v3507
      %v3535 = vadd.f32 %v3496, %v3507
      %v3536 = vadd.f32 %v3497, %v3507
      %v3537 = vadd.f32 %v3498, %v3507
      %v3538 = vadd.f32 %v3499, %v3507
      %v3539 = vadd.f32 %v3500, %v3507
      %v3540 = vadd.f32 %v3501, %v3507
      %p3541 = scmp.eq.s32.totalorder %s22, 0
      // Predicated region
      $region37: #{residual_group_forward.8} parent=35 // pred_check
        %p3542 = pneg %p3541
      $region38: #{residual_group_forward.8} parent=35 // pred_check_branch
        %3544 = sbr.rel (%p3542) target = $region40
      $region39: #{residual_group_forward.8} parent=35 // pred_region
        %3545 = vst [vmem:[%s355] sm:$0x1] 0.0
      $region40: #{residual_group_forward.8} parent=35 // pred_fallthru
        _
      %v3546 = vld [vmem:[%s355] sm:$0x1]
      %v3547 = vadd.f32 %v3509, %v3510
      %v3548 = vadd.f32 %v3547, %v3511
      %v3549 = vadd.f32 %v3548, %v3512
      %v3550 = vadd.f32 %v3549, %v3513
      %v3551 = vadd.f32 %v3550, %v3514
      %v3552 = vadd.f32 %v3551, %v3515
      %v3553 = vadd.f32 %v3552, %v3516
      %v3554 = vadd.f32 %v3553, %v3517
      %v3555 = vadd.f32 %v3554, %v3518
      %v3556 = vadd.f32 %v3555, %v3519
      %v3557 = vadd.f32 %v3556, %v3520
      %v3558 = vadd.f32 %v3557, %v3521
      %v3559 = vadd.f32 %v3558, %v3522
      %v3560 = vadd.f32 %v3559, %v3523
      %v3561 = vadd.f32 %v3560, %v3524
      %v3562 = vadd.f32 %v3561, %v3525
      %v3563 = vadd.f32 %v3562, %v3526
      %v3564 = vadd.f32 %v3563, %v3527
      %v3565 = vadd.f32 %v3564, %v3528
      %v3566 = vadd.f32 %v3565, %v3529
      %v3567 = vadd.f32 %v3566, %v3530
      %v3568 = vadd.f32 %v3567, %v3531
      %v3569 = vadd.f32 %v3568, %v3532
      %v3570 = vadd.f32 %v3569, %v3533
      %v3571 = vadd.f32 %v3570, %v3534
      %v3572 = vadd.f32 %v3571, %v3535
      %v3573 = vadd.f32 %v3572, %v3536
      %v3574 = vadd.f32 %v3573, %v3537
      %v3575 = vadd.f32 %v3574, %v3538
      %v3576 = vadd.f32 %v3575, %v3539
      %v3577 = vadd.f32 %v3576, %v3540
      %v3578 = vrot.slane %v3577, 4
      %v3579 = vadd.f32 %v3577, %v3578
      %v3580 = vrot.slane %v3579, 2
      %v3581 = vadd.f32 %v3579, %v3580
      %v3582 = vrot.slane %v3581, 1
      %v3583 = vadd.f32 %v3581, %v3582
      %v3584 = vadd.f32 %v3546, %v3583
      %3585 = vst [vmem:[%s355] sm:$0x1] %v3584
      %3586 = vst [vmem:[%s351] sm:$0xff] %v3509
      %3587 = vst [vmem:[%s351 + $0x8] sm:$0xff] %v3510
      %3588 = vst [vmem:[%s351 + $0x10] sm:$0xff] %v3511
      %3589 = vst [vmem:[%s351 + $0x18] sm:$0xff] %v3512
      %3590 = vst [vmem:[%s351 + $0x20] sm:$0xff] %v3513
      %3591 = vst [vmem:[%s351 + $0x28] sm:$0xff] %v3514
      %3592 = vst [vmem:[%s351 + $0x30] sm:$0xff] %v3515
      %3593 = vst [vmem:[%s351 + $0x38] sm:$0xff] %v3516
      %3594 = vst [vmem:[%s351 + $0x40] sm:$0xff] %v3517
      %3595 = vst [vmem:[%s351 + $0x48] sm:$0xff] %v3518
      %3596 = vst [vmem:[%s351 + $0x50] sm:$0xff] %v3519
      %3597 = vst [vmem:[%s351 + $0x58] sm:$0xff] %v3520
      %3598 = vst [vmem:[%s351 + $0x60] sm:$0xff] %v3521
      %3599 = vst [vmem:[%s351 + $0x68] sm:$0xff] %v3522
      %3600 = vst [vmem:[%s351 + $0x70] sm:$0xff] %v3523
      %3601 = vst [vmem:[%s351 + $0x78] sm:$0xff] %v3524
      %3602 = vst [vmem:[%s351 + $0x80] sm:$0xff] %v3525
      %3603 = vst [vmem:[%s351 + $0x88] sm:$0xff] %v3526
      %3604 = vst [vmem:[%s351 + $0x90] sm:$0xff] %v3527
      %3605 = vst [vmem:[%s351 + $0x98] sm:$0xff] %v3528
      %3606 = vst [vmem:[%s351 + $0xa0] sm:$0xff] %v3529
      %3607 = vst [vmem:[%s351 + $0xa8] sm:$0xff] %v3530
      %3608 = vst [vmem:[%s351 + $0xb0] sm:$0xff] %v3531
      %3609 = vst [vmem:[%s351 + $0xb8] sm:$0xff] %v3532
      %3610 = vst [vmem:[%s351 + $0xc0] sm:$0xff] %v3533
      %3611 = vst [vmem:[%s351 + $0xc8] sm:$0xff] %v3534
      %3612 = vst [vmem:[%s351 + $0xd0] sm:$0xff] %v3535
      %3613 = vst [vmem:[%s351 + $0xd8] sm:$0xff] %v3536
      %3614 = vst [vmem:[%s351 + $0xe0] sm:$0xff] %v3537
      %3615 = vst [vmem:[%s351 + $0xe8] sm:$0xff] %v3538
      %3616 = vst [vmem:[%s351 + $0xf0] sm:$0xff] %v3539
      %3617 = vst [vmem:[%s351 + $0xf8] sm:$0xff] %v3540
      %s3618 = smul.u32 16, %s22
      %p3619 = scmp.lt.s32.totalorder %s21, 1
      %s3620 = scalar_select %p3619, %s21, 1
      %p3621 = scmp.lt.s32.totalorder %s3618, 15
      %s3622 = scalar_select %p3621, %s3618, 15
      %s3623 = smul.addr %s3622, 2
      %s3624 = smul.addr %s3620, 32
      %s3625 = sadd.s32 %s3623, %s3624
      %s3626 = smul.addr %s3625, 8
      %s3627 = scalar_lea.vmem %s4, %s3626
      %p3628 = scmp.lt.s32.totalorder %s21, 1
      %s3629 = scalar_select %p3628, %s21, 1
      %s3630 = scalar_lea.vmem %s5, %s3629
      // Predicated region
      $region41: #{residual_group_forward.8} parent=35 // pred_check
        %p3631 = pneg %p151
      $region42: #{residual_group_forward.8} parent=35 // pred_check_branch
        %3633 = sbr.rel (%p3631) target = $region44
      $region43: #{residual_group_forward.8} parent=35 // pred_region
        %s3634 = smul.u32 16, %s22
      $region44: #{residual_group_forward.8} parent=35 // pred_fallthru
        _
      // Predicated region
      $region45: #{residual_group_forward.8} parent=35 // pred_check
        %p3635 = pneg %p177
      $region46: #{residual_group_forward.8} parent=35 // pred_check_branch
        %3637 = sbr.rel (%p3635) target = $region48
      $region47: #{residual_group_forward.8} parent=35 // pred_region
        _
      $region48: #{residual_group_forward.8} parent=35 // pred_fallthru
        _
    $region36: #{residual_group_forward.8} parent=5 // pred_fallthru
      _
    %p3638 = scmp.le.s32.totalorder 2, %s12
    // Predicated region
    $region49: #{residual_group_forward.8} parent=5 // pred_check
      %p3639 = pneg %p3638
    $region50: #{residual_group_forward.8} parent=5 // pred_check_branch
      %3641 = sbr.rel (%p3639) target = $region52
    $region51: #{residual_group_forward.8} parent=5 // pred_region
      %s3642 = ssub.s32 %s12, 2
      // Predicated region
      $region53: #{residual_group_forward.8} parent=51 // pred_check
        %p3643 = pneg %p157
      $region54: #{residual_group_forward.8} parent=51 // pred_check_branch
        %3645 = sbr.rel (%p3643) target = $region56
      $region55: #{residual_group_forward.8} parent=51 // pred_region
        %s3646 = smul.u32 16, %s24
        %p3647 = scmp.lt.s32.totalorder %s23, 1
        %s3648 = scalar_select %p3647, %s23, 1
        %p3649 = scmp.lt.s32.totalorder %s3646, 15
        %s3650 = scalar_select %p3649, %s3646, 15
        %s3651 = smul.addr %s3650, 2
        %s3652 = smul.addr %s3648, 32
        %s3653 = sadd.s32 %s3651, %s3652
        %s3654 = smul.addr %s3653, 8
        %s3655 = scalar_lea.vmem %s4, %s3654
      $region56: #{residual_group_forward.8} parent=51 // pred_fallthru
        _
      // Predicated region
      $region57: #{residual_group_forward.8} parent=51 // pred_check
        %p3656 = pneg %p183
      $region58: #{residual_group_forward.8} parent=51 // pred_check_branch
        %3658 = sbr.rel (%p3656) target = $region60
      $region59: #{residual_group_forward.8} parent=51 // pred_region
        %p3659 = scmp.lt.s32.totalorder %s23, 1
        %s3660 = scalar_select %p3659, %s23, 1
        %s3661 = scalar_lea.vmem %s5, %s3660
      $region60: #{residual_group_forward.8} parent=51 // pred_fallthru
        _
    $region52: #{residual_group_forward.8} parent=5 // pred_fallthru
      _
  $region6: #{residual_group_forward.8} parent=0 // loop_footer
    %s16 = sadd.s32 1, %s12
  $region7: #{residual_group_forward.8} parent=0 // loop_footer_branch
    %11 = sbr.rel target = $region3
  $region8: #{residual_group_forward.8} parent=0 // loop_exit
    _

</llo_original>
